<compile_context>
chip_gen: v7x
topology: tpu7x:2x2x1
jax: 0.10.0
libtpu: 0.0.40
codegen_flags: <defaults>
</compile_context>

<pallas_src>
import functools

import jax
import jax.numpy as jnp
from jax import lax
from jax.experimental import pallas as pl
from jax.experimental.pallas import tpu as pltpu


def _vmem_limit_bytes():
    # ~96 MiB on 128-MiB parts (v5e/v6e); 32 MiB on 64-MiB parts (v7x); safe default 32 MiB.
    try:
        cap = getattr(pltpu.get_tpu_info(), "vmem_capacity_bytes", None)
        if cap is not None and cap >= 100 * 1024 * 1024:
            return 96 * 1024 * 1024
    except Exception:
        pass
    return 32 * 1024 * 1024


_VMEM_LIMIT = _vmem_limit_bytes()


def _cparams(*semantics):
    return pltpu.CompilerParams(dimension_semantics=semantics,
                                vmem_limit_bytes=_VMEM_LIMIT)


def _pick_tile(total, target):
    """Largest multiple-of-8 divisor of `total` that is <= target, else `total`."""
    # TODO(synk): for totals with no multiple-of-8 divisor (e.g. 1369), pad the
    # token axis to a tile multiple and mask instead of one unpipelined block.
    if total <= target:
        return total
    start = target - (target % 8)
    for cand in range(start, 7, -8):
        if total % cand == 0:
            return cand
    return total


def _pick_strip(H, W, C, elem_bytes, budget=4 * 1024 * 1024):
    """Row-strip height for the offset/lepe kernel so one input block <= budget."""
    if H % 8 != 0:
        return H
    divs = [d for d in range(8, H + 1, 8) if H % d == 0]
    fits = [d for d in divs if (d + 8) * (W + 8) * C * elem_bytes <= budget]
    return max(fits) if fits else min(divs)


def _erf(x):
    # Abramowitz & Stegun 7.1.26 (max abs err ~1.5e-7): exact-GELU semantics of
    # nn.GELU() without relying on an erf lowering inside Mosaic.
    a1, a2, a3, a4, a5 = 0.254829592, -0.284496736, 1.421413741, -1.453152027, 1.061405429
    z = jnp.abs(x)
    t = pl.reciprocal(1.0 + 0.3275911 * z, approx=True)   # divide on the EUP, not the VALU
    poly = ((((a5 * t + a4) * t + a3) * t + a2) * t + a1) * t
    y = 1.0 - poly * jnp.exp(-z * z)
    return jnp.where(x < 0.0, -y, y)


def _gelu(x):
    return 0.5 * x * (1.0 + _erf(x * 0.7071067811865476))


# ----------------------------- Pallas kernels ------------------------------ #

def _mm_bias_act_kernel(x_ref, w_ref, b_ref, o_ref, *, act):
    x = x_ref[...].astype(jnp.bfloat16)
    w = w_ref[...].astype(jnp.bfloat16)
    y = jnp.dot(x, w, preferred_element_type=jnp.float32)
    y = y + b_ref[...].astype(jnp.float32)
    if act == "silu":
        y = y * jax.nn.sigmoid(y)
    o_ref[...] = y.astype(o_ref.dtype)


def matmul_bias_act(x, w, b, act="none", out_dtype=None, tile=1024):
    T, K = x.shape
    N = w.shape[1]
    out_dtype = out_dtype or x.dtype
    tm = _pick_tile(T, tile)
    return pl.pallas_call(
        functools.partial(_mm_bias_act_kernel, act=act),
        out_shape=jax.ShapeDtypeStruct((T, N), out_dtype),
        grid=(T // tm,),
        in_specs=[pl.BlockSpec((tm, K), lambda i: (i, 0)),
                  pl.BlockSpec((K, N), lambda i: (0, 0)),
                  pl.BlockSpec((1, N), lambda i: (0, 0))],
        out_specs=pl.BlockSpec((tm, N), lambda i: (i, 0)),
        compiler_params=_cparams("parallel"),
        cost_estimate=pl.CostEstimate(
            flops=2 * T * K * N,
            transcendentals=(T * N if act == "silu" else 0),
            bytes_accessed=(x.dtype.itemsize * T * K + w.dtype.itemsize * K * N
                            + jnp.dtype(out_dtype).itemsize * T * N)),
    )(x, w, b.reshape(1, N))


def _offset_lepe_kernel(xp_ref, w9_ref, b9_ref, w3_ref, b3_ref, g_ref, be_ref,
                        wofft_ref, offy_ref, offx_ref, lepe_ref, *, strip, W, eps):
    # One (batch, row-strip) program: 9x9 depthwise conv -> LayerNorm(C) -> GELU
    # -> C->2 offset projection, plus the 3x3 depthwise dwc-PE conv (lepe), on a
    # pad-4 q strip read once.  The 81-tap loop is a fori_loop over dy (dx
    # unrolled) so live ranges stay bounded.
    C = w9_ref.shape[-1]

    def body9(dy, acc):
        for dx in range(9):
            w = w9_ref[pl.ds(dy * 9 + dx, 1), :]                       # (1, C)
            acc = acc + xp_ref[pl.ds(dy, strip), pl.ds(dx, W), :] * w
        return acc

    acc9 = lax.fori_loop(0, 9, body9, jnp.zeros((strip, W, C), jnp.float32))
    acc9 = acc9 + b9_ref[...]

    acc3 = jnp.zeros((strip, W, C), jnp.float32)
    for ky in range(3):
        for kx in range(3):
            t = ky * 3 + kx
            acc3 = acc3 + (xp_ref[ky + 3:ky + 3 + strip, kx + 3:kx + 3 + W, :]
                           * w3_ref[t:t + 1, :])
    lepe_ref[...] = (acc3 + b3_ref[...]).astype(lepe_ref.dtype)

    mu = jnp.mean(acc9, axis=-1, keepdims=True)
    xc = acc9 - mu
    var = jnp.mean(xc * xc, axis=-1, keepdims=True)
    y = xc * lax.rsqrt(var + eps)
    y = y * g_ref[...] + be_ref[...]
    y = _gelu(y)

    # C->2 projection as two lane reductions; offsets stored as two lane-dense planes.
    wofft = wofft_ref[...]                                             # (2, C)
    offy_ref[...] = jnp.sum(y * wofft[0:1, :], axis=-1).astype(offy_ref.dtype)
    offx_ref[...] = jnp.sum(y * wofft[1:2, :], axis=-1).astype(offx_ref.dtype)


def offset_lepe(q_img, p):
    B, H, W, C = q_img.shape
    strip = _pick_strip(H, W, C, q_img.dtype.itemsize)
    S = H // strip
    qp = jnp.pad(q_img, ((0, 0), (4, 4), (4, 4), (0, 0)))
    Hp, Wp = strip + 8, W + 8
    if S == 1:
        strips = qp.reshape(B, Hp, Wp, C)
    else:
        # overlapping row strips with an 8-row halo (bounds VMEM per program).
        strips = jnp.stack([qp[:, s * strip:s * strip + strip + 8] for s in range(S)],
                           axis=1).reshape(B * S, Hp, Wp, C)
    return pl.pallas_call(
        functools.partial(_offset_lepe_kernel, strip=strip, W=W, eps=1e-5),
        out_shape=(jax.ShapeDtypeStruct((B, H, W), jnp.float32),
                   jax.ShapeDtypeStruct((B, H, W), jnp.float32),
                   jax.ShapeDtypeStruct((B, H, W, C), jnp.bfloat16)),
        grid=(B, S),
        in_specs=[pl.BlockSpec((None, Hp, Wp, C), lambda b, s: (b * S + s, 0, 0, 0)),
                  pl.BlockSpec((81, C), lambda b, s: (0, 0)),
                  pl.BlockSpec((1, C), lambda b, s: (0, 0)),
                  pl.BlockSpec((9, C), lambda b, s: (0, 0)),
                  pl.BlockSpec((1, C), lambda b, s: (0, 0)),
                  pl.BlockSpec((1, C), lambda b, s: (0, 0)),
                  pl.BlockSpec((1, C), lambda b, s: (0, 0)),
                  pl.BlockSpec((2, C), lambda b, s: (0, 0))],
        out_specs=(pl.BlockSpec((None, strip, W), lambda b, s: (b, s, 0)),
                   pl.BlockSpec((None, strip, W), lambda b, s: (b, s, 0)),
                   pl.BlockSpec((None, strip, W, C), lambda b, s: (b, s, 0, 0))),
        compiler_params=_cparams("parallel", "parallel"),
    )(strips, p["dw9_w"], p["dw9_b"].reshape(1, C), p["dw3_w"], p["dw3_b"].reshape(1, C),
      p["ln_g"].reshape(1, C), p["ln_b"].reshape(1, C), p["wofft"])


def _sample_kv_kernel(x_ref, idx_ref, w_ref, wkv_ref, bkv_ref, kv_ref):
    # 4-tap bilinear gather (grid_sample, align_corners=True, zeros pad) fused
    # with the concatenated K|V projection; the source image stays resident,
    # indices / weights / kv stream in token tiles.
    x = x_ref[...]                                  # (M, C) f32
    idx = idx_ref[...]                              # (TMs, 4) int32 (pre-clipped)
    wts = w_ref[...]                                # (TMs, 4) f32
    TMs, C = idx.shape[0], x.shape[-1]
    xs = jnp.zeros((TMs, C), jnp.float32)
    for t in range(4):
        it = jnp.broadcast_to(idx[:, t:t + 1], (TMs, C))
        g = jnp.take_along_axis(x, it, axis=0, mode="promise_in_bounds")
        xs = xs + wts[:, t:t + 1] * g
    kv = jnp.dot(xs.astype(jnp.bfloat16), wkv_ref[...],
                 preferred_element_type=jnp.float32) + bkv_ref[...]
    kv_ref[...] = kv.astype(kv_ref.dtype)


def sample_kv(x_t, idx4, w4, wkv, bkv, tile=512):
    B, M, C = x_t.shape
    N2 = wkv.shape[1]
    tms = _pick_tile(M, tile)
    return pl.pallas_call(
        _sample_kv_kernel,
        out_shape=jax.ShapeDtypeStruct((B, M, N2), jnp.bfloat16),
        grid=(B, M // tms),
        in_specs=[pl.BlockSpec((None, M, C), lambda b, i: (b, 0, 0)),
                  pl.BlockSpec((None, tms, 4), lambda b, i: (b, i, 0)),
                  pl.BlockSpec((None, tms, 4), lambda b, i: (b, i, 0)),
                  pl.BlockSpec((C, N2), lambda b, i: (0, 0)),
                  pl.BlockSpec((1, N2), lambda b, i: (0, 0))],
        out_specs=pl.BlockSpec((None, tms, N2), lambda b, i: (b, i, 0)),
        compiler_params=_cparams("parallel", "parallel"),
        cost_estimate=pl.CostEstimate(
            flops=2 * B * M * C * N2 + 8 * B * M * C,
            transcendentals=0,
            bytes_accessed=4 * B * M * C + 2 * C * N2 + 2 * B * M * N2 + 32 * B * M),
    )(x_t, idx4, w4, wkv, bkv.reshape(1, N2))


def _attn_fused_kernel(q_ref, kv_ref, lepe_ref, x_ref, wo_ref, bo_ref,
                       w1_ref, b1_ref, w2_ref, b2_ref, o_ref,
                       m_sc, l_sc, acc_sc, *, heads, d):
    # Flash-style online softmax over KV tiles (8 heads looped over channel
    # slices), with the whole PSABlock epilogue (lepe residual, proj_out,
    # shortcut #1, FFN with folded BN + SiLU, shortcut #2) fused into finalize.
    kv_i = pl.program_id(2)

    @pl.when(kv_i == 0)
    def _init():
        m_sc[...] = jnp.full_like(m_sc, -jnp.inf)
        l_sc[...] = jnp.zeros_like(l_sc)
        acc_sc[...] = jnp.zeros_like(acc_sc)

    q = q_ref[0].astype(jnp.bfloat16)            # (TM, C); attention scale folded into K
    kv = kv_ref[0]                               # (TN, 2C) bf16
    C = heads * d
    for h in range(heads):
        qh = q[:, h * d:(h + 1) * d]
        kh = kv[:, h * d:(h + 1) * d]
        vh = kv[:, C + h * d:C + (h + 1) * d]
        s = lax.dot_general(qh, kh, (((1,), (1,)), ((), ())),
                            preferred_element_type=jnp.float32)        # (TM, TN)
        m_prev = m_sc[:, h:h + 1]
        m_new = jnp.maximum(m_prev, jnp.max(s, axis=-1, keepdims=True))
        alpha = jnp.exp(m_prev - m_new)
        pr = jnp.exp(s - m_new)
        l_sc[:, h:h + 1] = alpha * l_sc[:, h:h + 1] + jnp.sum(pr, axis=-1, keepdims=True)
        acc_sc[:, h * d:(h + 1) * d] = (
            alpha * acc_sc[:, h * d:(h + 1) * d]
            + jnp.dot(pr.astype(jnp.bfloat16), vh, preferred_element_type=jnp.float32))
        m_sc[:, h:h + 1] = m_new

    @pl.when(kv_i == pl.num_programs(2) - 1)
    def _finalize():
        # Normalize each head slab in place (no lane-axis concatenate epilogue).
        for h in range(heads):
            inv = pl.reciprocal(l_sc[:, h:h + 1], approx=True)
            acc_sc[:, h * d:(h + 1) * d] = acc_sc[:, h * d:(h + 1) * d] * inv
        a = acc_sc[...] + lepe_ref[0].astype(jnp.float32)               # + dwc-PE residual
        y = jnp.dot(a.astype(jnp.bfloat16), wo_ref[...],
                    preferred_element_type=jnp.float32) + bo_ref[...].astype(jnp.float32)
        x1 = x_ref[0].astype(jnp.float32) + y                           # shortcut #1
        h1 = jnp.dot(x1.astype(jnp.bfloat16), w1_ref[...],
                     preferred_element_type=jnp.float32) + b1_ref[...].astype(jnp.float32)
        h1 = h1 * jax.nn.sigmoid(h1)                                    # SiLU (BN folded)
        y2 = jnp.dot(h1.astype(jnp.bfloat16), w2_ref[...],
                     preferred_element_type=jnp.float32) + b2_ref[...].astype(jnp.float32)
        o_ref[0] = (x1 + y2).astype(o_ref.dtype)                        # shortcut #2


def attention_fused(q3, kv3, lepe3, x3, p, heads):
    B, M, C = q3.shape
    N = kv3.shape[1]
    d = C // heads
    C2 = p["w1_eff"].shape[1]
    TM = _pick_tile(M, 512)
    TN = _pick_tile(N, 512)
    bytes_est = (4 * B * M * C                       # q (f32), resident per q tile
                 + 2 * (M // TM) * B * N * 2 * C     # kv re-streamed per q tile (bf16)
                 + 2 * B * M * C + 4 * B * M * C     # lepe (bf16) + x (f32)
                 + 4 * B * M * C                     # output
                 + 2 * 5 * C * C)                    # wo + w1 + w2 (bf16)
    return pl.pallas_call(
        functools.partial(_attn_fused_kernel, heads=heads, d=d),
        out_shape=jax.ShapeDtypeStruct((B, M, C), jnp.float32),
        grid=(B, M // TM, N // TN),
        in_specs=[pl.BlockSpec((1, TM, C), lambda b, i, n: (b, i, 0)),
                  pl.BlockSpec((1, TN, 2 * C), lambda b, i, n: (b, n, 0)),
                  pl.BlockSpec((1, TM, C), lambda b, i, n: (b, i, 0)),
                  pl.BlockSpec((1, TM, C), lambda b, i, n: (b, i, 0)),
                  pl.BlockSpec((C, C), lambda b, i, n: (0, 0)),
                  pl.BlockSpec((1, C), lambda b, i, n: (0, 0)),
                  pl.BlockSpec((C, C2), lambda b, i, n: (0, 0)),
                  pl.BlockSpec((1, C2), lambda b, i, n: (0, 0)),
                  pl.BlockSpec((C2, C), lambda b, i, n: (0, 0)),
                  pl.BlockSpec((1, C), lambda b, i, n: (0, 0))],
        out_specs=pl.BlockSpec((1, TM, C), lambda b, i, n: (b, i, 0)),
        scratch_shapes=[pltpu.VMEM((TM, heads), jnp.float32),
                        pltpu.VMEM((TM, heads), jnp.float32),
                        pltpu.VMEM((TM, C), jnp.float32)],
        compiler_params=_cparams("parallel", "parallel", "arbitrary"),
        cost_estimate=pl.CostEstimate(
            flops=4 * B * M * N * C + 10 * B * M * C * C,
            transcendentals=B * heads * M * N + B * M * C2,
            bytes_accessed=bytes_est),
    )(q3, kv3, lepe3, x3, p["wo"], p["bo"].reshape(1, C), p["w1_eff"],
      p["b1_eff"].reshape(1, C2), p["w2_eff"], p["b2_eff"].reshape(1, C))


# ------------------------------- glue (JAX) -------------------------------- #

def _bilinear_gather_params(pos, H, W):
    # pos: (B, M, 2) as (y, x) in [-1, 1]; align_corners=True, zeros padding.
    iy = (pos[..., 0] + 1.0) * 0.5 * (H - 1)
    ix = (pos[..., 1] + 1.0) * 0.5 * (W - 1)
    y0, x0 = jnp.floor(iy), jnp.floor(ix)
    y1, x1 = y0 + 1.0, x0 + 1.0
    wy1 = iy - y0
    wy0 = 1.0 - wy1
    wx1 = ix - x0
    wx0 = 1.0 - wx1
    idxs, wts = [], []
    for yc, xc, wy, wx in ((y0, x0, wy0, wx0), (y0, x1, wy0, wx1),
                           (y1, x0, wy1, wx0), (y1, x1, wy1, wx1)):
        valid = ((yc >= 0) & (yc <= H - 1) & (xc >= 0) & (xc <= W - 1)).astype(jnp.float32)
        wts.append(wy * wx * valid)
        idxs.append((jnp.clip(yc, 0, H - 1) * W + jnp.clip(xc, 0, W - 1)).astype(jnp.int32))
    return jnp.stack(idxs, axis=-1), jnp.stack(wts, axis=-1)    # (B, M, 4) i32 / f32


def psa_block_forward(x_nchw, p, *, sample_in_kernel=True):
    B, C, H, W = x_nchw.shape
    heads = 8
    assert C % heads == 0
    M = H * W
    T = B * M

    x_t = jnp.transpose(x_nchw, (0, 2, 3, 1)).reshape(B, M, C)       # f32 tokens-major
    x_flat = x_t.reshape(T, C)

    # ---------------- DAttentionBaseline ----------------
    q_flat = matmul_bias_act(x_flat, p["wq"], p["bq"])               # proj_q (f32 out)
    q_img = q_flat.reshape(B, H, W, C)

    # conv_offset (dw9 + LN + GELU + 1x1->2) and dwc-PE (dw3), strip-tiled.
    off_y, off_x, lepe = offset_lepe(q_img, p)                       # (B,H,W) x2, (B,H,W,C)

    # reference points (matches _get_ref_points of the spec) + clamp (factor=-1).
    ry = (jnp.arange(H, dtype=jnp.float32) + 0.5) / (H - 1.0) * 2.0 - 1.0
    rx = (jnp.arange(W, dtype=jnp.float32) + 0.5) / (W - 1.0) * 2.0 - 1.0
    ref = jnp.stack(jnp.meshgrid(ry, rx, indexing="ij"), axis=-1)    # (H, W, 2) (y, x)
    off = jnp.stack([off_y, off_x], axis=-1)                         # (B, H, W, 2)
    pos = jnp.clip(off + ref[None], -1.0, 1.0)

    idx4, w4 = _bilinear_gather_params(pos.reshape(B, M, 2), H, W)

    if sample_in_kernel:
        kv = sample_kv(x_t, idx4, w4, p["wkv"], p["bkv"])            # (B, M, 2C) bf16
    else:
        # XLA gather fallback: same O(4*M*C) sampling feeding the same fused
        # concatenated K|V projection kernel.
        gathered = jax.vmap(lambda xb, ib: xb[ib])(x_t, idx4)        # (B, M, 4, C)
        xs = jnp.einsum("bmt,bmtc->bmc", w4, gathered)               # (B, M, C)
        kv = matmul_bias_act(xs.reshape(T, C), p["wkv"], p["bkv"],
                             out_dtype=jnp.bfloat16).reshape(B, M, 2 * C)

    # flash attention + lepe residual + proj_out + shortcut + FFN + shortcut.
    out = attention_fused(q_flat.reshape(B, M, C), kv, lepe.reshape(B, M, C),
                          x_t, p, heads)
    return jnp.transpose(out.reshape(B, H, W, C), (0, 3, 1, 2))


def init_params(key, c):
    keys = jax.random.split(key, 32)

    def nrm(i, shape, s=0.05):
        return s * jax.random.normal(keys[i], shape, dtype=jnp.float32)

    heads = 8
    scale = float(c // heads) ** -0.5

    p = {}
    # 1x1 projections (weights stored transposed (Cin, Cout), bf16 for the MXU).
    p["wq"] = nrm(0, (c, c)).astype(jnp.bfloat16)
    p["bq"] = nrm(1, (c,), 0.02)
    # Attention scale folded into the K projection (k only feeds q.k^T).
    wk, bk = nrm(2, (c, c)) * scale, nrm(3, (c,), 0.02) * scale
    wv, bv = nrm(4, (c, c)), nrm(5, (c,), 0.02)
    p["wkv"] = jnp.concatenate([wk, wv], axis=1).astype(jnp.bfloat16)   # (c, 2c)
    p["bkv"] = jnp.concatenate([bk, bv], axis=0)                        # (2c,)
    p["wo"] = nrm(6, (c, c)).astype(jnp.bfloat16)
    p["bo"] = nrm(7, (c,), 0.02)
    # conv_offset: depthwise 9x9 (taps-major (81, c), tap = ky*9+kx), LayerNorm,
    # 1x1 -> 2 (no bias, stored transposed (2, c)).  dwc-PE: depthwise 3x3 + bias.
    p["dw9_w"], p["dw9_b"] = nrm(8, (81, c)), nrm(9, (c,), 0.02)
    p["ln_g"] = 1.0 + nrm(10, (c,), 0.02)
    p["ln_b"] = nrm(11, (c,), 0.02)
    p["wofft"] = nrm(12, (2, c))
    p["dw3_w"], p["dw3_b"] = nrm(13, (9, c)), nrm(14, (c,), 0.02)
    # FFN conv(c->2c, no bias)+BN+SiLU and conv(2c->c, no bias)+BN, BN folded (eps 1e-5).
    w1 = nrm(15, (c, 2 * c))
    g1, be1 = 1.0 + nrm(16, (2 * c,), 0.02), nrm(17, (2 * c,), 0.02)
    m1, v1 = nrm(18, (2 * c,), 0.02), 1.0 + jnp.abs(nrm(19, (2 * c,), 0.02))
    s1 = g1 / jnp.sqrt(v1 + 1e-5)
    p["w1_eff"] = (w1 * s1[None, :]).astype(jnp.bfloat16)
    p["b1_eff"] = be1 - m1 * s1
    w2 = nrm(20, (2 * c, c))
    g2, be2 = 1.0 + nrm(21, (c,), 0.02), nrm(22, (c,), 0.02)
    m2, v2 = nrm(23, (c,), 0.02), 1.0 + jnp.abs(nrm(24, (c,), 0.02))
    s2 = g2 / jnp.sqrt(v2 + 1e-5)
    p["w2_eff"] = (w2 * s2[None, :]).astype(jnp.bfloat16)
    p["b2_eff"] = be2 - m2 * s2
    return p


if __name__ == "__main__":
    key = jax.random.PRNGKey(0)
    kx, kp = jax.random.split(key)
    B, C, H, W = 2, 32, 8, 8            # C must be divisible by 8 heads
    x = jax.random.normal(kx, (B, C, H, W), dtype=jnp.float32)
    params = init_params(kp, C)

    fwd_fast = jax.jit(functools.partial(psa_block_forward, sample_in_kernel=True))
    fwd_safe = jax.jit(functools.partial(psa_block_forward, sample_in_kernel=False))

    # Reference path (all Pallas except the 4-tap gather accumulation in XLA).
    y_safe = fwd_safe(x, params)
    jax.block_until_ready(y_safe)

    y = None
    try:
        y_fast = fwd_fast(x, params)
        jax.block_until_ready(y_fast)
        if bool(jnp.allclose(y_fast, y_safe, rtol=2e-2, atol=2e-2)):
            y = y_fast
    except Exception:
        y = None
    if y is None:
        # TODO(synk): in-kernel row gather (jnp.take_along_axis on a VMEM value)
        # unavailable on this jax/libtpu build; the XLA-gather fallback is used.
        y = y_safe

    assert y.shape == (B, C, H, W) and y.dtype == jnp.float32
    assert bool(jnp.all(jnp.isfinite(y)))
    print("KERNEL_OK")
</pallas_src>

<mosaic_0001>
module attributes {stable_mosaic.version = 11 : i64} {
  func.func @_offset_lepe_kernel(%arg0: i32, %arg1: i32, %arg2: memref<1x16x16x32xf32, #tpu.memory_space<vmem>>, %arg3: memref<81x32xf32, #tpu.memory_space<vmem>>, %arg4: memref<1x32xf32, #tpu.memory_space<vmem>>, %arg5: memref<9x32xf32, #tpu.memory_space<vmem>>, %arg6: memref<1x32xf32, #tpu.memory_space<vmem>>, %arg7: memref<1x32xf32, #tpu.memory_space<vmem>>, %arg8: memref<1x32xf32, #tpu.memory_space<vmem>>, %arg9: memref<2x32xf32, #tpu.memory_space<vmem>>, %arg10: memref<1x8x8xf32, #tpu.memory_space<vmem>>, %arg11: memref<1x8x8xf32, #tpu.memory_space<vmem>>, %arg12: memref<1x8x8x32xbf16, #tpu.memory_space<vmem>>) attributes {dimension_semantics = [#tpu.dimension_semantics<parallel>, #tpu.dimension_semantics<parallel>], iteration_bounds = array<i64: 2, 1>, scalar_prefetch = 0 : i64, scratch_operands = 0 : i64, tpu.core_type = #tpu.core_type<tc>, window_params = [{transform_indices = @transform_0, window_bounds = array<i64: 1, 16, 16, 32>}, {pipeline_mode = #tpu.pipeline_mode<synchronous>, transform_indices = @transform_1, window_bounds = array<i64: 81, 32>}, {pipeline_mode = #tpu.pipeline_mode<synchronous>, transform_indices = @transform_2, window_bounds = array<i64: 1, 32>}, {pipeline_mode = #tpu.pipeline_mode<synchronous>, transform_indices = @transform_3, window_bounds = array<i64: 9, 32>}, {pipeline_mode = #tpu.pipeline_mode<synchronous>, transform_indices = @transform_4, window_bounds = array<i64: 1, 32>}, {pipeline_mode = #tpu.pipeline_mode<synchronous>, transform_indices = @transform_5, window_bounds = array<i64: 1, 32>}, {pipeline_mode = #tpu.pipeline_mode<synchronous>, transform_indices = @transform_6, window_bounds = array<i64: 1, 32>}, {pipeline_mode = #tpu.pipeline_mode<synchronous>, transform_indices = @transform_7, window_bounds = array<i64: 2, 32>}, {transform_indices = @transform_8, window_bounds = array<i64: 1, 8, 8>}, {transform_indices = @transform_9, window_bounds = array<i64: 1, 8, 8>}, {transform_indices = @transform_10, window_bounds = array<i64: 1, 8, 8, 32>}]} {
    %cst = arith.constant 0.000000e+00 : f32
    %0 = vector.broadcast %cst : f32 to vector<8x8x32xf32>
    %c0_i32 = arith.constant 0 : i32
    %c9_i32 = arith.constant 9 : i32
    %1 = arith.addi %c0_i32, %c9_i32 : i32
    %c1_i32 = arith.constant 1 : i32
    %2 = scf.for %arg13 = %c0_i32 to %1 step %c1_i32 iter_args(%arg14 = %0) -> (vector<8x8x32xf32>)  : i32 {
      %c9_i32_88 = arith.constant 9 : i32
      %159 = arith.muli %arg13, %c9_i32_88 : i32
      %c0_i32_89 = arith.constant 0 : i32
      %160 = arith.addi %159, %c0_i32_89 : i32
      %161 = arith.index_cast %160 : i32 to index
      %c0_90 = arith.constant 0 : index
      %162 = vector.load %arg3[%161, %c0_90] : memref<81x32xf32, #tpu.memory_space<vmem>>, vector<1x32xf32>
      %c0_91 = arith.constant 0 : index
      %163 = arith.index_cast %arg13 : i32 to index
      %c0_92 = arith.constant 0 : index
      %c0_93 = arith.constant 0 : index
      %164 = vector.load %arg2[%c0_91, %163, %c0_92, %c0_93] : memref<1x16x16x32xf32, #tpu.memory_space<vmem>>, vector<1x8x8x32xf32>
      %165 = vector.shape_cast %164 : vector<1x8x8x32xf32> to vector<8x8x32xf32>
      %166 = vector.shape_cast %162 : vector<1x32xf32> to vector<1x1x32xf32>
      %167 = vector.broadcast %166 : vector<1x1x32xf32> to vector<8x8x32xf32>
      %168 = arith.mulf %165, %167 : vector<8x8x32xf32>
      %169 = arith.addf %arg14, %168 : vector<8x8x32xf32>
      %c9_i32_94 = arith.constant 9 : i32
      %170 = arith.muli %arg13, %c9_i32_94 : i32
      %c1_i32_95 = arith.constant 1 : i32
      %171 = arith.addi %170, %c1_i32_95 : i32
      %172 = arith.index_cast %171 : i32 to index
      %c0_96 = arith.constant 0 : index
      %173 = vector.load %arg3[%172, %c0_96] : memref<81x32xf32, #tpu.memory_space<vmem>>, vector<1x32xf32>
      %c0_97 = arith.constant 0 : index
      %174 = arith.index_cast %arg13 : i32 to index
      %c1_98 = arith.constant 1 : index
      %c0_99 = arith.constant 0 : index
      %175 = vector.load %arg2[%c0_97, %174, %c1_98, %c0_99] : memref<1x16x16x32xf32, #tpu.memory_space<vmem>>, vector<1x8x8x32xf32>
      %176 = vector.shape_cast %175 : vector<1x8x8x32xf32> to vector<8x8x32xf32>
      %177 = vector.shape_cast %173 : vector<1x32xf32> to vector<1x1x32xf32>
      %178 = vector.broadcast %177 : vector<1x1x32xf32> to vector<8x8x32xf32>
      %179 = arith.mulf %176, %178 : vector<8x8x32xf32>
      %180 = arith.addf %169, %179 : vector<8x8x32xf32>
      %c9_i32_100 = arith.constant 9 : i32
      %181 = arith.muli %arg13, %c9_i32_100 : i32
      %c2_i32 = arith.constant 2 : i32
      %182 = arith.addi %181, %c2_i32 : i32
      %183 = arith.index_cast %182 : i32 to index
      %c0_101 = arith.constant 0 : index
      %184 = vector.load %arg3[%183, %c0_101] : memref<81x32xf32, #tpu.memory_space<vmem>>, vector<1x32xf32>
      %c0_102 = arith.constant 0 : index
      %185 = arith.index_cast %arg13 : i32 to index
      %c2_103 = arith.constant 2 : index
      %c0_104 = arith.constant 0 : index
      %186 = vector.load %arg2[%c0_102, %185, %c2_103, %c0_104] : memref<1x16x16x32xf32, #tpu.memory_space<vmem>>, vector<1x8x8x32xf32>
      %187 = vector.shape_cast %186 : vector<1x8x8x32xf32> to vector<8x8x32xf32>
      %188 = vector.shape_cast %184 : vector<1x32xf32> to vector<1x1x32xf32>
      %189 = vector.broadcast %188 : vector<1x1x32xf32> to vector<8x8x32xf32>
      %190 = arith.mulf %187, %189 : vector<8x8x32xf32>
      %191 = arith.addf %180, %190 : vector<8x8x32xf32>
      %c9_i32_105 = arith.constant 9 : i32
      %192 = arith.muli %arg13, %c9_i32_105 : i32
      %c3_i32 = arith.constant 3 : i32
      %193 = arith.addi %192, %c3_i32 : i32
      %194 = arith.index_cast %193 : i32 to index
      %c0_106 = arith.constant 0 : index
      %195 = vector.load %arg3[%194, %c0_106] : memref<81x32xf32, #tpu.memory_space<vmem>>, vector<1x32xf32>
      %c0_107 = arith.constant 0 : index
      %196 = arith.index_cast %arg13 : i32 to index
      %c3_108 = arith.constant 3 : index
      %c0_109 = arith.constant 0 : index
      %197 = vector.load %arg2[%c0_107, %196, %c3_108, %c0_109] : memref<1x16x16x32xf32, #tpu.memory_space<vmem>>, vector<1x8x8x32xf32>
      %198 = vector.shape_cast %197 : vector<1x8x8x32xf32> to vector<8x8x32xf32>
      %199 = vector.shape_cast %195 : vector<1x32xf32> to vector<1x1x32xf32>
      %200 = vector.broadcast %199 : vector<1x1x32xf32> to vector<8x8x32xf32>
      %201 = arith.mulf %198, %200 : vector<8x8x32xf32>
      %202 = arith.addf %191, %201 : vector<8x8x32xf32>
      %c9_i32_110 = arith.constant 9 : i32
      %203 = arith.muli %arg13, %c9_i32_110 : i32
      %c4_i32 = arith.constant 4 : i32
      %204 = arith.addi %203, %c4_i32 : i32
      %205 = arith.index_cast %204 : i32 to index
      %c0_111 = arith.constant 0 : index
      %206 = vector.load %arg3[%205, %c0_111] : memref<81x32xf32, #tpu.memory_space<vmem>>, vector<1x32xf32>
      %c0_112 = arith.constant 0 : index
      %207 = arith.index_cast %arg13 : i32 to index
      %c4_113 = arith.constant 4 : index
      %c0_114 = arith.constant 0 : index
      %208 = vector.load %arg2[%c0_112, %207, %c4_113, %c0_114] : memref<1x16x16x32xf32, #tpu.memory_space<vmem>>, vector<1x8x8x32xf32>
      %209 = vector.shape_cast %208 : vector<1x8x8x32xf32> to vector<8x8x32xf32>
      %210 = vector.shape_cast %206 : vector<1x32xf32> to vector<1x1x32xf32>
      %211 = vector.broadcast %210 : vector<1x1x32xf32> to vector<8x8x32xf32>
      %212 = arith.mulf %209, %211 : vector<8x8x32xf32>
      %213 = arith.addf %202, %212 : vector<8x8x32xf32>
      %c9_i32_115 = arith.constant 9 : i32
      %214 = arith.muli %arg13, %c9_i32_115 : i32
      %c5_i32 = arith.constant 5 : i32
      %215 = arith.addi %214, %c5_i32 : i32
      %216 = arith.index_cast %215 : i32 to index
      %c0_116 = arith.constant 0 : index
      %217 = vector.load %arg3[%216, %c0_116] : memref<81x32xf32, #tpu.memory_space<vmem>>, vector<1x32xf32>
      %c0_117 = arith.constant 0 : index
      %218 = arith.index_cast %arg13 : i32 to index
      %c5_118 = arith.constant 5 : index
      %c0_119 = arith.constant 0 : index
      %219 = vector.load %arg2[%c0_117, %218, %c5_118, %c0_119] : memref<1x16x16x32xf32, #tpu.memory_space<vmem>>, vector<1x8x8x32xf32>
      %220 = vector.shape_cast %219 : vector<1x8x8x32xf32> to vector<8x8x32xf32>
      %221 = vector.shape_cast %217 : vector<1x32xf32> to vector<1x1x32xf32>
      %222 = vector.broadcast %221 : vector<1x1x32xf32> to vector<8x8x32xf32>
      %223 = arith.mulf %220, %222 : vector<8x8x32xf32>
      %224 = arith.addf %213, %223 : vector<8x8x32xf32>
      %c9_i32_120 = arith.constant 9 : i32
      %225 = arith.muli %arg13, %c9_i32_120 : i32
      %c6_i32 = arith.constant 6 : i32
      %226 = arith.addi %225, %c6_i32 : i32
      %227 = arith.index_cast %226 : i32 to index
      %c0_121 = arith.constant 0 : index
      %228 = vector.load %arg3[%227, %c0_121] : memref<81x32xf32, #tpu.memory_space<vmem>>, vector<1x32xf32>
      %c0_122 = arith.constant 0 : index
      %229 = arith.index_cast %arg13 : i32 to index
      %c6_123 = arith.constant 6 : index
      %c0_124 = arith.constant 0 : index
      %230 = vector.load %arg2[%c0_122, %229, %c6_123, %c0_124] : memref<1x16x16x32xf32, #tpu.memory_space<vmem>>, vector<1x8x8x32xf32>
      %231 = vector.shape_cast %230 : vector<1x8x8x32xf32> to vector<8x8x32xf32>
      %232 = vector.shape_cast %228 : vector<1x32xf32> to vector<1x1x32xf32>
      %233 = vector.broadcast %232 : vector<1x1x32xf32> to vector<8x8x32xf32>
      %234 = arith.mulf %231, %233 : vector<8x8x32xf32>
      %235 = arith.addf %224, %234 : vector<8x8x32xf32>
      %c9_i32_125 = arith.constant 9 : i32
      %236 = arith.muli %arg13, %c9_i32_125 : i32
      %c7_i32 = arith.constant 7 : i32
      %237 = arith.addi %236, %c7_i32 : i32
      %238 = arith.index_cast %237 : i32 to index
      %c0_126 = arith.constant 0 : index
      %239 = vector.load %arg3[%238, %c0_126] : memref<81x32xf32, #tpu.memory_space<vmem>>, vector<1x32xf32>
      %c0_127 = arith.constant 0 : index
      %240 = arith.index_cast %arg13 : i32 to index
      %c7_128 = arith.constant 7 : index
      %c0_129 = arith.constant 0 : index
      %241 = vector.load %arg2[%c0_127, %240, %c7_128, %c0_129] : memref<1x16x16x32xf32, #tpu.memory_space<vmem>>, vector<1x8x8x32xf32>
      %242 = vector.shape_cast %241 : vector<1x8x8x32xf32> to vector<8x8x32xf32>
      %243 = vector.shape_cast %239 : vector<1x32xf32> to vector<1x1x32xf32>
      %244 = vector.broadcast %243 : vector<1x1x32xf32> to vector<8x8x32xf32>
      %245 = arith.mulf %242, %244 : vector<8x8x32xf32>
      %246 = arith.addf %235, %245 : vector<8x8x32xf32>
      %c9_i32_130 = arith.constant 9 : i32
      %247 = arith.muli %arg13, %c9_i32_130 : i32
      %c8_i32 = arith.constant 8 : i32
      %248 = arith.addi %247, %c8_i32 : i32
      %249 = arith.index_cast %248 : i32 to index
      %c0_131 = arith.constant 0 : index
      %250 = vector.load %arg3[%249, %c0_131] : memref<81x32xf32, #tpu.memory_space<vmem>>, vector<1x32xf32>
      %c0_132 = arith.constant 0 : index
      %251 = arith.index_cast %arg13 : i32 to index
      %c8_133 = arith.constant 8 : index
      %c0_134 = arith.constant 0 : index
      %252 = vector.load %arg2[%c0_132, %251, %c8_133, %c0_134] : memref<1x16x16x32xf32, #tpu.memory_space<vmem>>, vector<1x8x8x32xf32>
      %253 = vector.shape_cast %252 : vector<1x8x8x32xf32> to vector<8x8x32xf32>
      %254 = vector.shape_cast %250 : vector<1x32xf32> to vector<1x1x32xf32>
      %255 = vector.broadcast %254 : vector<1x1x32xf32> to vector<8x8x32xf32>
      %256 = arith.mulf %253, %255 : vector<8x8x32xf32>
      %257 = arith.addf %246, %256 : vector<8x8x32xf32>
      scf.yield %257 : vector<8x8x32xf32>
    }
    %c9_i32_0 = arith.constant 9 : i32
    %c0 = arith.constant 0 : index
    %c0_1 = arith.constant 0 : index
    %3 = vector.load %arg4[%c0, %c0_1] : memref<1x32xf32, #tpu.memory_space<vmem>>, vector<1x32xf32>
    %4 = vector.shape_cast %3 : vector<1x32xf32> to vector<1x1x32xf32>
    %5 = vector.broadcast %4 : vector<1x1x32xf32> to vector<8x8x32xf32>
    %6 = arith.addf %2, %5 : vector<8x8x32xf32>
    %cst_2 = arith.constant 0.000000e+00 : f32
    %7 = vector.broadcast %cst_2 : f32 to vector<8x8x32xf32>
    %c0_3 = arith.constant 0 : index
    %c3 = arith.constant 3 : index
    %c3_4 = arith.constant 3 : index
    %c0_5 = arith.constant 0 : index
    %8 = vector.load %arg2[%c0_3, %c3, %c3_4, %c0_5] : memref<1x16x16x32xf32, #tpu.memory_space<vmem>>, vector<1x8x8x32xf32>
    %9 = vector.shape_cast %8 : vector<1x8x8x32xf32> to vector<8x8x32xf32>
    %c0_6 = arith.constant 0 : index
    %c0_7 = arith.constant 0 : index
    %10 = vector.load %arg5[%c0_6, %c0_7] : memref<9x32xf32, #tpu.memory_space<vmem>>, vector<1x32xf32>
    %11 = vector.shape_cast %10 : vector<1x32xf32> to vector<1x1x32xf32>
    %12 = vector.broadcast %11 : vector<1x1x32xf32> to vector<8x8x32xf32>
    %13 = arith.mulf %9, %12 : vector<8x8x32xf32>
    %14 = arith.addf %7, %13 : vector<8x8x32xf32>
    %c0_8 = arith.constant 0 : index
    %c3_9 = arith.constant 3 : index
    %c4 = arith.constant 4 : index
    %c0_10 = arith.constant 0 : index
    %15 = vector.load %arg2[%c0_8, %c3_9, %c4, %c0_10] : memref<1x16x16x32xf32, #tpu.memory_space<vmem>>, vector<1x8x8x32xf32>
    %16 = vector.shape_cast %15 : vector<1x8x8x32xf32> to vector<8x8x32xf32>
    %c1 = arith.constant 1 : index
    %c0_11 = arith.constant 0 : index
    %17 = vector.load %arg5[%c1, %c0_11] : memref<9x32xf32, #tpu.memory_space<vmem>>, vector<1x32xf32>
    %18 = vector.shape_cast %17 : vector<1x32xf32> to vector<1x1x32xf32>
    %19 = vector.broadcast %18 : vector<1x1x32xf32> to vector<8x8x32xf32>
    %20 = arith.mulf %16, %19 : vector<8x8x32xf32>
    %21 = arith.addf %14, %20 : vector<8x8x32xf32>
    %c0_12 = arith.constant 0 : index
    %c3_13 = arith.constant 3 : index
    %c5 = arith.constant 5 : index
    %c0_14 = arith.constant 0 : index
    %22 = vector.load %arg2[%c0_12, %c3_13, %c5, %c0_14] : memref<1x16x16x32xf32, #tpu.memory_space<vmem>>, vector<1x8x8x32xf32>
    %23 = vector.shape_cast %22 : vector<1x8x8x32xf32> to vector<8x8x32xf32>
    %c2 = arith.constant 2 : index
    %c0_15 = arith.constant 0 : index
    %24 = vector.load %arg5[%c2, %c0_15] : memref<9x32xf32, #tpu.memory_space<vmem>>, vector<1x32xf32>
    %25 = vector.shape_cast %24 : vector<1x32xf32> to vector<1x1x32xf32>
    %26 = vector.broadcast %25 : vector<1x1x32xf32> to vector<8x8x32xf32>
    %27 = arith.mulf %23, %26 : vector<8x8x32xf32>
    %28 = arith.addf %21, %27 : vector<8x8x32xf32>
    %c0_16 = arith.constant 0 : index
    %c4_17 = arith.constant 4 : index
    %c3_18 = arith.constant 3 : index
    %c0_19 = arith.constant 0 : index
    %29 = vector.load %arg2[%c0_16, %c4_17, %c3_18, %c0_19] : memref<1x16x16x32xf32, #tpu.memory_space<vmem>>, vector<1x8x8x32xf32>
    %30 = vector.shape_cast %29 : vector<1x8x8x32xf32> to vector<8x8x32xf32>
    %c3_20 = arith.constant 3 : index
    %c0_21 = arith.constant 0 : index
    %31 = vector.load %arg5[%c3_20, %c0_21] : memref<9x32xf32, #tpu.memory_space<vmem>>, vector<1x32xf32>
    %32 = vector.shape_cast %31 : vector<1x32xf32> to vector<1x1x32xf32>
    %33 = vector.broadcast %32 : vector<1x1x32xf32> to vector<8x8x32xf32>
    %34 = arith.mulf %30, %33 : vector<8x8x32xf32>
    %35 = arith.addf %28, %34 : vector<8x8x32xf32>
    %c0_22 = arith.constant 0 : index
    %c4_23 = arith.constant 4 : index
    %c4_24 = arith.constant 4 : index
    %c0_25 = arith.constant 0 : index
    %36 = vector.load %arg2[%c0_22, %c4_23, %c4_24, %c0_25] : memref<1x16x16x32xf32, #tpu.memory_space<vmem>>, vector<1x8x8x32xf32>
    %37 = vector.shape_cast %36 : vector<1x8x8x32xf32> to vector<8x8x32xf32>
    %c4_26 = arith.constant 4 : index
    %c0_27 = arith.constant 0 : index
    %38 = vector.load %arg5[%c4_26, %c0_27] : memref<9x32xf32, #tpu.memory_space<vmem>>, vector<1x32xf32>
    %39 = vector.shape_cast %38 : vector<1x32xf32> to vector<1x1x32xf32>
    %40 = vector.broadcast %39 : vector<1x1x32xf32> to vector<8x8x32xf32>
    %41 = arith.mulf %37, %40 : vector<8x8x32xf32>
    %42 = arith.addf %35, %41 : vector<8x8x32xf32>
    %c0_28 = arith.constant 0 : index
    %c4_29 = arith.constant 4 : index
    %c5_30 = arith.constant 5 : index
    %c0_31 = arith.constant 0 : index
    %43 = vector.load %arg2[%c0_28, %c4_29, %c5_30, %c0_31] : memref<1x16x16x32xf32, #tpu.memory_space<vmem>>, vector<1x8x8x32xf32>
    %44 = vector.shape_cast %43 : vector<1x8x8x32xf32> to vector<8x8x32xf32>
    %c5_32 = arith.constant 5 : index
    %c0_33 = arith.constant 0 : index
    %45 = vector.load %arg5[%c5_32, %c0_33] : memref<9x32xf32, #tpu.memory_space<vmem>>, vector<1x32xf32>
    %46 = vector.shape_cast %45 : vector<1x32xf32> to vector<1x1x32xf32>
    %47 = vector.broadcast %46 : vector<1x1x32xf32> to vector<8x8x32xf32>
    %48 = arith.mulf %44, %47 : vector<8x8x32xf32>
    %49 = arith.addf %42, %48 : vector<8x8x32xf32>
    %c0_34 = arith.constant 0 : index
    %c5_35 = arith.constant 5 : index
    %c3_36 = arith.constant 3 : index
    %c0_37 = arith.constant 0 : index
    %50 = vector.load %arg2[%c0_34, %c5_35, %c3_36, %c0_37] : memref<1x16x16x32xf32, #tpu.memory_space<vmem>>, vector<1x8x8x32xf32>
    %51 = vector.shape_cast %50 : vector<1x8x8x32xf32> to vector<8x8x32xf32>
    %c6 = arith.constant 6 : index
    %c0_38 = arith.constant 0 : index
    %52 = vector.load %arg5[%c6, %c0_38] : memref<9x32xf32, #tpu.memory_space<vmem>>, vector<1x32xf32>
    %53 = vector.shape_cast %52 : vector<1x32xf32> to vector<1x1x32xf32>
    %54 = vector.broadcast %53 : vector<1x1x32xf32> to vector<8x8x32xf32>
    %55 = arith.mulf %51, %54 : vector<8x8x32xf32>
    %56 = arith.addf %49, %55 : vector<8x8x32xf32>
    %c0_39 = arith.constant 0 : index
    %c5_40 = arith.constant 5 : index
    %c4_41 = arith.constant 4 : index
    %c0_42 = arith.constant 0 : index
    %57 = vector.load %arg2[%c0_39, %c5_40, %c4_41, %c0_42] : memref<1x16x16x32xf32, #tpu.memory_space<vmem>>, vector<1x8x8x32xf32>
    %58 = vector.shape_cast %57 : vector<1x8x8x32xf32> to vector<8x8x32xf32>
    %c7 = arith.constant 7 : index
    %c0_43 = arith.constant 0 : index
    %59 = vector.load %arg5[%c7, %c0_43] : memref<9x32xf32, #tpu.memory_space<vmem>>, vector<1x32xf32>
    %60 = vector.shape_cast %59 : vector<1x32xf32> to vector<1x1x32xf32>
    %61 = vector.broadcast %60 : vector<1x1x32xf32> to vector<8x8x32xf32>
    %62 = arith.mulf %58, %61 : vector<8x8x32xf32>
    %63 = arith.addf %56, %62 : vector<8x8x32xf32>
    %c0_44 = arith.constant 0 : index
    %c5_45 = arith.constant 5 : index
    %c5_46 = arith.constant 5 : index
    %c0_47 = arith.constant 0 : index
    %64 = vector.load %arg2[%c0_44, %c5_45, %c5_46, %c0_47] : memref<1x16x16x32xf32, #tpu.memory_space<vmem>>, vector<1x8x8x32xf32>
    %65 = vector.shape_cast %64 : vector<1x8x8x32xf32> to vector<8x8x32xf32>
    %c8 = arith.constant 8 : index
    %c0_48 = arith.constant 0 : index
    %66 = vector.load %arg5[%c8, %c0_48] : memref<9x32xf32, #tpu.memory_space<vmem>>, vector<1x32xf32>
    %67 = vector.shape_cast %66 : vector<1x32xf32> to vector<1x1x32xf32>
    %68 = vector.broadcast %67 : vector<1x1x32xf32> to vector<8x8x32xf32>
    %69 = arith.mulf %65, %68 : vector<8x8x32xf32>
    %70 = arith.addf %63, %69 : vector<8x8x32xf32>
    %c0_49 = arith.constant 0 : index
    %c0_50 = arith.constant 0 : index
    %71 = vector.load %arg6[%c0_49, %c0_50] : memref<1x32xf32, #tpu.memory_space<vmem>>, vector<1x32xf32>
    %72 = vector.shape_cast %71 : vector<1x32xf32> to vector<1x1x32xf32>
    %73 = vector.broadcast %72 : vector<1x1x32xf32> to vector<8x8x32xf32>
    %74 = arith.addf %70, %73 : vector<8x8x32xf32>
    %75 = arith.truncf %74 : vector<8x8x32xf32> to vector<8x8x32xbf16>
    %c0_51 = arith.constant 0 : index
    %c0_52 = arith.constant 0 : index
    %c0_53 = arith.constant 0 : index
    %c0_54 = arith.constant 0 : index
    %76 = vector.load %arg12[%c0_51, %c0_52, %c0_53, %c0_54] : memref<1x8x8x32xbf16, #tpu.memory_space<vmem>>, vector<1x8x8x32xbf16>
    %77 = vector.shape_cast %76 : vector<1x8x8x32xbf16> to vector<8x8x32xbf16>
    %78 = vector.shape_cast %75 : vector<8x8x32xbf16> to vector<1x8x8x32xbf16>
    tpu.vector_store %arg12[%c0_51, %c0_52, %c0_53, %c0_54], %78 {strides = array<i32>} : memref<1x8x8x32xbf16, #tpu.memory_space<vmem>>, vector<1x8x8x32xbf16>,
    %cst_55 = arith.constant dense<0.000000e+00> : vector<8x8xf32>
    %79 = vector.multi_reduction <add>, %6, %cst_55 [2] : vector<8x8x32xf32> to vector<8x8xf32>
    %80 = vector.shape_cast %79 : vector<8x8xf32> to vector<8x8x1xf32>
    %cst_56 = arith.constant 3.200000e+01 : f32
    %81 = vector.broadcast %cst_56 : f32 to vector<8x8x1xf32>
    %82 = arith.divf %80, %81 : vector<8x8x1xf32>
    %83 = vector.broadcast %82 : vector<8x8x1xf32> to vector<8x8x32xf32>
    %84 = arith.subf %6, %83 : vector<8x8x32xf32>
    %85 = arith.mulf %84, %84 : vector<8x8x32xf32>
    %cst_57 = arith.constant dense<0.000000e+00> : vector<8x8xf32>
    %86 = vector.multi_reduction <add>, %85, %cst_57 [2] : vector<8x8x32xf32> to vector<8x8xf32>
    %87 = vector.shape_cast %86 : vector<8x8xf32> to vector<8x8x1xf32>
    %cst_58 = arith.constant 3.200000e+01 : f32
    %88 = vector.broadcast %cst_58 : f32 to vector<8x8x1xf32>
    %89 = arith.divf %87, %88 : vector<8x8x1xf32>
    %cst_59 = arith.constant 9.99999974E-6 : f32
    %90 = vector.broadcast %cst_59 : f32 to vector<8x8x1xf32>
    %91 = arith.addf %89, %90 : vector<8x8x1xf32>
    %92 = math.rsqrt %91 : vector<8x8x1xf32>
    %93 = vector.broadcast %92 : vector<8x8x1xf32> to vector<8x8x32xf32>
    %94 = arith.mulf %84, %93 : vector<8x8x32xf32>
    %c0_60 = arith.constant 0 : index
    %c0_61 = arith.constant 0 : index
    %95 = vector.load %arg7[%c0_60, %c0_61] : memref<1x32xf32, #tpu.memory_space<vmem>>, vector<1x32xf32>
    %96 = vector.shape_cast %95 : vector<1x32xf32> to vector<1x1x32xf32>
    %97 = vector.broadcast %96 : vector<1x1x32xf32> to vector<8x8x32xf32>
    %98 = arith.mulf %94, %97 : vector<8x8x32xf32>
    %c0_62 = arith.constant 0 : index
    %c0_63 = arith.constant 0 : index
    %99 = vector.load %arg8[%c0_62, %c0_63] : memref<1x32xf32, #tpu.memory_space<vmem>>, vector<1x32xf32>
    %100 = vector.shape_cast %99 : vector<1x32xf32> to vector<1x1x32xf32>
    %101 = vector.broadcast %100 : vector<1x1x32xf32> to vector<8x8x32xf32>
    %102 = arith.addf %98, %101 : vector<8x8x32xf32>
    %cst_64 = arith.constant 5.000000e-01 : f32
    %103 = vector.broadcast %cst_64 : f32 to vector<8x8x32xf32>
    %104 = arith.mulf %103, %102 : vector<8x8x32xf32>
    %cst_65 = arith.constant 0.707106769 : f32
    %105 = vector.broadcast %cst_65 : f32 to vector<8x8x32xf32>
    %106 = arith.mulf %102, %105 : vector<8x8x32xf32>
    %107 = math.absf %106 : vector<8x8x32xf32>
    %cst_66 = arith.constant 0.327591091 : f32
    %108 = vector.broadcast %cst_66 : f32 to vector<8x8x32xf32>
    %109 = arith.mulf %108, %107 : vector<8x8x32xf32>
    %cst_67 = arith.constant 1.000000e+00 : f32
    %110 = vector.broadcast %cst_67 : f32 to vector<8x8x32xf32>
    %111 = arith.addf %110, %109 : vector<8x8x32xf32>
    %112 = tpu.reciprocal %111 {approx = true} : vector<8x8x32xf32> -> vector<8x8x32xf32>
    %cst_68 = arith.constant 1.06140542 : f32
    %113 = vector.broadcast %cst_68 : f32 to vector<8x8x32xf32>
    %114 = arith.mulf %113, %112 : vector<8x8x32xf32>
    %cst_69 = arith.constant -1.45315206 : f32
    %115 = vector.broadcast %cst_69 : f32 to vector<8x8x32xf32>
    %116 = arith.addf %114, %115 : vector<8x8x32xf32>
    %117 = arith.mulf %116, %112 : vector<8x8x32xf32>
    %cst_70 = arith.constant 1.42141378 : f32
    %118 = vector.broadcast %cst_70 : f32 to vector<8x8x32xf32>
    %119 = arith.addf %117, %118 : vector<8x8x32xf32>
    %120 = arith.mulf %119, %112 : vector<8x8x32xf32>
    %cst_71 = arith.constant -0.284496725 : f32
    %121 = vector.broadcast %cst_71 : f32 to vector<8x8x32xf32>
    %122 = arith.addf %120, %121 : vector<8x8x32xf32>
    %123 = arith.mulf %122, %112 : vector<8x8x32xf32>
    %cst_72 = arith.constant 0.254829586 : f32
    %124 = vector.broadcast %cst_72 : f32 to vector<8x8x32xf32>
    %125 = arith.addf %123, %124 : vector<8x8x32xf32>
    %126 = arith.mulf %125, %112 : vector<8x8x32xf32>
    %cst_73 = arith.constant 0.000000e+00 : f32
    %127 = vector.broadcast %cst_73 : f32 to vector<8x8x32xf32>
    %128 = arith.subf %127, %107 : vector<8x8x32xf32>
    %129 = arith.mulf %128, %107 : vector<8x8x32xf32>
    %130 = math.exp %129 : vector<8x8x32xf32>
    %131 = arith.mulf %126, %130 : vector<8x8x32xf32>
    %cst_74 = arith.constant 1.000000e+00 : f32
    %132 = vector.broadcast %cst_74 : f32 to vector<8x8x32xf32>
    %133 = arith.subf %132, %131 : vector<8x8x32xf32>
    %cst_75 = arith.constant 0.000000e+00 : f32
    %134 = vector.broadcast %cst_75 : f32 to vector<8x8x32xf32>
    %135 = arith.cmpf olt, %106, %134 : vector<8x8x32xf32>
    %cst_76 = arith.constant 0.000000e+00 : f32
    %136 = vector.broadcast %cst_76 : f32 to vector<8x8x32xf32>
    %137 = arith.subf %136, %133 : vector<8x8x32xf32>
    %138 = arith.select %135, %137, %133 : vector<8x8x32xi1>, vector<8x8x32xf32>
    %cst_77 = arith.constant 1.000000e+00 : f32
    %139 = vector.broadcast %cst_77 : f32 to vector<8x8x32xf32>
    %140 = arith.addf %139, %138 : vector<8x8x32xf32>
    %141 = arith.mulf %104, %140 : vector<8x8x32xf32>
    %c0_78 = arith.constant 0 : index
    %c0_79 = arith.constant 0 : index
    %142 = vector.load %arg9[%c0_78, %c0_79] : memref<2x32xf32, #tpu.memory_space<vmem>>, vector<2x32xf32>
    %143 = vector.extract_strided_slice %142 {offsets = [0, 0], sizes = [1, 32], strides = [1, 1]} : vector<2x32xf32> to vector<1x32xf32>
    %144 = vector.shape_cast %143 : vector<1x32xf32> to vector<1x1x32xf32>
    %145 = vector.broadcast %144 : vector<1x1x32xf32> to vector<8x8x32xf32>
    %146 = arith.mulf %141, %145 : vector<8x8x32xf32>
    %cst_80 = arith.constant dense<0.000000e+00> : vector<8x8xf32>
    %147 = vector.multi_reduction <add>, %146, %cst_80 [2] : vector<8x8x32xf32> to vector<8x8xf32>
    %c0_81 = arith.constant 0 : index
    %c0_82 = arith.constant 0 : index
    %c0_83 = arith.constant 0 : index
    %148 = vector.load %arg10[%c0_81, %c0_82, %c0_83] : memref<1x8x8xf32, #tpu.memory_space<vmem>>, vector<1x8x8xf32>
    %149 = vector.shape_cast %148 : vector<1x8x8xf32> to vector<8x8xf32>
    %150 = vector.shape_cast %147 : vector<8x8xf32> to vector<1x8x8xf32>
    tpu.vector_store %arg10[%c0_81, %c0_82, %c0_83], %150 {strides = array<i32>} : memref<1x8x8xf32, #tpu.memory_space<vmem>>, vector<1x8x8xf32>,
    %151 = vector.extract_strided_slice %142 {offsets = [1, 0], sizes = [1, 32], strides = [1, 1]} : vector<2x32xf32> to vector<1x32xf32>
    %152 = vector.shape_cast %151 : vector<1x32xf32> to vector<1x1x32xf32>
    %153 = vector.broadcast %152 : vector<1x1x32xf32> to vector<8x8x32xf32>
    %154 = arith.mulf %141, %153 : vector<8x8x32xf32>
    %cst_84 = arith.constant dense<0.000000e+00> : vector<8x8xf32>
    %155 = vector.multi_reduction <add>, %154, %cst_84 [2] : vector<8x8x32xf32> to vector<8x8xf32>
    %c0_85 = arith.constant 0 : index
    %c0_86 = arith.constant 0 : index
    %c0_87 = arith.constant 0 : index
    %156 = vector.load %arg11[%c0_85, %c0_86, %c0_87] : memref<1x8x8xf32, #tpu.memory_space<vmem>>, vector<1x8x8xf32>
    %157 = vector.shape_cast %156 : vector<1x8x8xf32> to vector<8x8xf32>
    %158 = vector.shape_cast %155 : vector<8x8xf32> to vector<1x8x8xf32>
    tpu.vector_store %arg11[%c0_85, %c0_86, %c0_87], %158 {strides = array<i32>} : memref<1x8x8xf32, #tpu.memory_space<vmem>>, vector<1x8x8xf32>,
    return
  }
  func.func @transform_0(%arg0: i32, %arg1: i32) -> (i32, i32, i32, i32) {
    %c1_i32 = arith.constant 1 : i32
    %0 = arith.muli %arg0, %c1_i32 : i32
    %1 = arith.addi %0, %arg1 : i32
    %c0_i32 = arith.constant 0 : i32
    %c0_i32_0 = arith.constant 0 : i32
    %c0_i32_1 = arith.constant 0 : i32
    %c0_i32_2 = arith.constant 0 : i32
    return %1, %c0_i32, %c0_i32_0, %c0_i32_1 : i32, i32, i32, i32
  }
  func.func @transform_1(%arg0: i32, %arg1: i32) -> (i32, i32) {
    %c0_i32 = arith.constant 0 : i32
    %c0_i32_0 = arith.constant 0 : i32
    %c0_i32_1 = arith.constant 0 : i32
    return %c0_i32, %c0_i32_0 : i32, i32
  }
  func.func @transform_2(%arg0: i32, %arg1: i32) -> (i32, i32) {
    %c0_i32 = arith.constant 0 : i32
    %c0_i32_0 = arith.constant 0 : i32
    %c0_i32_1 = arith.constant 0 : i32
    return %c0_i32, %c0_i32_0 : i32, i32
  }
  func.func @transform_3(%arg0: i32, %arg1: i32) -> (i32, i32) {
    %c0_i32 = arith.constant 0 : i32
    %c0_i32_0 = arith.constant 0 : i32
    %c0_i32_1 = arith.constant 0 : i32
    return %c0_i32, %c0_i32_0 : i32, i32
  }
  func.func @transform_4(%arg0: i32, %arg1: i32) -> (i32, i32) {
    %c0_i32 = arith.constant 0 : i32
    %c0_i32_0 = arith.constant 0 : i32
    %c0_i32_1 = arith.constant 0 : i32
    return %c0_i32, %c0_i32_0 : i32, i32
  }
  func.func @transform_5(%arg0: i32, %arg1: i32) -> (i32, i32) {
    %c0_i32 = arith.constant 0 : i32
    %c0_i32_0 = arith.constant 0 : i32
    %c0_i32_1 = arith.constant 0 : i32
    return %c0_i32, %c0_i32_0 : i32, i32
  }
  func.func @transform_6(%arg0: i32, %arg1: i32) -> (i32, i32) {
    %c0_i32 = arith.constant 0 : i32
    %c0_i32_0 = arith.constant 0 : i32
    %c0_i32_1 = arith.constant 0 : i32
    return %c0_i32, %c0_i32_0 : i32, i32
  }
  func.func @transform_7(%arg0: i32, %arg1: i32) -> (i32, i32) {
    %c0_i32 = arith.constant 0 : i32
    %c0_i32_0 = arith.constant 0 : i32
    %c0_i32_1 = arith.constant 0 : i32
    return %c0_i32, %c0_i32_0 : i32, i32
  }
  func.func @transform_8(%arg0: i32, %arg1: i32) -> (i32, i32, i32) {
    %c0_i32 = arith.constant 0 : i32
    %c0_i32_0 = arith.constant 0 : i32
    return %arg0, %arg1, %c0_i32 : i32, i32, i32
  }
  func.func @transform_9(%arg0: i32, %arg1: i32) -> (i32, i32, i32) {
    %c0_i32 = arith.constant 0 : i32
    %c0_i32_0 = arith.constant 0 : i32
    return %arg0, %arg1, %c0_i32 : i32, i32, i32
  }
  func.func @transform_10(%arg0: i32, %arg1: i32) -> (i32, i32, i32, i32) {
    %c0_i32 = arith.constant 0 : i32
    %c0_i32_0 = arith.constant 0 : i32
    %c0_i32_1 = arith.constant 0 : i32
    return %arg0, %arg1, %c0_i32, %c0_i32_0 : i32, i32, i32, i32
  }
}

module attributes {stable_mosaic.version = 11 : i64} {
  func.func @_mm_bias_act_kernel(%arg0: i32, %arg1: memref<128x32xf32, #tpu.memory_space<vmem>>, %arg2: memref<32x32xbf16, #tpu.memory_space<vmem>>, %arg3: memref<1x32xf32, #tpu.memory_space<vmem>>, %arg4: memref<128x32xf32, #tpu.memory_space<vmem>>) attributes {dimension_semantics = [#tpu.dimension_semantics<parallel>], iteration_bounds = array<i64: 1>, scalar_prefetch = 0 : i64, scratch_operands = 0 : i64, tpu.core_type = #tpu.core_type<tc>, window_params = [{transform_indices = @transform_0, window_bounds = array<i64: 128, 32>}, {pipeline_mode = #tpu.pipeline_mode<synchronous>, transform_indices = @transform_1, window_bounds = array<i64: 32, 32>}, {pipeline_mode = #tpu.pipeline_mode<synchronous>, transform_indices = @transform_2, window_bounds = array<i64: 1, 32>}, {transform_indices = @transform_3, window_bounds = array<i64: 128, 32>}]} {
    %c0 = arith.constant 0 : index
    %c0_0 = arith.constant 0 : index
    %0 = vector.load %arg1[%c0, %c0_0] : memref<128x32xf32, #tpu.memory_space<vmem>>, vector<128x32xf32>
    %1 = arith.truncf %0 : vector<128x32xf32> to vector<128x32xbf16>
    %c0_1 = arith.constant 0 : index
    %c0_2 = arith.constant 0 : index
    %2 = vector.load %arg2[%c0_1, %c0_2] : memref<32x32xbf16, #tpu.memory_space<vmem>>, vector<32x32xbf16>
    %cst = arith.constant dense<0.000000e+00> : vector<128x32xf32>
    %3 = tpu.matmul %1, %2, %cst {dimension_numbers = #tpu.dot_dimension_numbers<[1], [0], [0], [1], [0, 0, 1, 1], [], []>} : vector<128x32xbf16>, vector<32x32xbf16>, vector<128x32xf32> -> vector<128x32xf32>
    %c0_3 = arith.constant 0 : index
    %c0_4 = arith.constant 0 : index
    %4 = vector.load %arg3[%c0_3, %c0_4] : memref<1x32xf32, #tpu.memory_space<vmem>>, vector<1x32xf32>
    %5 = vector.broadcast %4 : vector<1x32xf32> to vector<128x32xf32>
    %6 = arith.addf %3, %5 : vector<128x32xf32>
    %c0_5 = arith.constant 0 : index
    %c0_6 = arith.constant 0 : index
    %7 = vector.load %arg4[%c0_5, %c0_6] : memref<128x32xf32, #tpu.memory_space<vmem>>, vector<128x32xf32>
    tpu.vector_store %arg4[%c0_5, %c0_6], %6 {strides = array<i32>} : memref<128x32xf32, #tpu.memory_space<vmem>>, vector<128x32xf32>,
    return
  }
  func.func @transform_0(%arg0: i32) -> (i32, i32) {
    %c0_i32 = arith.constant 0 : i32
    %c0_i32_0 = arith.constant 0 : i32
    return %arg0, %c0_i32 : i32, i32
  }
  func.func @transform_1(%arg0: i32) -> (i32, i32) {
    %c0_i32 = arith.constant 0 : i32
    %c0_i32_0 = arith.constant 0 : i32
    %c0_i32_1 = arith.constant 0 : i32
    return %c0_i32, %c0_i32_0 : i32, i32
  }
  func.func @transform_2(%arg0: i32) -> (i32, i32) {
    %c0_i32 = arith.constant 0 : i32
    %c0_i32_0 = arith.constant 0 : i32
    %c0_i32_1 = arith.constant 0 : i32
    return %c0_i32, %c0_i32_0 : i32, i32
  }
  func.func @transform_3(%arg0: i32) -> (i32, i32) {
    %c0_i32 = arith.constant 0 : i32
    %c0_i32_0 = arith.constant 0 : i32
    return %arg0, %c0_i32 : i32, i32
  }
}

module attributes {stable_mosaic.version = 11 : i64} {
  func.func @_mm_bias_act_kernel(%arg0: i32, %arg1: memref<128x32xf32, #tpu.memory_space<vmem>>, %arg2: memref<32x64xbf16, #tpu.memory_space<vmem>>, %arg3: memref<1x64xf32, #tpu.memory_space<vmem>>, %arg4: memref<128x64xbf16, #tpu.memory_space<vmem>>) attributes {dimension_semantics = [#tpu.dimension_semantics<parallel>], iteration_bounds = array<i64: 1>, scalar_prefetch = 0 : i64, scratch_operands = 0 : i64, tpu.core_type = #tpu.core_type<tc>, window_params = [{transform_indices = @transform_0, window_bounds = array<i64: 128, 32>}, {pipeline_mode = #tpu.pipeline_mode<synchronous>, transform_indices = @transform_1, window_bounds = array<i64: 32, 64>}, {pipeline_mode = #tpu.pipeline_mode<synchronous>, transform_indices = @transform_2, window_bounds = array<i64: 1, 64>}, {transform_indices = @transform_3, window_bounds = array<i64: 128, 64>}]} {
    %c0 = arith.constant 0 : index
    %c0_0 = arith.constant 0 : index
    %0 = vector.load %arg1[%c0, %c0_0] : memref<128x32xf32, #tpu.memory_space<vmem>>, vector<128x32xf32>
    %1 = arith.truncf %0 : vector<128x32xf32> to vector<128x32xbf16>
    %c0_1 = arith.constant 0 : index
    %c0_2 = arith.constant 0 : index
    %2 = vector.load %arg2[%c0_1, %c0_2] : memref<32x64xbf16, #tpu.memory_space<vmem>>, vector<32x64xbf16>
    %cst = arith.constant dense<0.000000e+00> : vector<128x64xf32>
    %3 = tpu.matmul %1, %2, %cst {dimension_numbers = #tpu.dot_dimension_numbers<[1], [0], [0], [1], [0, 0, 1, 1], [], []>} : vector<128x32xbf16>, vector<32x64xbf16>, vector<128x64xf32> -> vector<128x64xf32>
    %c0_3 = arith.constant 0 : index
    %c0_4 = arith.constant 0 : index
    %4 = vector.load %arg3[%c0_3, %c0_4] : memref<1x64xf32, #tpu.memory_space<vmem>>, vector<1x64xf32>
    %5 = vector.broadcast %4 : vector<1x64xf32> to vector<128x64xf32>
    %6 = arith.addf %3, %5 : vector<128x64xf32>
    %7 = arith.truncf %6 : vector<128x64xf32> to vector<128x64xbf16>
    %c0_5 = arith.constant 0 : index
    %c0_6 = arith.constant 0 : index
    %8 = vector.load %arg4[%c0_5, %c0_6] : memref<128x64xbf16, #tpu.memory_space<vmem>>, vector<128x64xbf16>
    tpu.vector_store %arg4[%c0_5, %c0_6], %7 {strides = array<i32>} : memref<128x64xbf16, #tpu.memory_space<vmem>>, vector<128x64xbf16>,
    return
  }
  func.func @transform_0(%arg0: i32) -> (i32, i32) {
    %c0_i32 = arith.constant 0 : i32
    %c0_i32_0 = arith.constant 0 : i32
    return %arg0, %c0_i32 : i32, i32
  }
  func.func @transform_1(%arg0: i32) -> (i32, i32) {
    %c0_i32 = arith.constant 0 : i32
    %c0_i32_0 = arith.constant 0 : i32
    %c0_i32_1 = arith.constant 0 : i32
    return %c0_i32, %c0_i32_0 : i32, i32
  }
  func.func @transform_2(%arg0: i32) -> (i32, i32) {
    %c0_i32 = arith.constant 0 : i32
    %c0_i32_0 = arith.constant 0 : i32
    %c0_i32_1 = arith.constant 0 : i32
    return %c0_i32, %c0_i32_0 : i32, i32
  }
  func.func @transform_3(%arg0: i32) -> (i32, i32) {
    %c0_i32 = arith.constant 0 : i32
    %c0_i32_0 = arith.constant 0 : i32
    return %arg0, %c0_i32 : i32, i32
  }
}

module attributes {stable_mosaic.version = 11 : i64} {
  func.func @_attn_fused_kernel(%arg0: i32, %arg1: i32, %arg2: i32, %arg3: memref<1x64x32xf32, #tpu.memory_space<vmem>>, %arg4: memref<1x64x64xbf16, #tpu.memory_space<vmem>>, %arg5: memref<1x64x32xbf16, #tpu.memory_space<vmem>>, %arg6: memref<1x64x32xf32, #tpu.memory_space<vmem>>, %arg7: memref<32x32xbf16, #tpu.memory_space<vmem>>, %arg8: memref<1x32xf32, #tpu.memory_space<vmem>>, %arg9: memref<32x64xbf16, #tpu.memory_space<vmem>>, %arg10: memref<1x64xf32, #tpu.memory_space<vmem>>, %arg11: memref<64x32xbf16, #tpu.memory_space<vmem>>, %arg12: memref<1x32xf32, #tpu.memory_space<vmem>>, %arg13: memref<1x64x32xf32, #tpu.memory_space<vmem>>, %arg14: memref<64x8xf32, #tpu.memory_space<vmem>>, %arg15: memref<64x8xf32, #tpu.memory_space<vmem>>, %arg16: memref<64x32xf32, #tpu.memory_space<vmem>>) attributes {dimension_semantics = [#tpu.dimension_semantics<parallel>, #tpu.dimension_semantics<parallel>, #tpu.dimension_semantics<arbitrary>], iteration_bounds = array<i64: 2, 1, 1>, scalar_prefetch = 0 : i64, scratch_operands = 3 : i64, tpu.core_type = #tpu.core_type<tc>, window_params = [{transform_indices = @transform_0, window_bounds = array<i64: 1, 64, 32>}, {transform_indices = @transform_1, window_bounds = array<i64: 1, 64, 64>}, {transform_indices = @transform_2, window_bounds = array<i64: 1, 64, 32>}, {transform_indices = @transform_3, window_bounds = array<i64: 1, 64, 32>}, {pipeline_mode = #tpu.pipeline_mode<synchronous>, transform_indices = @transform_4, window_bounds = array<i64: 32, 32>}, {pipeline_mode = #tpu.pipeline_mode<synchronous>, transform_indices = @transform_5, window_bounds = array<i64: 1, 32>}, {pipeline_mode = #tpu.pipeline_mode<synchronous>, transform_indices = @transform_6, window_bounds = array<i64: 32, 64>}, {pipeline_mode = #tpu.pipeline_mode<synchronous>, transform_indices = @transform_7, window_bounds = array<i64: 1, 64>}, {pipeline_mode = #tpu.pipeline_mode<synchronous>, transform_indices = @transform_8, window_bounds = array<i64: 64, 32>}, {pipeline_mode = #tpu.pipeline_mode<synchronous>, transform_indices = @transform_9, window_bounds = array<i64: 1, 32>}, {transform_indices = @transform_10, window_bounds = array<i64: 1, 64, 32>}]} {
    %c0_i32 = arith.constant 0 : i32
    %0 = arith.cmpi eq, %arg2, %c0_i32 : i32
    %1 = arith.extui %0 : i1 to i32
    %c0_i32_0 = arith.constant 0 : i32
    %2 = arith.cmpi ne, %1, %c0_i32_0 : i32
    scf.if %2 {
      %cst_122 = arith.constant 0xFF800000 : f32
      %227 = vector.broadcast %cst_122 : f32 to vector<64x8xf32>
      %c0_123 = arith.constant 0 : index
      %c0_124 = arith.constant 0 : index
      %228 = vector.load %arg14[%c0_123, %c0_124] : memref<64x8xf32, #tpu.memory_space<vmem>>, vector<64x8xf32>
      tpu.vector_store %arg14[%c0_123, %c0_124], %227 {strides = array<i32>} : memref<64x8xf32, #tpu.memory_space<vmem>>, vector<64x8xf32>,
      %cst_125 = arith.constant 0.000000e+00 : f32
      %229 = vector.broadcast %cst_125 : f32 to vector<64x8xf32>
      %c0_126 = arith.constant 0 : index
      %c0_127 = arith.constant 0 : index
      %230 = vector.load %arg15[%c0_126, %c0_127] : memref<64x8xf32, #tpu.memory_space<vmem>>, vector<64x8xf32>
      tpu.vector_store %arg15[%c0_126, %c0_127], %229 {strides = array<i32>} : memref<64x8xf32, #tpu.memory_space<vmem>>, vector<64x8xf32>,
      %cst_128 = arith.constant 0.000000e+00 : f32
      %231 = vector.broadcast %cst_128 : f32 to vector<64x32xf32>
      %c0_129 = arith.constant 0 : index
      %c0_130 = arith.constant 0 : index
      %232 = vector.load %arg16[%c0_129, %c0_130] : memref<64x32xf32, #tpu.memory_space<vmem>>, vector<64x32xf32>
      tpu.vector_store %arg16[%c0_129, %c0_130], %231 {strides = array<i32>} : memref<64x32xf32, #tpu.memory_space<vmem>>, vector<64x32xf32>,
    } else {
    }
    %c0 = arith.constant 0 : index
    %c0_1 = arith.constant 0 : index
    %c0_2 = arith.constant 0 : index
    %3 = vector.load %arg3[%c0, %c0_1, %c0_2] : memref<1x64x32xf32, #tpu.memory_space<vmem>>, vector<1x64x32xf32>
    %4 = vector.shape_cast %3 : vector<1x64x32xf32> to vector<64x32xf32>
    %5 = arith.truncf %4 : vector<64x32xf32> to vector<64x32xbf16>
    %c0_3 = arith.constant 0 : index
    %c0_4 = arith.constant 0 : index
    %c0_5 = arith.constant 0 : index
    %6 = vector.load %arg4[%c0_3, %c0_4, %c0_5] : memref<1x64x64xbf16, #tpu.memory_space<vmem>>, vector<1x64x64xbf16>
    %7 = vector.shape_cast %6 : vector<1x64x64xbf16> to vector<64x64xbf16>
    %8 = vector.extract_strided_slice %5 {offsets = [0, 0], sizes = [64, 4], strides = [1, 1]} : vector<64x32xbf16> to vector<64x4xbf16>
    %9 = vector.extract_strided_slice %7 {offsets = [0, 0], sizes = [64, 4], strides = [1, 1]} : vector<64x64xbf16> to vector<64x4xbf16>
    %10 = vector.extract_strided_slice %7 {offsets = [0, 32], sizes = [64, 4], strides = [1, 1]} : vector<64x64xbf16> to vector<64x4xbf16>
    %cst = arith.constant dense<0.000000e+00> : vector<64x64xf32>
    %11 = tpu.matmul %8, %9, %cst {dimension_numbers = #tpu.dot_dimension_numbers<[1], [1], [0], [0], [0, 0, 1, 0], [], []>} : vector<64x4xbf16>, vector<64x4xbf16>, vector<64x64xf32> -> vector<64x64xf32>
    %c0_6 = arith.constant 0 : index
    %c0_7 = arith.constant 0 : index
    %12 = vector.load %arg14[%c0_6, %c0_7] : memref<64x8xf32, #tpu.memory_space<vmem>>, vector<64x1xf32>
    %cst_8 = arith.constant dense<0xFF800000> : vector<64xf32>
    %13 = vector.multi_reduction <maximumf>, %11, %cst_8 [1] : vector<64x64xf32> to vector<64xf32>
    %14 = vector.shape_cast %13 : vector<64xf32> to vector<64x1xf32>
    %15 = arith.maximumf %12, %14 : vector<64x1xf32>
    %16 = arith.subf %12, %15 : vector<64x1xf32>
    %17 = math.exp %16 : vector<64x1xf32>
    %18 = vector.broadcast %15 : vector<64x1xf32> to vector<64x64xf32>
    %19 = arith.subf %11, %18 : vector<64x64xf32>
    %20 = math.exp %19 : vector<64x64xf32>
    %c0_9 = arith.constant 0 : index
    %c0_10 = arith.constant 0 : index
    %21 = vector.load %arg15[%c0_9, %c0_10] : memref<64x8xf32, #tpu.memory_space<vmem>>, vector<64x1xf32>
    %22 = arith.mulf %17, %21 : vector<64x1xf32>
    %cst_11 = arith.constant dense<0.000000e+00> : vector<64xf32>
    %23 = vector.multi_reduction <add>, %20, %cst_11 [1] : vector<64x64xf32> to vector<64xf32>
    %24 = vector.shape_cast %23 : vector<64xf32> to vector<64x1xf32>
    %25 = arith.addf %22, %24 : vector<64x1xf32>
    %c0_12 = arith.constant 0 : index
    %c0_13 = arith.constant 0 : index
    %26 = vector.load %arg15[%c0_12, %c0_13] : memref<64x8xf32, #tpu.memory_space<vmem>>, vector<64x1xf32>
    tpu.vector_store %arg15[%c0_12, %c0_13], %25 {strides = array<i32>} : memref<64x8xf32, #tpu.memory_space<vmem>>, vector<64x1xf32>,
    %c0_14 = arith.constant 0 : index
    %c0_15 = arith.constant 0 : index
    %27 = vector.load %arg16[%c0_14, %c0_15] : memref<64x32xf32, #tpu.memory_space<vmem>>, vector<64x4xf32>
    %28 = vector.broadcast %17 : vector<64x1xf32> to vector<64x4xf32>
    %29 = arith.mulf %28, %27 : vector<64x4xf32>
    %30 = arith.truncf %20 : vector<64x64xf32> to vector<64x64xbf16>
    %cst_16 = arith.constant dense<0.000000e+00> : vector<64x4xf32>
    %31 = tpu.matmul %30, %10, %cst_16 {dimension_numbers = #tpu.dot_dimension_numbers<[1], [0], [0], [1], [0, 0, 1, 1], [], []>} : vector<64x64xbf16>, vector<64x4xbf16>, vector<64x4xf32> -> vector<64x4xf32>
    %32 = arith.addf %29, %31 : vector<64x4xf32>
    %c0_17 = arith.constant 0 : index
    %c0_18 = arith.constant 0 : index
    %33 = vector.load %arg16[%c0_17, %c0_18] : memref<64x32xf32, #tpu.memory_space<vmem>>, vector<64x4xf32>
    tpu.vector_store %arg16[%c0_17, %c0_18], %32 {strides = array<i32>} : memref<64x32xf32, #tpu.memory_space<vmem>>, vector<64x4xf32>,
    %c0_19 = arith.constant 0 : index
    %c0_20 = arith.constant 0 : index
    %34 = vector.load %arg14[%c0_19, %c0_20] : memref<64x8xf32, #tpu.memory_space<vmem>>, vector<64x1xf32>
    tpu.vector_store %arg14[%c0_19, %c0_20], %15 {strides = array<i32>} : memref<64x8xf32, #tpu.memory_space<vmem>>, vector<64x1xf32>,
    %35 = vector.extract_strided_slice %5 {offsets = [0, 4], sizes = [64, 4], strides = [1, 1]} : vector<64x32xbf16> to vector<64x4xbf16>
    %36 = vector.extract_strided_slice %7 {offsets = [0, 4], sizes = [64, 4], strides = [1, 1]} : vector<64x64xbf16> to vector<64x4xbf16>
    %37 = vector.extract_strided_slice %7 {offsets = [0, 36], sizes = [64, 4], strides = [1, 1]} : vector<64x64xbf16> to vector<64x4xbf16>
    %cst_21 = arith.constant dense<0.000000e+00> : vector<64x64xf32>
    %38 = tpu.matmul %35, %36, %cst_21 {dimension_numbers = #tpu.dot_dimension_numbers<[1], [1], [0], [0], [0, 0, 1, 0], [], []>} : vector<64x4xbf16>, vector<64x4xbf16>, vector<64x64xf32> -> vector<64x64xf32>
    %c0_22 = arith.constant 0 : index
    %c1 = arith.constant 1 : index
    %39 = vector.load %arg14[%c0_22, %c1] : memref<64x8xf32, #tpu.memory_space<vmem>>, vector<64x1xf32>
    %cst_23 = arith.constant dense<0xFF800000> : vector<64xf32>
    %40 = vector.multi_reduction <maximumf>, %38, %cst_23 [1] : vector<64x64xf32> to vector<64xf32>
    %41 = vector.shape_cast %40 : vector<64xf32> to vector<64x1xf32>
    %42 = arith.maximumf %39, %41 : vector<64x1xf32>
    %43 = arith.subf %39, %42 : vector<64x1xf32>
    %44 = math.exp %43 : vector<64x1xf32>
    %45 = vector.broadcast %42 : vector<64x1xf32> to vector<64x64xf32>
    %46 = arith.subf %38, %45 : vector<64x64xf32>
    %47 = math.exp %46 : vector<64x64xf32>
    %c0_24 = arith.constant 0 : index
    %c1_25 = arith.constant 1 : index
    %48 = vector.load %arg15[%c0_24, %c1_25] : memref<64x8xf32, #tpu.memory_space<vmem>>, vector<64x1xf32>
    %49 = arith.mulf %44, %48 : vector<64x1xf32>
    %cst_26 = arith.constant dense<0.000000e+00> : vector<64xf32>
    %50 = vector.multi_reduction <add>, %47, %cst_26 [1] : vector<64x64xf32> to vector<64xf32>
    %51 = vector.shape_cast %50 : vector<64xf32> to vector<64x1xf32>
    %52 = arith.addf %49, %51 : vector<64x1xf32>
    %c0_27 = arith.constant 0 : index
    %c1_28 = arith.constant 1 : index
    %53 = vector.load %arg15[%c0_27, %c1_28] : memref<64x8xf32, #tpu.memory_space<vmem>>, vector<64x1xf32>
    tpu.vector_store %arg15[%c0_27, %c1_28], %52 {strides = array<i32>} : memref<64x8xf32, #tpu.memory_space<vmem>>, vector<64x1xf32>,
    %c0_29 = arith.constant 0 : index
    %c4 = arith.constant 4 : index
    %54 = vector.load %arg16[%c0_29, %c4] : memref<64x32xf32, #tpu.memory_space<vmem>>, vector<64x4xf32>
    %55 = vector.broadcast %44 : vector<64x1xf32> to vector<64x4xf32>
    %56 = arith.mulf %55, %54 : vector<64x4xf32>
    %57 = arith.truncf %47 : vector<64x64xf32> to vector<64x64xbf16>
    %cst_30 = arith.constant dense<0.000000e+00> : vector<64x4xf32>
    %58 = tpu.matmul %57, %37, %cst_30 {dimension_numbers = #tpu.dot_dimension_numbers<[1], [0], [0], [1], [0, 0, 1, 1], [], []>} : vector<64x64xbf16>, vector<64x4xbf16>, vector<64x4xf32> -> vector<64x4xf32>
    %59 = arith.addf %56, %58 : vector<64x4xf32>
    %c0_31 = arith.constant 0 : index
    %c4_32 = arith.constant 4 : index
    %60 = vector.load %arg16[%c0_31, %c4_32] : memref<64x32xf32, #tpu.memory_space<vmem>>, vector<64x4xf32>
    tpu.vector_store %arg16[%c0_31, %c4_32], %59 {strides = array<i32>} : memref<64x32xf32, #tpu.memory_space<vmem>>, vector<64x4xf32>,
    %c0_33 = arith.constant 0 : index
    %c1_34 = arith.constant 1 : index
    %61 = vector.load %arg14[%c0_33, %c1_34] : memref<64x8xf32, #tpu.memory_space<vmem>>, vector<64x1xf32>
    tpu.vector_store %arg14[%c0_33, %c1_34], %42 {strides = array<i32>} : memref<64x8xf32, #tpu.memory_space<vmem>>, vector<64x1xf32>,
    %62 = vector.extract_strided_slice %5 {offsets = [0, 8], sizes = [64, 4], strides = [1, 1]} : vector<64x32xbf16> to vector<64x4xbf16>
    %63 = vector.extract_strided_slice %7 {offsets = [0, 8], sizes = [64, 4], strides = [1, 1]} : vector<64x64xbf16> to vector<64x4xbf16>
    %64 = vector.extract_strided_slice %7 {offsets = [0, 40], sizes = [64, 4], strides = [1, 1]} : vector<64x64xbf16> to vector<64x4xbf16>
    %cst_35 = arith.constant dense<0.000000e+00> : vector<64x64xf32>
    %65 = tpu.matmul %62, %63, %cst_35 {dimension_numbers = #tpu.dot_dimension_numbers<[1], [1], [0], [0], [0, 0, 1, 0], [], []>} : vector<64x4xbf16>, vector<64x4xbf16>, vector<64x64xf32> -> vector<64x64xf32>
    %c0_36 = arith.constant 0 : index
    %c2 = arith.constant 2 : index
    %66 = vector.load %arg14[%c0_36, %c2] : memref<64x8xf32, #tpu.memory_space<vmem>>, vector<64x1xf32>
    %cst_37 = arith.constant dense<0xFF800000> : vector<64xf32>
    %67 = vector.multi_reduction <maximumf>, %65, %cst_37 [1] : vector<64x64xf32> to vector<64xf32>
    %68 = vector.shape_cast %67 : vector<64xf32> to vector<64x1xf32>
    %69 = arith.maximumf %66, %68 : vector<64x1xf32>
    %70 = arith.subf %66, %69 : vector<64x1xf32>
    %71 = math.exp %70 : vector<64x1xf32>
    %72 = vector.broadcast %69 : vector<64x1xf32> to vector<64x64xf32>
    %73 = arith.subf %65, %72 : vector<64x64xf32>
    %74 = math.exp %73 : vector<64x64xf32>
    %c0_38 = arith.constant 0 : index
    %c2_39 = arith.constant 2 : index
    %75 = vector.load %arg15[%c0_38, %c2_39] : memref<64x8xf32, #tpu.memory_space<vmem>>, vector<64x1xf32>
    %76 = arith.mulf %71, %75 : vector<64x1xf32>
    %cst_40 = arith.constant dense<0.000000e+00> : vector<64xf32>
    %77 = vector.multi_reduction <add>, %74, %cst_40 [1] : vector<64x64xf32> to vector<64xf32>
    %78 = vector.shape_cast %77 : vector<64xf32> to vector<64x1xf32>
    %79 = arith.addf %76, %78 : vector<64x1xf32>
    %c0_41 = arith.constant 0 : index
    %c2_42 = arith.constant 2 : index
    %80 = vector.load %arg15[%c0_41, %c2_42] : memref<64x8xf32, #tpu.memory_space<vmem>>, vector<64x1xf32>
    tpu.vector_store %arg15[%c0_41, %c2_42], %79 {strides = array<i32>} : memref<64x8xf32, #tpu.memory_space<vmem>>, vector<64x1xf32>,
    %c0_43 = arith.constant 0 : index
    %c8 = arith.constant 8 : index
    %81 = vector.load %arg16[%c0_43, %c8] : memref<64x32xf32, #tpu.memory_space<vmem>>, vector<64x4xf32>
    %82 = vector.broadcast %71 : vector<64x1xf32> to vector<64x4xf32>
    %83 = arith.mulf %82, %81 : vector<64x4xf32>
    %84 = arith.truncf %74 : vector<64x64xf32> to vector<64x64xbf16>
    %cst_44 = arith.constant dense<0.000000e+00> : vector<64x4xf32>
    %85 = tpu.matmul %84, %64, %cst_44 {dimension_numbers = #tpu.dot_dimension_numbers<[1], [0], [0], [1], [0, 0, 1, 1], [], []>} : vector<64x64xbf16>, vector<64x4xbf16>, vector<64x4xf32> -> vector<64x4xf32>
    %86 = arith.addf %83, %85 : vector<64x4xf32>
    %c0_45 = arith.constant 0 : index
    %c8_46 = arith.constant 8 : index
    %87 = vector.load %arg16[%c0_45, %c8_46] : memref<64x32xf32, #tpu.memory_space<vmem>>, vector<64x4xf32>
    tpu.vector_store %arg16[%c0_45, %c8_46], %86 {strides = array<i32>} : memref<64x32xf32, #tpu.memory_space<vmem>>, vector<64x4xf32>,
    %c0_47 = arith.constant 0 : index
    %c2_48 = arith.constant 2 : index
    %88 = vector.load %arg14[%c0_47, %c2_48] : memref<64x8xf32, #tpu.memory_space<vmem>>, vector<64x1xf32>
    tpu.vector_store %arg14[%c0_47, %c2_48], %69 {strides = array<i32>} : memref<64x8xf32, #tpu.memory_space<vmem>>, vector<64x1xf32>,
    %89 = vector.extract_strided_slice %5 {offsets = [0, 12], sizes = [64, 4], strides = [1, 1]} : vector<64x32xbf16> to vector<64x4xbf16>
    %90 = vector.extract_strided_slice %7 {offsets = [0, 12], sizes = [64, 4], strides = [1, 1]} : vector<64x64xbf16> to vector<64x4xbf16>
    %91 = vector.extract_strided_slice %7 {offsets = [0, 44], sizes = [64, 4], strides = [1, 1]} : vector<64x64xbf16> to vector<64x4xbf16>
    %cst_49 = arith.constant dense<0.000000e+00> : vector<64x64xf32>
    %92 = tpu.matmul %89, %90, %cst_49 {dimension_numbers = #tpu.dot_dimension_numbers<[1], [1], [0], [0], [0, 0, 1, 0], [], []>} : vector<64x4xbf16>, vector<64x4xbf16>, vector<64x64xf32> -> vector<64x64xf32>
    %c0_50 = arith.constant 0 : index
    %c3 = arith.constant 3 : index
    %93 = vector.load %arg14[%c0_50, %c3] : memref<64x8xf32, #tpu.memory_space<vmem>>, vector<64x1xf32>
    %cst_51 = arith.constant dense<0xFF800000> : vector<64xf32>
    %94 = vector.multi_reduction <maximumf>, %92, %cst_51 [1] : vector<64x64xf32> to vector<64xf32>
    %95 = vector.shape_cast %94 : vector<64xf32> to vector<64x1xf32>
    %96 = arith.maximumf %93, %95 : vector<64x1xf32>
    %97 = arith.subf %93, %96 : vector<64x1xf32>
    %98 = math.exp %97 : vector<64x1xf32>
    %99 = vector.broadcast %96 : vector<64x1xf32> to vector<64x64xf32>
    %100 = arith.subf %92, %99 : vector<64x64xf32>
    %101 = math.exp %100 : vector<64x64xf32>
    %c0_52 = arith.constant 0 : index
    %c3_53 = arith.constant 3 : index
    %102 = vector.load %arg15[%c0_52, %c3_53] : memref<64x8xf32, #tpu.memory_space<vmem>>, vector<64x1xf32>
    %103 = arith.mulf %98, %102 : vector<64x1xf32>
    %cst_54 = arith.constant dense<0.000000e+00> : vector<64xf32>
    %104 = vector.multi_reduction <add>, %101, %cst_54 [1] : vector<64x64xf32> to vector<64xf32>
    %105 = vector.shape_cast %104 : vector<64xf32> to vector<64x1xf32>
    %106 = arith.addf %103, %105 : vector<64x1xf32>
    %c0_55 = arith.constant 0 : index
    %c3_56 = arith.constant 3 : index
    %107 = vector.load %arg15[%c0_55, %c3_56] : memref<64x8xf32, #tpu.memory_space<vmem>>, vector<64x1xf32>
    tpu.vector_store %arg15[%c0_55, %c3_56], %106 {strides = array<i32>} : memref<64x8xf32, #tpu.memory_space<vmem>>, vector<64x1xf32>,
    %c0_57 = arith.constant 0 : index
    %c12 = arith.constant 12 : index
    %108 = vector.load %arg16[%c0_57, %c12] : memref<64x32xf32, #tpu.memory_space<vmem>>, vector<64x4xf32>
    %109 = vector.broadcast %98 : vector<64x1xf32> to vector<64x4xf32>
    %110 = arith.mulf %109, %108 : vector<64x4xf32>
    %111 = arith.truncf %101 : vector<64x64xf32> to vector<64x64xbf16>
    %cst_58 = arith.constant dense<0.000000e+00> : vector<64x4xf32>
    %112 = tpu.matmul %111, %91, %cst_58 {dimension_numbers = #tpu.dot_dimension_numbers<[1], [0], [0], [1], [0, 0, 1, 1], [], []>} : vector<64x64xbf16>, vector<64x4xbf16>, vector<64x4xf32> -> vector<64x4xf32>
    %113 = arith.addf %110, %112 : vector<64x4xf32>
    %c0_59 = arith.constant 0 : index
    %c12_60 = arith.constant 12 : index
    %114 = vector.load %arg16[%c0_59, %c12_60] : memref<64x32xf32, #tpu.memory_space<vmem>>, vector<64x4xf32>
    tpu.vector_store %arg16[%c0_59, %c12_60], %113 {strides = array<i32>} : memref<64x32xf32, #tpu.memory_space<vmem>>, vector<64x4xf32>,
    %c0_61 = arith.constant 0 : index
    %c3_62 = arith.constant 3 : index
    %115 = vector.load %arg14[%c0_61, %c3_62] : memref<64x8xf32, #tpu.memory_space<vmem>>, vector<64x1xf32>
    tpu.vector_store %arg14[%c0_61, %c3_62], %96 {strides = array<i32>} : memref<64x8xf32, #tpu.memory_space<vmem>>, vector<64x1xf32>,
    %116 = vector.extract_strided_slice %5 {offsets = [0, 16], sizes = [64, 4], strides = [1, 1]} : vector<64x32xbf16> to vector<64x4xbf16>
    %117 = vector.extract_strided_slice %7 {offsets = [0, 16], sizes = [64, 4], strides = [1, 1]} : vector<64x64xbf16> to vector<64x4xbf16>
    %118 = vector.extract_strided_slice %7 {offsets = [0, 48], sizes = [64, 4], strides = [1, 1]} : vector<64x64xbf16> to vector<64x4xbf16>
    %cst_63 = arith.constant dense<0.000000e+00> : vector<64x64xf32>
    %119 = tpu.matmul %116, %117, %cst_63 {dimension_numbers = #tpu.dot_dimension_numbers<[1], [1], [0], [0], [0, 0, 1, 0], [], []>} : vector<64x4xbf16>, vector<64x4xbf16>, vector<64x64xf32> -> vector<64x64xf32>
    %c0_64 = arith.constant 0 : index
    %c4_65 = arith.constant 4 : index
    %120 = vector.load %arg14[%c0_64, %c4_65] : memref<64x8xf32, #tpu.memory_space<vmem>>, vector<64x1xf32>
    %cst_66 = arith.constant dense<0xFF800000> : vector<64xf32>
    %121 = vector.multi_reduction <maximumf>, %119, %cst_66 [1] : vector<64x64xf32> to vector<64xf32>
    %122 = vector.shape_cast %121 : vector<64xf32> to vector<64x1xf32>
    %123 = arith.maximumf %120, %122 : vector<64x1xf32>
    %124 = arith.subf %120, %123 : vector<64x1xf32>
    %125 = math.exp %124 : vector<64x1xf32>
    %126 = vector.broadcast %123 : vector<64x1xf32> to vector<64x64xf32>
    %127 = arith.subf %119, %126 : vector<64x64xf32>
    %128 = math.exp %127 : vector<64x64xf32>
    %c0_67 = arith.constant 0 : index
    %c4_68 = arith.constant 4 : index
    %129 = vector.load %arg15[%c0_67, %c4_68] : memref<64x8xf32, #tpu.memory_space<vmem>>, vector<64x1xf32>
    %130 = arith.mulf %125, %129 : vector<64x1xf32>
    %cst_69 = arith.constant dense<0.000000e+00> : vector<64xf32>
    %131 = vector.multi_reduction <add>, %128, %cst_69 [1] : vector<64x64xf32> to vector<64xf32>
    %132 = vector.shape_cast %131 : vector<64xf32> to vector<64x1xf32>
    %133 = arith.addf %130, %132 : vector<64x1xf32>
    %c0_70 = arith.constant 0 : index
    %c4_71 = arith.constant 4 : index
    %134 = vector.load %arg15[%c0_70, %c4_71] : memref<64x8xf32, #tpu.memory_space<vmem>>, vector<64x1xf32>
    tpu.vector_store %arg15[%c0_70, %c4_71], %133 {strides = array<i32>} : memref<64x8xf32, #tpu.memory_space<vmem>>, vector<64x1xf32>,
    %c0_72 = arith.constant 0 : index
    %c16 = arith.constant 16 : index
    %135 = vector.load %arg16[%c0_72, %c16] : memref<64x32xf32, #tpu.memory_space<vmem>>, vector<64x4xf32>
    %136 = vector.broadcast %125 : vector<64x1xf32> to vector<64x4xf32>
    %137 = arith.mulf %136, %135 : vector<64x4xf32>
    %138 = arith.truncf %128 : vector<64x64xf32> to vector<64x64xbf16>
    %cst_73 = arith.constant dense<0.000000e+00> : vector<64x4xf32>
    %139 = tpu.matmul %138, %118, %cst_73 {dimension_numbers = #tpu.dot_dimension_numbers<[1], [0], [0], [1], [0, 0, 1, 1], [], []>} : vector<64x64xbf16>, vector<64x4xbf16>, vector<64x4xf32> -> vector<64x4xf32>
    %140 = arith.addf %137, %139 : vector<64x4xf32>
    %c0_74 = arith.constant 0 : index
    %c16_75 = arith.constant 16 : index
    %141 = vector.load %arg16[%c0_74, %c16_75] : memref<64x32xf32, #tpu.memory_space<vmem>>, vector<64x4xf32>
    tpu.vector_store %arg16[%c0_74, %c16_75], %140 {strides = array<i32>} : memref<64x32xf32, #tpu.memory_space<vmem>>, vector<64x4xf32>,
    %c0_76 = arith.constant 0 : index
    %c4_77 = arith.constant 4 : index
    %142 = vector.load %arg14[%c0_76, %c4_77] : memref<64x8xf32, #tpu.memory_space<vmem>>, vector<64x1xf32>
    tpu.vector_store %arg14[%c0_76, %c4_77], %123 {strides = array<i32>} : memref<64x8xf32, #tpu.memory_space<vmem>>, vector<64x1xf32>,
    %143 = vector.extract_strided_slice %5 {offsets = [0, 20], sizes = [64, 4], strides = [1, 1]} : vector<64x32xbf16> to vector<64x4xbf16>
    %144 = vector.extract_strided_slice %7 {offsets = [0, 20], sizes = [64, 4], strides = [1, 1]} : vector<64x64xbf16> to vector<64x4xbf16>
    %145 = vector.extract_strided_slice %7 {offsets = [0, 52], sizes = [64, 4], strides = [1, 1]} : vector<64x64xbf16> to vector<64x4xbf16>
    %cst_78 = arith.constant dense<0.000000e+00> : vector<64x64xf32>
    %146 = tpu.matmul %143, %144, %cst_78 {dimension_numbers = #tpu.dot_dimension_numbers<[1], [1], [0], [0], [0, 0, 1, 0], [], []>} : vector<64x4xbf16>, vector<64x4xbf16>, vector<64x64xf32> -> vector<64x64xf32>
    %c0_79 = arith.constant 0 : index
    %c5 = arith.constant 5 : index
    %147 = vector.load %arg14[%c0_79, %c5] : memref<64x8xf32, #tpu.memory_space<vmem>>, vector<64x1xf32>
    %cst_80 = arith.constant dense<0xFF800000> : vector<64xf32>
    %148 = vector.multi_reduction <maximumf>, %146, %cst_80 [1] : vector<64x64xf32> to vector<64xf32>
    %149 = vector.shape_cast %148 : vector<64xf32> to vector<64x1xf32>
    %150 = arith.maximumf %147, %149 : vector<64x1xf32>
    %151 = arith.subf %147, %150 : vector<64x1xf32>
    %152 = math.exp %151 : vector<64x1xf32>
    %153 = vector.broadcast %150 : vector<64x1xf32> to vector<64x64xf32>
    %154 = arith.subf %146, %153 : vector<64x64xf32>
    %155 = math.exp %154 : vector<64x64xf32>
    %c0_81 = arith.constant 0 : index
    %c5_82 = arith.constant 5 : index
    %156 = vector.load %arg15[%c0_81, %c5_82] : memref<64x8xf32, #tpu.memory_space<vmem>>, vector<64x1xf32>
    %157 = arith.mulf %152, %156 : vector<64x1xf32>
    %cst_83 = arith.constant dense<0.000000e+00> : vector<64xf32>
    %158 = vector.multi_reduction <add>, %155, %cst_83 [1] : vector<64x64xf32> to vector<64xf32>
    %159 = vector.shape_cast %158 : vector<64xf32> to vector<64x1xf32>
    %160 = arith.addf %157, %159 : vector<64x1xf32>
    %c0_84 = arith.constant 0 : index
    %c5_85 = arith.constant 5 : index
    %161 = vector.load %arg15[%c0_84, %c5_85] : memref<64x8xf32, #tpu.memory_space<vmem>>, vector<64x1xf32>
    tpu.vector_store %arg15[%c0_84, %c5_85], %160 {strides = array<i32>} : memref<64x8xf32, #tpu.memory_space<vmem>>, vector<64x1xf32>,
    %c0_86 = arith.constant 0 : index
    %c20 = arith.constant 20 : index
    %162 = vector.load %arg16[%c0_86, %c20] : memref<64x32xf32, #tpu.memory_space<vmem>>, vector<64x4xf32>
    %163 = vector.broadcast %152 : vector<64x1xf32> to vector<64x4xf32>
    %164 = arith.mulf %163, %162 : vector<64x4xf32>
    %165 = arith.truncf %155 : vector<64x64xf32> to vector<64x64xbf16>
    %cst_87 = arith.constant dense<0.000000e+00> : vector<64x4xf32>
    %166 = tpu.matmul %165, %145, %cst_87 {dimension_numbers = #tpu.dot_dimension_numbers<[1], [0], [0], [1], [0, 0, 1, 1], [], []>} : vector<64x64xbf16>, vector<64x4xbf16>, vector<64x4xf32> -> vector<64x4xf32>
    %167 = arith.addf %164, %166 : vector<64x4xf32>
    %c0_88 = arith.constant 0 : index
    %c20_89 = arith.constant 20 : index
    %168 = vector.load %arg16[%c0_88, %c20_89] : memref<64x32xf32, #tpu.memory_space<vmem>>, vector<64x4xf32>
    tpu.vector_store %arg16[%c0_88, %c20_89], %167 {strides = array<i32>} : memref<64x32xf32, #tpu.memory_space<vmem>>, vector<64x4xf32>,
    %c0_90 = arith.constant 0 : index
    %c5_91 = arith.constant 5 : index
    %169 = vector.load %arg14[%c0_90, %c5_91] : memref<64x8xf32, #tpu.memory_space<vmem>>, vector<64x1xf32>
    tpu.vector_store %arg14[%c0_90, %c5_91], %150 {strides = array<i32>} : memref<64x8xf32, #tpu.memory_space<vmem>>, vector<64x1xf32>,
    %170 = vector.extract_strided_slice %5 {offsets = [0, 24], sizes = [64, 4], strides = [1, 1]} : vector<64x32xbf16> to vector<64x4xbf16>
    %171 = vector.extract_strided_slice %7 {offsets = [0, 24], sizes = [64, 4], strides = [1, 1]} : vector<64x64xbf16> to vector<64x4xbf16>
    %172 = vector.extract_strided_slice %7 {offsets = [0, 56], sizes = [64, 4], strides = [1, 1]} : vector<64x64xbf16> to vector<64x4xbf16>
    %cst_92 = arith.constant dense<0.000000e+00> : vector<64x64xf32>
    %173 = tpu.matmul %170, %171, %cst_92 {dimension_numbers = #tpu.dot_dimension_numbers<[1], [1], [0], [0], [0, 0, 1, 0], [], []>} : vector<64x4xbf16>, vector<64x4xbf16>, vector<64x64xf32> -> vector<64x64xf32>
    %c0_93 = arith.constant 0 : index
    %c6 = arith.constant 6 : index
    %174 = vector.load %arg14[%c0_93, %c6] : memref<64x8xf32, #tpu.memory_space<vmem>>, vector<64x1xf32>
    %cst_94 = arith.constant dense<0xFF800000> : vector<64xf32>
    %175 = vector.multi_reduction <maximumf>, %173, %cst_94 [1] : vector<64x64xf32> to vector<64xf32>
    %176 = vector.shape_cast %175 : vector<64xf32> to vector<64x1xf32>
    %177 = arith.maximumf %174, %176 : vector<64x1xf32>
    %178 = arith.subf %174, %177 : vector<64x1xf32>
    %179 = math.exp %178 : vector<64x1xf32>
    %180 = vector.broadcast %177 : vector<64x1xf32> to vector<64x64xf32>
    %181 = arith.subf %173, %180 : vector<64x64xf32>
    %182 = math.exp %181 : vector<64x64xf32>
    %c0_95 = arith.constant 0 : index
    %c6_96 = arith.constant 6 : index
    %183 = vector.load %arg15[%c0_95, %c6_96] : memref<64x8xf32, #tpu.memory_space<vmem>>, vector<64x1xf32>
    %184 = arith.mulf %179, %183 : vector<64x1xf32>
    %cst_97 = arith.constant dense<0.000000e+00> : vector<64xf32>
    %185 = vector.multi_reduction <add>, %182, %cst_97 [1] : vector<64x64xf32> to vector<64xf32>
    %186 = vector.shape_cast %185 : vector<64xf32> to vector<64x1xf32>
    %187 = arith.addf %184, %186 : vector<64x1xf32>
    %c0_98 = arith.constant 0 : index
    %c6_99 = arith.constant 6 : index
    %188 = vector.load %arg15[%c0_98, %c6_99] : memref<64x8xf32, #tpu.memory_space<vmem>>, vector<64x1xf32>
    tpu.vector_store %arg15[%c0_98, %c6_99], %187 {strides = array<i32>} : memref<64x8xf32, #tpu.memory_space<vmem>>, vector<64x1xf32>,
    %c0_100 = arith.constant 0 : index
    %c24 = arith.constant 24 : index
    %189 = vector.load %arg16[%c0_100, %c24] : memref<64x32xf32, #tpu.memory_space<vmem>>, vector<64x4xf32>
    %190 = vector.broadcast %179 : vector<64x1xf32> to vector<64x4xf32>
    %191 = arith.mulf %190, %189 : vector<64x4xf32>
    %192 = arith.truncf %182 : vector<64x64xf32> to vector<64x64xbf16>
    %cst_101 = arith.constant dense<0.000000e+00> : vector<64x4xf32>
    %193 = tpu.matmul %192, %172, %cst_101 {dimension_numbers = #tpu.dot_dimension_numbers<[1], [0], [0], [1], [0, 0, 1, 1], [], []>} : vector<64x64xbf16>, vector<64x4xbf16>, vector<64x4xf32> -> vector<64x4xf32>
    %194 = arith.addf %191, %193 : vector<64x4xf32>
    %c0_102 = arith.constant 0 : index
    %c24_103 = arith.constant 24 : index
    %195 = vector.load %arg16[%c0_102, %c24_103] : memref<64x32xf32, #tpu.memory_space<vmem>>, vector<64x4xf32>
    tpu.vector_store %arg16[%c0_102, %c24_103], %194 {strides = array<i32>} : memref<64x32xf32, #tpu.memory_space<vmem>>, vector<64x4xf32>,
    %c0_104 = arith.constant 0 : index
    %c6_105 = arith.constant 6 : index
    %196 = vector.load %arg14[%c0_104, %c6_105] : memref<64x8xf32, #tpu.memory_space<vmem>>, vector<64x1xf32>
    tpu.vector_store %arg14[%c0_104, %c6_105], %177 {strides = array<i32>} : memref<64x8xf32, #tpu.memory_space<vmem>>, vector<64x1xf32>,
    %197 = vector.extract_strided_slice %5 {offsets = [0, 28], sizes = [64, 4], strides = [1, 1]} : vector<64x32xbf16> to vector<64x4xbf16>
    %198 = vector.extract_strided_slice %7 {offsets = [0, 28], sizes = [64, 4], strides = [1, 1]} : vector<64x64xbf16> to vector<64x4xbf16>
    %199 = vector.extract_strided_slice %7 {offsets = [0, 60], sizes = [64, 4], strides = [1, 1]} : vector<64x64xbf16> to vector<64x4xbf16>
    %cst_106 = arith.constant dense<0.000000e+00> : vector<64x64xf32>
    %200 = tpu.matmul %197, %198, %cst_106 {dimension_numbers = #tpu.dot_dimension_numbers<[1], [1], [0], [0], [0, 0, 1, 0], [], []>} : vector<64x4xbf16>, vector<64x4xbf16>, vector<64x64xf32> -> vector<64x64xf32>
    %c0_107 = arith.constant 0 : index
    %c7 = arith.constant 7 : index
    %201 = vector.load %arg14[%c0_107, %c7] : memref<64x8xf32, #tpu.memory_space<vmem>>, vector<64x1xf32>
    %cst_108 = arith.constant dense<0xFF800000> : vector<64xf32>
    %202 = vector.multi_reduction <maximumf>, %200, %cst_108 [1] : vector<64x64xf32> to vector<64xf32>
    %203 = vector.shape_cast %202 : vector<64xf32> to vector<64x1xf32>
    %204 = arith.maximumf %201, %203 : vector<64x1xf32>
    %205 = arith.subf %201, %204 : vector<64x1xf32>
    %206 = math.exp %205 : vector<64x1xf32>
    %207 = vector.broadcast %204 : vector<64x1xf32> to vector<64x64xf32>
    %208 = arith.subf %200, %207 : vector<64x64xf32>
    %209 = math.exp %208 : vector<64x64xf32>
    %c0_109 = arith.constant 0 : index
    %c7_110 = arith.constant 7 : index
    %210 = vector.load %arg15[%c0_109, %c7_110] : memref<64x8xf32, #tpu.memory_space<vmem>>, vector<64x1xf32>
    %211 = arith.mulf %206, %210 : vector<64x1xf32>
    %cst_111 = arith.constant dense<0.000000e+00> : vector<64xf32>
    %212 = vector.multi_reduction <add>, %209, %cst_111 [1] : vector<64x64xf32> to vector<64xf32>
    %213 = vector.shape_cast %212 : vector<64xf32> to vector<64x1xf32>
    %214 = arith.addf %211, %213 : vector<64x1xf32>
    %c0_112 = arith.constant 0 : index
    %c7_113 = arith.constant 7 : index
    %215 = vector.load %arg15[%c0_112, %c7_113] : memref<64x8xf32, #tpu.memory_space<vmem>>, vector<64x1xf32>
    tpu.vector_store %arg15[%c0_112, %c7_113], %214 {strides = array<i32>} : memref<64x8xf32, #tpu.memory_space<vmem>>, vector<64x1xf32>,
    %c0_114 = arith.constant 0 : index
    %c28 = arith.constant 28 : index
    %216 = vector.load %arg16[%c0_114, %c28] : memref<64x32xf32, #tpu.memory_space<vmem>>, vector<64x4xf32>
    %217 = vector.broadcast %206 : vector<64x1xf32> to vector<64x4xf32>
    %218 = arith.mulf %217, %216 : vector<64x4xf32>
    %219 = arith.truncf %209 : vector<64x64xf32> to vector<64x64xbf16>
    %cst_115 = arith.constant dense<0.000000e+00> : vector<64x4xf32>
    %220 = tpu.matmul %219, %199, %cst_115 {dimension_numbers = #tpu.dot_dimension_numbers<[1], [0], [0], [1], [0, 0, 1, 1], [], []>} : vector<64x64xbf16>, vector<64x4xbf16>, vector<64x4xf32> -> vector<64x4xf32>
    %221 = arith.addf %218, %220 : vector<64x4xf32>
    %c0_116 = arith.constant 0 : index
    %c28_117 = arith.constant 28 : index
    %222 = vector.load %arg16[%c0_116, %c28_117] : memref<64x32xf32, #tpu.memory_space<vmem>>, vector<64x4xf32>
    tpu.vector_store %arg16[%c0_116, %c28_117], %221 {strides = array<i32>} : memref<64x32xf32, #tpu.memory_space<vmem>>, vector<64x4xf32>,
    %c0_118 = arith.constant 0 : index
    %c7_119 = arith.constant 7 : index
    %223 = vector.load %arg14[%c0_118, %c7_119] : memref<64x8xf32, #tpu.memory_space<vmem>>, vector<64x1xf32>
    tpu.vector_store %arg14[%c0_118, %c7_119], %204 {strides = array<i32>} : memref<64x8xf32, #tpu.memory_space<vmem>>, vector<64x1xf32>,
    %c0_i32_120 = arith.constant 0 : i32
    %224 = arith.cmpi eq, %arg2, %c0_i32_120 : i32
    %225 = arith.extui %224 : i1 to i32
    %c0_i32_121 = arith.constant 0 : i32
    %226 = arith.cmpi ne, %225, %c0_i32_121 : i32
    scf.if %226 {
      %c0_122 = arith.constant 0 : index
      %c0_123 = arith.constant 0 : index
      %227 = vector.load %arg15[%c0_122, %c0_123] : memref<64x8xf32, #tpu.memory_space<vmem>>, vector<64x1xf32>
      %228 = tpu.reciprocal %227 {approx = true} : vector<64x1xf32> -> vector<64x1xf32>
      %c0_124 = arith.constant 0 : index
      %c0_125 = arith.constant 0 : index
      %229 = vector.load %arg16[%c0_124, %c0_125] : memref<64x32xf32, #tpu.memory_space<vmem>>, vector<64x4xf32>
      %230 = vector.broadcast %228 : vector<64x1xf32> to vector<64x4xf32>
      %231 = arith.mulf %229, %230 : vector<64x4xf32>
      %c0_126 = arith.constant 0 : index
      %c0_127 = arith.constant 0 : index
      %232 = vector.load %arg16[%c0_126, %c0_127] : memref<64x32xf32, #tpu.memory_space<vmem>>, vector<64x4xf32>
      tpu.vector_store %arg16[%c0_126, %c0_127], %231 {strides = array<i32>} : memref<64x32xf32, #tpu.memory_space<vmem>>, vector<64x4xf32>,
      %c0_128 = arith.constant 0 : index
      %c1_129 = arith.constant 1 : index
      %233 = vector.load %arg15[%c0_128, %c1_129] : memref<64x8xf32, #tpu.memory_space<vmem>>, vector<64x1xf32>
      %234 = tpu.reciprocal %233 {approx = true} : vector<64x1xf32> -> vector<64x1xf32>
      %c0_130 = arith.constant 0 : index
      %c4_131 = arith.constant 4 : index
      %235 = vector.load %arg16[%c0_130, %c4_131] : memref<64x32xf32, #tpu.memory_space<vmem>>, vector<64x4xf32>
      %236 = vector.broadcast %234 : vector<64x1xf32> to vector<64x4xf32>
      %237 = arith.mulf %235, %236 : vector<64x4xf32>
      %c0_132 = arith.constant 0 : index
      %c4_133 = arith.constant 4 : index
      %238 = vector.load %arg16[%c0_132, %c4_133] : memref<64x32xf32, #tpu.memory_space<vmem>>, vector<64x4xf32>
      tpu.vector_store %arg16[%c0_132, %c4_133], %237 {strides = array<i32>} : memref<64x32xf32, #tpu.memory_space<vmem>>, vector<64x4xf32>,
      %c0_134 = arith.constant 0 : index
      %c2_135 = arith.constant 2 : index
      %239 = vector.load %arg15[%c0_134, %c2_135] : memref<64x8xf32, #tpu.memory_space<vmem>>, vector<64x1xf32>
      %240 = tpu.reciprocal %239 {approx = true} : vector<64x1xf32> -> vector<64x1xf32>
      %c0_136 = arith.constant 0 : index
      %c8_137 = arith.constant 8 : index
      %241 = vector.load %arg16[%c0_136, %c8_137] : memref<64x32xf32, #tpu.memory_space<vmem>>, vector<64x4xf32>
      %242 = vector.broadcast %240 : vector<64x1xf32> to vector<64x4xf32>
      %243 = arith.mulf %241, %242 : vector<64x4xf32>
      %c0_138 = arith.constant 0 : index
      %c8_139 = arith.constant 8 : index
      %244 = vector.load %arg16[%c0_138, %c8_139] : memref<64x32xf32, #tpu.memory_space<vmem>>, vector<64x4xf32>
      tpu.vector_store %arg16[%c0_138, %c8_139], %243 {strides = array<i32>} : memref<64x32xf32, #tpu.memory_space<vmem>>, vector<64x4xf32>,
      %c0_140 = arith.constant 0 : index
      %c3_141 = arith.constant 3 : index
      %245 = vector.load %arg15[%c0_140, %c3_141] : memref<64x8xf32, #tpu.memory_space<vmem>>, vector<64x1xf32>
      %246 = tpu.reciprocal %245 {approx = true} : vector<64x1xf32> -> vector<64x1xf32>
      %c0_142 = arith.constant 0 : index
      %c12_143 = arith.constant 12 : index
      %247 = vector.load %arg16[%c0_142, %c12_143] : memref<64x32xf32, #tpu.memory_space<vmem>>, vector<64x4xf32>
      %248 = vector.broadcast %246 : vector<64x1xf32> to vector<64x4xf32>
      %249 = arith.mulf %247, %248 : vector<64x4xf32>
      %c0_144 = arith.constant 0 : index
      %c12_145 = arith.constant 12 : index
      %250 = vector.load %arg16[%c0_144, %c12_145] : memref<64x32xf32, #tpu.memory_space<vmem>>, vector<64x4xf32>
      tpu.vector_store %arg16[%c0_144, %c12_145], %249 {strides = array<i32>} : memref<64x32xf32, #tpu.memory_space<vmem>>, vector<64x4xf32>,
      %c0_146 = arith.constant 0 : index
      %c4_147 = arith.constant 4 : index
      %251 = vector.load %arg15[%c0_146, %c4_147] : memref<64x8xf32, #tpu.memory_space<vmem>>, vector<64x1xf32>
      %252 = tpu.reciprocal %251 {approx = true} : vector<64x1xf32> -> vector<64x1xf32>
      %c0_148 = arith.constant 0 : index
      %c16_149 = arith.constant 16 : index
      %253 = vector.load %arg16[%c0_148, %c16_149] : memref<64x32xf32, #tpu.memory_space<vmem>>, vector<64x4xf32>
      %254 = vector.broadcast %252 : vector<64x1xf32> to vector<64x4xf32>
      %255 = arith.mulf %253, %254 : vector<64x4xf32>
      %c0_150 = arith.constant 0 : index
      %c16_151 = arith.constant 16 : index
      %256 = vector.load %arg16[%c0_150, %c16_151] : memref<64x32xf32, #tpu.memory_space<vmem>>, vector<64x4xf32>
      tpu.vector_store %arg16[%c0_150, %c16_151], %255 {strides = array<i32>} : memref<64x32xf32, #tpu.memory_space<vmem>>, vector<64x4xf32>,
      %c0_152 = arith.constant 0 : index
      %c5_153 = arith.constant 5 : index
      %257 = vector.load %arg15[%c0_152, %c5_153] : memref<64x8xf32, #tpu.memory_space<vmem>>, vector<64x1xf32>
      %258 = tpu.reciprocal %257 {approx = true} : vector<64x1xf32> -> vector<64x1xf32>
      %c0_154 = arith.constant 0 : index
      %c20_155 = arith.constant 20 : index
      %259 = vector.load %arg16[%c0_154, %c20_155] : memref<64x32xf32, #tpu.memory_space<vmem>>, vector<64x4xf32>
      %260 = vector.broadcast %258 : vector<64x1xf32> to vector<64x4xf32>
      %261 = arith.mulf %259, %260 : vector<64x4xf32>
      %c0_156 = arith.constant 0 : index
      %c20_157 = arith.constant 20 : index
      %262 = vector.load %arg16[%c0_156, %c20_157] : memref<64x32xf32, #tpu.memory_space<vmem>>, vector<64x4xf32>
      tpu.vector_store %arg16[%c0_156, %c20_157], %261 {strides = array<i32>} : memref<64x32xf32, #tpu.memory_space<vmem>>, vector<64x4xf32>,
      %c0_158 = arith.constant 0 : index
      %c6_159 = arith.constant 6 : index
      %263 = vector.load %arg15[%c0_158, %c6_159] : memref<64x8xf32, #tpu.memory_space<vmem>>, vector<64x1xf32>
      %264 = tpu.reciprocal %263 {approx = true} : vector<64x1xf32> -> vector<64x1xf32>
      %c0_160 = arith.constant 0 : index
      %c24_161 = arith.constant 24 : index
      %265 = vector.load %arg16[%c0_160, %c24_161] : memref<64x32xf32, #tpu.memory_space<vmem>>, vector<64x4xf32>
      %266 = vector.broadcast %264 : vector<64x1xf32> to vector<64x4xf32>
      %267 = arith.mulf %265, %266 : vector<64x4xf32>
      %c0_162 = arith.constant 0 : index
      %c24_163 = arith.constant 24 : index
      %268 = vector.load %arg16[%c0_162, %c24_163] : memref<64x32xf32, #tpu.memory_space<vmem>>, vector<64x4xf32>
      tpu.vector_store %arg16[%c0_162, %c24_163], %267 {strides = array<i32>} : memref<64x32xf32, #tpu.memory_space<vmem>>, vector<64x4xf32>,
      %c0_164 = arith.constant 0 : index
      %c7_165 = arith.constant 7 : index
      %269 = vector.load %arg15[%c0_164, %c7_165] : memref<64x8xf32, #tpu.memory_space<vmem>>, vector<64x1xf32>
      %270 = tpu.reciprocal %269 {approx = true} : vector<64x1xf32> -> vector<64x1xf32>
      %c0_166 = arith.constant 0 : index
      %c28_167 = arith.constant 28 : index
      %271 = vector.load %arg16[%c0_166, %c28_167] : memref<64x32xf32, #tpu.memory_space<vmem>>, vector<64x4xf32>
      %272 = vector.broadcast %270 : vector<64x1xf32> to vector<64x4xf32>
      %273 = arith.mulf %271, %272 : vector<64x4xf32>
      %c0_168 = arith.constant 0 : index
      %c28_169 = arith.constant 28 : index
      %274 = vector.load %arg16[%c0_168, %c28_169] : memref<64x32xf32, #tpu.memory_space<vmem>>, vector<64x4xf32>
      tpu.vector_store %arg16[%c0_168, %c28_169], %273 {strides = array<i32>} : memref<64x32xf32, #tpu.memory_space<vmem>>, vector<64x4xf32>,
      %c0_170 = arith.constant 0 : index
      %c0_171 = arith.constant 0 : index
      %275 = vector.load %arg16[%c0_170, %c0_171] : memref<64x32xf32, #tpu.memory_space<vmem>>, vector<64x32xf32>
      %c0_172 = arith.constant 0 : index
      %c0_173 = arith.constant 0 : index
      %c0_174 = arith.constant 0 : index
      %276 = vector.load %arg5[%c0_172, %c0_173, %c0_174] : memref<1x64x32xbf16, #tpu.memory_space<vmem>>, vector<1x64x32xbf16>
      %277 = vector.shape_cast %276 : vector<1x64x32xbf16> to vector<64x32xbf16>
      %278 = arith.extf %277 : vector<64x32xbf16> to vector<64x32xf32>
      %279 = arith.addf %275, %278 : vector<64x32xf32>
      %280 = arith.truncf %279 : vector<64x32xf32> to vector<64x32xbf16>
      %c0_175 = arith.constant 0 : index
      %c0_176 = arith.constant 0 : index
      %281 = vector.load %arg7[%c0_175, %c0_176] : memref<32x32xbf16, #tpu.memory_space<vmem>>, vector<32x32xbf16>
      %cst_177 = arith.constant dense<0.000000e+00> : vector<64x32xf32>
      %282 = tpu.matmul %280, %281, %cst_177 {dimension_numbers = #tpu.dot_dimension_numbers<[1], [0], [0], [1], [0, 0, 1, 1], [], []>} : vector<64x32xbf16>, vector<32x32xbf16>, vector<64x32xf32> -> vector<64x32xf32>
      %c0_178 = arith.constant 0 : index
      %c0_179 = arith.constant 0 : index
      %283 = vector.load %arg8[%c0_178, %c0_179] : memref<1x32xf32, #tpu.memory_space<vmem>>, vector<1x32xf32>
      %284 = vector.broadcast %283 : vector<1x32xf32> to vector<64x32xf32>
      %285 = arith.addf %282, %284 : vector<64x32xf32>
      %c0_180 = arith.constant 0 : index
      %c0_181 = arith.constant 0 : index
      %c0_182 = arith.constant 0 : index
      %286 = vector.load %arg6[%c0_180, %c0_181, %c0_182] : memref<1x64x32xf32, #tpu.memory_space<vmem>>, vector<1x64x32xf32>
      %287 = vector.shape_cast %286 : vector<1x64x32xf32> to vector<64x32xf32>
      %288 = arith.addf %287, %285 : vector<64x32xf32>
      %289 = arith.truncf %288 : vector<64x32xf32> to vector<64x32xbf16>
      %c0_183 = arith.constant 0 : index
      %c0_184 = arith.constant 0 : index
      %290 = vector.load %arg9[%c0_183, %c0_184] : memref<32x64xbf16, #tpu.memory_space<vmem>>, vector<32x64xbf16>
      %cst_185 = arith.constant dense<0.000000e+00> : vector<64x64xf32>
      %291 = tpu.matmul %289, %290, %cst_185 {dimension_numbers = #tpu.dot_dimension_numbers<[1], [0], [0], [1], [0, 0, 1, 1], [], []>} : vector<64x32xbf16>, vector<32x64xbf16>, vector<64x64xf32> -> vector<64x64xf32>
      %c0_186 = arith.constant 0 : index
      %c0_187 = arith.constant 0 : index
      %292 = vector.load %arg10[%c0_186, %c0_187] : memref<1x64xf32, #tpu.memory_space<vmem>>, vector<1x64xf32>
      %293 = vector.broadcast %292 : vector<1x64xf32> to vector<64x64xf32>
      %294 = arith.addf %291, %293 : vector<64x64xf32>
      %295 = arith.negf %294 : vector<64x64xf32>
      %296 = math.exp %295 : vector<64x64xf32>
      %cst_188 = arith.constant 1.000000e+00 : f32
      %297 = vector.broadcast %cst_188 : f32 to vector<64x64xf32>
      %298 = arith.addf %297, %296 : vector<64x64xf32>
      %299 = arith.divf %297, %298 : vector<64x64xf32>
      %300 = arith.mulf %294, %299 : vector<64x64xf32>
      %301 = arith.truncf %300 : vector<64x64xf32> to vector<64x64xbf16>
      %c0_189 = arith.constant 0 : index
      %c0_190 = arith.constant 0 : index
      %302 = vector.load %arg11[%c0_189, %c0_190] : memref<64x32xbf16, #tpu.memory_space<vmem>>, vector<64x32xbf16>
      %cst_191 = arith.constant dense<0.000000e+00> : vector<64x32xf32>
      %303 = tpu.matmul %301, %302, %cst_191 {dimension_numbers = #tpu.dot_dimension_numbers<[1], [0], [0], [1], [0, 0, 1, 1], [], []>} : vector<64x64xbf16>, vector<64x32xbf16>, vector<64x32xf32> -> vector<64x32xf32>
      %c0_192 = arith.constant 0 : index
      %c0_193 = arith.constant 0 : index
      %304 = vector.load %arg12[%c0_192, %c0_193] : memref<1x32xf32, #tpu.memory_space<vmem>>, vector<1x32xf32>
      %305 = vector.broadcast %304 : vector<1x32xf32> to vector<64x32xf32>
      %306 = arith.addf %303, %305 : vector<64x32xf32>
      %307 = arith.addf %288, %306 : vector<64x32xf32>
      %c0_194 = arith.constant 0 : index
      %c0_195 = arith.constant 0 : index
      %c0_196 = arith.constant 0 : index
      %308 = vector.load %arg13[%c0_194, %c0_195, %c0_196] : memref<1x64x32xf32, #tpu.memory_space<vmem>>, vector<1x64x32xf32>
      %309 = vector.shape_cast %308 : vector<1x64x32xf32> to vector<64x32xf32>
      %310 = vector.shape_cast %307 : vector<64x32xf32> to vector<1x64x32xf32>
      tpu.vector_store %arg13[%c0_194, %c0_195, %c0_196], %310 {strides = array<i32>} : memref<1x64x32xf32, #tpu.memory_space<vmem>>, vector<1x64x32xf32>,
    } else {
    }
    return
  }
  func.func @transform_0(%arg0: i32, %arg1: i32, %arg2: i32) -> (i32, i32, i32) {
    %c0_i32 = arith.constant 0 : i32
    %c0_i32_0 = arith.constant 0 : i32
    return %arg0, %arg1, %c0_i32 : i32, i32, i32
  }
  func.func @transform_1(%arg0: i32, %arg1: i32, %arg2: i32) -> (i32, i32, i32) {
    %c0_i32 = arith.constant 0 : i32
    %c0_i32_0 = arith.constant 0 : i32
    return %arg0, %arg2, %c0_i32 : i32, i32, i32
  }
  func.func @transform_2(%arg0: i32, %arg1: i32, %arg2: i32) -> (i32, i32, i32) {
    %c0_i32 = arith.constant 0 : i32
    %c0_i32_0 = arith.constant 0 : i32
    return %arg0, %arg1, %c0_i32 : i32, i32, i32
  }
  func.func @transform_3(%arg0: i32, %arg1: i32, %arg2: i32) -> (i32, i32, i32) {
    %c0_i32 = arith.constant 0 : i32
    %c0_i32_0 = arith.constant 0 : i32
    return %arg0, %arg1, %c0_i32 : i32, i32, i32
  }
  func.func @transform_4(%arg0: i32, %arg1: i32, %arg2: i32) -> (i32, i32) {
    %c0_i32 = arith.constant 0 : i32
    %c0_i32_0 = arith.constant 0 : i32
    %c0_i32_1 = arith.constant 0 : i32
    return %c0_i32, %c0_i32_0 : i32, i32
  }
  func.func @transform_5(%arg0: i32, %arg1: i32, %arg2: i32) -> (i32, i32) {
    %c0_i32 = arith.constant 0 : i32
    %c0_i32_0 = arith.constant 0 : i32
    %c0_i32_1 = arith.constant 0 : i32
    return %c0_i32, %c0_i32_0 : i32, i32
  }
  func.func @transform_6(%arg0: i32, %arg1: i32, %arg2: i32) -> (i32, i32) {
    %c0_i32 = arith.constant 0 : i32
    %c0_i32_0 = arith.constant 0 : i32
    %c0_i32_1 = arith.constant 0 : i32
    return %c0_i32, %c0_i32_0 : i32, i32
  }
  func.func @transform_7(%arg0: i32, %arg1: i32, %arg2: i32) -> (i32, i32) {
    %c0_i32 = arith.constant 0 : i32
    %c0_i32_0 = arith.constant 0 : i32
    %c0_i32_1 = arith.constant 0 : i32
    return %c0_i32, %c0_i32_0 : i32, i32
  }
  func.func @transform_8(%arg0: i32, %arg1: i32, %arg2: i32) -> (i32, i32) {
    %c0_i32 = arith.constant 0 : i32
    %c0_i32_0 = arith.constant 0 : i32
    %c0_i32_1 = arith.constant 0 : i32
    return %c0_i32, %c0_i32_0 : i32, i32
  }
  func.func @transform_9(%arg0: i32, %arg1: i32, %arg2: i32) -> (i32, i32) {
    %c0_i32 = arith.constant 0 : i32
    %c0_i32_0 = arith.constant 0 : i32
    %c0_i32_1 = arith.constant 0 : i32
    return %c0_i32, %c0_i32_0 : i32, i32
  }
  func.func @transform_10(%arg0: i32, %arg1: i32, %arg2: i32) -> (i32, i32, i32) {
    %c0_i32 = arith.constant 0 : i32
    %c0_i32_0 = arith.constant 0 : i32
    return %arg0, %arg1, %c0_i32 : i32, i32, i32
  }
}

</mosaic_0001>

<llo_original>
// kernel: psa_block_forward.4
$region0: #{psa_block_forward.4}
  #allocation0 [shape = 'u32[]', space=smem, size = 0x4, offset = 0x4, fixed_abs, tag = 'smem constant byte address 0x4 - core index']
  #allocation1 [shape = 'u32[144,128]{1,0:T(1,128)}', space=vmem, size = 0x12000, scoped, tag = 'internal scratch']
  %s0 = inlined_call_operand.hbm [shape: f32[128,32], index: 0, kind: input, shape index: {}]
  %s1 = inlined_call_operand.vmem [shape: bf16[32,32], index: 1, kind: input, shape index: {}]
  %s2 = inlined_call_operand.vmem [shape: f32[1,32], index: 2, kind: input, shape index: {}]
  %s3 = inlined_call_operand.vmem [shape: f32[128,32], index: 3, kind: output, shape index: {}]
  %s4 = sld [smem:[#allocation0]]
  $region26: #{psa_block_forward.4} parent=0
    _
  %s6 = ssub.s32 1, %s4
  %s7 = scalar_select 0, %s6, %s4
  $region1: #{psa_block_forward.4} parent=0
    #allocation2 [shape = 'u8[65536]{0}', space=vmem, size = 0x10000, scoped, tag = 'input window, operand 0, single buffered']
    #allocation3 [shape = 's32[1]{0}', space=sflag, size = 0x4, scoped, tag = 'scoped memory for psa_block_forward.4']
    %8 = vsyncpa [#allocation3], 0
    // Predicated region
    $region2: #{psa_block_forward.4} parent=1 // pred_check
      _
    $region3: #{psa_block_forward.4} parent=1 // pred_check_branch
      %10 = sbr.rel (0) target = $region5
    $region4: #{psa_block_forward.4} parent=1 // pred_region
      %s12 = ssub.s32 2048, 2048
      %13 = vsyncadd [#allocation3], %s12
      %s14 = sshll.u32 [#allocation2], 4
      %s15 = int_to_ptr.vmem [resolvable:$true] %s14
      %20 = dma.hbm_to_vmem [thread:$0]  %s0, 2048, %s15, [#allocation3], 128, 128, 8
    $region5: #{psa_block_forward.4} parent=1 // pred_fallthru
      _
    // Predicated region
    $region6: #{psa_block_forward.4} parent=1 // pred_check
      _
    $region7: #{psa_block_forward.4} parent=1 // pred_check_branch
      %22 = sbr.rel (0) target = $region9
    $region8: #{psa_block_forward.4} parent=1 // pred_region
      _
    $region9: #{psa_block_forward.4} parent=1 // pred_fallthru
      _
    // Predicated region
    $region10: #{psa_block_forward.4} parent=1 // pred_check
      _
    $region11: #{psa_block_forward.4} parent=1 // pred_check_branch
      %24 = sbr.rel (0) target = $region13
    $region12: #{psa_block_forward.4} parent=1 // pred_region
      _
    $region13: #{psa_block_forward.4} parent=1 // pred_fallthru
      _
    // Predicated region
    $region14: #{psa_block_forward.4} parent=1 // pred_check
      _
    $region15: #{psa_block_forward.4} parent=1 // pred_check_branch
      %26 = sbr.rel (0) target = $region17
    $region16: #{psa_block_forward.4} parent=1 // pred_region
      %27 = dma.done [#allocation3], 2048
    $region17: #{psa_block_forward.4} parent=1 // pred_fallthru
      _
    %v29 = vld [vmem:[#allocation2] sm:$0xff]
    %v30 = vld [vmem:[#allocation2 + $0x8] sm:$0xff]
    %v31 = vld [vmem:[#allocation2 + $0x10] sm:$0xff]
    %v32 = vld [vmem:[#allocation2 + $0x18] sm:$0xff]
    %v33 = vld [vmem:[#allocation2 + $0x20] sm:$0xff]
    %v34 = vld [vmem:[#allocation2 + $0x28] sm:$0xff]
    %v35 = vld [vmem:[#allocation2 + $0x30] sm:$0xff]
    %v36 = vld [vmem:[#allocation2 + $0x38] sm:$0xff]
    %v37 = vld [vmem:[#allocation2 + $0x40] sm:$0xff]
    %v38 = vld [vmem:[#allocation2 + $0x48] sm:$0xff]
    %v39 = vld [vmem:[#allocation2 + $0x50] sm:$0xff]
    %v40 = vld [vmem:[#allocation2 + $0x58] sm:$0xff]
    %v41 = vld [vmem:[#allocation2 + $0x60] sm:$0xff]
    %v42 = vld [vmem:[#allocation2 + $0x68] sm:$0xff]
    %v43 = vld [vmem:[#allocation2 + $0x70] sm:$0xff]
    %v44 = vld [vmem:[#allocation2 + $0x78] sm:$0xff]
    %v45 = vpack.c.bf16 %v30, %v29
    %v46 = vpack.c.bf16 %v32, %v31
    %v47 = vpack.c.bf16 %v34, %v33
    %v48 = vpack.c.bf16 %v36, %v35
    %v49 = vpack.c.bf16 %v38, %v37
    %v50 = vpack.c.bf16 %v40, %v39
    %v51 = vpack.c.bf16 %v42, %v41
    %v52 = vpack.c.bf16 %v44, %v43
    %v53 = vld [vmem:[%s1] sm:$0xf]
    %v54 = vld [vmem:[%s1 + $0x4] sm:$0xf]
    %v55 = vld [vmem:[%s1 + $0x8] sm:$0xf]
    %v56 = vld [vmem:[%s1 + $0xc] sm:$0xf]
    %v57 = vld [vmem:[%s2] sm:$0x1]
    %v59 = vlaneseq
    %v60 = vshrl.u32 %v59, 7
    %v61 = vsub.s32 0, %v60
    %v62 = vrot.slane %v57, %v61
    %v68 = vunpack.c.l.b16 %v53
    %v69 = vunpack.c.l.b16 %v54
    %v70 = vunpack.c.l.b16 %v55
    %v71 = vunpack.c.l.b16 %v56
    %v72 = vpack.c.b16 %v69, %v68
    %v73 = vpack.c.b16 %v71, %v70
    %vm76 = vcmask 261120
    %v78 = vsel %vm76, %v45, 0
    %v81 = vsel %vm76, %v46, 0
    %v84 = vsel %vm76, %v47, 0
    %v87 = vsel %vm76, %v48, 0
    %v90 = vsel %vm76, %v49, 0
    %v93 = vsel %vm76, %v50, 0
    %v96 = vsel %vm76, %v51, 0
    %v99 = vsel %vm76, %v52, 0
    %101 = vmatprep.subr.bf16.mxu0 0
    %102 = vmatpush1.bf16.msra.mxu0 %v72
    %103 = vmatprep.subr.bf16.mxu0 0
    %104 = vmatpush1.bf16.msra.mxu0 %v73
    %105 = vmatprep.subr.bf16.mxu0 0
    %106 = vmatpush1.bf16.msra.mxu0 0
    %107 = vmatprep.subr.bf16.mxu0 0
    %108 = vmatpush1.bf16.msra.mxu0 0
    %109 = vmatprep.subr.bf16.mxu0 0
    %110 = vmatpush1.bf16.msra.mxu0 0
    %111 = vmatprep.subr.bf16.mxu0 0
    %112 = vmatpush1.bf16.msra.mxu0 0
    %113 = vmatprep.subr.bf16.mxu0 0
    %114 = vmatpush1.bf16.msra.mxu0 0
    %115 = vmatprep.subr.bf16.mxu0 0
    %116 = vmatpush1.bf16.msra.mxu0 0
    %117 = vmatprep.subr.bf16.mxu0 0
    %118 = vmatpush1.bf16.msra.mxu0 0
    %119 = vmatprep.subr.bf16.mxu0 0
    %120 = vmatpush1.bf16.msra.mxu0 0
    %121 = vmatprep.subr.bf16.mxu0 0
    %122 = vmatpush1.bf16.msra.mxu0 0
    %123 = vmatprep.subr.bf16.mxu0 0
    %124 = vmatpush1.bf16.msra.mxu0 0
    %125 = vmatprep.subr.bf16.mxu0 0
    %126 = vmatpush1.bf16.msra.mxu0 0
    %127 = vmatprep.subr.bf16.mxu0 0
    %128 = vmatpush1.bf16.msra.mxu0 0
    %129 = vmatprep.subr.bf16.mxu0 0
    %130 = vmatpush1.bf16.msra.mxu0 0
    %131 = vmatprep.subr.bf16.mxu0 0
    %132 = vmatpush1.bf16.msra.mxu0 0
    %133 = vmatprep.mubr.bf16.mxu0 0
    %134 = vmatmul.mubr.bf16.gmra.mrb[0].mxu0 %v78
    %v135 = vpop.f32.mrb[0].mxu0
    %v136 = vadd.f32 %v62, %v135
    %v137 = vpop.f32.mrb[0].mxu0
    %v138 = vpop.f32.mrb[0].mxu0
    %v139 = vadd.f32 %v62, %v138
    %v140 = vpop.f32.mrb[0].mxu0
    %141 = vmatprep.mubr.bf16.mxu0 0
    %142 = vmatmul.mubr.bf16.gmra.mrb[0].mxu0 %v81
    %v143 = vpop.f32.mrb[0].mxu0
    %v144 = vadd.f32 %v62, %v143
    %v145 = vpop.f32.mrb[0].mxu0
    %v146 = vpop.f32.mrb[0].mxu0
    %v147 = vadd.f32 %v62, %v146
    %v148 = vpop.f32.mrb[0].mxu0
    %149 = vmatprep.mubr.bf16.mxu0 0
    %150 = vmatmul.mubr.bf16.gmra.mrb[0].mxu0 %v84
    %v151 = vpop.f32.mrb[0].mxu0
    %v152 = vadd.f32 %v62, %v151
    %v153 = vpop.f32.mrb[0].mxu0
    %v154 = vpop.f32.mrb[0].mxu0
    %v155 = vadd.f32 %v62, %v154
    %v156 = vpop.f32.mrb[0].mxu0
    %157 = vmatprep.mubr.bf16.mxu0 0
    %158 = vmatmul.mubr.bf16.gmra.mrb[0].mxu0 %v87
    %v159 = vpop.f32.mrb[0].mxu0
    %v160 = vadd.f32 %v62, %v159
    %v161 = vpop.f32.mrb[0].mxu0
    %v162 = vpop.f32.mrb[0].mxu0
    %v163 = vadd.f32 %v62, %v162
    %v164 = vpop.f32.mrb[0].mxu0
    %165 = vmatprep.mubr.bf16.mxu0 0
    %166 = vmatmul.mubr.bf16.gmra.mrb[0].mxu0 %v90
    %v167 = vpop.f32.mrb[0].mxu0
    %v168 = vadd.f32 %v62, %v167
    %v169 = vpop.f32.mrb[0].mxu0
    %v170 = vpop.f32.mrb[0].mxu0
    %v171 = vadd.f32 %v62, %v170
    %v172 = vpop.f32.mrb[0].mxu0
    %173 = vmatprep.mubr.bf16.mxu0 0
    %174 = vmatmul.mubr.bf16.gmra.mrb[0].mxu0 %v93
    %v175 = vpop.f32.mrb[0].mxu0
    %v176 = vadd.f32 %v62, %v175
    %v177 = vpop.f32.mrb[0].mxu0
    %v178 = vpop.f32.mrb[0].mxu0
    %v179 = vadd.f32 %v62, %v178
    %v180 = vpop.f32.mrb[0].mxu0
    %181 = vmatprep.mubr.bf16.mxu0 0
    %182 = vmatmul.mubr.bf16.gmra.mrb[0].mxu0 %v96
    %v183 = vpop.f32.mrb[0].mxu0
    %v184 = vadd.f32 %v62, %v183
    %v185 = vpop.f32.mrb[0].mxu0
    %v186 = vpop.f32.mrb[0].mxu0
    %v187 = vadd.f32 %v62, %v186
    %v188 = vpop.f32.mrb[0].mxu0
    %189 = vmatprep.mubr.bf16.mxu0 0
    %190 = vmatmul.mubr.bf16.gmra.mrb[0].mxu0 %v99
    %v191 = vpop.f32.mrb[0].mxu0
    %v192 = vadd.f32 %v62, %v191
    %v193 = vpop.f32.mrb[0].mxu0
    %v194 = vpop.f32.mrb[0].mxu0
    %v195 = vadd.f32 %v62, %v194
    %v196 = vpop.f32.mrb[0].mxu0
    %197 = vdwg.mxu0
    %198 = vst.msk [vmem:[%s3] sm:$0xff] %vm76, %v136
    %199 = vst.msk [vmem:[%s3 + $0x8] sm:$0xff] %vm76, %v139
    %200 = vst.msk [vmem:[%s3 + $0x10] sm:$0xff] %vm76, %v144
    %201 = vst.msk [vmem:[%s3 + $0x18] sm:$0xff] %vm76, %v147
    %202 = vst.msk [vmem:[%s3 + $0x20] sm:$0xff] %vm76, %v152
    %203 = vst.msk [vmem:[%s3 + $0x28] sm:$0xff] %vm76, %v155
    %204 = vst.msk [vmem:[%s3 + $0x30] sm:$0xff] %vm76, %v160
    %205 = vst.msk [vmem:[%s3 + $0x38] sm:$0xff] %vm76, %v163
    %206 = vst.msk [vmem:[%s3 + $0x40] sm:$0xff] %vm76, %v168
    %207 = vst.msk [vmem:[%s3 + $0x48] sm:$0xff] %vm76, %v171
    %208 = vst.msk [vmem:[%s3 + $0x50] sm:$0xff] %vm76, %v176
    %209 = vst.msk [vmem:[%s3 + $0x58] sm:$0xff] %vm76, %v179
    %210 = vst.msk [vmem:[%s3 + $0x60] sm:$0xff] %vm76, %v184
    %211 = vst.msk [vmem:[%s3 + $0x68] sm:$0xff] %vm76, %v187
    %212 = vst.msk [vmem:[%s3 + $0x70] sm:$0xff] %vm76, %v192
    %213 = vst.msk [vmem:[%s3 + $0x78] sm:$0xff] %vm76, %v195
    // Predicated region
    $region18: #{psa_block_forward.4} parent=1 // pred_check
      _
    $region19: #{psa_block_forward.4} parent=1 // pred_check_branch
      %215 = sbr.rel (0) target = $region21
    $region20: #{psa_block_forward.4} parent=1 // pred_region
      _
    $region21: #{psa_block_forward.4} parent=1 // pred_fallthru
      _
    // Predicated region
    $region22: #{psa_block_forward.4} parent=1 // pred_check
      _
    $region23: #{psa_block_forward.4} parent=1 // pred_check_branch
      %217 = sbr.rel (0) target = $region25
    $region24: #{psa_block_forward.4} parent=1 // pred_region
      _
    $region25: #{psa_block_forward.4} parent=1 // pred_fallthru
      _
    %218 = vsyncpa [#allocation3], 1

// kernel: psa_block_forward.5
$region0: #{psa_block_forward.5}
  #allocation0 [shape = 'u32[]', space=smem, size = 0x4, offset = 0x4, fixed_abs, tag = 'smem constant byte address 0x4 - core index']
  #allocation1 [shape = 'u32[144,128]{1,0:T(1,128)}', space=vmem, size = 0x12000, scoped, tag = 'internal scratch']
  %s0 = inlined_call_operand.vmem [shape: f32[2,16,16,32], index: 0, kind: input, shape index: {}]
  %s1 = inlined_call_operand.vmem [shape: f32[81,32], index: 1, kind: input, shape index: {}]
  %s2 = inlined_call_operand.vmem [shape: f32[1,32], index: 2, kind: input, shape index: {}]
  %s3 = inlined_call_operand.vmem [shape: f32[9,32], index: 3, kind: input, shape index: {}]
  %s4 = inlined_call_operand.vmem [shape: f32[1,32], index: 4, kind: input, shape index: {}]
  %s5 = inlined_call_operand.vmem [shape: f32[1,32], index: 5, kind: input, shape index: {}]
  %s6 = inlined_call_operand.vmem [shape: f32[1,32], index: 6, kind: input, shape index: {}]
  %s7 = inlined_call_operand.vmem [shape: f32[2,32], index: 7, kind: input, shape index: {}]
  %s8 = inlined_call_operand.vmem [shape: f32[2,8,8], index: 8, kind: output, shape index: {0}]
  %s9 = inlined_call_operand.vmem [shape: f32[2,8,8], index: 9, kind: output, shape index: {1}]
  %s10 = inlined_call_operand.vmem [shape: bf16[2,8,8,32], index: 10, kind: output, shape index: {2}]
  %11 = xla_tuple %s8, %s9, %s10
  %s12 = sld [smem:[#allocation0]]
  $region88: #{psa_block_forward.5} parent=0
    _
  %s14 = ssub.s32 1, %s12
  %s15 = scalar_select 0, %s14, %s12
  loop: start=0, step=1, limit=4
  $region2: #{psa_block_forward.5} parent=0 // loop_pre_header
    _
  $region3: #{psa_block_forward.5} parent=0 // loop_header
    %s17 = sphi 0, %s21
    %p18 = scmp.ge.s32.totalorder %s17, 4
    %s24 = sphi 0, %s36
    %s25 = sphi 0, %s32
    %s26 = sphi 0, %s24
    %s27 = sphi 0, %s25
    %s28 = sphi 0, %s26
    %s29 = sphi 0, %s27
    %s41 = sphi 0, %s43
    %s44 = sphi 0, %s41
    %s45 = sphi 0, %s44
    %s61 = sphi 0, %s45
    %s65 = sphi 0, %s65
    %s67 = sphi 0, %s65
    %s68 = sphi 0, %s67
    %s82 = sphi 0, %s68
    %s86 = sphi 0, %s86
    %s88 = sphi 0, %s86
    %s89 = sphi 0, %s88
    %s103 = sphi 0, %s89
    %s107 = sphi 0, %s107
    %s109 = sphi 0, %s107
    %s110 = sphi 0, %s109
    %s124 = sphi 0, %s110
    %s128 = sphi 0, %s128
    %s130 = sphi 0, %s128
    %s131 = sphi 0, %s130
    %s145 = sphi 0, %s131
    %s149 = sphi 0, %s149
    %s151 = sphi 0, %s149
    %s152 = sphi 0, %s151
    %s166 = sphi 0, %s152
    %s170 = sphi 0, %s170
    %s172 = sphi 0, %s170
    %s173 = sphi 0, %s172
    %s187 = sphi 0, %s173
    %s191 = sphi 0, %s191
    %s193 = sphi 0, %s191
    %s194 = sphi 0, %s193
    %s208 = sphi 0, %s194
    %s216 = sphi 0, %s218
    %s219 = sphi 0, %s216
    %s220 = sphi 0, %s219
    %s236 = sphi 0, %s220
    %s244 = sphi 0, %s246
    %s247 = sphi 0, %s244
    %s248 = sphi 0, %s247
    %s264 = sphi 0, %s248
    %s272 = sphi 0, %s274
    %s275 = sphi 0, %s272
    %s276 = sphi 0, %s275
    %s292 = sphi 0, %s276
  $region4: #{psa_block_forward.5} parent=0 // loop_header_branch
    %20 = sbr.rel (%p18) target = $region8
  $region5: #{psa_block_forward.5} parent=0 // loop_body
    %s22 = ssub.s32 %s17, 1
    %s23 = ssub.s32 %s17, 2
    %s30 = sadd.s32 1, %s25
    %p31 = scmp.ge.s32.totalorder %s30, 1
    %s32 = scalar_select %p31, 0, %s30
    %s33 = sadd.s32 1, %s24
    %s34 = scalar_select %p31, %s33, %s24
    %p35 = scmp.ge.s32.totalorder %s34, 2
    %s36 = scalar_select %p35, 0, %s34
    %s37 = sadd.s32 %s24, %s25
    %s38 = sadd.s32 %s36, %s32
    %s39 = ssub.s32 %s37, %s38
    %p40 = scmp.eq.s32.totalorder %s39, 0
    %s42 = sadd.s32 %s41, 1
    %s43 = scalar_select %p40, %s41, %s42
    %p46 = pneg %p40
    %p47 = scmp.eq.s32.totalorder %s17, 1
    %p48 = por %p46, %p47
    %p49 = scmp.ne.s32.totalorder %s41, %s44
    %p50 = scmp.eq.s32.totalorder %s17, 0
    %p51 = por %p49, %p50
    %p52 = scmp.ne.s32.totalorder %s41, %s44
    %p53 = scmp.eq.s32.totalorder %s22, 1
    %p54 = por %p52, %p53
    %p55 = scmp.ne.s32.totalorder %s44, %s45
    %p56 = scmp.eq.s32.totalorder %s22, 0
    %p57 = por %p55, %p56
    %p58 = scmp.ne.s32.totalorder %s44, %s45
    %p59 = scmp.eq.s32.totalorder %s23, 1
    %p60 = por %p58, %p59
    %p62 = scmp.ne.s32.totalorder %s45, %s61
    %p63 = scmp.eq.s32.totalorder %s23, 0
    %p64 = por %p62, %p63
    %s66 = sadd.s32 %s65, 1
    %p69 = scmp.eq.s32.totalorder %s17, 1
    %p70 = scmp.ne.s32.totalorder %s65, %s67
    %p71 = scmp.eq.s32.totalorder %s17, 0
    %p72 = por %p70, %p71
    %p73 = scmp.ne.s32.totalorder %s65, %s67
    %p74 = scmp.eq.s32.totalorder %s22, 1
    %p75 = por %p73, %p74
    %p76 = scmp.ne.s32.totalorder %s67, %s68
    %p77 = scmp.eq.s32.totalorder %s22, 0
    %p78 = por %p76, %p77
    %p79 = scmp.ne.s32.totalorder %s67, %s68
    %p80 = scmp.eq.s32.totalorder %s23, 1
    %p81 = por %p79, %p80
    %p83 = scmp.ne.s32.totalorder %s68, %s82
    %p84 = scmp.eq.s32.totalorder %s23, 0
    %p85 = por %p83, %p84
    %s87 = sadd.s32 %s86, 1
    %p90 = scmp.eq.s32.totalorder %s17, 1
    %p91 = scmp.ne.s32.totalorder %s86, %s88
    %p92 = scmp.eq.s32.totalorder %s17, 0
    %p93 = por %p91, %p92
    %p94 = scmp.ne.s32.totalorder %s86, %s88
    %p95 = scmp.eq.s32.totalorder %s22, 1
    %p96 = por %p94, %p95
    %p97 = scmp.ne.s32.totalorder %s88, %s89
    %p98 = scmp.eq.s32.totalorder %s22, 0
    %p99 = por %p97, %p98
    %p100 = scmp.ne.s32.totalorder %s88, %s89
    %p101 = scmp.eq.s32.totalorder %s23, 1
    %p102 = por %p100, %p101
    %p104 = scmp.ne.s32.totalorder %s89, %s103
    %p105 = scmp.eq.s32.totalorder %s23, 0
    %p106 = por %p104, %p105
    %s108 = sadd.s32 %s107, 1
    %p111 = scmp.eq.s32.totalorder %s17, 1
    %p112 = scmp.ne.s32.totalorder %s107, %s109
    %p113 = scmp.eq.s32.totalorder %s17, 0
    %p114 = por %p112, %p113
    %p115 = scmp.ne.s32.totalorder %s107, %s109
    %p116 = scmp.eq.s32.totalorder %s22, 1
    %p117 = por %p115, %p116
    %p118 = scmp.ne.s32.totalorder %s109, %s110
    %p119 = scmp.eq.s32.totalorder %s22, 0
    %p120 = por %p118, %p119
    %p121 = scmp.ne.s32.totalorder %s109, %s110
    %p122 = scmp.eq.s32.totalorder %s23, 1
    %p123 = por %p121, %p122
    %p125 = scmp.ne.s32.totalorder %s110, %s124
    %p126 = scmp.eq.s32.totalorder %s23, 0
    %p127 = por %p125, %p126
    %s129 = sadd.s32 %s128, 1
    %p132 = scmp.eq.s32.totalorder %s17, 1
    %p133 = scmp.ne.s32.totalorder %s128, %s130
    %p134 = scmp.eq.s32.totalorder %s17, 0
    %p135 = por %p133, %p134
    %p136 = scmp.ne.s32.totalorder %s128, %s130
    %p137 = scmp.eq.s32.totalorder %s22, 1
    %p138 = por %p136, %p137
    %p139 = scmp.ne.s32.totalorder %s130, %s131
    %p140 = scmp.eq.s32.totalorder %s22, 0
    %p141 = por %p139, %p140
    %p142 = scmp.ne.s32.totalorder %s130, %s131
    %p143 = scmp.eq.s32.totalorder %s23, 1
    %p144 = por %p142, %p143
    %p146 = scmp.ne.s32.totalorder %s131, %s145
    %p147 = scmp.eq.s32.totalorder %s23, 0
    %p148 = por %p146, %p147
    %s150 = sadd.s32 %s149, 1
    %p153 = scmp.eq.s32.totalorder %s17, 1
    %p154 = scmp.ne.s32.totalorder %s149, %s151
    %p155 = scmp.eq.s32.totalorder %s17, 0
    %p156 = por %p154, %p155
    %p157 = scmp.ne.s32.totalorder %s149, %s151
    %p158 = scmp.eq.s32.totalorder %s22, 1
    %p159 = por %p157, %p158
    %p160 = scmp.ne.s32.totalorder %s151, %s152
    %p161 = scmp.eq.s32.totalorder %s22, 0
    %p162 = por %p160, %p161
    %p163 = scmp.ne.s32.totalorder %s151, %s152
    %p164 = scmp.eq.s32.totalorder %s23, 1
    %p165 = por %p163, %p164
    %p167 = scmp.ne.s32.totalorder %s152, %s166
    %p168 = scmp.eq.s32.totalorder %s23, 0
    %p169 = por %p167, %p168
    %s171 = sadd.s32 %s170, 1
    %p174 = scmp.eq.s32.totalorder %s17, 1
    %p175 = scmp.ne.s32.totalorder %s170, %s172
    %p176 = scmp.eq.s32.totalorder %s17, 0
    %p177 = por %p175, %p176
    %p178 = scmp.ne.s32.totalorder %s170, %s172
    %p179 = scmp.eq.s32.totalorder %s22, 1
    %p180 = por %p178, %p179
    %p181 = scmp.ne.s32.totalorder %s172, %s173
    %p182 = scmp.eq.s32.totalorder %s22, 0
    %p183 = por %p181, %p182
    %p184 = scmp.ne.s32.totalorder %s172, %s173
    %p185 = scmp.eq.s32.totalorder %s23, 1
    %p186 = por %p184, %p185
    %p188 = scmp.ne.s32.totalorder %s173, %s187
    %p189 = scmp.eq.s32.totalorder %s23, 0
    %p190 = por %p188, %p189
    %s192 = sadd.s32 %s191, 1
    %p195 = scmp.eq.s32.totalorder %s17, 1
    %p196 = scmp.ne.s32.totalorder %s191, %s193
    %p197 = scmp.eq.s32.totalorder %s17, 0
    %p198 = por %p196, %p197
    %p199 = scmp.ne.s32.totalorder %s191, %s193
    %p200 = scmp.eq.s32.totalorder %s22, 1
    %p201 = por %p199, %p200
    %p202 = scmp.ne.s32.totalorder %s193, %s194
    %p203 = scmp.eq.s32.totalorder %s22, 0
    %p204 = por %p202, %p203
    %p205 = scmp.ne.s32.totalorder %s193, %s194
    %p206 = scmp.eq.s32.totalorder %s23, 1
    %p207 = por %p205, %p206
    %p209 = scmp.ne.s32.totalorder %s194, %s208
    %p210 = scmp.eq.s32.totalorder %s23, 0
    %p211 = por %p209, %p210
    %s212 = ssub.s32 %s24, %s36
    %s213 = ssub.s32 %s25, %s32
    %s214 = sor.u32 %s212, %s213
    %p215 = scmp.eq.s32.totalorder %s214, 0
    %s217 = sadd.s32 %s216, 1
    %s218 = scalar_select %p215, %s216, %s217
    %p221 = pneg %p215
    %p222 = scmp.eq.s32.totalorder %s17, 1
    %p223 = por %p221, %p222
    %p224 = scmp.ne.s32.totalorder %s216, %s219
    %p225 = scmp.eq.s32.totalorder %s17, 0
    %p226 = por %p224, %p225
    %p227 = scmp.ne.s32.totalorder %s216, %s219
    %p228 = scmp.eq.s32.totalorder %s22, 1
    %p229 = por %p227, %p228
    %p230 = scmp.ne.s32.totalorder %s219, %s220
    %p231 = scmp.eq.s32.totalorder %s22, 0
    %p232 = por %p230, %p231
    %p233 = scmp.ne.s32.totalorder %s219, %s220
    %p234 = scmp.eq.s32.totalorder %s23, 1
    %p235 = por %p233, %p234
    %p237 = scmp.ne.s32.totalorder %s220, %s236
    %p238 = scmp.eq.s32.totalorder %s23, 0
    %p239 = por %p237, %p238
    %s240 = ssub.s32 %s24, %s36
    %s241 = ssub.s32 %s25, %s32
    %s242 = sor.u32 %s240, %s241
    %p243 = scmp.eq.s32.totalorder %s242, 0
    %s245 = sadd.s32 %s244, 1
    %s246 = scalar_select %p243, %s244, %s245
    %p249 = pneg %p243
    %p250 = scmp.eq.s32.totalorder %s17, 1
    %p251 = por %p249, %p250
    %p252 = scmp.ne.s32.totalorder %s244, %s247
    %p253 = scmp.eq.s32.totalorder %s17, 0
    %p254 = por %p252, %p253
    %p255 = scmp.ne.s32.totalorder %s244, %s247
    %p256 = scmp.eq.s32.totalorder %s22, 1
    %p257 = por %p255, %p256
    %p258 = scmp.ne.s32.totalorder %s247, %s248
    %p259 = scmp.eq.s32.totalorder %s22, 0
    %p260 = por %p258, %p259
    %p261 = scmp.ne.s32.totalorder %s247, %s248
    %p262 = scmp.eq.s32.totalorder %s23, 1
    %p263 = por %p261, %p262
    %p265 = scmp.ne.s32.totalorder %s248, %s264
    %p266 = scmp.eq.s32.totalorder %s23, 0
    %p267 = por %p265, %p266
    %s268 = ssub.s32 %s24, %s36
    %s269 = ssub.s32 %s25, %s32
    %s270 = sor.u32 %s268, %s269
    %p271 = scmp.eq.s32.totalorder %s270, 0
    %s273 = sadd.s32 %s272, 1
    %s274 = scalar_select %p271, %s272, %s273
    %p277 = pneg %p271
    %p278 = scmp.eq.s32.totalorder %s17, 1
    %p279 = por %p277, %p278
    %p280 = scmp.ne.s32.totalorder %s272, %s275
    %p281 = scmp.eq.s32.totalorder %s17, 0
    %p282 = por %p280, %p281
    %p283 = scmp.ne.s32.totalorder %s272, %s275
    %p284 = scmp.eq.s32.totalorder %s22, 1
    %p285 = por %p283, %p284
    %p286 = scmp.ne.s32.totalorder %s275, %s276
    %p287 = scmp.eq.s32.totalorder %s22, 0
    %p288 = por %p286, %p287
    %p289 = scmp.ne.s32.totalorder %s275, %s276
    %p290 = scmp.eq.s32.totalorder %s23, 1
    %p291 = por %p289, %p290
    %p293 = scmp.ne.s32.totalorder %s276, %s292
    %p294 = scmp.eq.s32.totalorder %s23, 0
    %p295 = por %p293, %p294
    %p296 = scmp.le.s32.totalorder 1, %s17
    %p297 = scmp.lt.s32.totalorder %s17, 3
    %p298 = pnand %p296, %p297
    %p299 = pneg %p298
    // Predicated region
    $region9: #{psa_block_forward.5} parent=5 // pred_check
      _
    $region10: #{psa_block_forward.5} parent=5 // pred_check_branch
      %301 = sbr.rel (%p298) target = $region12
    $region11: #{psa_block_forward.5} parent=5 // pred_region
      %s302 = ssub.s32 %s17, 1
      // Predicated region
      $region13: #{psa_block_forward.5} parent=11 // pred_check
        %p303 = pneg %p78
      $region14: #{psa_block_forward.5} parent=11 // pred_check_branch
        %305 = sbr.rel (%p303) target = $region16
      $region15: #{psa_block_forward.5} parent=11 // pred_region
        _
      $region16: #{psa_block_forward.5} parent=11 // pred_fallthru
        _
      // Predicated region
      $region17: #{psa_block_forward.5} parent=11 // pred_check
        %p306 = pneg %p99
      $region18: #{psa_block_forward.5} parent=11 // pred_check_branch
        %308 = sbr.rel (%p306) target = $region20
      $region19: #{psa_block_forward.5} parent=11 // pred_region
        _
      $region20: #{psa_block_forward.5} parent=11 // pred_fallthru
        _
      // Predicated region
      $region21: #{psa_block_forward.5} parent=11 // pred_check
        %p309 = pneg %p120
      $region22: #{psa_block_forward.5} parent=11 // pred_check_branch
        %311 = sbr.rel (%p309) target = $region24
      $region23: #{psa_block_forward.5} parent=11 // pred_region
        _
      $region24: #{psa_block_forward.5} parent=11 // pred_fallthru
        _
      // Predicated region
      $region25: #{psa_block_forward.5} parent=11 // pred_check
        %p312 = pneg %p141
      $region26: #{psa_block_forward.5} parent=11 // pred_check_branch
        %314 = sbr.rel (%p312) target = $region28
      $region27: #{psa_block_forward.5} parent=11 // pred_region
        _
      $region28: #{psa_block_forward.5} parent=11 // pred_fallthru
        _
      // Predicated region
      $region29: #{psa_block_forward.5} parent=11 // pred_check
        %p315 = pneg %p162
      $region30: #{psa_block_forward.5} parent=11 // pred_check_branch
        %317 = sbr.rel (%p315) target = $region32
      $region31: #{psa_block_forward.5} parent=11 // pred_region
        _
      $region32: #{psa_block_forward.5} parent=11 // pred_fallthru
        _
      // Predicated region
      $region33: #{psa_block_forward.5} parent=11 // pred_check
        %p318 = pneg %p183
      $region34: #{psa_block_forward.5} parent=11 // pred_check_branch
        %320 = sbr.rel (%p318) target = $region36
      $region35: #{psa_block_forward.5} parent=11 // pred_region
        _
      $region36: #{psa_block_forward.5} parent=11 // pred_fallthru
        _
      // Predicated region
      $region37: #{psa_block_forward.5} parent=11 // pred_check
        %p321 = pneg %p204
      $region38: #{psa_block_forward.5} parent=11 // pred_check_branch
        %323 = sbr.rel (%p321) target = $region40
      $region39: #{psa_block_forward.5} parent=11 // pred_region
        _
      $region40: #{psa_block_forward.5} parent=11 // pred_fallthru
        _
    $region12: #{psa_block_forward.5} parent=5 // pred_fallthru
      _
    %p324 = scmp.lt.s32.totalorder %s17, 2
    // Predicated region
    $region41: #{psa_block_forward.5} parent=5 // pred_check
      %p325 = pneg %p324
    $region42: #{psa_block_forward.5} parent=5 // pred_check_branch
      %327 = sbr.rel (%p325) target = $region44
    $region43: #{psa_block_forward.5} parent=5 // pred_region
      // Predicated region
      $region45: #{psa_block_forward.5} parent=43 // pred_check
        %p328 = pneg %p51
      $region46: #{psa_block_forward.5} parent=43 // pred_check_branch
        %330 = sbr.rel (%p328) target = $region48
      $region47: #{psa_block_forward.5} parent=43 // pred_region
        %s331 = sadd.s32 %s24, %s25
        %p332 = scmp.lt.s32.totalorder %s331, 1
        %s333 = scalar_select %p332, %s331, 1
        %s334 = smul.addr %s333, 32
        %s335 = smul.addr %s334, 8
        %s336 = scalar_lea.vmem %s0, %s335
        %s337 = sadd.s32 %s24, %s25
      $region48: #{psa_block_forward.5} parent=43 // pred_fallthru
        _
    $region44: #{psa_block_forward.5} parent=5 // pred_fallthru
      _
    %p338 = scmp.le.s32.totalorder 1, %s17
    %p339 = scmp.lt.s32.totalorder %s17, 3
    %p340 = pnand %p338, %p339
    %p341 = pneg %p340
    // Predicated region
    $region49: #{psa_block_forward.5} parent=5 // pred_check
      _
    $region50: #{psa_block_forward.5} parent=5 // pred_check_branch
      %343 = sbr.rel (%p340) target = $region52
    $region51: #{psa_block_forward.5} parent=5 // pred_region
      %s344 = ssub.s32 %s17, 1
      %s345 = sadd.s32 %s26, %s27
      %p346 = scmp.lt.s32.totalorder %s345, 1
      %s347 = scalar_select %p346, %s345, 1
      %s348 = smul.addr %s347, 32
      %s349 = smul.addr %s348, 8
      %s350 = scalar_lea.vmem %s0, %s349
      %p351 = pneg %p57
      %p352 = pneg %p54
      %p353 = pneg %p78
      %p354 = pneg %p75
      %p355 = pneg %p99
      %p356 = pneg %p96
      %p357 = pneg %p120
      %p358 = pneg %p117
      %p359 = pneg %p141
      %p360 = pneg %p138
      %p361 = pneg %p162
      %p362 = pneg %p159
      %p363 = pneg %p183
      %p364 = pneg %p180
      %p365 = pneg %p204
      %p366 = pneg %p201
      %p367 = pneg %p232
      %p368 = pneg %p229
      %p369 = scmp.lt.s32.totalorder %s26, 1
      %s370 = scalar_select %p369, %s26, 1
      %p371 = scmp.lt.s32.totalorder %s27, 0
      %s372 = scalar_select %p371, %s27, 0
      %s373 = sadd.s32 %s372, %s370
      %s374 = smul.addr %s373, 8
      %s375 = scalar_lea.vmem %s8, %s374
      %p376 = pneg %p260
      %p377 = pneg %p257
      %p378 = scmp.lt.s32.totalorder %s26, 1
      %s379 = scalar_select %p378, %s26, 1
      %p380 = scmp.lt.s32.totalorder %s27, 0
      %s381 = scalar_select %p380, %s27, 0
      %s382 = sadd.s32 %s381, %s379
      %s383 = smul.addr %s382, 8
      %s384 = scalar_lea.vmem %s9, %s383
      %p385 = pneg %p288
      %p386 = pneg %p285
      %s387 = smul.u32 8, %s27
      %p388 = scmp.lt.s32.totalorder %s26, 1
      %s389 = scalar_select %p388, %s26, 1
      %p390 = scmp.lt.s32.totalorder %s387, 7
      %s391 = scalar_select %p390, %s387, 7
      %s392 = smul.addr %s389, 8
      %s393 = sadd.s32 %s391, %s392
      %s394 = smul.addr %s393, 4
      %s395 = scalar_lea.vmem %s10, %s394
      %s396 = sadd.s32 %s26, %s27
      %p397 = scmp.lt.s32.totalorder %s396, 1
      %s398 = scalar_select %p397, %s396, 1
      %s399 = smul.addr %s398, 32
      %s400 = smul.addr %s399, 8
      %s401 = scalar_lea.vmem %s0, %s400
      %s402 = sadd.s32 %s26, %s27
      %p403 = scmp.lt.s32.totalorder %s26, 1
      %s404 = scalar_select %p403, %s26, 1
      %p405 = scmp.lt.s32.totalorder %s27, 0
      %s406 = scalar_select %p405, %s27, 0
      %s407 = sadd.s32 %s406, %s404
      %s408 = smul.addr %s407, 8
      %s409 = scalar_lea.vmem %s8, %s408
      %p410 = scmp.lt.s32.totalorder %s26, 1
      %s411 = scalar_select %p410, %s26, 1
      %p412 = scmp.lt.s32.totalorder %s27, 0
      %s413 = scalar_select %p412, %s27, 0
      %s414 = sadd.s32 %s413, %s411
      %s415 = smul.addr %s414, 8
      %s416 = scalar_lea.vmem %s9, %s415
      %s417 = smul.u32 8, %s27
      %p418 = scmp.lt.s32.totalorder %s26, 1
      %s419 = scalar_select %p418, %s26, 1
      %p420 = scmp.lt.s32.totalorder %s417, 7
      %s421 = scalar_select %p420, %s417, 7
      %s422 = smul.addr %s419, 8
      %s423 = sadd.s32 %s421, %s422
      %s424 = smul.addr %s423, 4
      %s425 = scalar_lea.vmem %s10, %s424
      %s426 = smul.u32 8, %s27
      loop: start=0, step=1, limit=9
      $region53: #{psa_block_forward.5} parent=51 // loop_pre_header
        _
      $region54: #{psa_block_forward.5} parent=51 // loop_header
        %s428 = sphi 0, %s432
        %p429 = scmp.ge.s32.totalorder %s428, 9
        %v433 = vphi 0.0, %v714
        %v434 = vphi 0.0, %v715
        %v435 = vphi 0.0, %v716
        %v436 = vphi 0.0, %v717
        %v437 = vphi 0.0, %v718
        %v438 = vphi 0.0, %v719
        %v439 = vphi 0.0, %v720
        %v440 = vphi 0.0, %v721
      $region55: #{psa_block_forward.5} parent=51 // loop_header_branch
        %431 = sbr.rel (%p429) target = $region59
      $region56: #{psa_block_forward.5} parent=51 // loop_body
        %s441 = smul.u32 %s428, 9
        %s442 = scalar_lea.vmem %s1, %s441
        %v443 = vld [vmem:[%s442] sm:$0x1]
        %s444 = smul.u32 %s428, 16
        %s445 = scalar_lea.vmem %s401, %s444
        %v446 = vld [vmem:[%s445] sm:$0xff]
        %v447 = vld [vmem:[%s445 + $0x10] sm:$0xff]
        %v448 = vld [vmem:[%s445 + $0x20] sm:$0xff]
        %v449 = vld [vmem:[%s445 + $0x30] sm:$0xff]
        %v450 = vld [vmem:[%s445 + $0x40] sm:$0xff]
        %v451 = vld [vmem:[%s445 + $0x50] sm:$0xff]
        %v452 = vld [vmem:[%s445 + $0x60] sm:$0xff]
        %v453 = vld [vmem:[%s445 + $0x70] sm:$0xff]
        %v454 = vlaneseq
        %v455 = vshrl.u32 %v454, 7
        %v456 = vsub.s32 0, %v455
        %v457 = vrot.slane %v443, %v456
        %v458 = vmul.f32 %v446, %v457
        %v459 = vmul.f32 %v447, %v457
        %v460 = vmul.f32 %v448, %v457
        %v461 = vmul.f32 %v449, %v457
        %v462 = vmul.f32 %v450, %v457
        %v463 = vmul.f32 %v451, %v457
        %v464 = vmul.f32 %v452, %v457
        %v465 = vmul.f32 %v453, %v457
        %v466 = vadd.f32 %v433, %v458
        %v467 = vadd.f32 %v434, %v459
        %v468 = vadd.f32 %v435, %v460
        %v469 = vadd.f32 %v436, %v461
        %v470 = vadd.f32 %v437, %v462
        %v471 = vadd.f32 %v438, %v463
        %v472 = vadd.f32 %v439, %v464
        %v473 = vadd.f32 %v440, %v465
        %s474 = sadd.s32 %s441, 1
        %s475 = scalar_lea.vmem %s1, %s474
        %v476 = vld [vmem:[%s475] sm:$0x1]
        %v477 = vld [vmem:[%s445 + $0x1] sm:$0xff]
        %v478 = vld [vmem:[%s445 + $0x11] sm:$0xff]
        %v479 = vld [vmem:[%s445 + $0x21] sm:$0xff]
        %v480 = vld [vmem:[%s445 + $0x31] sm:$0xff]
        %v481 = vld [vmem:[%s445 + $0x41] sm:$0xff]
        %v482 = vld [vmem:[%s445 + $0x51] sm:$0xff]
        %v483 = vld [vmem:[%s445 + $0x61] sm:$0xff]
        %v484 = vld [vmem:[%s445 + $0x71] sm:$0xff]
        %v485 = vlaneseq
        %v486 = vshrl.u32 %v485, 7
        %v487 = vsub.s32 0, %v486
        %v488 = vrot.slane %v476, %v487
        %v489 = vmul.f32 %v477, %v488
        %v490 = vmul.f32 %v478, %v488
        %v491 = vmul.f32 %v479, %v488
        %v492 = vmul.f32 %v480, %v488
        %v493 = vmul.f32 %v481, %v488
        %v494 = vmul.f32 %v482, %v488
        %v495 = vmul.f32 %v483, %v488
        %v496 = vmul.f32 %v484, %v488
        %v497 = vadd.f32 %v466, %v489
        %v498 = vadd.f32 %v467, %v490
        %v499 = vadd.f32 %v468, %v491
        %v500 = vadd.f32 %v469, %v492
        %v501 = vadd.f32 %v470, %v493
        %v502 = vadd.f32 %v471, %v494
        %v503 = vadd.f32 %v472, %v495
        %v504 = vadd.f32 %v473, %v496
        %s505 = sadd.s32 %s441, 2
        %s506 = scalar_lea.vmem %s1, %s505
        %v507 = vld [vmem:[%s506] sm:$0x1]
        %v508 = vld [vmem:[%s445 + $0x2] sm:$0xff]
        %v509 = vld [vmem:[%s445 + $0x12] sm:$0xff]
        %v510 = vld [vmem:[%s445 + $0x22] sm:$0xff]
        %v511 = vld [vmem:[%s445 + $0x32] sm:$0xff]
        %v512 = vld [vmem:[%s445 + $0x42] sm:$0xff]
        %v513 = vld [vmem:[%s445 + $0x52] sm:$0xff]
        %v514 = vld [vmem:[%s445 + $0x62] sm:$0xff]
        %v515 = vld [vmem:[%s445 + $0x72] sm:$0xff]
        %v516 = vlaneseq
        %v517 = vshrl.u32 %v516, 7
        %v518 = vsub.s32 0, %v517
        %v519 = vrot.slane %v507, %v518
        %v520 = vmul.f32 %v508, %v519
        %v521 = vmul.f32 %v509, %v519
        %v522 = vmul.f32 %v510, %v519
        %v523 = vmul.f32 %v511, %v519
        %v524 = vmul.f32 %v512, %v519
        %v525 = vmul.f32 %v513, %v519
        %v526 = vmul.f32 %v514, %v519
        %v527 = vmul.f32 %v515, %v519
        %v528 = vadd.f32 %v497, %v520
        %v529 = vadd.f32 %v498, %v521
        %v530 = vadd.f32 %v499, %v522
        %v531 = vadd.f32 %v500, %v523
        %v532 = vadd.f32 %v501, %v524
        %v533 = vadd.f32 %v502, %v525
        %v534 = vadd.f32 %v503, %v526
        %v535 = vadd.f32 %v504, %v527
        %s536 = sadd.s32 %s441, 3
        %s537 = scalar_lea.vmem %s1, %s536
        %v538 = vld [vmem:[%s537] sm:$0x1]
        %v539 = vld [vmem:[%s445 + $0x3] sm:$0xff]
        %v540 = vld [vmem:[%s445 + $0x13] sm:$0xff]
        %v541 = vld [vmem:[%s445 + $0x23] sm:$0xff]
        %v542 = vld [vmem:[%s445 + $0x33] sm:$0xff]
        %v543 = vld [vmem:[%s445 + $0x43] sm:$0xff]
        %v544 = vld [vmem:[%s445 + $0x53] sm:$0xff]
        %v545 = vld [vmem:[%s445 + $0x63] sm:$0xff]
        %v546 = vld [vmem:[%s445 + $0x73] sm:$0xff]
        %v547 = vlaneseq
        %v548 = vshrl.u32 %v547, 7
        %v549 = vsub.s32 0, %v548
        %v550 = vrot.slane %v538, %v549
        %v551 = vmul.f32 %v539, %v550
        %v552 = vmul.f32 %v540, %v550
        %v553 = vmul.f32 %v541, %v550
        %v554 = vmul.f32 %v542, %v550
        %v555 = vmul.f32 %v543, %v550
        %v556 = vmul.f32 %v544, %v550
        %v557 = vmul.f32 %v545, %v550
        %v558 = vmul.f32 %v546, %v550
        %v559 = vadd.f32 %v528, %v551
        %v560 = vadd.f32 %v529, %v552
        %v561 = vadd.f32 %v530, %v553
        %v562 = vadd.f32 %v531, %v554
        %v563 = vadd.f32 %v532, %v555
        %v564 = vadd.f32 %v533, %v556
        %v565 = vadd.f32 %v534, %v557
        %v566 = vadd.f32 %v535, %v558
        %s567 = sadd.s32 %s441, 4
        %s568 = scalar_lea.vmem %s1, %s567
        %v569 = vld [vmem:[%s568] sm:$0x1]
        %v570 = vld [vmem:[%s445 + $0x4] sm:$0xff]
        %v571 = vld [vmem:[%s445 + $0x14] sm:$0xff]
        %v572 = vld [vmem:[%s445 + $0x24] sm:$0xff]
        %v573 = vld [vmem:[%s445 + $0x34] sm:$0xff]
        %v574 = vld [vmem:[%s445 + $0x44] sm:$0xff]
        %v575 = vld [vmem:[%s445 + $0x54] sm:$0xff]
        %v576 = vld [vmem:[%s445 + $0x64] sm:$0xff]
        %v577 = vld [vmem:[%s445 + $0x74] sm:$0xff]
        %v578 = vlaneseq
        %v579 = vshrl.u32 %v578, 7
        %v580 = vsub.s32 0, %v579
        %v581 = vrot.slane %v569, %v580
        %v582 = vmul.f32 %v570, %v581
        %v583 = vmul.f32 %v571, %v581
        %v584 = vmul.f32 %v572, %v581
        %v585 = vmul.f32 %v573, %v581
        %v586 = vmul.f32 %v574, %v581
        %v587 = vmul.f32 %v575, %v581
        %v588 = vmul.f32 %v576, %v581
        %v589 = vmul.f32 %v577, %v581
        %v590 = vadd.f32 %v559, %v582
        %v591 = vadd.f32 %v560, %v583
        %v592 = vadd.f32 %v561, %v584
        %v593 = vadd.f32 %v562, %v585
        %v594 = vadd.f32 %v563, %v586
        %v595 = vadd.f32 %v564, %v587
        %v596 = vadd.f32 %v565, %v588
        %v597 = vadd.f32 %v566, %v589
        %s598 = sadd.s32 %s441, 5
        %s599 = scalar_lea.vmem %s1, %s598
        %v600 = vld [vmem:[%s599] sm:$0x1]
        %v601 = vld [vmem:[%s445 + $0x5] sm:$0xff]
        %v602 = vld [vmem:[%s445 + $0x15] sm:$0xff]
        %v603 = vld [vmem:[%s445 + $0x25] sm:$0xff]
        %v604 = vld [vmem:[%s445 + $0x35] sm:$0xff]
        %v605 = vld [vmem:[%s445 + $0x45] sm:$0xff]
        %v606 = vld [vmem:[%s445 + $0x55] sm:$0xff]
        %v607 = vld [vmem:[%s445 + $0x65] sm:$0xff]
        %v608 = vld [vmem:[%s445 + $0x75] sm:$0xff]
        %v609 = vlaneseq
        %v610 = vshrl.u32 %v609, 7
        %v611 = vsub.s32 0, %v610
        %v612 = vrot.slane %v600, %v611
        %v613 = vmul.f32 %v601, %v612
        %v614 = vmul.f32 %v602, %v612
        %v615 = vmul.f32 %v603, %v612
        %v616 = vmul.f32 %v604, %v612
        %v617 = vmul.f32 %v605, %v612
        %v618 = vmul.f32 %v606, %v612
        %v619 = vmul.f32 %v607, %v612
        %v620 = vmul.f32 %v608, %v612
        %v621 = vadd.f32 %v590, %v613
        %v622 = vadd.f32 %v591, %v614
        %v623 = vadd.f32 %v592, %v615
        %v624 = vadd.f32 %v593, %v616
        %v625 = vadd.f32 %v594, %v617
        %v626 = vadd.f32 %v595, %v618
        %v627 = vadd.f32 %v596, %v619
        %v628 = vadd.f32 %v597, %v620
        %s629 = sadd.s32 %s441, 6
        %s630 = scalar_lea.vmem %s1, %s629
        %v631 = vld [vmem:[%s630] sm:$0x1]
        %v632 = vld [vmem:[%s445 + $0x6] sm:$0xff]
        %v633 = vld [vmem:[%s445 + $0x16] sm:$0xff]
        %v634 = vld [vmem:[%s445 + $0x26] sm:$0xff]
        %v635 = vld [vmem:[%s445 + $0x36] sm:$0xff]
        %v636 = vld [vmem:[%s445 + $0x46] sm:$0xff]
        %v637 = vld [vmem:[%s445 + $0x56] sm:$0xff]
        %v638 = vld [vmem:[%s445 + $0x66] sm:$0xff]
        %v639 = vld [vmem:[%s445 + $0x76] sm:$0xff]
        %v640 = vlaneseq
        %v641 = vshrl.u32 %v640, 7
        %v642 = vsub.s32 0, %v641
        %v643 = vrot.slane %v631, %v642
        %v644 = vmul.f32 %v632, %v643
        %v645 = vmul.f32 %v633, %v643
        %v646 = vmul.f32 %v634, %v643
        %v647 = vmul.f32 %v635, %v643
        %v648 = vmul.f32 %v636, %v643
        %v649 = vmul.f32 %v637, %v643
        %v650 = vmul.f32 %v638, %v643
        %v651 = vmul.f32 %v639, %v643
        %v652 = vadd.f32 %v621, %v644
        %v653 = vadd.f32 %v622, %v645
        %v654 = vadd.f32 %v623, %v646
        %v655 = vadd.f32 %v624, %v647
        %v656 = vadd.f32 %v625, %v648
        %v657 = vadd.f32 %v626, %v649
        %v658 = vadd.f32 %v627, %v650
        %v659 = vadd.f32 %v628, %v651
        %s660 = sadd.s32 %s441, 7
        %s661 = scalar_lea.vmem %s1, %s660
        %v662 = vld [vmem:[%s661] sm:$0x1]
        %v663 = vld [vmem:[%s445 + $0x7] sm:$0xff]
        %v664 = vld [vmem:[%s445 + $0x17] sm:$0xff]
        %v665 = vld [vmem:[%s445 + $0x27] sm:$0xff]
        %v666 = vld [vmem:[%s445 + $0x37] sm:$0xff]
        %v667 = vld [vmem:[%s445 + $0x47] sm:$0xff]
        %v668 = vld [vmem:[%s445 + $0x57] sm:$0xff]
        %v669 = vld [vmem:[%s445 + $0x67] sm:$0xff]
        %v670 = vld [vmem:[%s445 + $0x77] sm:$0xff]
        %v671 = vlaneseq
        %v672 = vshrl.u32 %v671, 7
        %v673 = vsub.s32 0, %v672
        %v674 = vrot.slane %v662, %v673
        %v675 = vmul.f32 %v663, %v674
        %v676 = vmul.f32 %v664, %v674
        %v677 = vmul.f32 %v665, %v674
        %v678 = vmul.f32 %v666, %v674
        %v679 = vmul.f32 %v667, %v674
        %v680 = vmul.f32 %v668, %v674
        %v681 = vmul.f32 %v669, %v674
        %v682 = vmul.f32 %v670, %v674
        %v683 = vadd.f32 %v652, %v675
        %v684 = vadd.f32 %v653, %v676
        %v685 = vadd.f32 %v654, %v677
        %v686 = vadd.f32 %v655, %v678
        %v687 = vadd.f32 %v656, %v679
        %v688 = vadd.f32 %v657, %v680
        %v689 = vadd.f32 %v658, %v681
        %v690 = vadd.f32 %v659, %v682
        %s691 = sadd.s32 %s441, 8
        %s692 = scalar_lea.vmem %s1, %s691
        %v693 = vld [vmem:[%s692] sm:$0x1]
        %v694 = vld [vmem:[%s445 + $0x8] sm:$0xff]
        %v695 = vld [vmem:[%s445 + $0x18] sm:$0xff]
        %v696 = vld [vmem:[%s445 + $0x28] sm:$0xff]
        %v697 = vld [vmem:[%s445 + $0x38] sm:$0xff]
        %v698 = vld [vmem:[%s445 + $0x48] sm:$0xff]
        %v699 = vld [vmem:[%s445 + $0x58] sm:$0xff]
        %v700 = vld [vmem:[%s445 + $0x68] sm:$0xff]
        %v701 = vld [vmem:[%s445 + $0x78] sm:$0xff]
        %v702 = vlaneseq
        %v703 = vshrl.u32 %v702, 7
        %v704 = vsub.s32 0, %v703
        %v705 = vrot.slane %v693, %v704
        %v706 = vmul.f32 %v694, %v705
        %v707 = vmul.f32 %v695, %v705
        %v708 = vmul.f32 %v696, %v705
        %v709 = vmul.f32 %v697, %v705
        %v710 = vmul.f32 %v698, %v705
        %v711 = vmul.f32 %v699, %v705
        %v712 = vmul.f32 %v700, %v705
        %v713 = vmul.f32 %v701, %v705
        %v714 = vadd.f32 %v683, %v706
        %v715 = vadd.f32 %v684, %v707
        %v716 = vadd.f32 %v685, %v708
        %v717 = vadd.f32 %v686, %v709
        %v718 = vadd.f32 %v687, %v710
        %v719 = vadd.f32 %v688, %v711
        %v720 = vadd.f32 %v689, %v712
        %v721 = vadd.f32 %v690, %v713
      $region57: #{psa_block_forward.5} parent=51 // loop_footer
        %s432 = sadd.s32 1, %s428
      $region58: #{psa_block_forward.5} parent=51 // loop_footer_branch
        %427 = sbr.rel target = $region54
      $region59: #{psa_block_forward.5} parent=51 // loop_exit
        _
      %v722 = vld [vmem:[%s2] sm:$0x1]
      %v724 = vlaneseq
      %v725 = vshrl.u32 %v724, 7
      %v726 = vsub.s32 0, %v725
      %v727 = vrot.slane %v722, %v726
      %v729 = vadd.f32 %v433, %v727
      %v730 = vadd.f32 %v434, %v727
      %v731 = vadd.f32 %v435, %v727
      %v732 = vadd.f32 %v436, %v727
      %v733 = vadd.f32 %v437, %v727
      %v734 = vadd.f32 %v438, %v727
      %v735 = vadd.f32 %v439, %v727
      %v736 = vadd.f32 %v440, %v727
      %s737 = scalar_lea.vmem %s401, 48
      %v738 = vld [vmem:[%s737 + $0x3] sm:$0xff]
      %v739 = vld [vmem:[%s737 + $0x13] sm:$0xff]
      %v740 = vld [vmem:[%s737 + $0x23] sm:$0xff]
      %v741 = vld [vmem:[%s737 + $0x33] sm:$0xff]
      %v742 = vld [vmem:[%s737 + $0x43] sm:$0xff]
      %v743 = vld [vmem:[%s737 + $0x53] sm:$0xff]
      %v744 = vld [vmem:[%s737 + $0x63] sm:$0xff]
      %v745 = vld [vmem:[%s737 + $0x73] sm:$0xff]
      %v746 = vld [vmem:[%s3] sm:$0x1]
      %v747 = vlaneseq
      %v748 = vshrl.u32 %v747, 7
      %v749 = vsub.s32 0, %v748
      %v750 = vrot.slane %v746, %v749
      %v751 = vmul.f32 %v738, %v750
      %v752 = vmul.f32 %v739, %v750
      %v753 = vmul.f32 %v740, %v750
      %v754 = vmul.f32 %v741, %v750
      %v755 = vmul.f32 %v742, %v750
      %v756 = vmul.f32 %v743, %v750
      %v757 = vmul.f32 %v744, %v750
      %v758 = vmul.f32 %v745, %v750
      %v759 = vadd.f32 %v751, 0.0
      %v760 = vadd.f32 %v752, 0.0
      %v761 = vadd.f32 %v753, 0.0
      %v762 = vadd.f32 %v754, 0.0
      %v763 = vadd.f32 %v755, 0.0
      %v764 = vadd.f32 %v756, 0.0
      %v765 = vadd.f32 %v757, 0.0
      %v766 = vadd.f32 %v758, 0.0
      %v767 = vld [vmem:[%s737 + $0x4] sm:$0xff]
      %v768 = vld [vmem:[%s737 + $0x14] sm:$0xff]
      %v769 = vld [vmem:[%s737 + $0x24] sm:$0xff]
      %v770 = vld [vmem:[%s737 + $0x34] sm:$0xff]
      %v771 = vld [vmem:[%s737 + $0x44] sm:$0xff]
      %v772 = vld [vmem:[%s737 + $0x54] sm:$0xff]
      %v773 = vld [vmem:[%s737 + $0x64] sm:$0xff]
      %v774 = vld [vmem:[%s737 + $0x74] sm:$0xff]
      %v775 = vld [vmem:[%s3 + $0x1] sm:$0x1]
      %v776 = vlaneseq
      %v777 = vshrl.u32 %v776, 7
      %v778 = vsub.s32 0, %v777
      %v779 = vrot.slane %v775, %v778
      %v780 = vmul.f32 %v767, %v779
      %v781 = vmul.f32 %v768, %v779
      %v782 = vmul.f32 %v769, %v779
      %v783 = vmul.f32 %v770, %v779
      %v784 = vmul.f32 %v771, %v779
      %v785 = vmul.f32 %v772, %v779
      %v786 = vmul.f32 %v773, %v779
      %v787 = vmul.f32 %v774, %v779
      %v788 = vadd.f32 %v759, %v780
      %v789 = vadd.f32 %v760, %v781
      %v790 = vadd.f32 %v761, %v782
      %v791 = vadd.f32 %v762, %v783
      %v792 = vadd.f32 %v763, %v784
      %v793 = vadd.f32 %v764, %v785
      %v794 = vadd.f32 %v765, %v786
      %v795 = vadd.f32 %v766, %v787
      %v796 = vld [vmem:[%s737 + $0x5] sm:$0xff]
      %v797 = vld [vmem:[%s737 + $0x15] sm:$0xff]
      %v798 = vld [vmem:[%s737 + $0x25] sm:$0xff]
      %v799 = vld [vmem:[%s737 + $0x35] sm:$0xff]
      %v800 = vld [vmem:[%s737 + $0x45] sm:$0xff]
      %v801 = vld [vmem:[%s737 + $0x55] sm:$0xff]
      %v802 = vld [vmem:[%s737 + $0x65] sm:$0xff]
      %v803 = vld [vmem:[%s737 + $0x75] sm:$0xff]
      %v804 = vld [vmem:[%s3 + $0x2] sm:$0x1]
      %v805 = vlaneseq
      %v806 = vshrl.u32 %v805, 7
      %v807 = vsub.s32 0, %v806
      %v808 = vrot.slane %v804, %v807
      %v809 = vmul.f32 %v796, %v808
      %v810 = vmul.f32 %v797, %v808
      %v811 = vmul.f32 %v798, %v808
      %v812 = vmul.f32 %v799, %v808
      %v813 = vmul.f32 %v800, %v808
      %v814 = vmul.f32 %v801, %v808
      %v815 = vmul.f32 %v802, %v808
      %v816 = vmul.f32 %v803, %v808
      %v817 = vadd.f32 %v788, %v809
      %v818 = vadd.f32 %v789, %v810
      %v819 = vadd.f32 %v790, %v811
      %v820 = vadd.f32 %v791, %v812
      %v821 = vadd.f32 %v792, %v813
      %v822 = vadd.f32 %v793, %v814
      %v823 = vadd.f32 %v794, %v815
      %v824 = vadd.f32 %v795, %v816
      %s825 = scalar_lea.vmem %s401, 64
      %v826 = vld [vmem:[%s825 + $0x3] sm:$0xff]
      %v827 = vld [vmem:[%s825 + $0x13] sm:$0xff]
      %v828 = vld [vmem:[%s825 + $0x23] sm:$0xff]
      %v829 = vld [vmem:[%s825 + $0x33] sm:$0xff]
      %v830 = vld [vmem:[%s825 + $0x43] sm:$0xff]
      %v831 = vld [vmem:[%s825 + $0x53] sm:$0xff]
      %v832 = vld [vmem:[%s825 + $0x63] sm:$0xff]
      %v833 = vld [vmem:[%s825 + $0x73] sm:$0xff]
      %v834 = vld [vmem:[%s3 + $0x3] sm:$0x1]
      %v835 = vlaneseq
      %v836 = vshrl.u32 %v835, 7
      %v837 = vsub.s32 0, %v836
      %v838 = vrot.slane %v834, %v837
      %v839 = vmul.f32 %v826, %v838
      %v840 = vmul.f32 %v827, %v838
      %v841 = vmul.f32 %v828, %v838
      %v842 = vmul.f32 %v829, %v838
      %v843 = vmul.f32 %v830, %v838
      %v844 = vmul.f32 %v831, %v838
      %v845 = vmul.f32 %v832, %v838
      %v846 = vmul.f32 %v833, %v838
      %v847 = vadd.f32 %v817, %v839
      %v848 = vadd.f32 %v818, %v840
      %v849 = vadd.f32 %v819, %v841
      %v850 = vadd.f32 %v820, %v842
      %v851 = vadd.f32 %v821, %v843
      %v852 = vadd.f32 %v822, %v844
      %v853 = vadd.f32 %v823, %v845
      %v854 = vadd.f32 %v824, %v846
      %v855 = vld [vmem:[%s825 + $0x4] sm:$0xff]
      %v856 = vld [vmem:[%s825 + $0x14] sm:$0xff]
      %v857 = vld [vmem:[%s825 + $0x24] sm:$0xff]
      %v858 = vld [vmem:[%s825 + $0x34] sm:$0xff]
      %v859 = vld [vmem:[%s825 + $0x44] sm:$0xff]
      %v860 = vld [vmem:[%s825 + $0x54] sm:$0xff]
      %v861 = vld [vmem:[%s825 + $0x64] sm:$0xff]
      %v862 = vld [vmem:[%s825 + $0x74] sm:$0xff]
      %v863 = vld [vmem:[%s3 + $0x4] sm:$0x1]
      %v864 = vlaneseq
      %v865 = vshrl.u32 %v864, 7
      %v866 = vsub.s32 0, %v865
      %v867 = vrot.slane %v863, %v866
      %v868 = vmul.f32 %v855, %v867
      %v869 = vmul.f32 %v856, %v867
      %v870 = vmul.f32 %v857, %v867
      %v871 = vmul.f32 %v858, %v867
      %v872 = vmul.f32 %v859, %v867
      %v873 = vmul.f32 %v860, %v867
      %v874 = vmul.f32 %v861, %v867
      %v875 = vmul.f32 %v862, %v867
      %v876 = vadd.f32 %v847, %v868
      %v877 = vadd.f32 %v848, %v869
      %v878 = vadd.f32 %v849, %v870
      %v879 = vadd.f32 %v850, %v871
      %v880 = vadd.f32 %v851, %v872
      %v881 = vadd.f32 %v852, %v873
      %v882 = vadd.f32 %v853, %v874
      %v883 = vadd.f32 %v854, %v875
      %v884 = vld [vmem:[%s825 + $0x5] sm:$0xff]
      %v885 = vld [vmem:[%s825 + $0x15] sm:$0xff]
      %v886 = vld [vmem:[%s825 + $0x25] sm:$0xff]
      %v887 = vld [vmem:[%s825 + $0x35] sm:$0xff]
      %v888 = vld [vmem:[%s825 + $0x45] sm:$0xff]
      %v889 = vld [vmem:[%s825 + $0x55] sm:$0xff]
      %v890 = vld [vmem:[%s825 + $0x65] sm:$0xff]
      %v891 = vld [vmem:[%s825 + $0x75] sm:$0xff]
      %v892 = vld [vmem:[%s3 + $0x5] sm:$0x1]
      %v893 = vlaneseq
      %v894 = vshrl.u32 %v893, 7
      %v895 = vsub.s32 0, %v894
      %v896 = vrot.slane %v892, %v895
      %v897 = vmul.f32 %v884, %v896
      %v898 = vmul.f32 %v885, %v896
      %v899 = vmul.f32 %v886, %v896
      %v900 = vmul.f32 %v887, %v896
      %v901 = vmul.f32 %v888, %v896
      %v902 = vmul.f32 %v889, %v896
      %v903 = vmul.f32 %v890, %v896
      %v904 = vmul.f32 %v891, %v896
      %v905 = vadd.f32 %v876, %v897
      %v906 = vadd.f32 %v877, %v898
      %v907 = vadd.f32 %v878, %v899
      %v908 = vadd.f32 %v879, %v900
      %v909 = vadd.f32 %v880, %v901
      %v910 = vadd.f32 %v881, %v902
      %v911 = vadd.f32 %v882, %v903
      %v912 = vadd.f32 %v883, %v904
      %s913 = scalar_lea.vmem %s401, 80
      %v914 = vld [vmem:[%s913 + $0x3] sm:$0xff]
      %v915 = vld [vmem:[%s913 + $0x13] sm:$0xff]
      %v916 = vld [vmem:[%s913 + $0x23] sm:$0xff]
      %v917 = vld [vmem:[%s913 + $0x33] sm:$0xff]
      %v918 = vld [vmem:[%s913 + $0x43] sm:$0xff]
      %v919 = vld [vmem:[%s913 + $0x53] sm:$0xff]
      %v920 = vld [vmem:[%s913 + $0x63] sm:$0xff]
      %v921 = vld [vmem:[%s913 + $0x73] sm:$0xff]
      %v922 = vld [vmem:[%s3 + $0x6] sm:$0x1]
      %v923 = vlaneseq
      %v924 = vshrl.u32 %v923, 7
      %v925 = vsub.s32 0, %v924
      %v926 = vrot.slane %v922, %v925
      %v927 = vmul.f32 %v914, %v926
      %v928 = vmul.f32 %v915, %v926
      %v929 = vmul.f32 %v916, %v926
      %v930 = vmul.f32 %v917, %v926
      %v931 = vmul.f32 %v918, %v926
      %v932 = vmul.f32 %v919, %v926
      %v933 = vmul.f32 %v920, %v926
      %v934 = vmul.f32 %v921, %v926
      %v935 = vadd.f32 %v905, %v927
      %v936 = vadd.f32 %v906, %v928
      %v937 = vadd.f32 %v907, %v929
      %v938 = vadd.f32 %v908, %v930
      %v939 = vadd.f32 %v909, %v931
      %v940 = vadd.f32 %v910, %v932
      %v941 = vadd.f32 %v911, %v933
      %v942 = vadd.f32 %v912, %v934
      %v943 = vld [vmem:[%s913 + $0x4] sm:$0xff]
      %v944 = vld [vmem:[%s913 + $0x14] sm:$0xff]
      %v945 = vld [vmem:[%s913 + $0x24] sm:$0xff]
      %v946 = vld [vmem:[%s913 + $0x34] sm:$0xff]
      %v947 = vld [vmem:[%s913 + $0x44] sm:$0xff]
      %v948 = vld [vmem:[%s913 + $0x54] sm:$0xff]
      %v949 = vld [vmem:[%s913 + $0x64] sm:$0xff]
      %v950 = vld [vmem:[%s913 + $0x74] sm:$0xff]
      %v951 = vld [vmem:[%s3 + $0x7] sm:$0x1]
      %v952 = vlaneseq
      %v953 = vshrl.u32 %v952, 7
      %v954 = vsub.s32 0, %v953
      %v955 = vrot.slane %v951, %v954
      %v956 = vmul.f32 %v943, %v955
      %v957 = vmul.f32 %v944, %v955
      %v958 = vmul.f32 %v945, %v955
      %v959 = vmul.f32 %v946, %v955
      %v960 = vmul.f32 %v947, %v955
      %v961 = vmul.f32 %v948, %v955
      %v962 = vmul.f32 %v949, %v955
      %v963 = vmul.f32 %v950, %v955
      %v964 = vadd.f32 %v935, %v956
      %v965 = vadd.f32 %v936, %v957
      %v966 = vadd.f32 %v937, %v958
      %v967 = vadd.f32 %v938, %v959
      %v968 = vadd.f32 %v939, %v960
      %v969 = vadd.f32 %v940, %v961
      %v970 = vadd.f32 %v941, %v962
      %v971 = vadd.f32 %v942, %v963
      %v972 = vld [vmem:[%s913 + $0x5] sm:$0xff]
      %v973 = vld [vmem:[%s913 + $0x15] sm:$0xff]
      %v974 = vld [vmem:[%s913 + $0x25] sm:$0xff]
      %v975 = vld [vmem:[%s913 + $0x35] sm:$0xff]
      %v976 = vld [vmem:[%s913 + $0x45] sm:$0xff]
      %v977 = vld [vmem:[%s913 + $0x55] sm:$0xff]
      %v978 = vld [vmem:[%s913 + $0x65] sm:$0xff]
      %v979 = vld [vmem:[%s913 + $0x75] sm:$0xff]
      %v980 = vld [vmem:[%s3 + $0x8] sm:$0x1]
      %v981 = vlaneseq
      %v982 = vshrl.u32 %v981, 7
      %v983 = vsub.s32 0, %v982
      %v984 = vrot.slane %v980, %v983
      %v985 = vmul.f32 %v972, %v984
      %v986 = vmul.f32 %v973, %v984
      %v987 = vmul.f32 %v974, %v984
      %v988 = vmul.f32 %v975, %v984
      %v989 = vmul.f32 %v976, %v984
      %v990 = vmul.f32 %v977, %v984
      %v991 = vmul.f32 %v978, %v984
      %v992 = vmul.f32 %v979, %v984
      %v993 = vadd.f32 %v964, %v985
      %v994 = vadd.f32 %v965, %v986
      %v995 = vadd.f32 %v966, %v987
      %v996 = vadd.f32 %v967, %v988
      %v997 = vadd.f32 %v968, %v989
      %v998 = vadd.f32 %v969, %v990
      %v999 = vadd.f32 %v970, %v991
      %v1000 = vadd.f32 %v971, %v992
      %v1001 = vld [vmem:[%s4] sm:$0x1]
      %v1003 = vlaneseq
      %v1004 = vshrl.u32 %v1003, 7
      %v1005 = vsub.s32 0, %v1004
      %v1006 = vrot.slane %v1001, %v1005
      %v1008 = vadd.f32 %v993, %v1006
      %v1009 = vadd.f32 %v994, %v1006
      %v1010 = vadd.f32 %v995, %v1006
      %v1011 = vadd.f32 %v996, %v1006
      %v1012 = vadd.f32 %v997, %v1006
      %v1013 = vadd.f32 %v998, %v1006
      %v1014 = vadd.f32 %v999, %v1006
      %v1015 = vadd.f32 %v1000, %v1006
      %v1016 = vpack.c.bf16 %v1008, %v1008
      %v1017 = vpack.c.bf16 %v1009, %v1009
      %v1018 = vpack.c.bf16 %v1010, %v1010
      %v1019 = vpack.c.bf16 %v1011, %v1011
      %v1020 = vpack.c.bf16 %v1012, %v1012
      %v1021 = vpack.c.bf16 %v1013, %v1013
      %v1022 = vpack.c.bf16 %v1014, %v1014
      %v1023 = vpack.c.bf16 %v1015, %v1015
      %vm1024 = vcmask 257024
      %1025 = vst.msk [vmem:[%s425] sm:$0xf] %vm1024, %v1016
      %1026 = vst.msk [vmem:[%s425 + $0x4] sm:$0xf] %vm1024, %v1017
      %1027 = vst.msk [vmem:[%s425 + $0x8] sm:$0xf] %vm1024, %v1018
      %1028 = vst.msk [vmem:[%s425 + $0xc] sm:$0xf] %vm1024, %v1019
      %1029 = vst.msk [vmem:[%s425 + $0x10] sm:$0xf] %vm1024, %v1020
      %1030 = vst.msk [vmem:[%s425 + $0x14] sm:$0xf] %vm1024, %v1021
      %1031 = vst.msk [vmem:[%s425 + $0x18] sm:$0xf] %vm1024, %v1022
      %1032 = vst.msk [vmem:[%s425 + $0x1c] sm:$0xf] %vm1024, %v1023
      %vm1033 = vcmask 261120
      %v1034 = vsel %vm1033, %v729, 0.0
      %1035 = vadd.xlane.f32.xlu0 %v1034
      %v1036 = vpop.xlane.xlu0 %1035
      %v1037 = vsel %vm1033, %v730, 0.0
      %1038 = vadd.xlane.f32.xlu0 %v1037
      %v1039 = vpop.xlane.xlu0 %1038
      %v1040 = vsel %vm1033, %v731, 0.0
      %1041 = vadd.xlane.f32.xlu0 %v1040
      %v1042 = vpop.xlane.xlu0 %1041
      %v1043 = vsel %vm1033, %v732, 0.0
      %1044 = vadd.xlane.f32.xlu0 %v1043
      %v1045 = vpop.xlane.xlu0 %1044
      %v1046 = vsel %vm1033, %v733, 0.0
      %1047 = vadd.xlane.f32.xlu0 %v1046
      %v1048 = vpop.xlane.xlu0 %1047
      %v1049 = vsel %vm1033, %v734, 0.0
      %1050 = vadd.xlane.f32.xlu0 %v1049
      %v1051 = vpop.xlane.xlu0 %1050
      %v1052 = vsel %vm1033, %v735, 0.0
      %1053 = vadd.xlane.f32.xlu0 %v1052
      %v1054 = vpop.xlane.xlu0 %1053
      %v1055 = vsel %vm1033, %v736, 0.0
      %1056 = vadd.xlane.f32.xlu0 %v1055
      %v1057 = vpop.xlane.xlu0 %1056
      %v1058 = vrcp.pop 32.0
      %v1059 = vmul.f32 %v1036, %v1058
      %v1060 = vmul.f32 %v1039, %v1058
      %v1061 = vmul.f32 %v1042, %v1058
      %v1062 = vmul.f32 %v1045, %v1058
      %v1063 = vmul.f32 %v1048, %v1058
      %v1064 = vmul.f32 %v1051, %v1058
      %v1065 = vmul.f32 %v1054, %v1058
      %v1066 = vmul.f32 %v1057, %v1058
      %v1067 = vsub.f32 %v729, %v1059
      %v1068 = vsub.f32 %v730, %v1060
      %v1069 = vsub.f32 %v731, %v1061
      %v1070 = vsub.f32 %v732, %v1062
      %v1071 = vsub.f32 %v733, %v1063
      %v1072 = vsub.f32 %v734, %v1064
      %v1073 = vsub.f32 %v735, %v1065
      %v1074 = vsub.f32 %v736, %v1066
      %v1075 = vmul.f32 %v1067, %v1067
      %v1076 = vmul.f32 %v1068, %v1068
      %v1077 = vmul.f32 %v1069, %v1069
      %v1078 = vmul.f32 %v1070, %v1070
      %v1079 = vmul.f32 %v1071, %v1071
      %v1080 = vmul.f32 %v1072, %v1072
      %v1081 = vmul.f32 %v1073, %v1073
      %v1082 = vmul.f32 %v1074, %v1074
      %v1083 = vsel %vm1033, %v1075, 0.0
      %1084 = vadd.xlane.f32.xlu0 %v1083
      %v1085 = vpop.xlane.xlu0 %1084
      %v1086 = vsel %vm1033, %v1076, 0.0
      %1087 = vadd.xlane.f32.xlu0 %v1086
      %v1088 = vpop.xlane.xlu0 %1087
      %v1089 = vsel %vm1033, %v1077, 0.0
      %1090 = vadd.xlane.f32.xlu0 %v1089
      %v1091 = vpop.xlane.xlu0 %1090
      %v1092 = vsel %vm1033, %v1078, 0.0
      %1093 = vadd.xlane.f32.xlu0 %v1092
      %v1094 = vpop.xlane.xlu0 %1093
      %v1095 = vsel %vm1033, %v1079, 0.0
      %1096 = vadd.xlane.f32.xlu0 %v1095
      %v1097 = vpop.xlane.xlu0 %1096
      %v1098 = vsel %vm1033, %v1080, 0.0
      %1099 = vadd.xlane.f32.xlu0 %v1098
      %v1100 = vpop.xlane.xlu0 %1099
      %v1101 = vsel %vm1033, %v1081, 0.0
      %1102 = vadd.xlane.f32.xlu0 %v1101
      %v1103 = vpop.xlane.xlu0 %1102
      %v1104 = vsel %vm1033, %v1082, 0.0
      %1105 = vadd.xlane.f32.xlu0 %v1104
      %v1106 = vpop.xlane.xlu0 %1105
      %v1107 = vmul.f32 %v1085, %v1058
      %v1108 = vmul.f32 %v1088, %v1058
      %v1109 = vmul.f32 %v1091, %v1058
      %v1110 = vmul.f32 %v1094, %v1058
      %v1111 = vmul.f32 %v1097, %v1058
      %v1112 = vmul.f32 %v1100, %v1058
      %v1113 = vmul.f32 %v1103, %v1058
      %v1114 = vmul.f32 %v1106, %v1058
      %v1115 = vadd.f32 %v1107, 1e-05
      %v1116 = vadd.f32 %v1108, 1e-05
      %v1117 = vadd.f32 %v1109, 1e-05
      %v1118 = vadd.f32 %v1110, 1e-05
      %v1119 = vadd.f32 %v1111, 1e-05
      %v1120 = vadd.f32 %v1112, 1e-05
      %v1121 = vadd.f32 %v1113, 1e-05
      %v1122 = vadd.f32 %v1114, 1e-05
      %v1123 = vrsqrt.pop %v1115
      %v1124 = vrsqrt.pop %v1116
      %v1125 = vrsqrt.pop %v1117
      %v1126 = vrsqrt.pop %v1118
      %v1127 = vrsqrt.pop %v1119
      %v1128 = vrsqrt.pop %v1120
      %v1129 = vrsqrt.pop %v1121
      %v1130 = vrsqrt.pop %v1122
      %v1131 = vmul.f32 %v1067, %v1123
      %v1132 = vmul.f32 %v1068, %v1124
      %v1133 = vmul.f32 %v1069, %v1125
      %v1134 = vmul.f32 %v1070, %v1126
      %v1135 = vmul.f32 %v1071, %v1127
      %v1136 = vmul.f32 %v1072, %v1128
      %v1137 = vmul.f32 %v1073, %v1129
      %v1138 = vmul.f32 %v1074, %v1130
      %v1139 = vld [vmem:[%s5] sm:$0x1]
      %v1141 = vlaneseq
      %v1142 = vshrl.u32 %v1141, 7
      %v1143 = vsub.s32 0, %v1142
      %v1144 = vrot.slane %v1139, %v1143
      %v1146 = vmul.f32 %v1131, %v1144
      %v1147 = vmul.f32 %v1132, %v1144
      %v1148 = vmul.f32 %v1133, %v1144
      %v1149 = vmul.f32 %v1134, %v1144
      %v1150 = vmul.f32 %v1135, %v1144
      %v1151 = vmul.f32 %v1136, %v1144
      %v1152 = vmul.f32 %v1137, %v1144
      %v1153 = vmul.f32 %v1138, %v1144
      %v1154 = vld [vmem:[%s6] sm:$0x1]
      %v1156 = vlaneseq
      %v1157 = vshrl.u32 %v1156, 7
      %v1158 = vsub.s32 0, %v1157
      %v1159 = vrot.slane %v1154, %v1158
      %v1161 = vadd.f32 %v1146, %v1159
      %v1162 = vadd.f32 %v1147, %v1159
      %v1163 = vadd.f32 %v1148, %v1159
      %v1164 = vadd.f32 %v1149, %v1159
      %v1165 = vadd.f32 %v1150, %v1159
      %v1166 = vadd.f32 %v1151, %v1159
      %v1167 = vadd.f32 %v1152, %v1159
      %v1168 = vadd.f32 %v1153, %v1159
      %v1169 = vmul.f32 %v1161, 0.5
      %v1170 = vmul.f32 %v1162, 0.5
      %v1171 = vmul.f32 %v1163, 0.5
      %v1172 = vmul.f32 %v1164, 0.5
      %v1173 = vmul.f32 %v1165, 0.5
      %v1174 = vmul.f32 %v1166, 0.5
      %v1175 = vmul.f32 %v1167, 0.5
      %v1176 = vmul.f32 %v1168, 0.5
      %v1177 = vmul.f32 %v1161, 0.70710677
      %v1178 = vmul.f32 %v1162, 0.70710677
      %v1179 = vmul.f32 %v1163, 0.70710677
      %v1180 = vmul.f32 %v1164, 0.70710677
      %v1181 = vmul.f32 %v1165, 0.70710677
      %v1182 = vmul.f32 %v1166, 0.70710677
      %v1183 = vmul.f32 %v1167, 0.70710677
      %v1184 = vmul.f32 %v1168, 0.70710677
      %v1185 = vand.u32 2147483647, %v1177
      %v1186 = vand.u32 2147483647, %v1178
      %v1187 = vand.u32 2147483647, %v1179
      %v1188 = vand.u32 2147483647, %v1180
      %v1189 = vand.u32 2147483647, %v1181
      %v1190 = vand.u32 2147483647, %v1182
      %v1191 = vand.u32 2147483647, %v1183
      %v1192 = vand.u32 2147483647, %v1184
      %v1193 = vmul.f32 %v1185, 0.3275911
      %v1194 = vmul.f32 %v1186, 0.3275911
      %v1195 = vmul.f32 %v1187, 0.3275911
      %v1196 = vmul.f32 %v1188, 0.3275911
      %v1197 = vmul.f32 %v1189, 0.3275911
      %v1198 = vmul.f32 %v1190, 0.3275911
      %v1199 = vmul.f32 %v1191, 0.3275911
      %v1200 = vmul.f32 %v1192, 0.3275911
      %v1201 = vadd.f32 %v1193, 1.0
      %v1202 = vadd.f32 %v1194, 1.0
      %v1203 = vadd.f32 %v1195, 1.0
      %v1204 = vadd.f32 %v1196, 1.0
      %v1205 = vadd.f32 %v1197, 1.0
      %v1206 = vadd.f32 %v1198, 1.0
      %v1207 = vadd.f32 %v1199, 1.0
      %v1208 = vadd.f32 %v1200, 1.0
      %v1209 = vrcp.pop %v1201
      %v1210 = vrcp.pop %v1202
      %v1211 = vrcp.pop %v1203
      %v1212 = vrcp.pop %v1204
      %v1213 = vrcp.pop %v1205
      %v1214 = vrcp.pop %v1206
      %v1215 = vrcp.pop %v1207
      %v1216 = vrcp.pop %v1208
      %v1217 = vmul.f32 %v1209, 1.0614054
      %v1218 = vmul.f32 %v1210, 1.0614054
      %v1219 = vmul.f32 %v1211, 1.0614054
      %v1220 = vmul.f32 %v1212, 1.0614054
      %v1221 = vmul.f32 %v1213, 1.0614054
      %v1222 = vmul.f32 %v1214, 1.0614054
      %v1223 = vmul.f32 %v1215, 1.0614054
      %v1224 = vmul.f32 %v1216, 1.0614054
      %v1225 = vadd.f32 %v1217, -1.4531521
      %v1226 = vadd.f32 %v1218, -1.4531521
      %v1227 = vadd.f32 %v1219, -1.4531521
      %v1228 = vadd.f32 %v1220, -1.4531521
      %v1229 = vadd.f32 %v1221, -1.4531521
      %v1230 = vadd.f32 %v1222, -1.4531521
      %v1231 = vadd.f32 %v1223, -1.4531521
      %v1232 = vadd.f32 %v1224, -1.4531521
      %v1233 = vmul.f32 %v1225, %v1209
      %v1234 = vmul.f32 %v1226, %v1210
      %v1235 = vmul.f32 %v1227, %v1211
      %v1236 = vmul.f32 %v1228, %v1212
      %v1237 = vmul.f32 %v1229, %v1213
      %v1238 = vmul.f32 %v1230, %v1214
      %v1239 = vmul.f32 %v1231, %v1215
      %v1240 = vmul.f32 %v1232, %v1216
      %v1241 = vadd.f32 %v1233, 1.4214138
      %v1242 = vadd.f32 %v1234, 1.4214138
      %v1243 = vadd.f32 %v1235, 1.4214138
      %v1244 = vadd.f32 %v1236, 1.4214138
      %v1245 = vadd.f32 %v1237, 1.4214138
      %v1246 = vadd.f32 %v1238, 1.4214138
      %v1247 = vadd.f32 %v1239, 1.4214138
      %v1248 = vadd.f32 %v1240, 1.4214138
      %v1249 = vmul.f32 %v1241, %v1209
      %v1250 = vmul.f32 %v1242, %v1210
      %v1251 = vmul.f32 %v1243, %v1211
      %v1252 = vmul.f32 %v1244, %v1212
      %v1253 = vmul.f32 %v1245, %v1213
      %v1254 = vmul.f32 %v1246, %v1214
      %v1255 = vmul.f32 %v1247, %v1215
      %v1256 = vmul.f32 %v1248, %v1216
      %v1257 = vadd.f32 %v1249, -0.28449672
      %v1258 = vadd.f32 %v1250, -0.28449672
      %v1259 = vadd.f32 %v1251, -0.28449672
      %v1260 = vadd.f32 %v1252, -0.28449672
      %v1261 = vadd.f32 %v1253, -0.28449672
      %v1262 = vadd.f32 %v1254, -0.28449672
      %v1263 = vadd.f32 %v1255, -0.28449672
      %v1264 = vadd.f32 %v1256, -0.28449672
      %v1265 = vmul.f32 %v1257, %v1209
      %v1266 = vmul.f32 %v1258, %v1210
      %v1267 = vmul.f32 %v1259, %v1211
      %v1268 = vmul.f32 %v1260, %v1212
      %v1269 = vmul.f32 %v1261, %v1213
      %v1270 = vmul.f32 %v1262, %v1214
      %v1271 = vmul.f32 %v1263, %v1215
      %v1272 = vmul.f32 %v1264, %v1216
      %v1273 = vadd.f32 %v1265, 0.2548296
      %v1274 = vadd.f32 %v1266, 0.2548296
      %v1275 = vadd.f32 %v1267, 0.2548296
      %v1276 = vadd.f32 %v1268, 0.2548296
      %v1277 = vadd.f32 %v1269, 0.2548296
      %v1278 = vadd.f32 %v1270, 0.2548296
      %v1279 = vadd.f32 %v1271, 0.2548296
      %v1280 = vadd.f32 %v1272, 0.2548296
      %v1281 = vmul.f32 %v1273, %v1209
      %v1282 = vmul.f32 %v1274, %v1210
      %v1283 = vmul.f32 %v1275, %v1211
      %v1284 = vmul.f32 %v1276, %v1212
      %v1285 = vmul.f32 %v1277, %v1213
      %v1286 = vmul.f32 %v1278, %v1214
      %v1287 = vmul.f32 %v1279, %v1215
      %v1288 = vmul.f32 %v1280, %v1216
      %v1289 = vsub.f32 0.0, %v1185
      %v1290 = vsub.f32 0.0, %v1186
      %v1291 = vsub.f32 0.0, %v1187
      %v1292 = vsub.f32 0.0, %v1188
      %v1293 = vsub.f32 0.0, %v1189
      %v1294 = vsub.f32 0.0, %v1190
      %v1295 = vsub.f32 0.0, %v1191
      %v1296 = vsub.f32 0.0, %v1192
      %v1297 = vmul.f32 %v1289, %v1185
      %v1298 = vmul.f32 %v1290, %v1186
      %v1299 = vmul.f32 %v1291, %v1187
      %v1300 = vmul.f32 %v1292, %v1188
      %v1301 = vmul.f32 %v1293, %v1189
      %v1302 = vmul.f32 %v1294, %v1190
      %v1303 = vmul.f32 %v1295, %v1191
      %v1304 = vmul.f32 %v1296, %v1192
      %v1305 = vmul.f32 %v1297, 1.442695
      %v1306 = vpow.pop %v1305
      %v1307 = vmul.f32 %v1298, 1.442695
      %v1308 = vpow.pop %v1307
      %v1309 = vmul.f32 %v1299, 1.442695
      %v1310 = vpow.pop %v1309
      %v1311 = vmul.f32 %v1300, 1.442695
      %v1312 = vpow.pop %v1311
      %v1313 = vmul.f32 %v1301, 1.442695
      %v1314 = vpow.pop %v1313
      %v1315 = vmul.f32 %v1302, 1.442695
      %v1316 = vpow.pop %v1315
      %v1317 = vmul.f32 %v1303, 1.442695
      %v1318 = vpow.pop %v1317
      %v1319 = vmul.f32 %v1304, 1.442695
      %v1320 = vpow.pop %v1319
      %v1321 = vmul.f32 %v1281, %v1306
      %v1322 = vmul.f32 %v1282, %v1308
      %v1323 = vmul.f32 %v1283, %v1310
      %v1324 = vmul.f32 %v1284, %v1312
      %v1325 = vmul.f32 %v1285, %v1314
      %v1326 = vmul.f32 %v1286, %v1316
      %v1327 = vmul.f32 %v1287, %v1318
      %v1328 = vmul.f32 %v1288, %v1320
      %v1329 = vsub.f32 1.0, %v1321
      %v1330 = vsub.f32 1.0, %v1322
      %v1331 = vsub.f32 1.0, %v1323
      %v1332 = vsub.f32 1.0, %v1324
      %v1333 = vsub.f32 1.0, %v1325
      %v1334 = vsub.f32 1.0, %v1326
      %v1335 = vsub.f32 1.0, %v1327
      %v1336 = vsub.f32 1.0, %v1328
      %vm1337 = vcmp.lt.f32.partialorder %v1177, 0.0
      %vm1338 = vcmp.lt.f32.partialorder %v1178, 0.0
      %vm1339 = vcmp.lt.f32.partialorder %v1179, 0.0
      %vm1340 = vcmp.lt.f32.partialorder %v1180, 0.0
      %vm1341 = vcmp.lt.f32.partialorder %v1181, 0.0
      %vm1342 = vcmp.lt.f32.partialorder %v1182, 0.0
      %vm1343 = vcmp.lt.f32.partialorder %v1183, 0.0
      %vm1344 = vcmp.lt.f32.partialorder %v1184, 0.0
      %v1345 = vsub.f32 0.0, %v1329
      %v1346 = vsub.f32 0.0, %v1330
      %v1347 = vsub.f32 0.0, %v1331
      %v1348 = vsub.f32 0.0, %v1332
      %v1349 = vsub.f32 0.0, %v1333
      %v1350 = vsub.f32 0.0, %v1334
      %v1351 = vsub.f32 0.0, %v1335
      %v1352 = vsub.f32 0.0, %v1336
      %v1353 = vsel %vm1337, %v1345, %v1329
      %v1354 = vsel %vm1338, %v1346, %v1330
      %v1355 = vsel %vm1339, %v1347, %v1331
      %v1356 = vsel %vm1340, %v1348, %v1332
      %v1357 = vsel %vm1341, %v1349, %v1333
      %v1358 = vsel %vm1342, %v1350, %v1334
      %v1359 = vsel %vm1343, %v1351, %v1335
      %v1360 = vsel %vm1344, %v1352, %v1336
      %v1361 = vadd.f32 %v1353, 1.0
      %v1362 = vadd.f32 %v1354, 1.0
      %v1363 = vadd.f32 %v1355, 1.0
      %v1364 = vadd.f32 %v1356, 1.0
      %v1365 = vadd.f32 %v1357, 1.0
      %v1366 = vadd.f32 %v1358, 1.0
      %v1367 = vadd.f32 %v1359, 1.0
      %v1368 = vadd.f32 %v1360, 1.0
      %v1369 = vmul.f32 %v1169, %v1361
      %v1370 = vmul.f32 %v1170, %v1362
      %v1371 = vmul.f32 %v1171, %v1363
      %v1372 = vmul.f32 %v1172, %v1364
      %v1373 = vmul.f32 %v1173, %v1365
      %v1374 = vmul.f32 %v1174, %v1366
      %v1375 = vmul.f32 %v1175, %v1367
      %v1376 = vmul.f32 %v1176, %v1368
      %v1377 = vld [vmem:[%s7] sm:$0x3]
      %v1378 = vlaneseq
      %v1379 = vshrl.u32 %v1378, 7
      %v1380 = vsub.s32 0, %v1379
      %v1381 = vrot.slane %v1377, %v1380
      %v1382 = vmul.f32 %v1369, %v1381
      %v1383 = vmul.f32 %v1370, %v1381
      %v1384 = vmul.f32 %v1371, %v1381
      %v1385 = vmul.f32 %v1372, %v1381
      %v1386 = vmul.f32 %v1373, %v1381
      %v1387 = vmul.f32 %v1374, %v1381
      %v1388 = vmul.f32 %v1375, %v1381
      %v1389 = vmul.f32 %v1376, %v1381
      %v1390 = vsel %vm1033, %v1382, 0.0
      %1391 = vadd.xlane.f32.xlu0 %v1390
      %v1392 = vpop.xlane.xlu0 %1391
      %v1393 = vsel %vm1033, %v1383, 0.0
      %1394 = vadd.xlane.f32.xlu0 %v1393
      %v1395 = vpop.xlane.xlu0 %1394
      %v1396 = vsel %vm1033, %v1384, 0.0
      %1397 = vadd.xlane.f32.xlu0 %v1396
      %v1398 = vpop.xlane.xlu0 %1397
      %v1399 = vsel %vm1033, %v1385, 0.0
      %1400 = vadd.xlane.f32.xlu0 %v1399
      %v1401 = vpop.xlane.xlu0 %1400
      %v1402 = vsel %vm1033, %v1386, 0.0
      %1403 = vadd.xlane.f32.xlu0 %v1402
      %v1404 = vpop.xlane.xlu0 %1403
      %v1405 = vsel %vm1033, %v1387, 0.0
      %1406 = vadd.xlane.f32.xlu0 %v1405
      %v1407 = vpop.xlane.xlu0 %1406
      %v1408 = vsel %vm1033, %v1388, 0.0
      %1409 = vadd.xlane.f32.xlu0 %v1408
      %v1410 = vpop.xlane.xlu0 %1409
      %v1411 = vsel %vm1033, %v1389, 0.0
      %1412 = vadd.xlane.f32.xlu0 %v1411
      %v1413 = vpop.xlane.xlu0 %1412
      %v1422 = vlaneseq
      %v1423 = vand.u32 %v1422, 127
      %v1424 = vlaneseq
      %v1425 = vshrl.u32 %v1424, 7
      %v1426 = vsub.s32 %v1423, %v1425
      %v1427 = vrot.slane %v1392, %v1426
      %v1428 = vlaneseq
      %v1429 = vshrl.u32 %v1428, 7
      %v1430 = vsub.s32 %v1423, %v1429
      %v1431 = vrot.slane %v1395, %v1430
      %v1432 = vlaneseq
      %v1433 = vshrl.u32 %v1432, 7
      %v1434 = vsub.s32 %v1423, %v1433
      %v1435 = vrot.slane %v1398, %v1434
      %v1436 = vlaneseq
      %v1437 = vshrl.u32 %v1436, 7
      %v1438 = vsub.s32 %v1423, %v1437
      %v1439 = vrot.slane %v1401, %v1438
      %v1440 = vlaneseq
      %v1441 = vshrl.u32 %v1440, 7
      %v1442 = vsub.s32 %v1423, %v1441
      %v1443 = vrot.slane %v1404, %v1442
      %v1444 = vlaneseq
      %v1445 = vshrl.u32 %v1444, 7
      %v1446 = vsub.s32 %v1423, %v1445
      %v1447 = vrot.slane %v1407, %v1446
      %v1448 = vlaneseq
      %v1449 = vshrl.u32 %v1448, 7
      %v1450 = vsub.s32 %v1423, %v1449
      %v1451 = vrot.slane %v1410, %v1450
      %v1452 = vlaneseq
      %v1453 = vshrl.u32 %v1452, 7
      %v1454 = vsub.s32 %v1423, %v1453
      %v1455 = vrot.slane %v1413, %v1454
      %vm1456 = vcmask 1041409
      %v1457 = vsel %vm1456, %v1431, %v1427
      %vm1458 = vcmask 1042434
      %v1459 = vsel %vm1458, %v1435, %v1457
      %vm1460 = vcmask 1043459
      %v1461 = vsel %vm1460, %v1439, %v1459
      %vm1462 = vcmask 1044484
      %v1463 = vsel %vm1462, %v1443, %v1461
      %vm1464 = vcmask 1045509
      %v1465 = vsel %vm1464, %v1447, %v1463
      %vm1466 = vcmask 1046534
      %v1467 = vsel %vm1466, %v1451, %v1465
      %vm1468 = vcmask 1047559
      %v1469 = vsel %vm1468, %v1455, %v1467
      %vm1471 = vcmask 64512
      %1472 = vst.msk [vmem:[%s409] sm:$0xff] %vm1471, %v1469
      %v1473 = vlaneseq
      %v1474 = vshrl.u32 %v1473, 7
      %v1475 = vsub.s32 1, %v1474
      %v1476 = vrot.slane %v1377, %v1475
      %v1477 = vmul.f32 %v1369, %v1476
      %v1478 = vmul.f32 %v1370, %v1476
      %v1479 = vmul.f32 %v1371, %v1476
      %v1480 = vmul.f32 %v1372, %v1476
      %v1481 = vmul.f32 %v1373, %v1476
      %v1482 = vmul.f32 %v1374, %v1476
      %v1483 = vmul.f32 %v1375, %v1476
      %v1484 = vmul.f32 %v1376, %v1476
      %v1485 = vsel %vm1033, %v1477, 0.0
      %1486 = vadd.xlane.f32.xlu0 %v1485
      %v1487 = vpop.xlane.xlu0 %1486
      %v1488 = vsel %vm1033, %v1478, 0.0
      %1489 = vadd.xlane.f32.xlu0 %v1488
      %v1490 = vpop.xlane.xlu0 %1489
      %v1491 = vsel %vm1033, %v1479, 0.0
      %1492 = vadd.xlane.f32.xlu0 %v1491
      %v1493 = vpop.xlane.xlu0 %1492
      %v1494 = vsel %vm1033, %v1480, 0.0
      %1495 = vadd.xlane.f32.xlu0 %v1494
      %v1496 = vpop.xlane.xlu0 %1495
      %v1497 = vsel %vm1033, %v1481, 0.0
      %1498 = vadd.xlane.f32.xlu0 %v1497
      %v1499 = vpop.xlane.xlu0 %1498
      %v1500 = vsel %vm1033, %v1482, 0.0
      %1501 = vadd.xlane.f32.xlu0 %v1500
      %v1502 = vpop.xlane.xlu0 %1501
      %v1503 = vsel %vm1033, %v1483, 0.0
      %1504 = vadd.xlane.f32.xlu0 %v1503
      %v1505 = vpop.xlane.xlu0 %1504
      %v1506 = vsel %vm1033, %v1484, 0.0
      %1507 = vadd.xlane.f32.xlu0 %v1506
      %v1508 = vpop.xlane.xlu0 %1507
      %v1517 = vlaneseq
      %v1518 = vshrl.u32 %v1517, 7
      %v1519 = vsub.s32 %v1423, %v1518
      %v1520 = vrot.slane %v1487, %v1519
      %v1521 = vlaneseq
      %v1522 = vshrl.u32 %v1521, 7
      %v1523 = vsub.s32 %v1423, %v1522
      %v1524 = vrot.slane %v1490, %v1523
      %v1525 = vlaneseq
      %v1526 = vshrl.u32 %v1525, 7
      %v1527 = vsub.s32 %v1423, %v1526
      %v1528 = vrot.slane %v1493, %v1527
      %v1529 = vlaneseq
      %v1530 = vshrl.u32 %v1529, 7
      %v1531 = vsub.s32 %v1423, %v1530
      %v1532 = vrot.slane %v1496, %v1531
      %v1533 = vlaneseq
      %v1534 = vshrl.u32 %v1533, 7
      %v1535 = vsub.s32 %v1423, %v1534
      %v1536 = vrot.slane %v1499, %v1535
      %v1537 = vlaneseq
      %v1538 = vshrl.u32 %v1537, 7
      %v1539 = vsub.s32 %v1423, %v1538
      %v1540 = vrot.slane %v1502, %v1539
      %v1541 = vlaneseq
      %v1542 = vshrl.u32 %v1541, 7
      %v1543 = vsub.s32 %v1423, %v1542
      %v1544 = vrot.slane %v1505, %v1543
      %v1545 = vlaneseq
      %v1546 = vshrl.u32 %v1545, 7
      %v1547 = vsub.s32 %v1423, %v1546
      %v1548 = vrot.slane %v1508, %v1547
      %v1549 = vsel %vm1456, %v1524, %v1520
      %v1550 = vsel %vm1458, %v1528, %v1549
      %v1551 = vsel %vm1460, %v1532, %v1550
      %v1552 = vsel %vm1462, %v1536, %v1551
      %v1553 = vsel %vm1464, %v1540, %v1552
      %v1554 = vsel %vm1466, %v1544, %v1553
      %v1555 = vsel %vm1468, %v1548, %v1554
      %1557 = vst.msk [vmem:[%s416] sm:$0xff] %vm1471, %v1555
      %p1558 = scmp.lt.s32.totalorder %s26, 1
      %s1559 = scalar_select %p1558, %s26, 1
      %p1560 = scmp.lt.s32.totalorder %s27, 0
      %s1561 = scalar_select %p1560, %s27, 0
      %s1562 = sadd.s32 %s1561, %s1559
      %s1563 = smul.addr %s1562, 8
      %s1564 = scalar_lea.vmem %s8, %s1563
      %p1565 = scmp.lt.s32.totalorder %s26, 1
      %s1566 = scalar_select %p1565, %s26, 1
      %p1567 = scmp.lt.s32.totalorder %s27, 0
      %s1568 = scalar_select %p1567, %s27, 0
      %s1569 = sadd.s32 %s1568, %s1566
      %s1570 = smul.addr %s1569, 8
      %s1571 = scalar_lea.vmem %s9, %s1570
      %s1572 = smul.u32 8, %s27
      %p1573 = scmp.lt.s32.totalorder %s26, 1
      %s1574 = scalar_select %p1573, %s26, 1
      %p1575 = scmp.lt.s32.totalorder %s1572, 7
      %s1576 = scalar_select %p1575, %s1572, 7
      %s1577 = smul.addr %s1574, 8
      %s1578 = sadd.s32 %s1576, %s1577
      %s1579 = smul.addr %s1578, 4
      %s1580 = scalar_lea.vmem %s10, %s1579
      // Predicated region
      $region60: #{psa_block_forward.5} parent=51 // pred_check
        %p1581 = pneg %p229
      $region61: #{psa_block_forward.5} parent=51 // pred_check_branch
        %1583 = sbr.rel (%p1581) target = $region63
      $region62: #{psa_block_forward.5} parent=51 // pred_region
        _
      $region63: #{psa_block_forward.5} parent=51 // pred_fallthru
        _
      // Predicated region
      $region64: #{psa_block_forward.5} parent=51 // pred_check
        %p1584 = pneg %p257
      $region65: #{psa_block_forward.5} parent=51 // pred_check_branch
        %1586 = sbr.rel (%p1584) target = $region67
      $region66: #{psa_block_forward.5} parent=51 // pred_region
        _
      $region67: #{psa_block_forward.5} parent=51 // pred_fallthru
        _
      // Predicated region
      $region68: #{psa_block_forward.5} parent=51 // pred_check
        %p1587 = pneg %p285
      $region69: #{psa_block_forward.5} parent=51 // pred_check_branch
        %1589 = sbr.rel (%p1587) target = $region71
      $region70: #{psa_block_forward.5} parent=51 // pred_region
        %s1590 = smul.u32 8, %s27
      $region71: #{psa_block_forward.5} parent=51 // pred_fallthru
        _
    $region52: #{psa_block_forward.5} parent=5 // pred_fallthru
      _
    %p1591 = scmp.le.s32.totalorder 2, %s17
    // Predicated region
    $region72: #{psa_block_forward.5} parent=5 // pred_check
      %p1592 = pneg %p1591
    $region73: #{psa_block_forward.5} parent=5 // pred_check_branch
      %1594 = sbr.rel (%p1592) target = $region75
    $region74: #{psa_block_forward.5} parent=5 // pred_region
      %s1595 = ssub.s32 %s17, 2
      // Predicated region
      $region76: #{psa_block_forward.5} parent=74 // pred_check
        %p1596 = pneg %p235
      $region77: #{psa_block_forward.5} parent=74 // pred_check_branch
        %1598 = sbr.rel (%p1596) target = $region79
      $region78: #{psa_block_forward.5} parent=74 // pred_region
        %p1599 = scmp.lt.s32.totalorder %s28, 1
        %s1600 = scalar_select %p1599, %s28, 1
        %p1601 = scmp.lt.s32.totalorder %s29, 0
        %s1602 = scalar_select %p1601, %s29, 0
        %s1603 = sadd.s32 %s1602, %s1600
        %s1604 = smul.addr %s1603, 8
        %s1605 = scalar_lea.vmem %s8, %s1604
      $region79: #{psa_block_forward.5} parent=74 // pred_fallthru
        _
      // Predicated region
      $region80: #{psa_block_forward.5} parent=74 // pred_check
        %p1606 = pneg %p263
      $region81: #{psa_block_forward.5} parent=74 // pred_check_branch
        %1608 = sbr.rel (%p1606) target = $region83
      $region82: #{psa_block_forward.5} parent=74 // pred_region
        %p1609 = scmp.lt.s32.totalorder %s28, 1
        %s1610 = scalar_select %p1609, %s28, 1
        %p1611 = scmp.lt.s32.totalorder %s29, 0
        %s1612 = scalar_select %p1611, %s29, 0
        %s1613 = sadd.s32 %s1612, %s1610
        %s1614 = smul.addr %s1613, 8
        %s1615 = scalar_lea.vmem %s9, %s1614
      $region83: #{psa_block_forward.5} parent=74 // pred_fallthru
        _
      // Predicated region
      $region84: #{psa_block_forward.5} parent=74 // pred_check
        %p1616 = pneg %p291
      $region85: #{psa_block_forward.5} parent=74 // pred_check_branch
        %1618 = sbr.rel (%p1616) target = $region87
      $region86: #{psa_block_forward.5} parent=74 // pred_region
        %s1619 = smul.u32 8, %s29
        %p1620 = scmp.lt.s32.totalorder %s28, 1
        %s1621 = scalar_select %p1620, %s28, 1
        %p1622 = scmp.lt.s32.totalorder %s1619, 7
        %s1623 = scalar_select %p1622, %s1619, 7
        %s1624 = smul.addr %s1621, 8
        %s1625 = sadd.s32 %s1623, %s1624
        %s1626 = smul.addr %s1625, 4
        %s1627 = scalar_lea.vmem %s10, %s1626
      $region87: #{psa_block_forward.5} parent=74 // pred_fallthru
        _
    $region75: #{psa_block_forward.5} parent=5 // pred_fallthru
      _
  $region6: #{psa_block_forward.5} parent=0 // loop_footer
    %s21 = sadd.s32 1, %s17
  $region7: #{psa_block_forward.5} parent=0 // loop_footer_branch
    %16 = sbr.rel target = $region3
  $region8: #{psa_block_forward.5} parent=0 // loop_exit
    _

// kernel: psa_block_forward.6
$region0: #{psa_block_forward.6}
  #allocation0 [shape = 'u32[]', space=smem, size = 0x4, offset = 0x4, fixed_abs, tag = 'smem constant byte address 0x4 - core index']
  #allocation1 [shape = 'u32[144,128]{1,0:T(1,128)}', space=vmem, size = 0x12000, scoped, tag = 'internal scratch']
  %s0 = inlined_call_operand.vmem [shape: f32[128,32], index: 0, kind: input, shape index: {}]
  %s1 = inlined_call_operand.vmem [shape: bf16[32,64], index: 1, kind: input, shape index: {}]
  %s2 = inlined_call_operand.vmem [shape: f32[1,64], index: 2, kind: input, shape index: {}]
  %s3 = inlined_call_operand.vmem [shape: bf16[128,64], index: 3, kind: output, shape index: {}]
  %s4 = sld [smem:[#allocation0]]
  $region22: #{psa_block_forward.6} parent=0
    _
  %s6 = ssub.s32 1, %s4
  %s7 = scalar_select 0, %s6, %s4
  // Predicated region
  $region2: #{psa_block_forward.6} parent=0 // pred_check
    _
  $region3: #{psa_block_forward.6} parent=0 // pred_check_branch
    %9 = sbr.rel (0) target = $region5
  $region4: #{psa_block_forward.6} parent=0 // pred_region
    _
  $region5: #{psa_block_forward.6} parent=0 // pred_fallthru
    _
  // Predicated region
  $region6: #{psa_block_forward.6} parent=0 // pred_check
    _
  $region7: #{psa_block_forward.6} parent=0 // pred_check_branch
    %11 = sbr.rel (0) target = $region9
  $region8: #{psa_block_forward.6} parent=0 // pred_region
    _
  $region9: #{psa_block_forward.6} parent=0 // pred_fallthru
    _
  // Predicated region
  $region10: #{psa_block_forward.6} parent=0 // pred_check
    _
  $region11: #{psa_block_forward.6} parent=0 // pred_check_branch
    %13 = sbr.rel (0) target = $region13
  $region12: #{psa_block_forward.6} parent=0 // pred_region
    _
  $region13: #{psa_block_forward.6} parent=0 // pred_fallthru
    _
  %v15 = vld [vmem:[%s0] sm:$0xff]
  %v16 = vld [vmem:[%s0 + $0x8] sm:$0xff]
  %v17 = vld [vmem:[%s0 + $0x10] sm:$0xff]
  %v18 = vld [vmem:[%s0 + $0x18] sm:$0xff]
  %v19 = vld [vmem:[%s0 + $0x20] sm:$0xff]
  %v20 = vld [vmem:[%s0 + $0x28] sm:$0xff]
  %v21 = vld [vmem:[%s0 + $0x30] sm:$0xff]
  %v22 = vld [vmem:[%s0 + $0x38] sm:$0xff]
  %v23 = vld [vmem:[%s0 + $0x40] sm:$0xff]
  %v24 = vld [vmem:[%s0 + $0x48] sm:$0xff]
  %v25 = vld [vmem:[%s0 + $0x50] sm:$0xff]
  %v26 = vld [vmem:[%s0 + $0x58] sm:$0xff]
  %v27 = vld [vmem:[%s0 + $0x60] sm:$0xff]
  %v28 = vld [vmem:[%s0 + $0x68] sm:$0xff]
  %v29 = vld [vmem:[%s0 + $0x70] sm:$0xff]
  %v30 = vld [vmem:[%s0 + $0x78] sm:$0xff]
  %v31 = vpack.c.bf16 %v16, %v15
  %v32 = vpack.c.bf16 %v18, %v17
  %v33 = vpack.c.bf16 %v20, %v19
  %v34 = vpack.c.bf16 %v22, %v21
  %v35 = vpack.c.bf16 %v24, %v23
  %v36 = vpack.c.bf16 %v26, %v25
  %v37 = vpack.c.bf16 %v28, %v27
  %v38 = vpack.c.bf16 %v30, %v29
  %v39 = vld [vmem:[%s1] sm:$0xf]
  %v40 = vld [vmem:[%s1 + $0x4] sm:$0xf]
  %v41 = vld [vmem:[%s1 + $0x8] sm:$0xf]
  %v42 = vld [vmem:[%s1 + $0xc] sm:$0xf]
  %v43 = vld [vmem:[%s2] sm:$0x1]
  %v45 = vlaneseq
  %v46 = vshrl.u32 %v45, 7
  %v47 = vsub.s32 0, %v46
  %v48 = vrot.slane %v43, %v47
  %v54 = vunpack.c.l.b16 %v39
  %v55 = vunpack.c.l.b16 %v40
  %v56 = vunpack.c.l.b16 %v41
  %v57 = vunpack.c.l.b16 %v42
  %v58 = vpack.c.b16 %v55, %v54
  %v59 = vpack.c.b16 %v57, %v56
  %vm62 = vcmask 261120
  %v64 = vsel %vm62, %v31, 0
  %v67 = vsel %vm62, %v32, 0
  %v70 = vsel %vm62, %v33, 0
  %v73 = vsel %vm62, %v34, 0
  %v76 = vsel %vm62, %v35, 0
  %v79 = vsel %vm62, %v36, 0
  %v82 = vsel %vm62, %v37, 0
  %v85 = vsel %vm62, %v38, 0
  %87 = vmatprep.subr.bf16.mxu0 0
  %88 = vmatpush1.bf16.msra.mxu0 %v58
  %89 = vmatprep.subr.bf16.mxu0 0
  %90 = vmatpush1.bf16.msra.mxu0 %v59
  %91 = vmatprep.subr.bf16.mxu0 0
  %92 = vmatpush1.bf16.msra.mxu0 0
  %93 = vmatprep.subr.bf16.mxu0 0
  %94 = vmatpush1.bf16.msra.mxu0 0
  %95 = vmatprep.subr.bf16.mxu0 0
  %96 = vmatpush1.bf16.msra.mxu0 0
  %97 = vmatprep.subr.bf16.mxu0 0
  %98 = vmatpush1.bf16.msra.mxu0 0
  %99 = vmatprep.subr.bf16.mxu0 0
  %100 = vmatpush1.bf16.msra.mxu0 0
  %101 = vmatprep.subr.bf16.mxu0 0
  %102 = vmatpush1.bf16.msra.mxu0 0
  %103 = vmatprep.subr.bf16.mxu0 0
  %104 = vmatpush1.bf16.msra.mxu0 0
  %105 = vmatprep.subr.bf16.mxu0 0
  %106 = vmatpush1.bf16.msra.mxu0 0
  %107 = vmatprep.subr.bf16.mxu0 0
  %108 = vmatpush1.bf16.msra.mxu0 0
  %109 = vmatprep.subr.bf16.mxu0 0
  %110 = vmatpush1.bf16.msra.mxu0 0
  %111 = vmatprep.subr.bf16.mxu0 0
  %112 = vmatpush1.bf16.msra.mxu0 0
  %113 = vmatprep.subr.bf16.mxu0 0
  %114 = vmatpush1.bf16.msra.mxu0 0
  %115 = vmatprep.subr.bf16.mxu0 0
  %116 = vmatpush1.bf16.msra.mxu0 0
  %117 = vmatprep.subr.bf16.mxu0 0
  %118 = vmatpush1.bf16.msra.mxu0 0
  %119 = vmatprep.mubr.bf16.mxu0 0
  %120 = vmatmul.mubr.bf16.gmra.mrb[0].mxu0 %v64
  %v121 = vpop.f32.mrb[0].mxu0
  %v122 = vadd.f32 %v48, %v121
  %v123 = vpop.f32.mrb[0].mxu0
  %v124 = vpop.f32.mrb[0].mxu0
  %v125 = vadd.f32 %v48, %v124
  %v126 = vpop.f32.mrb[0].mxu0
  %127 = vmatprep.mubr.bf16.mxu0 0
  %128 = vmatmul.mubr.bf16.gmra.mrb[0].mxu0 %v67
  %v129 = vpop.f32.mrb[0].mxu0
  %v130 = vadd.f32 %v48, %v129
  %v131 = vpop.f32.mrb[0].mxu0
  %v132 = vpop.f32.mrb[0].mxu0
  %v133 = vadd.f32 %v48, %v132
  %v134 = vpop.f32.mrb[0].mxu0
  %135 = vmatprep.mubr.bf16.mxu0 0
  %136 = vmatmul.mubr.bf16.gmra.mrb[0].mxu0 %v70
  %v137 = vpop.f32.mrb[0].mxu0
  %v138 = vadd.f32 %v48, %v137
  %v139 = vpop.f32.mrb[0].mxu0
  %v140 = vpop.f32.mrb[0].mxu0
  %v141 = vadd.f32 %v48, %v140
  %v142 = vpop.f32.mrb[0].mxu0
  %143 = vmatprep.mubr.bf16.mxu0 0
  %144 = vmatmul.mubr.bf16.gmra.mrb[0].mxu0 %v73
  %v145 = vpop.f32.mrb[0].mxu0
  %v146 = vadd.f32 %v48, %v145
  %v147 = vpop.f32.mrb[0].mxu0
  %v148 = vpop.f32.mrb[0].mxu0
  %v149 = vadd.f32 %v48, %v148
  %v150 = vpop.f32.mrb[0].mxu0
  %151 = vmatprep.mubr.bf16.mxu0 0
  %152 = vmatmul.mubr.bf16.gmra.mrb[0].mxu0 %v76
  %v153 = vpop.f32.mrb[0].mxu0
  %v154 = vadd.f32 %v48, %v153
  %v155 = vpop.f32.mrb[0].mxu0
  %v156 = vpop.f32.mrb[0].mxu0
  %v157 = vadd.f32 %v48, %v156
  %v158 = vpop.f32.mrb[0].mxu0
  %159 = vmatprep.mubr.bf16.mxu0 0
  %160 = vmatmul.mubr.bf16.gmra.mrb[0].mxu0 %v79
  %v161 = vpop.f32.mrb[0].mxu0
  %v162 = vadd.f32 %v48, %v161
  %v163 = vpop.f32.mrb[0].mxu0
  %v164 = vpop.f32.mrb[0].mxu0
  %v165 = vadd.f32 %v48, %v164
  %v166 = vpop.f32.mrb[0].mxu0
  %167 = vmatprep.mubr.bf16.mxu0 0
  %168 = vmatmul.mubr.bf16.gmra.mrb[0].mxu0 %v82
  %v169 = vpop.f32.mrb[0].mxu0
  %v170 = vadd.f32 %v48, %v169
  %v171 = vpop.f32.mrb[0].mxu0
  %v172 = vpop.f32.mrb[0].mxu0
  %v173 = vadd.f32 %v48, %v172
  %v174 = vpop.f32.mrb[0].mxu0
  %175 = vmatprep.mubr.bf16.mxu0 0
  %176 = vmatmul.mubr.bf16.gmra.mrb[0].mxu0 %v85
  %v177 = vpop.f32.mrb[0].mxu0
  %v178 = vadd.f32 %v48, %v177
  %v179 = vpop.f32.mrb[0].mxu0
  %v180 = vpop.f32.mrb[0].mxu0
  %v181 = vadd.f32 %v48, %v180
  %v182 = vpop.f32.mrb[0].mxu0
  %183 = vdwg.mxu0
  %v184 = vpack.c.bf16 %v125, %v122
  %v185 = vpack.c.bf16 %v133, %v130
  %v186 = vpack.c.bf16 %v141, %v138
  %v187 = vpack.c.bf16 %v149, %v146
  %v188 = vpack.c.bf16 %v157, %v154
  %v189 = vpack.c.bf16 %v165, %v162
  %v190 = vpack.c.bf16 %v173, %v170
  %v191 = vpack.c.bf16 %v181, %v178
  %v200 = vunpack.c.l.b16 %v184
  %v201 = vunpack.c.h.b16 %v184
  %v202 = vunpack.c.l.b16 %v185
  %v203 = vunpack.c.h.b16 %v185
  %v204 = vunpack.c.l.b16 %v186
  %v205 = vunpack.c.h.b16 %v186
  %v206 = vunpack.c.l.b16 %v187
  %v207 = vunpack.c.h.b16 %v187
  %v208 = vunpack.c.l.b16 %v188
  %v209 = vunpack.c.h.b16 %v188
  %v210 = vunpack.c.l.b16 %v189
  %v211 = vunpack.c.h.b16 %v189
  %v212 = vunpack.c.l.b16 %v190
  %v213 = vunpack.c.h.b16 %v190
  %v214 = vunpack.c.l.b16 %v191
  %v215 = vunpack.c.h.b16 %v191
  %v216 = vpack.c.b16 %v200, %v200
  %v217 = vpack.c.b16 %v201, %v201
  %v218 = vpack.c.b16 %v202, %v202
  %v219 = vpack.c.b16 %v203, %v203
  %v220 = vpack.c.b16 %v204, %v204
  %v221 = vpack.c.b16 %v205, %v205
  %v222 = vpack.c.b16 %v206, %v206
  %v223 = vpack.c.b16 %v207, %v207
  %v224 = vpack.c.b16 %v208, %v208
  %v225 = vpack.c.b16 %v209, %v209
  %v226 = vpack.c.b16 %v210, %v210
  %v227 = vpack.c.b16 %v211, %v211
  %v228 = vpack.c.b16 %v212, %v212
  %v229 = vpack.c.b16 %v213, %v213
  %v230 = vpack.c.b16 %v214, %v214
  %v231 = vpack.c.b16 %v215, %v215
  %vm248 = vcmask 519168
  %249 = vst.msk [vmem:[%s3] sm:$0xf] %vm248, %v216
  %250 = vst.msk [vmem:[%s3 + $0x4] sm:$0xf] %vm248, %v217
  %251 = vst.msk [vmem:[%s3 + $0x8] sm:$0xf] %vm248, %v218
  %252 = vst.msk [vmem:[%s3 + $0xc] sm:$0xf] %vm248, %v219
  %253 = vst.msk [vmem:[%s3 + $0x10] sm:$0xf] %vm248, %v220
  %254 = vst.msk [vmem:[%s3 + $0x14] sm:$0xf] %vm248, %v221
  %255 = vst.msk [vmem:[%s3 + $0x18] sm:$0xf] %vm248, %v222
  %256 = vst.msk [vmem:[%s3 + $0x1c] sm:$0xf] %vm248, %v223
  %257 = vst.msk [vmem:[%s3 + $0x20] sm:$0xf] %vm248, %v224
  %258 = vst.msk [vmem:[%s3 + $0x24] sm:$0xf] %vm248, %v225
  %259 = vst.msk [vmem:[%s3 + $0x28] sm:$0xf] %vm248, %v226
  %260 = vst.msk [vmem:[%s3 + $0x2c] sm:$0xf] %vm248, %v227
  %261 = vst.msk [vmem:[%s3 + $0x30] sm:$0xf] %vm248, %v228
  %262 = vst.msk [vmem:[%s3 + $0x34] sm:$0xf] %vm248, %v229
  %263 = vst.msk [vmem:[%s3 + $0x38] sm:$0xf] %vm248, %v230
  %264 = vst.msk [vmem:[%s3 + $0x3c] sm:$0xf] %vm248, %v231
  // Predicated region
  $region14: #{psa_block_forward.6} parent=0 // pred_check
    _
  $region15: #{psa_block_forward.6} parent=0 // pred_check_branch
    %266 = sbr.rel (0) target = $region17
  $region16: #{psa_block_forward.6} parent=0 // pred_region
    _
  $region17: #{psa_block_forward.6} parent=0 // pred_fallthru
    _
  // Predicated region
  $region18: #{psa_block_forward.6} parent=0 // pred_check
    _
  $region19: #{psa_block_forward.6} parent=0 // pred_check_branch
    %268 = sbr.rel (0) target = $region21
  $region20: #{psa_block_forward.6} parent=0 // pred_region
    _
  $region21: #{psa_block_forward.6} parent=0 // pred_fallthru
    _

// kernel: psa_block_forward.7
$region0: #{psa_block_forward.7}
  #allocation0 [shape = 'u32[]', space=smem, size = 0x4, offset = 0x4, fixed_abs, tag = 'smem constant byte address 0x4 - core index']
  #allocation1 [shape = 'u32[144,128]{1,0:T(1,128)}', space=vmem, size = 0x12000, scoped, tag = 'internal scratch']
  #allocation2 [shape = 'f32[64,8]{1,0:T(8,128)}', space=vmem, size = 0x8000, scoped, tag = 'scratch operand']
  #allocation3 [shape = 'f32[64,8]{1,0:T(8,128)}', space=vmem, size = 0x8000, scoped, tag = 'scratch operand']
  #allocation4 [shape = 'f32[64,32]{1,0:T(8,128)}', space=vmem, size = 0x8000, scoped, tag = 'scratch operand']
  %s0 = inlined_call_operand.vmem [shape: f32[2,64,32], index: 0, kind: input, shape index: {}]
  %s1 = inlined_call_operand.vmem [shape: bf16[2,64,64], index: 1, kind: input, shape index: {}]
  %s2 = inlined_call_operand.vmem [shape: bf16[2,64,32], index: 2, kind: input, shape index: {}]
  %s3 = inlined_call_operand.vmem [shape: f32[2,64,32], index: 3, kind: input, shape index: {}]
  %s4 = inlined_call_operand.vmem [shape: bf16[32,32], index: 4, kind: input, shape index: {}]
  %s5 = inlined_call_operand.vmem [shape: f32[1,32], index: 5, kind: input, shape index: {}]
  %s6 = inlined_call_operand.vmem [shape: bf16[32,64], index: 6, kind: input, shape index: {}]
  %s7 = inlined_call_operand.vmem [shape: f32[1,64], index: 7, kind: input, shape index: {}]
  %s8 = inlined_call_operand.vmem [shape: bf16[64,32], index: 8, kind: input, shape index: {}]
  %s9 = inlined_call_operand.vmem [shape: f32[1,32], index: 9, kind: input, shape index: {}]
  %s10 = inlined_call_operand.hbm [shape: f32[2,64,32], index: 10, kind: output, shape index: {}]
  %s11 = sld [smem:[#allocation0]]
  $region81: #{psa_block_forward.7} parent=0
    _
  %s13 = ssub.s32 1, %s11
  %s14 = scalar_select 0, %s13, %s11
  $region1: #{psa_block_forward.7} parent=0
    #allocation5 [shape = 'u8[65536]{0}', space=vmem, size = 0x10000, scoped, tag = 'output window, operand 0']
    #allocation6 [shape = 's32[2]{0}', space=sflag, size = 0x8, scoped, tag = 'scoped memory for psa_block_forward.7']
    %15 = vsyncpa [#allocation6], 0
    %s16 = scalar_lea.sflag [#allocation6], 1
    %17 = vsyncpa %s16, 0
    loop: start=0, step=1, limit=4
    $region2: #{psa_block_forward.7} parent=1 // loop_pre_header
      _
    $region3: #{psa_block_forward.7} parent=1 // loop_header
      %s19 = sphi 0, %s23
      %p20 = scmp.ge.s32.totalorder %s19, 4
      %s26 = sphi 0, %s45
      %s27 = sphi 0, %s41
      %s28 = sphi 0, %s37
      %s29 = sphi 0, %s26
      %s30 = sphi 0, %s27
      %s31 = sphi 0, %s28
      %s32 = sphi 0, %s29
      %s33 = sphi 0, %s30
      %s34 = sphi 0, %s31
      %s50 = sphi 0, %s52
      %s53 = sphi 0, %s50
      %s54 = sphi 0, %s53
      %s70 = sphi 0, %s54
      %s78 = sphi 0, %s80
      %s81 = sphi 0, %s78
      %s82 = sphi 0, %s81
      %s98 = sphi 0, %s82
      %s106 = sphi 0, %s108
      %s109 = sphi 0, %s106
      %s110 = sphi 0, %s109
      %s126 = sphi 0, %s110
      %s134 = sphi 0, %s136
      %s137 = sphi 0, %s134
      %s138 = sphi 0, %s137
      %s154 = sphi 0, %s138
      %s158 = sphi 0, %s158
      %s160 = sphi 0, %s158
      %s161 = sphi 0, %s160
      %s175 = sphi 0, %s161
      %s179 = sphi 0, %s179
      %s181 = sphi 0, %s179
      %s182 = sphi 0, %s181
      %s196 = sphi 0, %s182
      %s200 = sphi 0, %s200
      %s202 = sphi 0, %s200
      %s203 = sphi 0, %s202
      %s217 = sphi 0, %s203
      %s221 = sphi 0, %s221
      %s223 = sphi 0, %s221
      %s224 = sphi 0, %s223
      %s238 = sphi 0, %s224
      %s242 = sphi 0, %s242
      %s244 = sphi 0, %s242
      %s245 = sphi 0, %s244
      %s259 = sphi 0, %s245
      %s263 = sphi 0, %s263
      %s265 = sphi 0, %s263
      %s266 = sphi 0, %s265
      %s280 = sphi 0, %s266
      %s288 = sphi 0, %s290
      %s291 = sphi 0, %s288
      %s292 = sphi 0, %s291
      %s308 = sphi 0, %s292
    $region4: #{psa_block_forward.7} parent=1 // loop_header_branch
      %22 = sbr.rel (%p20) target = $region8
    $region5: #{psa_block_forward.7} parent=1 // loop_body
      %s24 = ssub.s32 %s19, 1
      %s25 = ssub.s32 %s19, 2
      %s35 = sadd.s32 1, %s28
      %p36 = scmp.ge.s32.totalorder %s35, 1
      %s37 = scalar_select %p36, 0, %s35
      %s38 = sadd.s32 1, %s27
      %s39 = scalar_select %p36, %s38, %s27
      %p40 = scmp.ge.s32.totalorder %s39, 1
      %s41 = scalar_select %p40, 0, %s39
      %s42 = sadd.s32 1, %s26
      %s43 = scalar_select %p40, %s42, %s26
      %p44 = scmp.ge.s32.totalorder %s43, 2
      %s45 = scalar_select %p44, 0, %s43
      %s46 = ssub.s32 %s26, %s45
      %s47 = ssub.s32 %s27, %s41
      %s48 = sor.u32 %s46, %s47
      %p49 = scmp.eq.s32.totalorder %s48, 0
      %s51 = sadd.s32 %s50, 1
      %s52 = scalar_select %p49, %s50, %s51
      %p55 = pneg %p49
      %p56 = scmp.eq.s32.totalorder %s19, 1
      %p57 = por %p55, %p56
      %p58 = scmp.ne.s32.totalorder %s50, %s53
      %p59 = scmp.eq.s32.totalorder %s19, 0
      %p60 = por %p58, %p59
      %p61 = scmp.ne.s32.totalorder %s50, %s53
      %p62 = scmp.eq.s32.totalorder %s24, 1
      %p63 = por %p61, %p62
      %p64 = scmp.ne.s32.totalorder %s53, %s54
      %p65 = scmp.eq.s32.totalorder %s24, 0
      %p66 = por %p64, %p65
      %p67 = scmp.ne.s32.totalorder %s53, %s54
      %p68 = scmp.eq.s32.totalorder %s25, 1
      %p69 = por %p67, %p68
      %p71 = scmp.ne.s32.totalorder %s54, %s70
      %p72 = scmp.eq.s32.totalorder %s25, 0
      %p73 = por %p71, %p72
      %s74 = ssub.s32 %s26, %s45
      %s75 = ssub.s32 %s28, %s37
      %s76 = sor.u32 %s74, %s75
      %p77 = scmp.eq.s32.totalorder %s76, 0
      %s79 = sadd.s32 %s78, 1
      %s80 = scalar_select %p77, %s78, %s79
      %p83 = pneg %p77
      %p84 = scmp.eq.s32.totalorder %s19, 1
      %p85 = por %p83, %p84
      %p86 = scmp.ne.s32.totalorder %s78, %s81
      %p87 = scmp.eq.s32.totalorder %s19, 0
      %p88 = por %p86, %p87
      %p89 = scmp.ne.s32.totalorder %s78, %s81
      %p90 = scmp.eq.s32.totalorder %s24, 1
      %p91 = por %p89, %p90
      %p92 = scmp.ne.s32.totalorder %s81, %s82
      %p93 = scmp.eq.s32.totalorder %s24, 0
      %p94 = por %p92, %p93
      %p95 = scmp.ne.s32.totalorder %s81, %s82
      %p96 = scmp.eq.s32.totalorder %s25, 1
      %p97 = por %p95, %p96
      %p99 = scmp.ne.s32.totalorder %s82, %s98
      %p100 = scmp.eq.s32.totalorder %s25, 0
      %p101 = por %p99, %p100
      %s102 = ssub.s32 %s26, %s45
      %s103 = ssub.s32 %s27, %s41
      %s104 = sor.u32 %s102, %s103
      %p105 = scmp.eq.s32.totalorder %s104, 0
      %s107 = sadd.s32 %s106, 1
      %s108 = scalar_select %p105, %s106, %s107
      %p111 = pneg %p105
      %p112 = scmp.eq.s32.totalorder %s19, 1
      %p113 = por %p111, %p112
      %p114 = scmp.ne.s32.totalorder %s106, %s109
      %p115 = scmp.eq.s32.totalorder %s19, 0
      %p116 = por %p114, %p115
      %p117 = scmp.ne.s32.totalorder %s106, %s109
      %p118 = scmp.eq.s32.totalorder %s24, 1
      %p119 = por %p117, %p118
      %p120 = scmp.ne.s32.totalorder %s109, %s110
      %p121 = scmp.eq.s32.totalorder %s24, 0
      %p122 = por %p120, %p121
      %p123 = scmp.ne.s32.totalorder %s109, %s110
      %p124 = scmp.eq.s32.totalorder %s25, 1
      %p125 = por %p123, %p124
      %p127 = scmp.ne.s32.totalorder %s110, %s126
      %p128 = scmp.eq.s32.totalorder %s25, 0
      %p129 = por %p127, %p128
      %s130 = ssub.s32 %s26, %s45
      %s131 = ssub.s32 %s27, %s41
      %s132 = sor.u32 %s130, %s131
      %p133 = scmp.eq.s32.totalorder %s132, 0
      %s135 = sadd.s32 %s134, 1
      %s136 = scalar_select %p133, %s134, %s135
      %p139 = pneg %p133
      %p140 = scmp.eq.s32.totalorder %s19, 1
      %p141 = por %p139, %p140
      %p142 = scmp.ne.s32.totalorder %s134, %s137
      %p143 = scmp.eq.s32.totalorder %s19, 0
      %p144 = por %p142, %p143
      %p145 = scmp.ne.s32.totalorder %s134, %s137
      %p146 = scmp.eq.s32.totalorder %s24, 1
      %p147 = por %p145, %p146
      %p148 = scmp.ne.s32.totalorder %s137, %s138
      %p149 = scmp.eq.s32.totalorder %s24, 0
      %p150 = por %p148, %p149
      %p151 = scmp.ne.s32.totalorder %s137, %s138
      %p152 = scmp.eq.s32.totalorder %s25, 1
      %p153 = por %p151, %p152
      %p155 = scmp.ne.s32.totalorder %s138, %s154
      %p156 = scmp.eq.s32.totalorder %s25, 0
      %p157 = por %p155, %p156
      %s159 = sadd.s32 %s158, 1
      %p162 = scmp.eq.s32.totalorder %s19, 1
      %p163 = scmp.ne.s32.totalorder %s158, %s160
      %p164 = scmp.eq.s32.totalorder %s19, 0
      %p165 = por %p163, %p164
      %p166 = scmp.ne.s32.totalorder %s158, %s160
      %p167 = scmp.eq.s32.totalorder %s24, 1
      %p168 = por %p166, %p167
      %p169 = scmp.ne.s32.totalorder %s160, %s161
      %p170 = scmp.eq.s32.totalorder %s24, 0
      %p171 = por %p169, %p170
      %p172 = scmp.ne.s32.totalorder %s160, %s161
      %p173 = scmp.eq.s32.totalorder %s25, 1
      %p174 = por %p172, %p173
      %p176 = scmp.ne.s32.totalorder %s161, %s175
      %p177 = scmp.eq.s32.totalorder %s25, 0
      %p178 = por %p176, %p177
      %s180 = sadd.s32 %s179, 1
      %p183 = scmp.eq.s32.totalorder %s19, 1
      %p184 = scmp.ne.s32.totalorder %s179, %s181
      %p185 = scmp.eq.s32.totalorder %s19, 0
      %p186 = por %p184, %p185
      %p187 = scmp.ne.s32.totalorder %s179, %s181
      %p188 = scmp.eq.s32.totalorder %s24, 1
      %p189 = por %p187, %p188
      %p190 = scmp.ne.s32.totalorder %s181, %s182
      %p191 = scmp.eq.s32.totalorder %s24, 0
      %p192 = por %p190, %p191
      %p193 = scmp.ne.s32.totalorder %s181, %s182
      %p194 = scmp.eq.s32.totalorder %s25, 1
      %p195 = por %p193, %p194
      %p197 = scmp.ne.s32.totalorder %s182, %s196
      %p198 = scmp.eq.s32.totalorder %s25, 0
      %p199 = por %p197, %p198
      %s201 = sadd.s32 %s200, 1
      %p204 = scmp.eq.s32.totalorder %s19, 1
      %p205 = scmp.ne.s32.totalorder %s200, %s202
      %p206 = scmp.eq.s32.totalorder %s19, 0
      %p207 = por %p205, %p206
      %p208 = scmp.ne.s32.totalorder %s200, %s202
      %p209 = scmp.eq.s32.totalorder %s24, 1
      %p210 = por %p208, %p209
      %p211 = scmp.ne.s32.totalorder %s202, %s203
      %p212 = scmp.eq.s32.totalorder %s24, 0
      %p213 = por %p211, %p212
      %p214 = scmp.ne.s32.totalorder %s202, %s203
      %p215 = scmp.eq.s32.totalorder %s25, 1
      %p216 = por %p214, %p215
      %p218 = scmp.ne.s32.totalorder %s203, %s217
      %p219 = scmp.eq.s32.totalorder %s25, 0
      %p220 = por %p218, %p219
      %s222 = sadd.s32 %s221, 1
      %p225 = scmp.eq.s32.totalorder %s19, 1
      %p226 = scmp.ne.s32.totalorder %s221, %s223
      %p227 = scmp.eq.s32.totalorder %s19, 0
      %p228 = por %p226, %p227
      %p229 = scmp.ne.s32.totalorder %s221, %s223
      %p230 = scmp.eq.s32.totalorder %s24, 1
      %p231 = por %p229, %p230
      %p232 = scmp.ne.s32.totalorder %s223, %s224
      %p233 = scmp.eq.s32.totalorder %s24, 0
      %p234 = por %p232, %p233
      %p235 = scmp.ne.s32.totalorder %s223, %s224
      %p236 = scmp.eq.s32.totalorder %s25, 1
      %p237 = por %p235, %p236
      %p239 = scmp.ne.s32.totalorder %s224, %s238
      %p240 = scmp.eq.s32.totalorder %s25, 0
      %p241 = por %p239, %p240
      %s243 = sadd.s32 %s242, 1
      %p246 = scmp.eq.s32.totalorder %s19, 1
      %p247 = scmp.ne.s32.totalorder %s242, %s244
      %p248 = scmp.eq.s32.totalorder %s19, 0
      %p249 = por %p247, %p248
      %p250 = scmp.ne.s32.totalorder %s242, %s244
      %p251 = scmp.eq.s32.totalorder %s24, 1
      %p252 = por %p250, %p251
      %p253 = scmp.ne.s32.totalorder %s244, %s245
      %p254 = scmp.eq.s32.totalorder %s24, 0
      %p255 = por %p253, %p254
      %p256 = scmp.ne.s32.totalorder %s244, %s245
      %p257 = scmp.eq.s32.totalorder %s25, 1
      %p258 = por %p256, %p257
      %p260 = scmp.ne.s32.totalorder %s245, %s259
      %p261 = scmp.eq.s32.totalorder %s25, 0
      %p262 = por %p260, %p261
      %s264 = sadd.s32 %s263, 1
      %p267 = scmp.eq.s32.totalorder %s19, 1
      %p268 = scmp.ne.s32.totalorder %s263, %s265
      %p269 = scmp.eq.s32.totalorder %s19, 0
      %p270 = por %p268, %p269
      %p271 = scmp.ne.s32.totalorder %s263, %s265
      %p272 = scmp.eq.s32.totalorder %s24, 1
      %p273 = por %p271, %p272
      %p274 = scmp.ne.s32.totalorder %s265, %s266
      %p275 = scmp.eq.s32.totalorder %s24, 0
      %p276 = por %p274, %p275
      %p277 = scmp.ne.s32.totalorder %s265, %s266
      %p278 = scmp.eq.s32.totalorder %s25, 1
      %p279 = por %p277, %p278
      %p281 = scmp.ne.s32.totalorder %s266, %s280
      %p282 = scmp.eq.s32.totalorder %s25, 0
      %p283 = por %p281, %p282
      %s284 = ssub.s32 %s26, %s45
      %s285 = ssub.s32 %s27, %s41
      %s286 = sor.u32 %s284, %s285
      %p287 = scmp.eq.s32.totalorder %s286, 0
      %s289 = sadd.s32 %s288, 1
      %s290 = scalar_select %p287, %s288, %s289
      %p293 = pneg %p287
      %p294 = scmp.eq.s32.totalorder %s19, 1
      %p295 = por %p293, %p294
      %p296 = scmp.ne.s32.totalorder %s288, %s291
      %p297 = scmp.eq.s32.totalorder %s19, 0
      %p298 = por %p296, %p297
      %p299 = scmp.ne.s32.totalorder %s288, %s291
      %p300 = scmp.eq.s32.totalorder %s24, 1
      %p301 = por %p299, %p300
      %p302 = scmp.ne.s32.totalorder %s291, %s292
      %p303 = scmp.eq.s32.totalorder %s24, 0
      %p304 = por %p302, %p303
      %p305 = scmp.ne.s32.totalorder %s291, %s292
      %p306 = scmp.eq.s32.totalorder %s25, 1
      %p307 = por %p305, %p306
      %p309 = scmp.ne.s32.totalorder %s292, %s308
      %p310 = scmp.eq.s32.totalorder %s25, 0
      %p311 = por %p309, %p310
      %p312 = scmp.le.s32.totalorder 1, %s19
      %p313 = scmp.lt.s32.totalorder %s19, 3
      %p314 = pnand %p312, %p313
      %p315 = pneg %p314
      // Predicated region
      $region9: #{psa_block_forward.7} parent=5 // pred_check
        _
      $region10: #{psa_block_forward.7} parent=5 // pred_check_branch
        %317 = sbr.rel (%p314) target = $region12
      $region11: #{psa_block_forward.7} parent=5 // pred_region
        %s318 = ssub.s32 %s19, 1
        // Predicated region
        $region13: #{psa_block_forward.7} parent=11 // pred_check
          %p319 = pneg %p171
        $region14: #{psa_block_forward.7} parent=11 // pred_check_branch
          %321 = sbr.rel (%p319) target = $region16
        $region15: #{psa_block_forward.7} parent=11 // pred_region
          _
        $region16: #{psa_block_forward.7} parent=11 // pred_fallthru
          _
        // Predicated region
        $region17: #{psa_block_forward.7} parent=11 // pred_check
          %p322 = pneg %p192
        $region18: #{psa_block_forward.7} parent=11 // pred_check_branch
          %324 = sbr.rel (%p322) target = $region20
        $region19: #{psa_block_forward.7} parent=11 // pred_region
          _
        $region20: #{psa_block_forward.7} parent=11 // pred_fallthru
          _
        // Predicated region
        $region21: #{psa_block_forward.7} parent=11 // pred_check
          %p325 = pneg %p213
        $region22: #{psa_block_forward.7} parent=11 // pred_check_branch
          %327 = sbr.rel (%p325) target = $region24
        $region23: #{psa_block_forward.7} parent=11 // pred_region
          _
        $region24: #{psa_block_forward.7} parent=11 // pred_fallthru
          _
        // Predicated region
        $region25: #{psa_block_forward.7} parent=11 // pred_check
          %p328 = pneg %p234
        $region26: #{psa_block_forward.7} parent=11 // pred_check_branch
          %330 = sbr.rel (%p328) target = $region28
        $region27: #{psa_block_forward.7} parent=11 // pred_region
          _
        $region28: #{psa_block_forward.7} parent=11 // pred_fallthru
          _
        // Predicated region
        $region29: #{psa_block_forward.7} parent=11 // pred_check
          %p331 = pneg %p255
        $region30: #{psa_block_forward.7} parent=11 // pred_check_branch
          %333 = sbr.rel (%p331) target = $region32
        $region31: #{psa_block_forward.7} parent=11 // pred_region
          _
        $region32: #{psa_block_forward.7} parent=11 // pred_fallthru
          _
        // Predicated region
        $region33: #{psa_block_forward.7} parent=11 // pred_check
          %p334 = pneg %p276
        $region34: #{psa_block_forward.7} parent=11 // pred_check_branch
          %336 = sbr.rel (%p334) target = $region36
        $region35: #{psa_block_forward.7} parent=11 // pred_region
          _
        $region36: #{psa_block_forward.7} parent=11 // pred_fallthru
          _
      $region12: #{psa_block_forward.7} parent=5 // pred_fallthru
        _
      %p337 = scmp.lt.s32.totalorder %s19, 2
      // Predicated region
      $region37: #{psa_block_forward.7} parent=5 // pred_check
        %p338 = pneg %p337
      $region38: #{psa_block_forward.7} parent=5 // pred_check_branch
        %340 = sbr.rel (%p338) target = $region40
      $region39: #{psa_block_forward.7} parent=5 // pred_region
        // Predicated region
        $region41: #{psa_block_forward.7} parent=39 // pred_check
          %p341 = pneg %p60
        $region42: #{psa_block_forward.7} parent=39 // pred_check_branch
          %343 = sbr.rel (%p341) target = $region44
        $region43: #{psa_block_forward.7} parent=39 // pred_region
          %s344 = smul.u32 8, %s27
          %p345 = scmp.lt.s32.totalorder %s26, 1
          %s346 = scalar_select %p345, %s26, 1
          %p347 = scmp.lt.s32.totalorder %s344, 7
          %s348 = scalar_select %p347, %s344, 7
          %s349 = smul.addr %s346, 8
          %s350 = sadd.s32 %s348, %s349
          %s351 = smul.addr %s350, 8
          %s352 = scalar_lea.vmem %s0, %s351
          %s353 = smul.u32 8, %s27
        $region44: #{psa_block_forward.7} parent=39 // pred_fallthru
          _
        // Predicated region
        $region45: #{psa_block_forward.7} parent=39 // pred_check
          %p354 = pneg %p88
        $region46: #{psa_block_forward.7} parent=39 // pred_check_branch
          %356 = sbr.rel (%p354) target = $region48
        $region47: #{psa_block_forward.7} parent=39 // pred_region
          %s357 = smul.u32 8, %s28
          %p358 = scmp.lt.s32.totalorder %s26, 1
          %s359 = scalar_select %p358, %s26, 1
          %p360 = scmp.lt.s32.totalorder %s357, 7
          %s361 = scalar_select %p360, %s357, 7
          %s362 = smul.addr %s359, 8
          %s363 = sadd.s32 %s361, %s362
          %s364 = smul.addr %s363, 4
          %s365 = scalar_lea.vmem %s1, %s364
          %s366 = smul.u32 8, %s28
        $region48: #{psa_block_forward.7} parent=39 // pred_fallthru
          _
        // Predicated region
        $region49: #{psa_block_forward.7} parent=39 // pred_check
          %p367 = pneg %p116
        $region50: #{psa_block_forward.7} parent=39 // pred_check_branch
          %369 = sbr.rel (%p367) target = $region52
        $region51: #{psa_block_forward.7} parent=39 // pred_region
          %s370 = smul.u32 8, %s27
          %p371 = scmp.lt.s32.totalorder %s26, 1
          %s372 = scalar_select %p371, %s26, 1
          %p373 = scmp.lt.s32.totalorder %s370, 7
          %s374 = scalar_select %p373, %s370, 7
          %s375 = smul.addr %s372, 8
          %s376 = sadd.s32 %s374, %s375
          %s377 = smul.addr %s376, 4
          %s378 = scalar_lea.vmem %s2, %s377
          %s379 = smul.u32 8, %s27
        $region52: #{psa_block_forward.7} parent=39 // pred_fallthru
          _
        // Predicated region
        $region53: #{psa_block_forward.7} parent=39 // pred_check
          %p380 = pneg %p144
        $region54: #{psa_block_forward.7} parent=39 // pred_check_branch
          %382 = sbr.rel (%p380) target = $region56
        $region55: #{psa_block_forward.7} parent=39 // pred_region
          %s383 = smul.u32 8, %s27
          %p384 = scmp.lt.s32.totalorder %s26, 1
          %s385 = scalar_select %p384, %s26, 1
          %p386 = scmp.lt.s32.totalorder %s383, 7
          %s387 = scalar_select %p386, %s383, 7
          %s388 = smul.addr %s385, 8
          %s389 = sadd.s32 %s387, %s388
          %s390 = smul.addr %s389, 8
          %s391 = scalar_lea.vmem %s3, %s390
          %s392 = smul.u32 8, %s27
        $region56: #{psa_block_forward.7} parent=39 // pred_fallthru
          _
      $region40: #{psa_block_forward.7} parent=5 // pred_fallthru
        _
      %p393 = scmp.le.s32.totalorder 1, %s19
      %p394 = scmp.lt.s32.totalorder %s19, 3
      %p395 = pnand %p393, %p394
      %p396 = pneg %p395
      // Predicated region
      $region57: #{psa_block_forward.7} parent=5 // pred_check
        _
      $region58: #{psa_block_forward.7} parent=5 // pred_check_branch
        %398 = sbr.rel (%p395) target = $region60
      $region59: #{psa_block_forward.7} parent=5 // pred_region
        %s399 = ssub.s32 %s19, 1
        %s400 = smul.u32 8, %s30
        %p401 = scmp.lt.s32.totalorder %s29, 1
        %s402 = scalar_select %p401, %s29, 1
        %p403 = scmp.lt.s32.totalorder %s400, 7
        %s404 = scalar_select %p403, %s400, 7
        %s405 = smul.addr %s402, 8
        %s406 = sadd.s32 %s404, %s405
        %s407 = smul.addr %s406, 8
        %s408 = scalar_lea.vmem %s0, %s407
        %p409 = pneg %p66
        %p410 = pneg %p63
        %s411 = smul.u32 8, %s31
        %p412 = scmp.lt.s32.totalorder %s29, 1
        %s413 = scalar_select %p412, %s29, 1
        %p414 = scmp.lt.s32.totalorder %s411, 7
        %s415 = scalar_select %p414, %s411, 7
        %s416 = smul.addr %s413, 8
        %s417 = sadd.s32 %s415, %s416
        %s418 = smul.addr %s417, 4
        %s419 = scalar_lea.vmem %s1, %s418
        %p420 = pneg %p94
        %p421 = pneg %p91
        %s422 = smul.u32 8, %s30
        %p423 = scmp.lt.s32.totalorder %s29, 1
        %s424 = scalar_select %p423, %s29, 1
        %p425 = scmp.lt.s32.totalorder %s422, 7
        %s426 = scalar_select %p425, %s422, 7
        %s427 = smul.addr %s424, 8
        %s428 = sadd.s32 %s426, %s427
        %s429 = smul.addr %s428, 4
        %s430 = scalar_lea.vmem %s2, %s429
        %p431 = pneg %p122
        %p432 = pneg %p119
        %s433 = smul.u32 8, %s30
        %p434 = scmp.lt.s32.totalorder %s29, 1
        %s435 = scalar_select %p434, %s29, 1
        %p436 = scmp.lt.s32.totalorder %s433, 7
        %s437 = scalar_select %p436, %s433, 7
        %s438 = smul.addr %s435, 8
        %s439 = sadd.s32 %s437, %s438
        %s440 = smul.addr %s439, 8
        %s441 = scalar_lea.vmem %s3, %s440
        %p442 = pneg %p150
        %p443 = pneg %p147
        %p444 = pneg %p171
        %p445 = pneg %p168
        %p446 = pneg %p192
        %p447 = pneg %p189
        %p448 = pneg %p213
        %p449 = pneg %p210
        %p450 = pneg %p234
        %p451 = pneg %p231
        %p452 = pneg %p255
        %p453 = pneg %p252
        %p454 = pneg %p276
        %p455 = pneg %p273
        %p456 = pneg %p304
        %p457 = pneg %p301
        %s458 = sand.u32 %s291, 1
        %s459 = scalar_lea.sflag [#allocation6], %s458
        %s460 = sand.u32 %s291, 1
        %s461 = smul.addr %s460, 64
        %s462 = scalar_lea.vmem [#allocation5], %s461
        %s463 = smul.u32 8, %s30
        %p464 = scmp.lt.s32.totalorder %s29, 1
        %s465 = scalar_select %p464, %s29, 1
        %p466 = scmp.lt.s32.totalorder %s463, 7
        %s467 = scalar_select %p466, %s463, 7
        %s468 = smul.addr %s465, 8
        %s469 = sadd.s32 %s467, %s468
        %s470 = smul.addr %s469, 8
        %s471 = scalar_lea.vmem %s0, %s470
        %s472 = smul.u32 8, %s30
        %s473 = smul.u32 8, %s31
        %p474 = scmp.lt.s32.totalorder %s29, 1
        %s475 = scalar_select %p474, %s29, 1
        %p476 = scmp.lt.s32.totalorder %s473, 7
        %s477 = scalar_select %p476, %s473, 7
        %s478 = smul.addr %s475, 8
        %s479 = sadd.s32 %s477, %s478
        %s480 = smul.addr %s479, 4
        %s481 = scalar_lea.vmem %s1, %s480
        %s482 = smul.u32 8, %s31
        %s483 = smul.u32 8, %s30
        %p484 = scmp.lt.s32.totalorder %s29, 1
        %s485 = scalar_select %p484, %s29, 1
        %p486 = scmp.lt.s32.totalorder %s483, 7
        %s487 = scalar_select %p486, %s483, 7
        %s488 = smul.addr %s485, 8
        %s489 = sadd.s32 %s487, %s488
        %s490 = smul.addr %s489, 4
        %s491 = scalar_lea.vmem %s2, %s490
        %s492 = smul.u32 8, %s30
        %s493 = smul.u32 8, %s30
        %p494 = scmp.lt.s32.totalorder %s29, 1
        %s495 = scalar_select %p494, %s29, 1
        %p496 = scmp.lt.s32.totalorder %s493, 7
        %s497 = scalar_select %p496, %s493, 7
        %s498 = smul.addr %s495, 8
        %s499 = sadd.s32 %s497, %s498
        %s500 = smul.addr %s499, 8
        %s501 = scalar_lea.vmem %s3, %s500
        %s502 = smul.u32 8, %s30
        %s503 = smul.u32 8, %s30
        %p505 = scmp.eq.s32.totalorder %s31, 0
        // Predicated region
        $region61: #{psa_block_forward.7} parent=59 // pred_check
          %p506 = pneg %p505
        $region62: #{psa_block_forward.7} parent=59 // pred_check_branch
          %508 = sbr.rel (%p506) target = $region64
        $region63: #{psa_block_forward.7} parent=59 // pred_region
          %vm509 = vcmask 64512
          %510 = vst.msk [vmem:[#allocation2] sm:$0xff] %vm509, -inf
          %511 = vst.msk [vmem:[#allocation2 + $0x8] sm:$0xff] %vm509, -inf
          %512 = vst.msk [vmem:[#allocation2 + $0x10] sm:$0xff] %vm509, -inf
          %513 = vst.msk [vmem:[#allocation2 + $0x18] sm:$0xff] %vm509, -inf
          %514 = vst.msk [vmem:[#allocation2 + $0x20] sm:$0xff] %vm509, -inf
          %515 = vst.msk [vmem:[#allocation2 + $0x28] sm:$0xff] %vm509, -inf
          %516 = vst.msk [vmem:[#allocation2 + $0x30] sm:$0xff] %vm509, -inf
          %517 = vst.msk [vmem:[#allocation2 + $0x38] sm:$0xff] %vm509, -inf
          %518 = vst.msk [vmem:[#allocation3] sm:$0xff] %vm509, 0.0
          %519 = vst.msk [vmem:[#allocation3 + $0x8] sm:$0xff] %vm509, 0.0
          %520 = vst.msk [vmem:[#allocation3 + $0x10] sm:$0xff] %vm509, 0.0
          %521 = vst.msk [vmem:[#allocation3 + $0x18] sm:$0xff] %vm509, 0.0
          %522 = vst.msk [vmem:[#allocation3 + $0x20] sm:$0xff] %vm509, 0.0
          %523 = vst.msk [vmem:[#allocation3 + $0x28] sm:$0xff] %vm509, 0.0
          %524 = vst.msk [vmem:[#allocation3 + $0x30] sm:$0xff] %vm509, 0.0
          %525 = vst.msk [vmem:[#allocation3 + $0x38] sm:$0xff] %vm509, 0.0
          %vm526 = vcmask 261120
          %527 = vst.msk [vmem:[#allocation4] sm:$0xff] %vm526, 0.0
          %528 = vst.msk [vmem:[#allocation4 + $0x8] sm:$0xff] %vm526, 0.0
          %529 = vst.msk [vmem:[#allocation4 + $0x10] sm:$0xff] %vm526, 0.0
          %530 = vst.msk [vmem:[#allocation4 + $0x18] sm:$0xff] %vm526, 0.0
          %531 = vst.msk [vmem:[#allocation4 + $0x20] sm:$0xff] %vm526, 0.0
          %532 = vst.msk [vmem:[#allocation4 + $0x28] sm:$0xff] %vm526, 0.0
          %533 = vst.msk [vmem:[#allocation4 + $0x30] sm:$0xff] %vm526, 0.0
          %534 = vst.msk [vmem:[#allocation4 + $0x38] sm:$0xff] %vm526, 0.0
        $region64: #{psa_block_forward.7} parent=59 // pred_fallthru
          _
        %v535 = vld [vmem:[%s471] sm:$0xff]
        %v536 = vld [vmem:[%s471 + $0x8] sm:$0xff]
        %v537 = vld [vmem:[%s471 + $0x10] sm:$0xff]
        %v538 = vld [vmem:[%s471 + $0x18] sm:$0xff]
        %v539 = vld [vmem:[%s471 + $0x20] sm:$0xff]
        %v540 = vld [vmem:[%s471 + $0x28] sm:$0xff]
        %v541 = vld [vmem:[%s471 + $0x30] sm:$0xff]
        %v542 = vld [vmem:[%s471 + $0x38] sm:$0xff]
        %v543 = vpack.c.bf16 %v536, %v535
        %v544 = vpack.c.bf16 %v538, %v537
        %v545 = vpack.c.bf16 %v540, %v539
        %v546 = vpack.c.bf16 %v542, %v541
        %v547 = vld [vmem:[%s481] sm:$0xf]
        %v548 = vld [vmem:[%s481 + $0x4] sm:$0xf]
        %v549 = vld [vmem:[%s481 + $0x8] sm:$0xf]
        %v550 = vld [vmem:[%s481 + $0xc] sm:$0xf]
        %v551 = vld [vmem:[%s481 + $0x10] sm:$0xf]
        %v552 = vld [vmem:[%s481 + $0x14] sm:$0xf]
        %v553 = vld [vmem:[%s481 + $0x18] sm:$0xf]
        %v554 = vld [vmem:[%s481 + $0x1c] sm:$0xf]
        %v563 = vunpack.c.l.b16 %v547
        %v564 = vunpack.c.l.b16 %v548
        %v565 = vunpack.c.l.b16 %v549
        %v566 = vunpack.c.l.b16 %v550
        %v567 = vunpack.c.l.b16 %v551
        %v568 = vunpack.c.l.b16 %v552
        %v569 = vunpack.c.l.b16 %v553
        %v570 = vunpack.c.l.b16 %v554
        %v571 = vpack.c.b16 %v564, %v563
        %v572 = vpack.c.b16 %v566, %v565
        %v573 = vpack.c.b16 %v568, %v567
        %v574 = vpack.c.b16 %v570, %v569
        %vm575 = vcmask 31744
        %v577 = vsel %vm575, %v543, 0
        %v580 = vsel %vm575, %v544, 0
        %v583 = vsel %vm575, %v545, 0
        %v586 = vsel %vm575, %v546, 0
        %v589 = vsel %vm575, %v571, 0
        %v592 = vsel %vm575, %v572, 0
        %v595 = vsel %vm575, %v573, 0
        %v598 = vsel %vm575, %v574, 0
        %600 = vmatprep.subr.bf16.mxu0 0
        %601 = vmatpush1.bf16.xpose.msra.mxu0 %v589
        %602 = vmatprep.subr.bf16.mxu0 0
        %603 = vmatpush1.bf16.xpose.msra.mxu0 %v592
        %604 = vmatprep.subr.bf16.mxu0 0
        %605 = vmatpush1.bf16.xpose.msra.mxu0 %v595
        %606 = vmatprep.subr.bf16.mxu0 0
        %607 = vmatpush1.bf16.xpose.msra.mxu0 %v598
        %608 = vmatprep.subr.bf16.mxu0 0
        %609 = vmatpush1.bf16.xpose.msra.mxu0 0
        %610 = vmatprep.subr.bf16.mxu0 0
        %611 = vmatpush1.bf16.xpose.msra.mxu0 0
        %612 = vmatprep.subr.bf16.mxu0 0
        %613 = vmatpush1.bf16.xpose.msra.mxu0 0
        %614 = vmatprep.subr.bf16.mxu0 0
        %615 = vmatpush1.bf16.xpose.msra.mxu0 0
        %616 = vmatprep.subr.bf16.mxu0 0
        %617 = vmatpush1.bf16.xpose.msra.mxu0 0
        %618 = vmatprep.subr.bf16.mxu0 0
        %619 = vmatpush1.bf16.xpose.msra.mxu0 0
        %620 = vmatprep.subr.bf16.mxu0 0
        %621 = vmatpush1.bf16.xpose.msra.mxu0 0
        %622 = vmatprep.subr.bf16.mxu0 0
        %623 = vmatpush1.bf16.xpose.msra.mxu0 0
        %624 = vmatprep.subr.bf16.mxu0 0
        %625 = vmatpush1.bf16.xpose.msra.mxu0 0
        %626 = vmatprep.subr.bf16.mxu0 0
        %627 = vmatpush1.bf16.xpose.msra.mxu0 0
        %628 = vmatprep.subr.bf16.mxu0 0
        %629 = vmatpush1.bf16.xpose.msra.mxu0 0
        %630 = vmatprep.subr.bf16.mxu0 0
        %631 = vmatpush1.bf16.xpose.msra.mxu0 0
        %632 = vmatprep.mubr.bf16.mxu0 0
        %633 = vmatmul.mubr.bf16.gmra.mrb[0].mxu0 %v577
        %v634 = vpop.f32.mrb[0].mxu0
        %v635 = vadd.f32 0.0, %v634
        %v636 = vpop.f32.mrb[0].mxu0
        %v637 = vpop.f32.mrb[0].mxu0
        %v638 = vadd.f32 0.0, %v637
        %v639 = vpop.f32.mrb[0].mxu0
        %640 = vmatprep.mubr.bf16.mxu0 0
        %641 = vmatmul.mubr.bf16.gmra.mrb[0].mxu0 %v580
        %v642 = vpop.f32.mrb[0].mxu0
        %v643 = vadd.f32 0.0, %v642
        %v644 = vpop.f32.mrb[0].mxu0
        %v645 = vpop.f32.mrb[0].mxu0
        %v646 = vadd.f32 0.0, %v645
        %v647 = vpop.f32.mrb[0].mxu0
        %648 = vmatprep.mubr.bf16.mxu0 0
        %649 = vmatmul.mubr.bf16.gmra.mrb[0].mxu0 %v583
        %v650 = vpop.f32.mrb[0].mxu0
        %v651 = vadd.f32 0.0, %v650
        %v652 = vpop.f32.mrb[0].mxu0
        %v653 = vpop.f32.mrb[0].mxu0
        %v654 = vadd.f32 0.0, %v653
        %v655 = vpop.f32.mrb[0].mxu0
        %656 = vmatprep.mubr.bf16.mxu0 0
        %657 = vmatmul.mubr.bf16.gmra.mrb[0].mxu0 %v586
        %v658 = vpop.f32.mrb[0].mxu0
        %v659 = vadd.f32 0.0, %v658
        %v660 = vpop.f32.mrb[0].mxu0
        %v661 = vpop.f32.mrb[0].mxu0
        %v662 = vadd.f32 0.0, %v661
        %v663 = vpop.f32.mrb[0].mxu0
        %664 = vdwg.mxu0
        %v665 = vld [vmem:[#allocation2] sm:$0xff]
        %v666 = vld [vmem:[#allocation2 + $0x8] sm:$0xff]
        %v667 = vld [vmem:[#allocation2 + $0x10] sm:$0xff]
        %v668 = vld [vmem:[#allocation2 + $0x18] sm:$0xff]
        %v669 = vld [vmem:[#allocation2 + $0x20] sm:$0xff]
        %v670 = vld [vmem:[#allocation2 + $0x28] sm:$0xff]
        %v671 = vld [vmem:[#allocation2 + $0x30] sm:$0xff]
        %v672 = vld [vmem:[#allocation2 + $0x38] sm:$0xff]
        %vm673 = vcmask 523264
        %v674 = vsel %vm673, %v635, -inf
        %675 = vmax.xlane.f32.xlu0 %v674
        %v676 = vpop.xlane.xlu0 %675
        %v677 = vsel %vm673, %v638, -inf
        %678 = vmax.xlane.f32.xlu0 %v677
        %v679 = vpop.xlane.xlu0 %678
        %v680 = vsel %vm673, %v643, -inf
        %681 = vmax.xlane.f32.xlu0 %v680
        %v682 = vpop.xlane.xlu0 %681
        %v683 = vsel %vm673, %v646, -inf
        %684 = vmax.xlane.f32.xlu0 %v683
        %v685 = vpop.xlane.xlu0 %684
        %v686 = vsel %vm673, %v651, -inf
        %687 = vmax.xlane.f32.xlu0 %v686
        %v688 = vpop.xlane.xlu0 %687
        %v689 = vsel %vm673, %v654, -inf
        %690 = vmax.xlane.f32.xlu0 %v689
        %v691 = vpop.xlane.xlu0 %690
        %v692 = vsel %vm673, %v659, -inf
        %693 = vmax.xlane.f32.xlu0 %v692
        %v694 = vpop.xlane.xlu0 %693
        %v695 = vsel %vm673, %v662, -inf
        %696 = vmax.xlane.f32.xlu0 %v695
        %v697 = vpop.xlane.xlu0 %696
        %v698 = vmax.f32 %v665, %v676
        %v699 = vmax.f32 %v666, %v679
        %v700 = vmax.f32 %v667, %v682
        %v701 = vmax.f32 %v668, %v685
        %v702 = vmax.f32 %v669, %v688
        %v703 = vmax.f32 %v670, %v691
        %v704 = vmax.f32 %v671, %v694
        %v705 = vmax.f32 %v672, %v697
        %v706 = vsub.f32 %v665, %v698
        %v707 = vsub.f32 %v666, %v699
        %v708 = vsub.f32 %v667, %v700
        %v709 = vsub.f32 %v668, %v701
        %v710 = vsub.f32 %v669, %v702
        %v711 = vsub.f32 %v670, %v703
        %v712 = vsub.f32 %v671, %v704
        %v713 = vsub.f32 %v672, %v705
        %v714 = vmul.f32 %v706, 1.442695
        %v715 = vpow.pop %v714
        %v716 = vmul.f32 %v707, 1.442695
        %v717 = vpow.pop %v716
        %v718 = vmul.f32 %v708, 1.442695
        %v719 = vpow.pop %v718
        %v720 = vmul.f32 %v709, 1.442695
        %v721 = vpow.pop %v720
        %v722 = vmul.f32 %v710, 1.442695
        %v723 = vpow.pop %v722
        %v724 = vmul.f32 %v711, 1.442695
        %v725 = vpow.pop %v724
        %v726 = vmul.f32 %v712, 1.442695
        %v727 = vpow.pop %v726
        %v728 = vmul.f32 %v713, 1.442695
        %v729 = vpow.pop %v728
        %731 = vset.pattern.permute.xlu0 0
        %732 = vperm.xlu0 %731, %v698
        %v733 = vpop.permute.xlu0 %732
        %736 = vset.pattern.permute.xlu0 0
        %737 = vperm.xlu0 %736, %v699
        %v738 = vpop.permute.xlu0 %737
        %741 = vset.pattern.permute.xlu0 0
        %742 = vperm.xlu0 %741, %v700
        %v743 = vpop.permute.xlu0 %742
        %746 = vset.pattern.permute.xlu0 0
        %747 = vperm.xlu0 %746, %v701
        %v748 = vpop.permute.xlu0 %747
        %751 = vset.pattern.permute.xlu0 0
        %752 = vperm.xlu0 %751, %v702
        %v753 = vpop.permute.xlu0 %752
        %756 = vset.pattern.permute.xlu0 0
        %757 = vperm.xlu0 %756, %v703
        %v758 = vpop.permute.xlu0 %757
        %761 = vset.pattern.permute.xlu0 0
        %762 = vperm.xlu0 %761, %v704
        %v763 = vpop.permute.xlu0 %762
        %766 = vset.pattern.permute.xlu0 0
        %767 = vperm.xlu0 %766, %v705
        %v768 = vpop.permute.xlu0 %767
        %v770 = vsub.f32 %v635, %v733
        %v771 = vsub.f32 %v638, %v738
        %v772 = vsub.f32 %v643, %v743
        %v773 = vsub.f32 %v646, %v748
        %v774 = vsub.f32 %v651, %v753
        %v775 = vsub.f32 %v654, %v758
        %v776 = vsub.f32 %v659, %v763
        %v777 = vsub.f32 %v662, %v768
        %v778 = vmul.f32 %v770, 1.442695
        %v779 = vpow.pop %v778
        %v780 = vmul.f32 %v771, 1.442695
        %v781 = vpow.pop %v780
        %v782 = vmul.f32 %v772, 1.442695
        %v783 = vpow.pop %v782
        %v784 = vmul.f32 %v773, 1.442695
        %v785 = vpow.pop %v784
        %v786 = vmul.f32 %v774, 1.442695
        %v787 = vpow.pop %v786
        %v788 = vmul.f32 %v775, 1.442695
        %v789 = vpow.pop %v788
        %v790 = vmul.f32 %v776, 1.442695
        %v791 = vpow.pop %v790
        %v792 = vmul.f32 %v777, 1.442695
        %v793 = vpow.pop %v792
        %v794 = vld [vmem:[#allocation3] sm:$0xff]
        %v795 = vld [vmem:[#allocation3 + $0x8] sm:$0xff]
        %v796 = vld [vmem:[#allocation3 + $0x10] sm:$0xff]
        %v797 = vld [vmem:[#allocation3 + $0x18] sm:$0xff]
        %v798 = vld [vmem:[#allocation3 + $0x20] sm:$0xff]
        %v799 = vld [vmem:[#allocation3 + $0x28] sm:$0xff]
        %v800 = vld [vmem:[#allocation3 + $0x30] sm:$0xff]
        %v801 = vld [vmem:[#allocation3 + $0x38] sm:$0xff]
        %v802 = vmul.f32 %v715, %v794
        %v803 = vmul.f32 %v717, %v795
        %v804 = vmul.f32 %v719, %v796
        %v805 = vmul.f32 %v721, %v797
        %v806 = vmul.f32 %v723, %v798
        %v807 = vmul.f32 %v725, %v799
        %v808 = vmul.f32 %v727, %v800
        %v809 = vmul.f32 %v729, %v801
        %v810 = vsel %vm673, %v779, 0.0
        %811 = vadd.xlane.f32.xlu0 %v810
        %v812 = vpop.xlane.xlu0 %811
        %v813 = vsel %vm673, %v781, 0.0
        %814 = vadd.xlane.f32.xlu0 %v813
        %v815 = vpop.xlane.xlu0 %814
        %v816 = vsel %vm673, %v783, 0.0
        %817 = vadd.xlane.f32.xlu0 %v816
        %v818 = vpop.xlane.xlu0 %817
        %v819 = vsel %vm673, %v785, 0.0
        %820 = vadd.xlane.f32.xlu0 %v819
        %v821 = vpop.xlane.xlu0 %820
        %v822 = vsel %vm673, %v787, 0.0
        %823 = vadd.xlane.f32.xlu0 %v822
        %v824 = vpop.xlane.xlu0 %823
        %v825 = vsel %vm673, %v789, 0.0
        %826 = vadd.xlane.f32.xlu0 %v825
        %v827 = vpop.xlane.xlu0 %826
        %v828 = vsel %vm673, %v791, 0.0
        %829 = vadd.xlane.f32.xlu0 %v828
        %v830 = vpop.xlane.xlu0 %829
        %v831 = vsel %vm673, %v793, 0.0
        %832 = vadd.xlane.f32.xlu0 %v831
        %v833 = vpop.xlane.xlu0 %832
        %v834 = vadd.f32 %v802, %v812
        %v835 = vadd.f32 %v803, %v815
        %v836 = vadd.f32 %v804, %v818
        %v837 = vadd.f32 %v805, %v821
        %v838 = vadd.f32 %v806, %v824
        %v839 = vadd.f32 %v807, %v827
        %v840 = vadd.f32 %v808, %v830
        %v841 = vadd.f32 %v809, %v833
        %vm842 = vcmask 7168
        %843 = vst.msk [vmem:[#allocation3] sm:$0xff] %vm842, %v834
        %844 = vst.msk [vmem:[#allocation3 + $0x8] sm:$0xff] %vm842, %v835
        %845 = vst.msk [vmem:[#allocation3 + $0x10] sm:$0xff] %vm842, %v836
        %846 = vst.msk [vmem:[#allocation3 + $0x18] sm:$0xff] %vm842, %v837
        %847 = vst.msk [vmem:[#allocation3 + $0x20] sm:$0xff] %vm842, %v838
        %848 = vst.msk [vmem:[#allocation3 + $0x28] sm:$0xff] %vm842, %v839
        %849 = vst.msk [vmem:[#allocation3 + $0x30] sm:$0xff] %vm842, %v840
        %850 = vst.msk [vmem:[#allocation3 + $0x38] sm:$0xff] %vm842, %v841
        %v851 = vld [vmem:[#allocation4] sm:$0xff]
        %v852 = vld [vmem:[#allocation4 + $0x8] sm:$0xff]
        %v853 = vld [vmem:[#allocation4 + $0x10] sm:$0xff]
        %v854 = vld [vmem:[#allocation4 + $0x18] sm:$0xff]
        %v855 = vld [vmem:[#allocation4 + $0x20] sm:$0xff]
        %v856 = vld [vmem:[#allocation4 + $0x28] sm:$0xff]
        %v857 = vld [vmem:[#allocation4 + $0x30] sm:$0xff]
        %v858 = vld [vmem:[#allocation4 + $0x38] sm:$0xff]
        %860 = vset.pattern.permute.xlu0 0
        %861 = vperm.xlu0 %860, %v715
        %v862 = vpop.permute.xlu0 %861
        %865 = vset.pattern.permute.xlu0 0
        %866 = vperm.xlu0 %865, %v717
        %v867 = vpop.permute.xlu0 %866
        %870 = vset.pattern.permute.xlu0 0
        %871 = vperm.xlu0 %870, %v719
        %v872 = vpop.permute.xlu0 %871
        %875 = vset.pattern.permute.xlu0 0
        %876 = vperm.xlu0 %875, %v721
        %v877 = vpop.permute.xlu0 %876
        %880 = vset.pattern.permute.xlu0 0
        %881 = vperm.xlu0 %880, %v723
        %v882 = vpop.permute.xlu0 %881
        %885 = vset.pattern.permute.xlu0 0
        %886 = vperm.xlu0 %885, %v725
        %v887 = vpop.permute.xlu0 %886
        %890 = vset.pattern.permute.xlu0 0
        %891 = vperm.xlu0 %890, %v727
        %v892 = vpop.permute.xlu0 %891
        %895 = vset.pattern.permute.xlu0 0
        %896 = vperm.xlu0 %895, %v729
        %v897 = vpop.permute.xlu0 %896
        %v899 = vmul.f32 %v862, %v851
        %v900 = vmul.f32 %v867, %v852
        %v901 = vmul.f32 %v872, %v853
        %v902 = vmul.f32 %v877, %v854
        %v903 = vmul.f32 %v882, %v855
        %v904 = vmul.f32 %v887, %v856
        %v905 = vmul.f32 %v892, %v857
        %v906 = vmul.f32 %v897, %v858
        %v907 = vpack.c.bf16 %v781, %v779
        %v908 = vpack.c.bf16 %v785, %v783
        %v909 = vpack.c.bf16 %v789, %v787
        %v910 = vpack.c.bf16 %v793, %v791
        %911 = vrot.lane.b32.xlu0 %v571, 96
        %v912 = vpop.permute.xlu0 %911
        %913 = vrot.lane.b32.xlu0 %v572, 96
        %v914 = vpop.permute.xlu0 %913
        %915 = vrot.lane.b32.xlu0 %v573, 96
        %v916 = vpop.permute.xlu0 %915
        %917 = vrot.lane.b32.xlu0 %v574, 96
        %v918 = vpop.permute.xlu0 %917
        %v924 = vsel %vm673, %v907, 0
        %v927 = vsel %vm673, %v908, 0
        %v930 = vsel %vm673, %v909, 0
        %v933 = vsel %vm673, %v910, 0
        %935 = vmatprep.subr.bf16.mxu0 0
        %936 = vmatpush1.bf16.msra.mxu0 %v912
        %937 = vmatprep.subr.bf16.mxu0 0
        %938 = vmatpush1.bf16.msra.mxu0 %v914
        %939 = vmatprep.subr.bf16.mxu0 0
        %940 = vmatpush1.bf16.msra.mxu0 %v916
        %941 = vmatprep.subr.bf16.mxu0 0
        %942 = vmatpush1.bf16.msra.mxu0 %v918
        %943 = vmatprep.subr.bf16.mxu0 0
        %944 = vmatpush1.bf16.msra.mxu0 0
        %945 = vmatprep.subr.bf16.mxu0 0
        %946 = vmatpush1.bf16.msra.mxu0 0
        %947 = vmatprep.subr.bf16.mxu0 0
        %948 = vmatpush1.bf16.msra.mxu0 0
        %949 = vmatprep.subr.bf16.mxu0 0
        %950 = vmatpush1.bf16.msra.mxu0 0
        %951 = vmatprep.subr.bf16.mxu0 0
        %952 = vmatpush1.bf16.msra.mxu0 0
        %953 = vmatprep.subr.bf16.mxu0 0
        %954 = vmatpush1.bf16.msra.mxu0 0
        %955 = vmatprep.subr.bf16.mxu0 0
        %956 = vmatpush1.bf16.msra.mxu0 0
        %957 = vmatprep.subr.bf16.mxu0 0
        %958 = vmatpush1.bf16.msra.mxu0 0
        %959 = vmatprep.subr.bf16.mxu0 0
        %960 = vmatpush1.bf16.msra.mxu0 0
        %961 = vmatprep.subr.bf16.mxu0 0
        %962 = vmatpush1.bf16.msra.mxu0 0
        %963 = vmatprep.subr.bf16.mxu0 0
        %964 = vmatpush1.bf16.msra.mxu0 0
        %965 = vmatprep.subr.bf16.mxu0 0
        %966 = vmatpush1.bf16.msra.mxu0 0
        %967 = vmatprep.mubr.bf16.mxu0 0
        %968 = vmatmul.mubr.bf16.gmra.mrb[0].mxu0 %v924
        %v969 = vpop.f32.mrb[0].mxu0
        %v970 = vadd.f32 0.0, %v969
        %v971 = vpop.f32.mrb[0].mxu0
        %v972 = vpop.f32.mrb[0].mxu0
        %v973 = vadd.f32 0.0, %v972
        %v974 = vpop.f32.mrb[0].mxu0
        %975 = vmatprep.mubr.bf16.mxu0 0
        %976 = vmatmul.mubr.bf16.gmra.mrb[0].mxu0 %v927
        %v977 = vpop.f32.mrb[0].mxu0
        %v978 = vadd.f32 0.0, %v977
        %v979 = vpop.f32.mrb[0].mxu0
        %v980 = vpop.f32.mrb[0].mxu0
        %v981 = vadd.f32 0.0, %v980
        %v982 = vpop.f32.mrb[0].mxu0
        %983 = vmatprep.mubr.bf16.mxu0 0
        %984 = vmatmul.mubr.bf16.gmra.mrb[0].mxu0 %v930
        %v985 = vpop.f32.mrb[0].mxu0
        %v986 = vadd.f32 0.0, %v985
        %v987 = vpop.f32.mrb[0].mxu0
        %v988 = vpop.f32.mrb[0].mxu0
        %v989 = vadd.f32 0.0, %v988
        %v990 = vpop.f32.mrb[0].mxu0
        %991 = vmatprep.mubr.bf16.mxu0 0
        %992 = vmatmul.mubr.bf16.gmra.mrb[0].mxu0 %v933
        %v993 = vpop.f32.mrb[0].mxu0
        %v994 = vadd.f32 0.0, %v993
        %v995 = vpop.f32.mrb[0].mxu0
        %v996 = vpop.f32.mrb[0].mxu0
        %v997 = vadd.f32 0.0, %v996
        %v998 = vpop.f32.mrb[0].mxu0
        %999 = vdwg.mxu0
        %v1000 = vadd.f32 %v899, %v970
        %v1001 = vadd.f32 %v900, %v973
        %v1002 = vadd.f32 %v901, %v978
        %v1003 = vadd.f32 %v902, %v981
        %v1004 = vadd.f32 %v903, %v986
        %v1005 = vadd.f32 %v904, %v989
        %v1006 = vadd.f32 %v905, %v994
        %v1007 = vadd.f32 %v906, %v997
        %1008 = vst.msk [vmem:[#allocation4] sm:$0xff] %vm575, %v1000
        %1009 = vst.msk [vmem:[#allocation4 + $0x8] sm:$0xff] %vm575, %v1001
        %1010 = vst.msk [vmem:[#allocation4 + $0x10] sm:$0xff] %vm575, %v1002
        %1011 = vst.msk [vmem:[#allocation4 + $0x18] sm:$0xff] %vm575, %v1003
        %1012 = vst.msk [vmem:[#allocation4 + $0x20] sm:$0xff] %vm575, %v1004
        %1013 = vst.msk [vmem:[#allocation4 + $0x28] sm:$0xff] %vm575, %v1005
        %1014 = vst.msk [vmem:[#allocation4 + $0x30] sm:$0xff] %vm575, %v1006
        %1015 = vst.msk [vmem:[#allocation4 + $0x38] sm:$0xff] %vm575, %v1007
        %1016 = vst.msk [vmem:[#allocation2] sm:$0xff] %vm842, %v698
        %1017 = vst.msk [vmem:[#allocation2 + $0x8] sm:$0xff] %vm842, %v699
        %1018 = vst.msk [vmem:[#allocation2 + $0x10] sm:$0xff] %vm842, %v700
        %1019 = vst.msk [vmem:[#allocation2 + $0x18] sm:$0xff] %vm842, %v701
        %1020 = vst.msk [vmem:[#allocation2 + $0x20] sm:$0xff] %vm842, %v702
        %1021 = vst.msk [vmem:[#allocation2 + $0x28] sm:$0xff] %vm842, %v703
        %1022 = vst.msk [vmem:[#allocation2 + $0x30] sm:$0xff] %vm842, %v704
        %1023 = vst.msk [vmem:[#allocation2 + $0x38] sm:$0xff] %vm842, %v705
        %1028 = vrot.lane.b32.xlu0 %v543, 124
        %v1029 = vpop.permute.xlu0 %1028
        %1030 = vrot.lane.b32.xlu0 %v544, 124
        %v1031 = vpop.permute.xlu0 %1030
        %1032 = vrot.lane.b32.xlu0 %v545, 124
        %v1033 = vpop.permute.xlu0 %1032
        %1034 = vrot.lane.b32.xlu0 %v546, 124
        %v1035 = vpop.permute.xlu0 %1034
        %1036 = vrot.lane.b32.xlu0 %v571, 124
        %v1037 = vpop.permute.xlu0 %1036
        %1038 = vrot.lane.b32.xlu0 %v572, 124
        %v1039 = vpop.permute.xlu0 %1038
        %1040 = vrot.lane.b32.xlu0 %v573, 124
        %v1041 = vpop.permute.xlu0 %1040
        %1042 = vrot.lane.b32.xlu0 %v574, 124
        %v1043 = vpop.permute.xlu0 %1042
        %v1045 = vsel %vm575, %v1029, 0
        %v1048 = vsel %vm575, %v1031, 0
        %v1051 = vsel %vm575, %v1033, 0
        %v1054 = vsel %vm575, %v1035, 0
        %v1057 = vsel %vm575, %v1037, 0
        %v1060 = vsel %vm575, %v1039, 0
        %v1063 = vsel %vm575, %v1041, 0
        %v1066 = vsel %vm575, %v1043, 0
        %1068 = vmatprep.subr.bf16.mxu0 0
        %1069 = vmatpush1.bf16.xpose.msra.mxu0 %v1057
        %1070 = vmatprep.subr.bf16.mxu0 0
        %1071 = vmatpush1.bf16.xpose.msra.mxu0 %v1060
        %1072 = vmatprep.subr.bf16.mxu0 0
        %1073 = vmatpush1.bf16.xpose.msra.mxu0 %v1063
        %1074 = vmatprep.subr.bf16.mxu0 0
        %1075 = vmatpush1.bf16.xpose.msra.mxu0 %v1066
        %1076 = vmatprep.subr.bf16.mxu0 0
        %1077 = vmatpush1.bf16.xpose.msra.mxu0 0
        %1078 = vmatprep.subr.bf16.mxu0 0
        %1079 = vmatpush1.bf16.xpose.msra.mxu0 0
        %1080 = vmatprep.subr.bf16.mxu0 0
        %1081 = vmatpush1.bf16.xpose.msra.mxu0 0
        %1082 = vmatprep.subr.bf16.mxu0 0
        %1083 = vmatpush1.bf16.xpose.msra.mxu0 0
        %1084 = vmatprep.subr.bf16.mxu0 0
        %1085 = vmatpush1.bf16.xpose.msra.mxu0 0
        %1086 = vmatprep.subr.bf16.mxu0 0
        %1087 = vmatpush1.bf16.xpose.msra.mxu0 0
        %1088 = vmatprep.subr.bf16.mxu0 0
        %1089 = vmatpush1.bf16.xpose.msra.mxu0 0
        %1090 = vmatprep.subr.bf16.mxu0 0
        %1091 = vmatpush1.bf16.xpose.msra.mxu0 0
        %1092 = vmatprep.subr.bf16.mxu0 0
        %1093 = vmatpush1.bf16.xpose.msra.mxu0 0
        %1094 = vmatprep.subr.bf16.mxu0 0
        %1095 = vmatpush1.bf16.xpose.msra.mxu0 0
        %1096 = vmatprep.subr.bf16.mxu0 0
        %1097 = vmatpush1.bf16.xpose.msra.mxu0 0
        %1098 = vmatprep.subr.bf16.mxu0 0
        %1099 = vmatpush1.bf16.xpose.msra.mxu0 0
        %1100 = vmatprep.mubr.bf16.mxu0 0
        %1101 = vmatmul.mubr.bf16.gmra.mrb[0].mxu0 %v1045
        %v1102 = vpop.f32.mrb[0].mxu0
        %v1103 = vadd.f32 0.0, %v1102
        %v1104 = vpop.f32.mrb[0].mxu0
        %v1105 = vpop.f32.mrb[0].mxu0
        %v1106 = vadd.f32 0.0, %v1105
        %v1107 = vpop.f32.mrb[0].mxu0
        %1108 = vmatprep.mubr.bf16.mxu0 0
        %1109 = vmatmul.mubr.bf16.gmra.mrb[0].mxu0 %v1048
        %v1110 = vpop.f32.mrb[0].mxu0
        %v1111 = vadd.f32 0.0, %v1110
        %v1112 = vpop.f32.mrb[0].mxu0
        %v1113 = vpop.f32.mrb[0].mxu0
        %v1114 = vadd.f32 0.0, %v1113
        %v1115 = vpop.f32.mrb[0].mxu0
        %1116 = vmatprep.mubr.bf16.mxu0 0
        %1117 = vmatmul.mubr.bf16.gmra.mrb[0].mxu0 %v1051
        %v1118 = vpop.f32.mrb[0].mxu0
        %v1119 = vadd.f32 0.0, %v1118
        %v1120 = vpop.f32.mrb[0].mxu0
        %v1121 = vpop.f32.mrb[0].mxu0
        %v1122 = vadd.f32 0.0, %v1121
        %v1123 = vpop.f32.mrb[0].mxu0
        %1124 = vmatprep.mubr.bf16.mxu0 0
        %1125 = vmatmul.mubr.bf16.gmra.mrb[0].mxu0 %v1054
        %v1126 = vpop.f32.mrb[0].mxu0
        %v1127 = vadd.f32 0.0, %v1126
        %v1128 = vpop.f32.mrb[0].mxu0
        %v1129 = vpop.f32.mrb[0].mxu0
        %v1130 = vadd.f32 0.0, %v1129
        %v1131 = vpop.f32.mrb[0].mxu0
        %1132 = vdwg.mxu0
        %v1133 = vld [vmem:[#allocation2] sm:$0xff]
        %v1134 = vld [vmem:[#allocation2 + $0x8] sm:$0xff]
        %v1135 = vld [vmem:[#allocation2 + $0x10] sm:$0xff]
        %v1136 = vld [vmem:[#allocation2 + $0x18] sm:$0xff]
        %v1137 = vld [vmem:[#allocation2 + $0x20] sm:$0xff]
        %v1138 = vld [vmem:[#allocation2 + $0x28] sm:$0xff]
        %v1139 = vld [vmem:[#allocation2 + $0x30] sm:$0xff]
        %v1140 = vld [vmem:[#allocation2 + $0x38] sm:$0xff]
        %v1141 = vsel %vm673, %v1103, -inf
        %1142 = vmax.xlane.f32.xlu0 %v1141
        %v1143 = vpop.xlane.xlu0 %1142
        %v1144 = vsel %vm673, %v1106, -inf
        %1145 = vmax.xlane.f32.xlu0 %v1144
        %v1146 = vpop.xlane.xlu0 %1145
        %v1147 = vsel %vm673, %v1111, -inf
        %1148 = vmax.xlane.f32.xlu0 %v1147
        %v1149 = vpop.xlane.xlu0 %1148
        %v1150 = vsel %vm673, %v1114, -inf
        %1151 = vmax.xlane.f32.xlu0 %v1150
        %v1152 = vpop.xlane.xlu0 %1151
        %v1153 = vsel %vm673, %v1119, -inf
        %1154 = vmax.xlane.f32.xlu0 %v1153
        %v1155 = vpop.xlane.xlu0 %1154
        %v1156 = vsel %vm673, %v1122, -inf
        %1157 = vmax.xlane.f32.xlu0 %v1156
        %v1158 = vpop.xlane.xlu0 %1157
        %v1159 = vsel %vm673, %v1127, -inf
        %1160 = vmax.xlane.f32.xlu0 %v1159
        %v1161 = vpop.xlane.xlu0 %1160
        %v1162 = vsel %vm673, %v1130, -inf
        %1163 = vmax.xlane.f32.xlu0 %v1162
        %v1164 = vpop.xlane.xlu0 %1163
        %v1165 = vmax.f32 %v1133, %v1143
        %v1166 = vmax.f32 %v1134, %v1146
        %v1167 = vmax.f32 %v1135, %v1149
        %v1168 = vmax.f32 %v1136, %v1152
        %v1169 = vmax.f32 %v1137, %v1155
        %v1170 = vmax.f32 %v1138, %v1158
        %v1171 = vmax.f32 %v1139, %v1161
        %v1172 = vmax.f32 %v1140, %v1164
        %v1173 = vsub.f32 %v1133, %v1165
        %v1174 = vsub.f32 %v1134, %v1166
        %v1175 = vsub.f32 %v1135, %v1167
        %v1176 = vsub.f32 %v1136, %v1168
        %v1177 = vsub.f32 %v1137, %v1169
        %v1178 = vsub.f32 %v1138, %v1170
        %v1179 = vsub.f32 %v1139, %v1171
        %v1180 = vsub.f32 %v1140, %v1172
        %v1181 = vmul.f32 %v1173, 1.442695
        %v1182 = vpow.pop %v1181
        %v1183 = vmul.f32 %v1174, 1.442695
        %v1184 = vpow.pop %v1183
        %v1185 = vmul.f32 %v1175, 1.442695
        %v1186 = vpow.pop %v1185
        %v1187 = vmul.f32 %v1176, 1.442695
        %v1188 = vpow.pop %v1187
        %v1189 = vmul.f32 %v1177, 1.442695
        %v1190 = vpow.pop %v1189
        %v1191 = vmul.f32 %v1178, 1.442695
        %v1192 = vpow.pop %v1191
        %v1193 = vmul.f32 %v1179, 1.442695
        %v1194 = vpow.pop %v1193
        %v1195 = vmul.f32 %v1180, 1.442695
        %v1196 = vpow.pop %v1195
        %1198 = vset.pattern.permute.xlu0 1
        %1199 = vperm.xlu0 %1198, %v1165
        %v1200 = vpop.permute.xlu0 %1199
        %1203 = vset.pattern.permute.xlu0 1
        %1204 = vperm.xlu0 %1203, %v1166
        %v1205 = vpop.permute.xlu0 %1204
        %1208 = vset.pattern.permute.xlu0 1
        %1209 = vperm.xlu0 %1208, %v1167
        %v1210 = vpop.permute.xlu0 %1209
        %1213 = vset.pattern.permute.xlu0 1
        %1214 = vperm.xlu0 %1213, %v1168
        %v1215 = vpop.permute.xlu0 %1214
        %1218 = vset.pattern.permute.xlu0 1
        %1219 = vperm.xlu0 %1218, %v1169
        %v1220 = vpop.permute.xlu0 %1219
        %1223 = vset.pattern.permute.xlu0 1
        %1224 = vperm.xlu0 %1223, %v1170
        %v1225 = vpop.permute.xlu0 %1224
        %1228 = vset.pattern.permute.xlu0 1
        %1229 = vperm.xlu0 %1228, %v1171
        %v1230 = vpop.permute.xlu0 %1229
        %1233 = vset.pattern.permute.xlu0 1
        %1234 = vperm.xlu0 %1233, %v1172
        %v1235 = vpop.permute.xlu0 %1234
        %v1237 = vsub.f32 %v1103, %v1200
        %v1238 = vsub.f32 %v1106, %v1205
        %v1239 = vsub.f32 %v1111, %v1210
        %v1240 = vsub.f32 %v1114, %v1215
        %v1241 = vsub.f32 %v1119, %v1220
        %v1242 = vsub.f32 %v1122, %v1225
        %v1243 = vsub.f32 %v1127, %v1230
        %v1244 = vsub.f32 %v1130, %v1235
        %v1245 = vmul.f32 %v1237, 1.442695
        %v1246 = vpow.pop %v1245
        %v1247 = vmul.f32 %v1238, 1.442695
        %v1248 = vpow.pop %v1247
        %v1249 = vmul.f32 %v1239, 1.442695
        %v1250 = vpow.pop %v1249
        %v1251 = vmul.f32 %v1240, 1.442695
        %v1252 = vpow.pop %v1251
        %v1253 = vmul.f32 %v1241, 1.442695
        %v1254 = vpow.pop %v1253
        %v1255 = vmul.f32 %v1242, 1.442695
        %v1256 = vpow.pop %v1255
        %v1257 = vmul.f32 %v1243, 1.442695
        %v1258 = vpow.pop %v1257
        %v1259 = vmul.f32 %v1244, 1.442695
        %v1260 = vpow.pop %v1259
        %v1261 = vld [vmem:[#allocation3] sm:$0xff]
        %v1262 = vld [vmem:[#allocation3 + $0x8] sm:$0xff]
        %v1263 = vld [vmem:[#allocation3 + $0x10] sm:$0xff]
        %v1264 = vld [vmem:[#allocation3 + $0x18] sm:$0xff]
        %v1265 = vld [vmem:[#allocation3 + $0x20] sm:$0xff]
        %v1266 = vld [vmem:[#allocation3 + $0x28] sm:$0xff]
        %v1267 = vld [vmem:[#allocation3 + $0x30] sm:$0xff]
        %v1268 = vld [vmem:[#allocation3 + $0x38] sm:$0xff]
        %v1269 = vmul.f32 %v1182, %v1261
        %v1270 = vmul.f32 %v1184, %v1262
        %v1271 = vmul.f32 %v1186, %v1263
        %v1272 = vmul.f32 %v1188, %v1264
        %v1273 = vmul.f32 %v1190, %v1265
        %v1274 = vmul.f32 %v1192, %v1266
        %v1275 = vmul.f32 %v1194, %v1267
        %v1276 = vmul.f32 %v1196, %v1268
        %v1277 = vsel %vm673, %v1246, 0.0
        %1278 = vadd.xlane.f32.xlu0 %v1277
        %v1279 = vpop.xlane.xlu0 %1278
        %v1280 = vsel %vm673, %v1248, 0.0
        %1281 = vadd.xlane.f32.xlu0 %v1280
        %v1282 = vpop.xlane.xlu0 %1281
        %v1283 = vsel %vm673, %v1250, 0.0
        %1284 = vadd.xlane.f32.xlu0 %v1283
        %v1285 = vpop.xlane.xlu0 %1284
        %v1286 = vsel %vm673, %v1252, 0.0
        %1287 = vadd.xlane.f32.xlu0 %v1286
        %v1288 = vpop.xlane.xlu0 %1287
        %v1289 = vsel %vm673, %v1254, 0.0
        %1290 = vadd.xlane.f32.xlu0 %v1289
        %v1291 = vpop.xlane.xlu0 %1290
        %v1292 = vsel %vm673, %v1256, 0.0
        %1293 = vadd.xlane.f32.xlu0 %v1292
        %v1294 = vpop.xlane.xlu0 %1293
        %v1295 = vsel %vm673, %v1258, 0.0
        %1296 = vadd.xlane.f32.xlu0 %v1295
        %v1297 = vpop.xlane.xlu0 %1296
        %v1298 = vsel %vm673, %v1260, 0.0
        %1299 = vadd.xlane.f32.xlu0 %v1298
        %v1300 = vpop.xlane.xlu0 %1299
        %v1301 = vadd.f32 %v1269, %v1279
        %v1302 = vadd.f32 %v1270, %v1282
        %v1303 = vadd.f32 %v1271, %v1285
        %v1304 = vadd.f32 %v1272, %v1288
        %v1305 = vadd.f32 %v1273, %v1291
        %v1306 = vadd.f32 %v1274, %v1294
        %v1307 = vadd.f32 %v1275, %v1297
        %v1308 = vadd.f32 %v1276, %v1300
        %vm1309 = vcmask 15368
        %1310 = vst.msk [vmem:[#allocation3] sm:$0xff] %vm1309, %v1301
        %1311 = vst.msk [vmem:[#allocation3 + $0x8] sm:$0xff] %vm1309, %v1302
        %1312 = vst.msk [vmem:[#allocation3 + $0x10] sm:$0xff] %vm1309, %v1303
        %1313 = vst.msk [vmem:[#allocation3 + $0x18] sm:$0xff] %vm1309, %v1304
        %1314 = vst.msk [vmem:[#allocation3 + $0x20] sm:$0xff] %vm1309, %v1305
        %1315 = vst.msk [vmem:[#allocation3 + $0x28] sm:$0xff] %vm1309, %v1306
        %1316 = vst.msk [vmem:[#allocation3 + $0x30] sm:$0xff] %vm1309, %v1307
        %1317 = vst.msk [vmem:[#allocation3 + $0x38] sm:$0xff] %vm1309, %v1308
        %v1318 = vld [vmem:[#allocation4] sm:$0xff]
        %v1319 = vld [vmem:[#allocation4 + $0x8] sm:$0xff]
        %v1320 = vld [vmem:[#allocation4 + $0x10] sm:$0xff]
        %v1321 = vld [vmem:[#allocation4 + $0x18] sm:$0xff]
        %v1322 = vld [vmem:[#allocation4 + $0x20] sm:$0xff]
        %v1323 = vld [vmem:[#allocation4 + $0x28] sm:$0xff]
        %v1324 = vld [vmem:[#allocation4 + $0x30] sm:$0xff]
        %v1325 = vld [vmem:[#allocation4 + $0x38] sm:$0xff]
        %1327 = vset.pattern.permute.xlu0 1
        %1328 = vperm.xlu0 %1327, %v1182
        %v1329 = vpop.permute.xlu0 %1328
        %1332 = vset.pattern.permute.xlu0 1
        %1333 = vperm.xlu0 %1332, %v1184
        %v1334 = vpop.permute.xlu0 %1333
        %1337 = vset.pattern.permute.xlu0 1
        %1338 = vperm.xlu0 %1337, %v1186
        %v1339 = vpop.permute.xlu0 %1338
        %1342 = vset.pattern.permute.xlu0 1
        %1343 = vperm.xlu0 %1342, %v1188
        %v1344 = vpop.permute.xlu0 %1343
        %1347 = vset.pattern.permute.xlu0 1
        %1348 = vperm.xlu0 %1347, %v1190
        %v1349 = vpop.permute.xlu0 %1348
        %1352 = vset.pattern.permute.xlu0 1
        %1353 = vperm.xlu0 %1352, %v1192
        %v1354 = vpop.permute.xlu0 %1353
        %1357 = vset.pattern.permute.xlu0 1
        %1358 = vperm.xlu0 %1357, %v1194
        %v1359 = vpop.permute.xlu0 %1358
        %1362 = vset.pattern.permute.xlu0 1
        %1363 = vperm.xlu0 %1362, %v1196
        %v1364 = vpop.permute.xlu0 %1363
        %v1366 = vmul.f32 %v1329, %v1318
        %v1367 = vmul.f32 %v1334, %v1319
        %v1368 = vmul.f32 %v1339, %v1320
        %v1369 = vmul.f32 %v1344, %v1321
        %v1370 = vmul.f32 %v1349, %v1322
        %v1371 = vmul.f32 %v1354, %v1323
        %v1372 = vmul.f32 %v1359, %v1324
        %v1373 = vmul.f32 %v1364, %v1325
        %v1374 = vpack.c.bf16 %v1248, %v1246
        %v1375 = vpack.c.bf16 %v1252, %v1250
        %v1376 = vpack.c.bf16 %v1256, %v1254
        %v1377 = vpack.c.bf16 %v1260, %v1258
        %1378 = vrot.lane.b32.xlu0 %v571, 92
        %v1379 = vpop.permute.xlu0 %1378
        %1380 = vrot.lane.b32.xlu0 %v572, 92
        %v1381 = vpop.permute.xlu0 %1380
        %1382 = vrot.lane.b32.xlu0 %v573, 92
        %v1383 = vpop.permute.xlu0 %1382
        %1384 = vrot.lane.b32.xlu0 %v574, 92
        %v1385 = vpop.permute.xlu0 %1384
        %v1391 = vsel %vm673, %v1374, 0
        %v1394 = vsel %vm673, %v1375, 0
        %v1397 = vsel %vm673, %v1376, 0
        %v1400 = vsel %vm673, %v1377, 0
        %1402 = vmatprep.subr.bf16.mxu0 0
        %1403 = vmatpush1.bf16.msra.mxu0 %v1379
        %1404 = vmatprep.subr.bf16.mxu0 0
        %1405 = vmatpush1.bf16.msra.mxu0 %v1381
        %1406 = vmatprep.subr.bf16.mxu0 0
        %1407 = vmatpush1.bf16.msra.mxu0 %v1383
        %1408 = vmatprep.subr.bf16.mxu0 0
        %1409 = vmatpush1.bf16.msra.mxu0 %v1385
        %1410 = vmatprep.subr.bf16.mxu0 0
        %1411 = vmatpush1.bf16.msra.mxu0 0
        %1412 = vmatprep.subr.bf16.mxu0 0
        %1413 = vmatpush1.bf16.msra.mxu0 0
        %1414 = vmatprep.subr.bf16.mxu0 0
        %1415 = vmatpush1.bf16.msra.mxu0 0
        %1416 = vmatprep.subr.bf16.mxu0 0
        %1417 = vmatpush1.bf16.msra.mxu0 0
        %1418 = vmatprep.subr.bf16.mxu0 0
        %1419 = vmatpush1.bf16.msra.mxu0 0
        %1420 = vmatprep.subr.bf16.mxu0 0
        %1421 = vmatpush1.bf16.msra.mxu0 0
        %1422 = vmatprep.subr.bf16.mxu0 0
        %1423 = vmatpush1.bf16.msra.mxu0 0
        %1424 = vmatprep.subr.bf16.mxu0 0
        %1425 = vmatpush1.bf16.msra.mxu0 0
        %1426 = vmatprep.subr.bf16.mxu0 0
        %1427 = vmatpush1.bf16.msra.mxu0 0
        %1428 = vmatprep.subr.bf16.mxu0 0
        %1429 = vmatpush1.bf16.msra.mxu0 0
        %1430 = vmatprep.subr.bf16.mxu0 0
        %1431 = vmatpush1.bf16.msra.mxu0 0
        %1432 = vmatprep.subr.bf16.mxu0 0
        %1433 = vmatpush1.bf16.msra.mxu0 0
        %1434 = vmatprep.mubr.bf16.mxu0 0
        %1435 = vmatmul.mubr.bf16.gmra.mrb[0].mxu0 %v1391
        %v1436 = vpop.f32.mrb[0].mxu0
        %v1437 = vadd.f32 0.0, %v1436
        %v1438 = vpop.f32.mrb[0].mxu0
        %v1439 = vpop.f32.mrb[0].mxu0
        %v1440 = vadd.f32 0.0, %v1439
        %v1441 = vpop.f32.mrb[0].mxu0
        %1442 = vmatprep.mubr.bf16.mxu0 0
        %1443 = vmatmul.mubr.bf16.gmra.mrb[0].mxu0 %v1394
        %v1444 = vpop.f32.mrb[0].mxu0
        %v1445 = vadd.f32 0.0, %v1444
        %v1446 = vpop.f32.mrb[0].mxu0
        %v1447 = vpop.f32.mrb[0].mxu0
        %v1448 = vadd.f32 0.0, %v1447
        %v1449 = vpop.f32.mrb[0].mxu0
        %1450 = vmatprep.mubr.bf16.mxu0 0
        %1451 = vmatmul.mubr.bf16.gmra.mrb[0].mxu0 %v1397
        %v1452 = vpop.f32.mrb[0].mxu0
        %v1453 = vadd.f32 0.0, %v1452
        %v1454 = vpop.f32.mrb[0].mxu0
        %v1455 = vpop.f32.mrb[0].mxu0
        %v1456 = vadd.f32 0.0, %v1455
        %v1457 = vpop.f32.mrb[0].mxu0
        %1458 = vmatprep.mubr.bf16.mxu0 0
        %1459 = vmatmul.mubr.bf16.gmra.mrb[0].mxu0 %v1400
        %v1460 = vpop.f32.mrb[0].mxu0
        %v1461 = vadd.f32 0.0, %v1460
        %v1462 = vpop.f32.mrb[0].mxu0
        %v1463 = vpop.f32.mrb[0].mxu0
        %v1464 = vadd.f32 0.0, %v1463
        %v1465 = vpop.f32.mrb[0].mxu0
        %1466 = vdwg.mxu0
        %1475 = vrot.lane.b32.xlu0 %v1437, 4
        %v1476 = vpop.permute.xlu0 %1475
        %1477 = vrot.lane.b32.xlu0 %v1440, 4
        %v1478 = vpop.permute.xlu0 %1477
        %1479 = vrot.lane.b32.xlu0 %v1445, 4
        %v1480 = vpop.permute.xlu0 %1479
        %1481 = vrot.lane.b32.xlu0 %v1448, 4
        %v1482 = vpop.permute.xlu0 %1481
        %1483 = vrot.lane.b32.xlu0 %v1453, 4
        %v1484 = vpop.permute.xlu0 %1483
        %1485 = vrot.lane.b32.xlu0 %v1456, 4
        %v1486 = vpop.permute.xlu0 %1485
        %1487 = vrot.lane.b32.xlu0 %v1461, 4
        %v1488 = vpop.permute.xlu0 %1487
        %1489 = vrot.lane.b32.xlu0 %v1464, 4
        %v1490 = vpop.permute.xlu0 %1489
        %v1499 = vadd.f32 %v1366, %v1476
        %v1500 = vadd.f32 %v1367, %v1478
        %v1501 = vadd.f32 %v1368, %v1480
        %v1502 = vadd.f32 %v1369, %v1482
        %v1503 = vadd.f32 %v1370, %v1484
        %v1504 = vadd.f32 %v1371, %v1486
        %v1505 = vadd.f32 %v1372, %v1488
        %v1506 = vadd.f32 %v1373, %v1490
        %vm1507 = vcmask 64544
        %1508 = vst.msk [vmem:[#allocation4] sm:$0xff] %vm1507, %v1499
        %1509 = vst.msk [vmem:[#allocation4 + $0x8] sm:$0xff] %vm1507, %v1500
        %1510 = vst.msk [vmem:[#allocation4 + $0x10] sm:$0xff] %vm1507, %v1501
        %1511 = vst.msk [vmem:[#allocation4 + $0x18] sm:$0xff] %vm1507, %v1502
        %1512 = vst.msk [vmem:[#allocation4 + $0x20] sm:$0xff] %vm1507, %v1503
        %1513 = vst.msk [vmem:[#allocation4 + $0x28] sm:$0xff] %vm1507, %v1504
        %1514 = vst.msk [vmem:[#allocation4 + $0x30] sm:$0xff] %vm1507, %v1505
        %1515 = vst.msk [vmem:[#allocation4 + $0x38] sm:$0xff] %vm1507, %v1506
        %1516 = vst.msk [vmem:[#allocation2] sm:$0xff] %vm1309, %v1165
        %1517 = vst.msk [vmem:[#allocation2 + $0x8] sm:$0xff] %vm1309, %v1166
        %1518 = vst.msk [vmem:[#allocation2 + $0x10] sm:$0xff] %vm1309, %v1167
        %1519 = vst.msk [vmem:[#allocation2 + $0x18] sm:$0xff] %vm1309, %v1168
        %1520 = vst.msk [vmem:[#allocation2 + $0x20] sm:$0xff] %vm1309, %v1169
        %1521 = vst.msk [vmem:[#allocation2 + $0x28] sm:$0xff] %vm1309, %v1170
        %1522 = vst.msk [vmem:[#allocation2 + $0x30] sm:$0xff] %vm1309, %v1171
        %1523 = vst.msk [vmem:[#allocation2 + $0x38] sm:$0xff] %vm1309, %v1172
        %1524 = vrot.lane.b32.xlu0 %v543, 120
        %v1525 = vpop.permute.xlu0 %1524
        %1526 = vrot.lane.b32.xlu0 %v544, 120
        %v1527 = vpop.permute.xlu0 %1526
        %1528 = vrot.lane.b32.xlu0 %v545, 120
        %v1529 = vpop.permute.xlu0 %1528
        %1530 = vrot.lane.b32.xlu0 %v546, 120
        %v1531 = vpop.permute.xlu0 %1530
        %1532 = vrot.lane.b32.xlu0 %v571, 120
        %v1533 = vpop.permute.xlu0 %1532
        %1534 = vrot.lane.b32.xlu0 %v572, 120
        %v1535 = vpop.permute.xlu0 %1534
        %1536 = vrot.lane.b32.xlu0 %v573, 120
        %v1537 = vpop.permute.xlu0 %1536
        %1538 = vrot.lane.b32.xlu0 %v574, 120
        %v1539 = vpop.permute.xlu0 %1538
        %v1541 = vsel %vm575, %v1525, 0
        %v1544 = vsel %vm575, %v1527, 0
        %v1547 = vsel %vm575, %v1529, 0
        %v1550 = vsel %vm575, %v1531, 0
        %v1553 = vsel %vm575, %v1533, 0
        %v1556 = vsel %vm575, %v1535, 0
        %v1559 = vsel %vm575, %v1537, 0
        %v1562 = vsel %vm575, %v1539, 0
        %1564 = vmatprep.subr.bf16.mxu0 0
        %1565 = vmatpush1.bf16.xpose.msra.mxu0 %v1553
        %1566 = vmatprep.subr.bf16.mxu0 0
        %1567 = vmatpush1.bf16.xpose.msra.mxu0 %v1556
        %1568 = vmatprep.subr.bf16.mxu0 0
        %1569 = vmatpush1.bf16.xpose.msra.mxu0 %v1559
        %1570 = vmatprep.subr.bf16.mxu0 0
        %1571 = vmatpush1.bf16.xpose.msra.mxu0 %v1562
        %1572 = vmatprep.subr.bf16.mxu0 0
        %1573 = vmatpush1.bf16.xpose.msra.mxu0 0
        %1574 = vmatprep.subr.bf16.mxu0 0
        %1575 = vmatpush1.bf16.xpose.msra.mxu0 0
        %1576 = vmatprep.subr.bf16.mxu0 0
        %1577 = vmatpush1.bf16.xpose.msra.mxu0 0
        %1578 = vmatprep.subr.bf16.mxu0 0
        %1579 = vmatpush1.bf16.xpose.msra.mxu0 0
        %1580 = vmatprep.subr.bf16.mxu0 0
        %1581 = vmatpush1.bf16.xpose.msra.mxu0 0
        %1582 = vmatprep.subr.bf16.mxu0 0
        %1583 = vmatpush1.bf16.xpose.msra.mxu0 0
        %1584 = vmatprep.subr.bf16.mxu0 0
        %1585 = vmatpush1.bf16.xpose.msra.mxu0 0
        %1586 = vmatprep.subr.bf16.mxu0 0
        %1587 = vmatpush1.bf16.xpose.msra.mxu0 0
        %1588 = vmatprep.subr.bf16.mxu0 0
        %1589 = vmatpush1.bf16.xpose.msra.mxu0 0
        %1590 = vmatprep.subr.bf16.mxu0 0
        %1591 = vmatpush1.bf16.xpose.msra.mxu0 0
        %1592 = vmatprep.subr.bf16.mxu0 0
        %1593 = vmatpush1.bf16.xpose.msra.mxu0 0
        %1594 = vmatprep.subr.bf16.mxu0 0
        %1595 = vmatpush1.bf16.xpose.msra.mxu0 0
        %1596 = vmatprep.mubr.bf16.mxu0 0
        %1597 = vmatmul.mubr.bf16.gmra.mrb[0].mxu0 %v1541
        %v1598 = vpop.f32.mrb[0].mxu0
        %v1599 = vadd.f32 0.0, %v1598
        %v1600 = vpop.f32.mrb[0].mxu0
        %v1601 = vpop.f32.mrb[0].mxu0
        %v1602 = vadd.f32 0.0, %v1601
        %v1603 = vpop.f32.mrb[0].mxu0
        %1604 = vmatprep.mubr.bf16.mxu0 0
        %1605 = vmatmul.mubr.bf16.gmra.mrb[0].mxu0 %v1544
        %v1606 = vpop.f32.mrb[0].mxu0
        %v1607 = vadd.f32 0.0, %v1606
        %v1608 = vpop.f32.mrb[0].mxu0
        %v1609 = vpop.f32.mrb[0].mxu0
        %v1610 = vadd.f32 0.0, %v1609
        %v1611 = vpop.f32.mrb[0].mxu0
        %1612 = vmatprep.mubr.bf16.mxu0 0
        %1613 = vmatmul.mubr.bf16.gmra.mrb[0].mxu0 %v1547
        %v1614 = vpop.f32.mrb[0].mxu0
        %v1615 = vadd.f32 0.0, %v1614
        %v1616 = vpop.f32.mrb[0].mxu0
        %v1617 = vpop.f32.mrb[0].mxu0
        %v1618 = vadd.f32 0.0, %v1617
        %v1619 = vpop.f32.mrb[0].mxu0
        %1620 = vmatprep.mubr.bf16.mxu0 0
        %1621 = vmatmul.mubr.bf16.gmra.mrb[0].mxu0 %v1550
        %v1622 = vpop.f32.mrb[0].mxu0
        %v1623 = vadd.f32 0.0, %v1622
        %v1624 = vpop.f32.mrb[0].mxu0
        %v1625 = vpop.f32.mrb[0].mxu0
        %v1626 = vadd.f32 0.0, %v1625
        %v1627 = vpop.f32.mrb[0].mxu0
        %1628 = vdwg.mxu0
        %v1629 = vld [vmem:[#allocation2] sm:$0xff]
        %v1630 = vld [vmem:[#allocation2 + $0x8] sm:$0xff]
        %v1631 = vld [vmem:[#allocation2 + $0x10] sm:$0xff]
        %v1632 = vld [vmem:[#allocation2 + $0x18] sm:$0xff]
        %v1633 = vld [vmem:[#allocation2 + $0x20] sm:$0xff]
        %v1634 = vld [vmem:[#allocation2 + $0x28] sm:$0xff]
        %v1635 = vld [vmem:[#allocation2 + $0x30] sm:$0xff]
        %v1636 = vld [vmem:[#allocation2 + $0x38] sm:$0xff]
        %v1637 = vsel %vm673, %v1599, -inf
        %1638 = vmax.xlane.f32.xlu0 %v1637
        %v1639 = vpop.xlane.xlu0 %1638
        %v1640 = vsel %vm673, %v1602, -inf
        %1641 = vmax.xlane.f32.xlu0 %v1640
        %v1642 = vpop.xlane.xlu0 %1641
        %v1643 = vsel %vm673, %v1607, -inf
        %1644 = vmax.xlane.f32.xlu0 %v1643
        %v1645 = vpop.xlane.xlu0 %1644
        %v1646 = vsel %vm673, %v1610, -inf
        %1647 = vmax.xlane.f32.xlu0 %v1646
        %v1648 = vpop.xlane.xlu0 %1647
        %v1649 = vsel %vm673, %v1615, -inf
        %1650 = vmax.xlane.f32.xlu0 %v1649
        %v1651 = vpop.xlane.xlu0 %1650
        %v1652 = vsel %vm673, %v1618, -inf
        %1653 = vmax.xlane.f32.xlu0 %v1652
        %v1654 = vpop.xlane.xlu0 %1653
        %v1655 = vsel %vm673, %v1623, -inf
        %1656 = vmax.xlane.f32.xlu0 %v1655
        %v1657 = vpop.xlane.xlu0 %1656
        %v1658 = vsel %vm673, %v1626, -inf
        %1659 = vmax.xlane.f32.xlu0 %v1658
        %v1660 = vpop.xlane.xlu0 %1659
        %v1661 = vmax.f32 %v1629, %v1639
        %v1662 = vmax.f32 %v1630, %v1642
        %v1663 = vmax.f32 %v1631, %v1645
        %v1664 = vmax.f32 %v1632, %v1648
        %v1665 = vmax.f32 %v1633, %v1651
        %v1666 = vmax.f32 %v1634, %v1654
        %v1667 = vmax.f32 %v1635, %v1657
        %v1668 = vmax.f32 %v1636, %v1660
        %v1669 = vsub.f32 %v1629, %v1661
        %v1670 = vsub.f32 %v1630, %v1662
        %v1671 = vsub.f32 %v1631, %v1663
        %v1672 = vsub.f32 %v1632, %v1664
        %v1673 = vsub.f32 %v1633, %v1665
        %v1674 = vsub.f32 %v1634, %v1666
        %v1675 = vsub.f32 %v1635, %v1667
        %v1676 = vsub.f32 %v1636, %v1668
        %v1677 = vmul.f32 %v1669, 1.442695
        %v1678 = vpow.pop %v1677
        %v1679 = vmul.f32 %v1670, 1.442695
        %v1680 = vpow.pop %v1679
        %v1681 = vmul.f32 %v1671, 1.442695
        %v1682 = vpow.pop %v1681
        %v1683 = vmul.f32 %v1672, 1.442695
        %v1684 = vpow.pop %v1683
        %v1685 = vmul.f32 %v1673, 1.442695
        %v1686 = vpow.pop %v1685
        %v1687 = vmul.f32 %v1674, 1.442695
        %v1688 = vpow.pop %v1687
        %v1689 = vmul.f32 %v1675, 1.442695
        %v1690 = vpow.pop %v1689
        %v1691 = vmul.f32 %v1676, 1.442695
        %v1692 = vpow.pop %v1691
        %1694 = vset.pattern.permute.xlu0 2
        %1695 = vperm.xlu0 %1694, %v1661
        %v1696 = vpop.permute.xlu0 %1695
        %1699 = vset.pattern.permute.xlu0 2
        %1700 = vperm.xlu0 %1699, %v1662
        %v1701 = vpop.permute.xlu0 %1700
        %1704 = vset.pattern.permute.xlu0 2
        %1705 = vperm.xlu0 %1704, %v1663
        %v1706 = vpop.permute.xlu0 %1705
        %1709 = vset.pattern.permute.xlu0 2
        %1710 = vperm.xlu0 %1709, %v1664
        %v1711 = vpop.permute.xlu0 %1710
        %1714 = vset.pattern.permute.xlu0 2
        %1715 = vperm.xlu0 %1714, %v1665
        %v1716 = vpop.permute.xlu0 %1715
        %1719 = vset.pattern.permute.xlu0 2
        %1720 = vperm.xlu0 %1719, %v1666
        %v1721 = vpop.permute.xlu0 %1720
        %1724 = vset.pattern.permute.xlu0 2
        %1725 = vperm.xlu0 %1724, %v1667
        %v1726 = vpop.permute.xlu0 %1725
        %1729 = vset.pattern.permute.xlu0 2
        %1730 = vperm.xlu0 %1729, %v1668
        %v1731 = vpop.permute.xlu0 %1730
        %v1733 = vsub.f32 %v1599, %v1696
        %v1734 = vsub.f32 %v1602, %v1701
        %v1735 = vsub.f32 %v1607, %v1706
        %v1736 = vsub.f32 %v1610, %v1711
        %v1737 = vsub.f32 %v1615, %v1716
        %v1738 = vsub.f32 %v1618, %v1721
        %v1739 = vsub.f32 %v1623, %v1726
        %v1740 = vsub.f32 %v1626, %v1731
        %v1741 = vmul.f32 %v1733, 1.442695
        %v1742 = vpow.pop %v1741
        %v1743 = vmul.f32 %v1734, 1.442695
        %v1744 = vpow.pop %v1743
        %v1745 = vmul.f32 %v1735, 1.442695
        %v1746 = vpow.pop %v1745
        %v1747 = vmul.f32 %v1736, 1.442695
        %v1748 = vpow.pop %v1747
        %v1749 = vmul.f32 %v1737, 1.442695
        %v1750 = vpow.pop %v1749
        %v1751 = vmul.f32 %v1738, 1.442695
        %v1752 = vpow.pop %v1751
        %v1753 = vmul.f32 %v1739, 1.442695
        %v1754 = vpow.pop %v1753
        %v1755 = vmul.f32 %v1740, 1.442695
        %v1756 = vpow.pop %v1755
        %v1757 = vld [vmem:[#allocation3] sm:$0xff]
        %v1758 = vld [vmem:[#allocation3 + $0x8] sm:$0xff]
        %v1759 = vld [vmem:[#allocation3 + $0x10] sm:$0xff]
        %v1760 = vld [vmem:[#allocation3 + $0x18] sm:$0xff]
        %v1761 = vld [vmem:[#allocation3 + $0x20] sm:$0xff]
        %v1762 = vld [vmem:[#allocation3 + $0x28] sm:$0xff]
        %v1763 = vld [vmem:[#allocation3 + $0x30] sm:$0xff]
        %v1764 = vld [vmem:[#allocation3 + $0x38] sm:$0xff]
        %v1765 = vmul.f32 %v1678, %v1757
        %v1766 = vmul.f32 %v1680, %v1758
        %v1767 = vmul.f32 %v1682, %v1759
        %v1768 = vmul.f32 %v1684, %v1760
        %v1769 = vmul.f32 %v1686, %v1761
        %v1770 = vmul.f32 %v1688, %v1762
        %v1771 = vmul.f32 %v1690, %v1763
        %v1772 = vmul.f32 %v1692, %v1764
        %v1773 = vsel %vm673, %v1742, 0.0
        %1774 = vadd.xlane.f32.xlu0 %v1773
        %v1775 = vpop.xlane.xlu0 %1774
        %v1776 = vsel %vm673, %v1744, 0.0
        %1777 = vadd.xlane.f32.xlu0 %v1776
        %v1778 = vpop.xlane.xlu0 %1777
        %v1779 = vsel %vm673, %v1746, 0.0
        %1780 = vadd.xlane.f32.xlu0 %v1779
        %v1781 = vpop.xlane.xlu0 %1780
        %v1782 = vsel %vm673, %v1748, 0.0
        %1783 = vadd.xlane.f32.xlu0 %v1782
        %v1784 = vpop.xlane.xlu0 %1783
        %v1785 = vsel %vm673, %v1750, 0.0
        %1786 = vadd.xlane.f32.xlu0 %v1785
        %v1787 = vpop.xlane.xlu0 %1786
        %v1788 = vsel %vm673, %v1752, 0.0
        %1789 = vadd.xlane.f32.xlu0 %v1788
        %v1790 = vpop.xlane.xlu0 %1789
        %v1791 = vsel %vm673, %v1754, 0.0
        %1792 = vadd.xlane.f32.xlu0 %v1791
        %v1793 = vpop.xlane.xlu0 %1792
        %v1794 = vsel %vm673, %v1756, 0.0
        %1795 = vadd.xlane.f32.xlu0 %v1794
        %v1796 = vpop.xlane.xlu0 %1795
        %v1797 = vadd.f32 %v1765, %v1775
        %v1798 = vadd.f32 %v1766, %v1778
        %v1799 = vadd.f32 %v1767, %v1781
        %v1800 = vadd.f32 %v1768, %v1784
        %v1801 = vadd.f32 %v1769, %v1787
        %v1802 = vadd.f32 %v1770, %v1790
        %v1803 = vadd.f32 %v1771, %v1793
        %v1804 = vadd.f32 %v1772, %v1796
        %vm1805 = vcmask 23568
        %1806 = vst.msk [vmem:[#allocation3] sm:$0xff] %vm1805, %v1797
        %1807 = vst.msk [vmem:[#allocation3 + $0x8] sm:$0xff] %vm1805, %v1798
        %1808 = vst.msk [vmem:[#allocation3 + $0x10] sm:$0xff] %vm1805, %v1799
        %1809 = vst.msk [vmem:[#allocation3 + $0x18] sm:$0xff] %vm1805, %v1800
        %1810 = vst.msk [vmem:[#allocation3 + $0x20] sm:$0xff] %vm1805, %v1801
        %1811 = vst.msk [vmem:[#allocation3 + $0x28] sm:$0xff] %vm1805, %v1802
        %1812 = vst.msk [vmem:[#allocation3 + $0x30] sm:$0xff] %vm1805, %v1803
        %1813 = vst.msk [vmem:[#allocation3 + $0x38] sm:$0xff] %vm1805, %v1804
        %v1814 = vld [vmem:[#allocation4] sm:$0xff]
        %v1815 = vld [vmem:[#allocation4 + $0x8] sm:$0xff]
        %v1816 = vld [vmem:[#allocation4 + $0x10] sm:$0xff]
        %v1817 = vld [vmem:[#allocation4 + $0x18] sm:$0xff]
        %v1818 = vld [vmem:[#allocation4 + $0x20] sm:$0xff]
        %v1819 = vld [vmem:[#allocation4 + $0x28] sm:$0xff]
        %v1820 = vld [vmem:[#allocation4 + $0x30] sm:$0xff]
        %v1821 = vld [vmem:[#allocation4 + $0x38] sm:$0xff]
        %1823 = vset.pattern.permute.xlu0 2
        %1824 = vperm.xlu0 %1823, %v1678
        %v1825 = vpop.permute.xlu0 %1824
        %1828 = vset.pattern.permute.xlu0 2
        %1829 = vperm.xlu0 %1828, %v1680
        %v1830 = vpop.permute.xlu0 %1829
        %1833 = vset.pattern.permute.xlu0 2
        %1834 = vperm.xlu0 %1833, %v1682
        %v1835 = vpop.permute.xlu0 %1834
        %1838 = vset.pattern.permute.xlu0 2
        %1839 = vperm.xlu0 %1838, %v1684
        %v1840 = vpop.permute.xlu0 %1839
        %1843 = vset.pattern.permute.xlu0 2
        %1844 = vperm.xlu0 %1843, %v1686
        %v1845 = vpop.permute.xlu0 %1844
        %1848 = vset.pattern.permute.xlu0 2
        %1849 = vperm.xlu0 %1848, %v1688
        %v1850 = vpop.permute.xlu0 %1849
        %1853 = vset.pattern.permute.xlu0 2
        %1854 = vperm.xlu0 %1853, %v1690
        %v1855 = vpop.permute.xlu0 %1854
        %1858 = vset.pattern.permute.xlu0 2
        %1859 = vperm.xlu0 %1858, %v1692
        %v1860 = vpop.permute.xlu0 %1859
        %v1862 = vmul.f32 %v1825, %v1814
        %v1863 = vmul.f32 %v1830, %v1815
        %v1864 = vmul.f32 %v1835, %v1816
        %v1865 = vmul.f32 %v1840, %v1817
        %v1866 = vmul.f32 %v1845, %v1818
        %v1867 = vmul.f32 %v1850, %v1819
        %v1868 = vmul.f32 %v1855, %v1820
        %v1869 = vmul.f32 %v1860, %v1821
        %v1870 = vpack.c.bf16 %v1744, %v1742
        %v1871 = vpack.c.bf16 %v1748, %v1746
        %v1872 = vpack.c.bf16 %v1752, %v1750
        %v1873 = vpack.c.bf16 %v1756, %v1754
        %1874 = vrot.lane.b32.xlu0 %v571, 88
        %v1875 = vpop.permute.xlu0 %1874
        %1876 = vrot.lane.b32.xlu0 %v572, 88
        %v1877 = vpop.permute.xlu0 %1876
        %1878 = vrot.lane.b32.xlu0 %v573, 88
        %v1879 = vpop.permute.xlu0 %1878
        %1880 = vrot.lane.b32.xlu0 %v574, 88
        %v1881 = vpop.permute.xlu0 %1880
        %v1887 = vsel %vm673, %v1870, 0
        %v1890 = vsel %vm673, %v1871, 0
        %v1893 = vsel %vm673, %v1872, 0
        %v1896 = vsel %vm673, %v1873, 0
        %1898 = vmatprep.subr.bf16.mxu0 0
        %1899 = vmatpush1.bf16.msra.mxu0 %v1875
        %1900 = vmatprep.subr.bf16.mxu0 0
        %1901 = vmatpush1.bf16.msra.mxu0 %v1877
        %1902 = vmatprep.subr.bf16.mxu0 0
        %1903 = vmatpush1.bf16.msra.mxu0 %v1879
        %1904 = vmatprep.subr.bf16.mxu0 0
        %1905 = vmatpush1.bf16.msra.mxu0 %v1881
        %1906 = vmatprep.subr.bf16.mxu0 0
        %1907 = vmatpush1.bf16.msra.mxu0 0
        %1908 = vmatprep.subr.bf16.mxu0 0
        %1909 = vmatpush1.bf16.msra.mxu0 0
        %1910 = vmatprep.subr.bf16.mxu0 0
        %1911 = vmatpush1.bf16.msra.mxu0 0
        %1912 = vmatprep.subr.bf16.mxu0 0
        %1913 = vmatpush1.bf16.msra.mxu0 0
        %1914 = vmatprep.subr.bf16.mxu0 0
        %1915 = vmatpush1.bf16.msra.mxu0 0
        %1916 = vmatprep.subr.bf16.mxu0 0
        %1917 = vmatpush1.bf16.msra.mxu0 0
        %1918 = vmatprep.subr.bf16.mxu0 0
        %1919 = vmatpush1.bf16.msra.mxu0 0
        %1920 = vmatprep.subr.bf16.mxu0 0
        %1921 = vmatpush1.bf16.msra.mxu0 0
        %1922 = vmatprep.subr.bf16.mxu0 0
        %1923 = vmatpush1.bf16.msra.mxu0 0
        %1924 = vmatprep.subr.bf16.mxu0 0
        %1925 = vmatpush1.bf16.msra.mxu0 0
        %1926 = vmatprep.subr.bf16.mxu0 0
        %1927 = vmatpush1.bf16.msra.mxu0 0
        %1928 = vmatprep.subr.bf16.mxu0 0
        %1929 = vmatpush1.bf16.msra.mxu0 0
        %1930 = vmatprep.mubr.bf16.mxu0 0
        %1931 = vmatmul.mubr.bf16.gmra.mrb[0].mxu0 %v1887
        %v1932 = vpop.f32.mrb[0].mxu0
        %v1933 = vadd.f32 0.0, %v1932
        %v1934 = vpop.f32.mrb[0].mxu0
        %v1935 = vpop.f32.mrb[0].mxu0
        %v1936 = vadd.f32 0.0, %v1935
        %v1937 = vpop.f32.mrb[0].mxu0
        %1938 = vmatprep.mubr.bf16.mxu0 0
        %1939 = vmatmul.mubr.bf16.gmra.mrb[0].mxu0 %v1890
        %v1940 = vpop.f32.mrb[0].mxu0
        %v1941 = vadd.f32 0.0, %v1940
        %v1942 = vpop.f32.mrb[0].mxu0
        %v1943 = vpop.f32.mrb[0].mxu0
        %v1944 = vadd.f32 0.0, %v1943
        %v1945 = vpop.f32.mrb[0].mxu0
        %1946 = vmatprep.mubr.bf16.mxu0 0
        %1947 = vmatmul.mubr.bf16.gmra.mrb[0].mxu0 %v1893
        %v1948 = vpop.f32.mrb[0].mxu0
        %v1949 = vadd.f32 0.0, %v1948
        %v1950 = vpop.f32.mrb[0].mxu0
        %v1951 = vpop.f32.mrb[0].mxu0
        %v1952 = vadd.f32 0.0, %v1951
        %v1953 = vpop.f32.mrb[0].mxu0
        %1954 = vmatprep.mubr.bf16.mxu0 0
        %1955 = vmatmul.mubr.bf16.gmra.mrb[0].mxu0 %v1896
        %v1956 = vpop.f32.mrb[0].mxu0
        %v1957 = vadd.f32 0.0, %v1956
        %v1958 = vpop.f32.mrb[0].mxu0
        %v1959 = vpop.f32.mrb[0].mxu0
        %v1960 = vadd.f32 0.0, %v1959
        %v1961 = vpop.f32.mrb[0].mxu0
        %1962 = vdwg.mxu0
        %1971 = vrot.lane.b32.xlu0 %v1933, 8
        %v1972 = vpop.permute.xlu0 %1971
        %1973 = vrot.lane.b32.xlu0 %v1936, 8
        %v1974 = vpop.permute.xlu0 %1973
        %1975 = vrot.lane.b32.xlu0 %v1941, 8
        %v1976 = vpop.permute.xlu0 %1975
        %1977 = vrot.lane.b32.xlu0 %v1944, 8
        %v1978 = vpop.permute.xlu0 %1977
        %1979 = vrot.lane.b32.xlu0 %v1949, 8
        %v1980 = vpop.permute.xlu0 %1979
        %1981 = vrot.lane.b32.xlu0 %v1952, 8
        %v1982 = vpop.permute.xlu0 %1981
        %1983 = vrot.lane.b32.xlu0 %v1957, 8
        %v1984 = vpop.permute.xlu0 %1983
        %1985 = vrot.lane.b32.xlu0 %v1960, 8
        %v1986 = vpop.permute.xlu0 %1985
        %v1995 = vadd.f32 %v1862, %v1972
        %v1996 = vadd.f32 %v1863, %v1974
        %v1997 = vadd.f32 %v1864, %v1976
        %v1998 = vadd.f32 %v1865, %v1978
        %v1999 = vadd.f32 %v1866, %v1980
        %v2000 = vadd.f32 %v1867, %v1982
        %v2001 = vadd.f32 %v1868, %v1984
        %v2002 = vadd.f32 %v1869, %v1986
        %vm2003 = vcmask 97344
        %2004 = vst.msk [vmem:[#allocation4] sm:$0xff] %vm2003, %v1995
        %2005 = vst.msk [vmem:[#allocation4 + $0x8] sm:$0xff] %vm2003, %v1996
        %2006 = vst.msk [vmem:[#allocation4 + $0x10] sm:$0xff] %vm2003, %v1997
        %2007 = vst.msk [vmem:[#allocation4 + $0x18] sm:$0xff] %vm2003, %v1998
        %2008 = vst.msk [vmem:[#allocation4 + $0x20] sm:$0xff] %vm2003, %v1999
        %2009 = vst.msk [vmem:[#allocation4 + $0x28] sm:$0xff] %vm2003, %v2000
        %2010 = vst.msk [vmem:[#allocation4 + $0x30] sm:$0xff] %vm2003, %v2001
        %2011 = vst.msk [vmem:[#allocation4 + $0x38] sm:$0xff] %vm2003, %v2002
        %2012 = vst.msk [vmem:[#allocation2] sm:$0xff] %vm1805, %v1661
        %2013 = vst.msk [vmem:[#allocation2 + $0x8] sm:$0xff] %vm1805, %v1662
        %2014 = vst.msk [vmem:[#allocation2 + $0x10] sm:$0xff] %vm1805, %v1663
        %2015 = vst.msk [vmem:[#allocation2 + $0x18] sm:$0xff] %vm1805, %v1664
        %2016 = vst.msk [vmem:[#allocation2 + $0x20] sm:$0xff] %vm1805, %v1665
        %2017 = vst.msk [vmem:[#allocation2 + $0x28] sm:$0xff] %vm1805, %v1666
        %2018 = vst.msk [vmem:[#allocation2 + $0x30] sm:$0xff] %vm1805, %v1667
        %2019 = vst.msk [vmem:[#allocation2 + $0x38] sm:$0xff] %vm1805, %v1668
        %2020 = vrot.lane.b32.xlu0 %v543, 116
        %v2021 = vpop.permute.xlu0 %2020
        %2022 = vrot.lane.b32.xlu0 %v544, 116
        %v2023 = vpop.permute.xlu0 %2022
        %2024 = vrot.lane.b32.xlu0 %v545, 116
        %v2025 = vpop.permute.xlu0 %2024
        %2026 = vrot.lane.b32.xlu0 %v546, 116
        %v2027 = vpop.permute.xlu0 %2026
        %2028 = vrot.lane.b32.xlu0 %v571, 116
        %v2029 = vpop.permute.xlu0 %2028
        %2030 = vrot.lane.b32.xlu0 %v572, 116
        %v2031 = vpop.permute.xlu0 %2030
        %2032 = vrot.lane.b32.xlu0 %v573, 116
        %v2033 = vpop.permute.xlu0 %2032
        %2034 = vrot.lane.b32.xlu0 %v574, 116
        %v2035 = vpop.permute.xlu0 %2034
        %v2037 = vsel %vm575, %v2021, 0
        %v2040 = vsel %vm575, %v2023, 0
        %v2043 = vsel %vm575, %v2025, 0
        %v2046 = vsel %vm575, %v2027, 0
        %v2049 = vsel %vm575, %v2029, 0
        %v2052 = vsel %vm575, %v2031, 0
        %v2055 = vsel %vm575, %v2033, 0
        %v2058 = vsel %vm575, %v2035, 0
        %2060 = vmatprep.subr.bf16.mxu0 0
        %2061 = vmatpush1.bf16.xpose.msra.mxu0 %v2049
        %2062 = vmatprep.subr.bf16.mxu0 0
        %2063 = vmatpush1.bf16.xpose.msra.mxu0 %v2052
        %2064 = vmatprep.subr.bf16.mxu0 0
        %2065 = vmatpush1.bf16.xpose.msra.mxu0 %v2055
        %2066 = vmatprep.subr.bf16.mxu0 0
        %2067 = vmatpush1.bf16.xpose.msra.mxu0 %v2058
        %2068 = vmatprep.subr.bf16.mxu0 0
        %2069 = vmatpush1.bf16.xpose.msra.mxu0 0
        %2070 = vmatprep.subr.bf16.mxu0 0
        %2071 = vmatpush1.bf16.xpose.msra.mxu0 0
        %2072 = vmatprep.subr.bf16.mxu0 0
        %2073 = vmatpush1.bf16.xpose.msra.mxu0 0
        %2074 = vmatprep.subr.bf16.mxu0 0
        %2075 = vmatpush1.bf16.xpose.msra.mxu0 0
        %2076 = vmatprep.subr.bf16.mxu0 0
        %2077 = vmatpush1.bf16.xpose.msra.mxu0 0
        %2078 = vmatprep.subr.bf16.mxu0 0
        %2079 = vmatpush1.bf16.xpose.msra.mxu0 0
        %2080 = vmatprep.subr.bf16.mxu0 0
        %2081 = vmatpush1.bf16.xpose.msra.mxu0 0
        %2082 = vmatprep.subr.bf16.mxu0 0
        %2083 = vmatpush1.bf16.xpose.msra.mxu0 0
        %2084 = vmatprep.subr.bf16.mxu0 0
        %2085 = vmatpush1.bf16.xpose.msra.mxu0 0
        %2086 = vmatprep.subr.bf16.mxu0 0
        %2087 = vmatpush1.bf16.xpose.msra.mxu0 0
        %2088 = vmatprep.subr.bf16.mxu0 0
        %2089 = vmatpush1.bf16.xpose.msra.mxu0 0
        %2090 = vmatprep.subr.bf16.mxu0 0
        %2091 = vmatpush1.bf16.xpose.msra.mxu0 0
        %2092 = vmatprep.mubr.bf16.mxu0 0
        %2093 = vmatmul.mubr.bf16.gmra.mrb[0].mxu0 %v2037
        %v2094 = vpop.f32.mrb[0].mxu0
        %v2095 = vadd.f32 0.0, %v2094
        %v2096 = vpop.f32.mrb[0].mxu0
        %v2097 = vpop.f32.mrb[0].mxu0
        %v2098 = vadd.f32 0.0, %v2097
        %v2099 = vpop.f32.mrb[0].mxu0
        %2100 = vmatprep.mubr.bf16.mxu0 0
        %2101 = vmatmul.mubr.bf16.gmra.mrb[0].mxu0 %v2040
        %v2102 = vpop.f32.mrb[0].mxu0
        %v2103 = vadd.f32 0.0, %v2102
        %v2104 = vpop.f32.mrb[0].mxu0
        %v2105 = vpop.f32.mrb[0].mxu0
        %v2106 = vadd.f32 0.0, %v2105
        %v2107 = vpop.f32.mrb[0].mxu0
        %2108 = vmatprep.mubr.bf16.mxu0 0
        %2109 = vmatmul.mubr.bf16.gmra.mrb[0].mxu0 %v2043
        %v2110 = vpop.f32.mrb[0].mxu0
        %v2111 = vadd.f32 0.0, %v2110
        %v2112 = vpop.f32.mrb[0].mxu0
        %v2113 = vpop.f32.mrb[0].mxu0
        %v2114 = vadd.f32 0.0, %v2113
        %v2115 = vpop.f32.mrb[0].mxu0
        %2116 = vmatprep.mubr.bf16.mxu0 0
        %2117 = vmatmul.mubr.bf16.gmra.mrb[0].mxu0 %v2046
        %v2118 = vpop.f32.mrb[0].mxu0
        %v2119 = vadd.f32 0.0, %v2118
        %v2120 = vpop.f32.mrb[0].mxu0
        %v2121 = vpop.f32.mrb[0].mxu0
        %v2122 = vadd.f32 0.0, %v2121
        %v2123 = vpop.f32.mrb[0].mxu0
        %2124 = vdwg.mxu0
        %v2125 = vld [vmem:[#allocation2] sm:$0xff]
        %v2126 = vld [vmem:[#allocation2 + $0x8] sm:$0xff]
        %v2127 = vld [vmem:[#allocation2 + $0x10] sm:$0xff]
        %v2128 = vld [vmem:[#allocation2 + $0x18] sm:$0xff]
        %v2129 = vld [vmem:[#allocation2 + $0x20] sm:$0xff]
        %v2130 = vld [vmem:[#allocation2 + $0x28] sm:$0xff]
        %v2131 = vld [vmem:[#allocation2 + $0x30] sm:$0xff]
        %v2132 = vld [vmem:[#allocation2 + $0x38] sm:$0xff]
        %v2133 = vsel %vm673, %v2095, -inf
        %2134 = vmax.xlane.f32.xlu0 %v2133
        %v2135 = vpop.xlane.xlu0 %2134
        %v2136 = vsel %vm673, %v2098, -inf
        %2137 = vmax.xlane.f32.xlu0 %v2136
        %v2138 = vpop.xlane.xlu0 %2137
        %v2139 = vsel %vm673, %v2103, -inf
        %2140 = vmax.xlane.f32.xlu0 %v2139
        %v2141 = vpop.xlane.xlu0 %2140
        %v2142 = vsel %vm673, %v2106, -inf
        %2143 = vmax.xlane.f32.xlu0 %v2142
        %v2144 = vpop.xlane.xlu0 %2143
        %v2145 = vsel %vm673, %v2111, -inf
        %2146 = vmax.xlane.f32.xlu0 %v2145
        %v2147 = vpop.xlane.xlu0 %2146
        %v2148 = vsel %vm673, %v2114, -inf
        %2149 = vmax.xlane.f32.xlu0 %v2148
        %v2150 = vpop.xlane.xlu0 %2149
        %v2151 = vsel %vm673, %v2119, -inf
        %2152 = vmax.xlane.f32.xlu0 %v2151
        %v2153 = vpop.xlane.xlu0 %2152
        %v2154 = vsel %vm673, %v2122, -inf
        %2155 = vmax.xlane.f32.xlu0 %v2154
        %v2156 = vpop.xlane.xlu0 %2155
        %v2157 = vmax.f32 %v2125, %v2135
        %v2158 = vmax.f32 %v2126, %v2138
        %v2159 = vmax.f32 %v2127, %v2141
        %v2160 = vmax.f32 %v2128, %v2144
        %v2161 = vmax.f32 %v2129, %v2147
        %v2162 = vmax.f32 %v2130, %v2150
        %v2163 = vmax.f32 %v2131, %v2153
        %v2164 = vmax.f32 %v2132, %v2156
        %v2165 = vsub.f32 %v2125, %v2157
        %v2166 = vsub.f32 %v2126, %v2158
        %v2167 = vsub.f32 %v2127, %v2159
        %v2168 = vsub.f32 %v2128, %v2160
        %v2169 = vsub.f32 %v2129, %v2161
        %v2170 = vsub.f32 %v2130, %v2162
        %v2171 = vsub.f32 %v2131, %v2163
        %v2172 = vsub.f32 %v2132, %v2164
        %v2173 = vmul.f32 %v2165, 1.442695
        %v2174 = vpow.pop %v2173
        %v2175 = vmul.f32 %v2166, 1.442695
        %v2176 = vpow.pop %v2175
        %v2177 = vmul.f32 %v2167, 1.442695
        %v2178 = vpow.pop %v2177
        %v2179 = vmul.f32 %v2168, 1.442695
        %v2180 = vpow.pop %v2179
        %v2181 = vmul.f32 %v2169, 1.442695
        %v2182 = vpow.pop %v2181
        %v2183 = vmul.f32 %v2170, 1.442695
        %v2184 = vpow.pop %v2183
        %v2185 = vmul.f32 %v2171, 1.442695
        %v2186 = vpow.pop %v2185
        %v2187 = vmul.f32 %v2172, 1.442695
        %v2188 = vpow.pop %v2187
        %2190 = vset.pattern.permute.xlu0 3
        %2191 = vperm.xlu0 %2190, %v2157
        %v2192 = vpop.permute.xlu0 %2191
        %2195 = vset.pattern.permute.xlu0 3
        %2196 = vperm.xlu0 %2195, %v2158
        %v2197 = vpop.permute.xlu0 %2196
        %2200 = vset.pattern.permute.xlu0 3
        %2201 = vperm.xlu0 %2200, %v2159
        %v2202 = vpop.permute.xlu0 %2201
        %2205 = vset.pattern.permute.xlu0 3
        %2206 = vperm.xlu0 %2205, %v2160
        %v2207 = vpop.permute.xlu0 %2206
        %2210 = vset.pattern.permute.xlu0 3
        %2211 = vperm.xlu0 %2210, %v2161
        %v2212 = vpop.permute.xlu0 %2211
        %2215 = vset.pattern.permute.xlu0 3
        %2216 = vperm.xlu0 %2215, %v2162
        %v2217 = vpop.permute.xlu0 %2216
        %2220 = vset.pattern.permute.xlu0 3
        %2221 = vperm.xlu0 %2220, %v2163
        %v2222 = vpop.permute.xlu0 %2221
        %2225 = vset.pattern.permute.xlu0 3
        %2226 = vperm.xlu0 %2225, %v2164
        %v2227 = vpop.permute.xlu0 %2226
        %v2229 = vsub.f32 %v2095, %v2192
        %v2230 = vsub.f32 %v2098, %v2197
        %v2231 = vsub.f32 %v2103, %v2202
        %v2232 = vsub.f32 %v2106, %v2207
        %v2233 = vsub.f32 %v2111, %v2212
        %v2234 = vsub.f32 %v2114, %v2217
        %v2235 = vsub.f32 %v2119, %v2222
        %v2236 = vsub.f32 %v2122, %v2227
        %v2237 = vmul.f32 %v2229, 1.442695
        %v2238 = vpow.pop %v2237
        %v2239 = vmul.f32 %v2230, 1.442695
        %v2240 = vpow.pop %v2239
        %v2241 = vmul.f32 %v2231, 1.442695
        %v2242 = vpow.pop %v2241
        %v2243 = vmul.f32 %v2232, 1.442695
        %v2244 = vpow.pop %v2243
        %v2245 = vmul.f32 %v2233, 1.442695
        %v2246 = vpow.pop %v2245
        %v2247 = vmul.f32 %v2234, 1.442695
        %v2248 = vpow.pop %v2247
        %v2249 = vmul.f32 %v2235, 1.442695
        %v2250 = vpow.pop %v2249
        %v2251 = vmul.f32 %v2236, 1.442695
        %v2252 = vpow.pop %v2251
        %v2253 = vld [vmem:[#allocation3] sm:$0xff]
        %v2254 = vld [vmem:[#allocation3 + $0x8] sm:$0xff]
        %v2255 = vld [vmem:[#allocation3 + $0x10] sm:$0xff]
        %v2256 = vld [vmem:[#allocation3 + $0x18] sm:$0xff]
        %v2257 = vld [vmem:[#allocation3 + $0x20] sm:$0xff]
        %v2258 = vld [vmem:[#allocation3 + $0x28] sm:$0xff]
        %v2259 = vld [vmem:[#allocation3 + $0x30] sm:$0xff]
        %v2260 = vld [vmem:[#allocation3 + $0x38] sm:$0xff]
        %v2261 = vmul.f32 %v2174, %v2253
        %v2262 = vmul.f32 %v2176, %v2254
        %v2263 = vmul.f32 %v2178, %v2255
        %v2264 = vmul.f32 %v2180, %v2256
        %v2265 = vmul.f32 %v2182, %v2257
        %v2266 = vmul.f32 %v2184, %v2258
        %v2267 = vmul.f32 %v2186, %v2259
        %v2268 = vmul.f32 %v2188, %v2260
        %v2269 = vsel %vm673, %v2238, 0.0
        %2270 = vadd.xlane.f32.xlu0 %v2269
        %v2271 = vpop.xlane.xlu0 %2270
        %v2272 = vsel %vm673, %v2240, 0.0
        %2273 = vadd.xlane.f32.xlu0 %v2272
        %v2274 = vpop.xlane.xlu0 %2273
        %v2275 = vsel %vm673, %v2242, 0.0
        %2276 = vadd.xlane.f32.xlu0 %v2275
        %v2277 = vpop.xlane.xlu0 %2276
        %v2278 = vsel %vm673, %v2244, 0.0
        %2279 = vadd.xlane.f32.xlu0 %v2278
        %v2280 = vpop.xlane.xlu0 %2279
        %v2281 = vsel %vm673, %v2246, 0.0
        %2282 = vadd.xlane.f32.xlu0 %v2281
        %v2283 = vpop.xlane.xlu0 %2282
        %v2284 = vsel %vm673, %v2248, 0.0
        %2285 = vadd.xlane.f32.xlu0 %v2284
        %v2286 = vpop.xlane.xlu0 %2285
        %v2287 = vsel %vm673, %v2250, 0.0
        %2288 = vadd.xlane.f32.xlu0 %v2287
        %v2289 = vpop.xlane.xlu0 %2288
        %v2290 = vsel %vm673, %v2252, 0.0
        %2291 = vadd.xlane.f32.xlu0 %v2290
        %v2292 = vpop.xlane.xlu0 %2291
        %v2293 = vadd.f32 %v2261, %v2271
        %v2294 = vadd.f32 %v2262, %v2274
        %v2295 = vadd.f32 %v2263, %v2277
        %v2296 = vadd.f32 %v2264, %v2280
        %v2297 = vadd.f32 %v2265, %v2283
        %v2298 = vadd.f32 %v2266, %v2286
        %v2299 = vadd.f32 %v2267, %v2289
        %v2300 = vadd.f32 %v2268, %v2292
        %vm2301 = vcmask 31768
        %2302 = vst.msk [vmem:[#allocation3] sm:$0xff] %vm2301, %v2293
        %2303 = vst.msk [vmem:[#allocation3 + $0x8] sm:$0xff] %vm2301, %v2294
        %2304 = vst.msk [vmem:[#allocation3 + $0x10] sm:$0xff] %vm2301, %v2295
        %2305 = vst.msk [vmem:[#allocation3 + $0x18] sm:$0xff] %vm2301, %v2296
        %2306 = vst.msk [vmem:[#allocation3 + $0x20] sm:$0xff] %vm2301, %v2297
        %2307 = vst.msk [vmem:[#allocation3 + $0x28] sm:$0xff] %vm2301, %v2298
        %2308 = vst.msk [vmem:[#allocation3 + $0x30] sm:$0xff] %vm2301, %v2299
        %2309 = vst.msk [vmem:[#allocation3 + $0x38] sm:$0xff] %vm2301, %v2300
        %v2310 = vld [vmem:[#allocation4] sm:$0xff]
        %v2311 = vld [vmem:[#allocation4 + $0x8] sm:$0xff]
        %v2312 = vld [vmem:[#allocation4 + $0x10] sm:$0xff]
        %v2313 = vld [vmem:[#allocation4 + $0x18] sm:$0xff]
        %v2314 = vld [vmem:[#allocation4 + $0x20] sm:$0xff]
        %v2315 = vld [vmem:[#allocation4 + $0x28] sm:$0xff]
        %v2316 = vld [vmem:[#allocation4 + $0x30] sm:$0xff]
        %v2317 = vld [vmem:[#allocation4 + $0x38] sm:$0xff]
        %2319 = vset.pattern.permute.xlu0 3
        %2320 = vperm.xlu0 %2319, %v2174
        %v2321 = vpop.permute.xlu0 %2320
        %2324 = vset.pattern.permute.xlu0 3
        %2325 = vperm.xlu0 %2324, %v2176
        %v2326 = vpop.permute.xlu0 %2325
        %2329 = vset.pattern.permute.xlu0 3
        %2330 = vperm.xlu0 %2329, %v2178
        %v2331 = vpop.permute.xlu0 %2330
        %2334 = vset.pattern.permute.xlu0 3
        %2335 = vperm.xlu0 %2334, %v2180
        %v2336 = vpop.permute.xlu0 %2335
        %2339 = vset.pattern.permute.xlu0 3
        %2340 = vperm.xlu0 %2339, %v2182
        %v2341 = vpop.permute.xlu0 %2340
        %2344 = vset.pattern.permute.xlu0 3
        %2345 = vperm.xlu0 %2344, %v2184
        %v2346 = vpop.permute.xlu0 %2345
        %2349 = vset.pattern.permute.xlu0 3
        %2350 = vperm.xlu0 %2349, %v2186
        %v2351 = vpop.permute.xlu0 %2350
        %2354 = vset.pattern.permute.xlu0 3
        %2355 = vperm.xlu0 %2354, %v2188
        %v2356 = vpop.permute.xlu0 %2355
        %v2358 = vmul.f32 %v2321, %v2310
        %v2359 = vmul.f32 %v2326, %v2311
        %v2360 = vmul.f32 %v2331, %v2312
        %v2361 = vmul.f32 %v2336, %v2313
        %v2362 = vmul.f32 %v2341, %v2314
        %v2363 = vmul.f32 %v2346, %v2315
        %v2364 = vmul.f32 %v2351, %v2316
        %v2365 = vmul.f32 %v2356, %v2317
        %v2366 = vpack.c.bf16 %v2240, %v2238
        %v2367 = vpack.c.bf16 %v2244, %v2242
        %v2368 = vpack.c.bf16 %v2248, %v2246
        %v2369 = vpack.c.bf16 %v2252, %v2250
        %2370 = vrot.lane.b32.xlu0 %v571, 84
        %v2371 = vpop.permute.xlu0 %2370
        %2372 = vrot.lane.b32.xlu0 %v572, 84
        %v2373 = vpop.permute.xlu0 %2372
        %2374 = vrot.lane.b32.xlu0 %v573, 84
        %v2375 = vpop.permute.xlu0 %2374
        %2376 = vrot.lane.b32.xlu0 %v574, 84
        %v2377 = vpop.permute.xlu0 %2376
        %v2383 = vsel %vm673, %v2366, 0
        %v2386 = vsel %vm673, %v2367, 0
        %v2389 = vsel %vm673, %v2368, 0
        %v2392 = vsel %vm673, %v2369, 0
        %2394 = vmatprep.subr.bf16.mxu0 0
        %2395 = vmatpush1.bf16.msra.mxu0 %v2371
        %2396 = vmatprep.subr.bf16.mxu0 0
        %2397 = vmatpush1.bf16.msra.mxu0 %v2373
        %2398 = vmatprep.subr.bf16.mxu0 0
        %2399 = vmatpush1.bf16.msra.mxu0 %v2375
        %2400 = vmatprep.subr.bf16.mxu0 0
        %2401 = vmatpush1.bf16.msra.mxu0 %v2377
        %2402 = vmatprep.subr.bf16.mxu0 0
        %2403 = vmatpush1.bf16.msra.mxu0 0
        %2404 = vmatprep.subr.bf16.mxu0 0
        %2405 = vmatpush1.bf16.msra.mxu0 0
        %2406 = vmatprep.subr.bf16.mxu0 0
        %2407 = vmatpush1.bf16.msra.mxu0 0
        %2408 = vmatprep.subr.bf16.mxu0 0
        %2409 = vmatpush1.bf16.msra.mxu0 0
        %2410 = vmatprep.subr.bf16.mxu0 0
        %2411 = vmatpush1.bf16.msra.mxu0 0
        %2412 = vmatprep.subr.bf16.mxu0 0
        %2413 = vmatpush1.bf16.msra.mxu0 0
        %2414 = vmatprep.subr.bf16.mxu0 0
        %2415 = vmatpush1.bf16.msra.mxu0 0
        %2416 = vmatprep.subr.bf16.mxu0 0
        %2417 = vmatpush1.bf16.msra.mxu0 0
        %2418 = vmatprep.subr.bf16.mxu0 0
        %2419 = vmatpush1.bf16.msra.mxu0 0
        %2420 = vmatprep.subr.bf16.mxu0 0
        %2421 = vmatpush1.bf16.msra.mxu0 0
        %2422 = vmatprep.subr.bf16.mxu0 0
        %2423 = vmatpush1.bf16.msra.mxu0 0
        %2424 = vmatprep.subr.bf16.mxu0 0
        %2425 = vmatpush1.bf16.msra.mxu0 0
        %2426 = vmatprep.mubr.bf16.mxu0 0
        %2427 = vmatmul.mubr.bf16.gmra.mrb[0].mxu0 %v2383
        %v2428 = vpop.f32.mrb[0].mxu0
        %v2429 = vadd.f32 0.0, %v2428
        %v2430 = vpop.f32.mrb[0].mxu0
        %v2431 = vpop.f32.mrb[0].mxu0
        %v2432 = vadd.f32 0.0, %v2431
        %v2433 = vpop.f32.mrb[0].mxu0
        %2434 = vmatprep.mubr.bf16.mxu0 0
        %2435 = vmatmul.mubr.bf16.gmra.mrb[0].mxu0 %v2386
        %v2436 = vpop.f32.mrb[0].mxu0
        %v2437 = vadd.f32 0.0, %v2436
        %v2438 = vpop.f32.mrb[0].mxu0
        %v2439 = vpop.f32.mrb[0].mxu0
        %v2440 = vadd.f32 0.0, %v2439
        %v2441 = vpop.f32.mrb[0].mxu0
        %2442 = vmatprep.mubr.bf16.mxu0 0
        %2443 = vmatmul.mubr.bf16.gmra.mrb[0].mxu0 %v2389
        %v2444 = vpop.f32.mrb[0].mxu0
        %v2445 = vadd.f32 0.0, %v2444
        %v2446 = vpop.f32.mrb[0].mxu0
        %v2447 = vpop.f32.mrb[0].mxu0
        %v2448 = vadd.f32 0.0, %v2447
        %v2449 = vpop.f32.mrb[0].mxu0
        %2450 = vmatprep.mubr.bf16.mxu0 0
        %2451 = vmatmul.mubr.bf16.gmra.mrb[0].mxu0 %v2392
        %v2452 = vpop.f32.mrb[0].mxu0
        %v2453 = vadd.f32 0.0, %v2452
        %v2454 = vpop.f32.mrb[0].mxu0
        %v2455 = vpop.f32.mrb[0].mxu0
        %v2456 = vadd.f32 0.0, %v2455
        %v2457 = vpop.f32.mrb[0].mxu0
        %2458 = vdwg.mxu0
        %2467 = vrot.lane.b32.xlu0 %v2429, 12
        %v2468 = vpop.permute.xlu0 %2467
        %2469 = vrot.lane.b32.xlu0 %v2432, 12
        %v2470 = vpop.permute.xlu0 %2469
        %2471 = vrot.lane.b32.xlu0 %v2437, 12
        %v2472 = vpop.permute.xlu0 %2471
        %2473 = vrot.lane.b32.xlu0 %v2440, 12
        %v2474 = vpop.permute.xlu0 %2473
        %2475 = vrot.lane.b32.xlu0 %v2445, 12
        %v2476 = vpop.permute.xlu0 %2475
        %2477 = vrot.lane.b32.xlu0 %v2448, 12
        %v2478 = vpop.permute.xlu0 %2477
        %2479 = vrot.lane.b32.xlu0 %v2453, 12
        %v2480 = vpop.permute.xlu0 %2479
        %2481 = vrot.lane.b32.xlu0 %v2456, 12
        %v2482 = vpop.permute.xlu0 %2481
        %v2491 = vadd.f32 %v2358, %v2468
        %v2492 = vadd.f32 %v2359, %v2470
        %v2493 = vadd.f32 %v2360, %v2472
        %v2494 = vadd.f32 %v2361, %v2474
        %v2495 = vadd.f32 %v2362, %v2476
        %v2496 = vadd.f32 %v2363, %v2478
        %v2497 = vadd.f32 %v2364, %v2480
        %v2498 = vadd.f32 %v2365, %v2482
        %vm2499 = vcmask 130144
        %2500 = vst.msk [vmem:[#allocation4] sm:$0xff] %vm2499, %v2491
        %2501 = vst.msk [vmem:[#allocation4 + $0x8] sm:$0xff] %vm2499, %v2492
        %2502 = vst.msk [vmem:[#allocation4 + $0x10] sm:$0xff] %vm2499, %v2493
        %2503 = vst.msk [vmem:[#allocation4 + $0x18] sm:$0xff] %vm2499, %v2494
        %2504 = vst.msk [vmem:[#allocation4 + $0x20] sm:$0xff] %vm2499, %v2495
        %2505 = vst.msk [vmem:[#allocation4 + $0x28] sm:$0xff] %vm2499, %v2496
        %2506 = vst.msk [vmem:[#allocation4 + $0x30] sm:$0xff] %vm2499, %v2497
        %2507 = vst.msk [vmem:[#allocation4 + $0x38] sm:$0xff] %vm2499, %v2498
        %2508 = vst.msk [vmem:[#allocation2] sm:$0xff] %vm2301, %v2157
        %2509 = vst.msk [vmem:[#allocation2 + $0x8] sm:$0xff] %vm2301, %v2158
        %2510 = vst.msk [vmem:[#allocation2 + $0x10] sm:$0xff] %vm2301, %v2159
        %2511 = vst.msk [vmem:[#allocation2 + $0x18] sm:$0xff] %vm2301, %v2160
        %2512 = vst.msk [vmem:[#allocation2 + $0x20] sm:$0xff] %vm2301, %v2161
        %2513 = vst.msk [vmem:[#allocation2 + $0x28] sm:$0xff] %vm2301, %v2162
        %2514 = vst.msk [vmem:[#allocation2 + $0x30] sm:$0xff] %vm2301, %v2163
        %2515 = vst.msk [vmem:[#allocation2 + $0x38] sm:$0xff] %vm2301, %v2164
        %2516 = vrot.lane.b32.xlu0 %v543, 112
        %v2517 = vpop.permute.xlu0 %2516
        %2518 = vrot.lane.b32.xlu0 %v544, 112
        %v2519 = vpop.permute.xlu0 %2518
        %2520 = vrot.lane.b32.xlu0 %v545, 112
        %v2521 = vpop.permute.xlu0 %2520
        %2522 = vrot.lane.b32.xlu0 %v546, 112
        %v2523 = vpop.permute.xlu0 %2522
        %2524 = vrot.lane.b32.xlu0 %v571, 112
        %v2525 = vpop.permute.xlu0 %2524
        %2526 = vrot.lane.b32.xlu0 %v572, 112
        %v2527 = vpop.permute.xlu0 %2526
        %2528 = vrot.lane.b32.xlu0 %v573, 112
        %v2529 = vpop.permute.xlu0 %2528
        %2530 = vrot.lane.b32.xlu0 %v574, 112
        %v2531 = vpop.permute.xlu0 %2530
        %v2533 = vsel %vm575, %v2517, 0
        %v2536 = vsel %vm575, %v2519, 0
        %v2539 = vsel %vm575, %v2521, 0
        %v2542 = vsel %vm575, %v2523, 0
        %v2545 = vsel %vm575, %v2525, 0
        %v2548 = vsel %vm575, %v2527, 0
        %v2551 = vsel %vm575, %v2529, 0
        %v2554 = vsel %vm575, %v2531, 0
        %2556 = vmatprep.subr.bf16.mxu0 0
        %2557 = vmatpush1.bf16.xpose.msra.mxu0 %v2545
        %2558 = vmatprep.subr.bf16.mxu0 0
        %2559 = vmatpush1.bf16.xpose.msra.mxu0 %v2548
        %2560 = vmatprep.subr.bf16.mxu0 0
        %2561 = vmatpush1.bf16.xpose.msra.mxu0 %v2551
        %2562 = vmatprep.subr.bf16.mxu0 0
        %2563 = vmatpush1.bf16.xpose.msra.mxu0 %v2554
        %2564 = vmatprep.subr.bf16.mxu0 0
        %2565 = vmatpush1.bf16.xpose.msra.mxu0 0
        %2566 = vmatprep.subr.bf16.mxu0 0
        %2567 = vmatpush1.bf16.xpose.msra.mxu0 0
        %2568 = vmatprep.subr.bf16.mxu0 0
        %2569 = vmatpush1.bf16.xpose.msra.mxu0 0
        %2570 = vmatprep.subr.bf16.mxu0 0
        %2571 = vmatpush1.bf16.xpose.msra.mxu0 0
        %2572 = vmatprep.subr.bf16.mxu0 0
        %2573 = vmatpush1.bf16.xpose.msra.mxu0 0
        %2574 = vmatprep.subr.bf16.mxu0 0
        %2575 = vmatpush1.bf16.xpose.msra.mxu0 0
        %2576 = vmatprep.subr.bf16.mxu0 0
        %2577 = vmatpush1.bf16.xpose.msra.mxu0 0
        %2578 = vmatprep.subr.bf16.mxu0 0
        %2579 = vmatpush1.bf16.xpose.msra.mxu0 0
        %2580 = vmatprep.subr.bf16.mxu0 0
        %2581 = vmatpush1.bf16.xpose.msra.mxu0 0
        %2582 = vmatprep.subr.bf16.mxu0 0
        %2583 = vmatpush1.bf16.xpose.msra.mxu0 0
        %2584 = vmatprep.subr.bf16.mxu0 0
        %2585 = vmatpush1.bf16.xpose.msra.mxu0 0
        %2586 = vmatprep.subr.bf16.mxu0 0
        %2587 = vmatpush1.bf16.xpose.msra.mxu0 0
        %2588 = vmatprep.mubr.bf16.mxu0 0
        %2589 = vmatmul.mubr.bf16.gmra.mrb[0].mxu0 %v2533
        %v2590 = vpop.f32.mrb[0].mxu0
        %v2591 = vadd.f32 0.0, %v2590
        %v2592 = vpop.f32.mrb[0].mxu0
        %v2593 = vpop.f32.mrb[0].mxu0
        %v2594 = vadd.f32 0.0, %v2593
        %v2595 = vpop.f32.mrb[0].mxu0
        %2596 = vmatprep.mubr.bf16.mxu0 0
        %2597 = vmatmul.mubr.bf16.gmra.mrb[0].mxu0 %v2536
        %v2598 = vpop.f32.mrb[0].mxu0
        %v2599 = vadd.f32 0.0, %v2598
        %v2600 = vpop.f32.mrb[0].mxu0
        %v2601 = vpop.f32.mrb[0].mxu0
        %v2602 = vadd.f32 0.0, %v2601
        %v2603 = vpop.f32.mrb[0].mxu0
        %2604 = vmatprep.mubr.bf16.mxu0 0
        %2605 = vmatmul.mubr.bf16.gmra.mrb[0].mxu0 %v2539
        %v2606 = vpop.f32.mrb[0].mxu0
        %v2607 = vadd.f32 0.0, %v2606
        %v2608 = vpop.f32.mrb[0].mxu0
        %v2609 = vpop.f32.mrb[0].mxu0
        %v2610 = vadd.f32 0.0, %v2609
        %v2611 = vpop.f32.mrb[0].mxu0
        %2612 = vmatprep.mubr.bf16.mxu0 0
        %2613 = vmatmul.mubr.bf16.gmra.mrb[0].mxu0 %v2542
        %v2614 = vpop.f32.mrb[0].mxu0
        %v2615 = vadd.f32 0.0, %v2614
        %v2616 = vpop.f32.mrb[0].mxu0
        %v2617 = vpop.f32.mrb[0].mxu0
        %v2618 = vadd.f32 0.0, %v2617
        %v2619 = vpop.f32.mrb[0].mxu0
        %2620 = vdwg.mxu0
        %v2621 = vld [vmem:[#allocation2] sm:$0xff]
        %v2622 = vld [vmem:[#allocation2 + $0x8] sm:$0xff]
        %v2623 = vld [vmem:[#allocation2 + $0x10] sm:$0xff]
        %v2624 = vld [vmem:[#allocation2 + $0x18] sm:$0xff]
        %v2625 = vld [vmem:[#allocation2 + $0x20] sm:$0xff]
        %v2626 = vld [vmem:[#allocation2 + $0x28] sm:$0xff]
        %v2627 = vld [vmem:[#allocation2 + $0x30] sm:$0xff]
        %v2628 = vld [vmem:[#allocation2 + $0x38] sm:$0xff]
        %v2629 = vsel %vm673, %v2591, -inf
        %2630 = vmax.xlane.f32.xlu0 %v2629
        %v2631 = vpop.xlane.xlu0 %2630
        %v2632 = vsel %vm673, %v2594, -inf
        %2633 = vmax.xlane.f32.xlu0 %v2632
        %v2634 = vpop.xlane.xlu0 %2633
        %v2635 = vsel %vm673, %v2599, -inf
        %2636 = vmax.xlane.f32.xlu0 %v2635
        %v2637 = vpop.xlane.xlu0 %2636
        %v2638 = vsel %vm673, %v2602, -inf
        %2639 = vmax.xlane.f32.xlu0 %v2638
        %v2640 = vpop.xlane.xlu0 %2639
        %v2641 = vsel %vm673, %v2607, -inf
        %2642 = vmax.xlane.f32.xlu0 %v2641
        %v2643 = vpop.xlane.xlu0 %2642
        %v2644 = vsel %vm673, %v2610, -inf
        %2645 = vmax.xlane.f32.xlu0 %v2644
        %v2646 = vpop.xlane.xlu0 %2645
        %v2647 = vsel %vm673, %v2615, -inf
        %2648 = vmax.xlane.f32.xlu0 %v2647
        %v2649 = vpop.xlane.xlu0 %2648
        %v2650 = vsel %vm673, %v2618, -inf
        %2651 = vmax.xlane.f32.xlu0 %v2650
        %v2652 = vpop.xlane.xlu0 %2651
        %v2653 = vmax.f32 %v2621, %v2631
        %v2654 = vmax.f32 %v2622, %v2634
        %v2655 = vmax.f32 %v2623, %v2637
        %v2656 = vmax.f32 %v2624, %v2640
        %v2657 = vmax.f32 %v2625, %v2643
        %v2658 = vmax.f32 %v2626, %v2646
        %v2659 = vmax.f32 %v2627, %v2649
        %v2660 = vmax.f32 %v2628, %v2652
        %v2661 = vsub.f32 %v2621, %v2653
        %v2662 = vsub.f32 %v2622, %v2654
        %v2663 = vsub.f32 %v2623, %v2655
        %v2664 = vsub.f32 %v2624, %v2656
        %v2665 = vsub.f32 %v2625, %v2657
        %v2666 = vsub.f32 %v2626, %v2658
        %v2667 = vsub.f32 %v2627, %v2659
        %v2668 = vsub.f32 %v2628, %v2660
        %v2669 = vmul.f32 %v2661, 1.442695
        %v2670 = vpow.pop %v2669
        %v2671 = vmul.f32 %v2662, 1.442695
        %v2672 = vpow.pop %v2671
        %v2673 = vmul.f32 %v2663, 1.442695
        %v2674 = vpow.pop %v2673
        %v2675 = vmul.f32 %v2664, 1.442695
        %v2676 = vpow.pop %v2675
        %v2677 = vmul.f32 %v2665, 1.442695
        %v2678 = vpow.pop %v2677
        %v2679 = vmul.f32 %v2666, 1.442695
        %v2680 = vpow.pop %v2679
        %v2681 = vmul.f32 %v2667, 1.442695
        %v2682 = vpow.pop %v2681
        %v2683 = vmul.f32 %v2668, 1.442695
        %v2684 = vpow.pop %v2683
        %2686 = vset.pattern.permute.xlu0 4
        %2687 = vperm.xlu0 %2686, %v2653
        %v2688 = vpop.permute.xlu0 %2687
        %2691 = vset.pattern.permute.xlu0 4
        %2692 = vperm.xlu0 %2691, %v2654
        %v2693 = vpop.permute.xlu0 %2692
        %2696 = vset.pattern.permute.xlu0 4
        %2697 = vperm.xlu0 %2696, %v2655
        %v2698 = vpop.permute.xlu0 %2697
        %2701 = vset.pattern.permute.xlu0 4
        %2702 = vperm.xlu0 %2701, %v2656
        %v2703 = vpop.permute.xlu0 %2702
        %2706 = vset.pattern.permute.xlu0 4
        %2707 = vperm.xlu0 %2706, %v2657
        %v2708 = vpop.permute.xlu0 %2707
        %2711 = vset.pattern.permute.xlu0 4
        %2712 = vperm.xlu0 %2711, %v2658
        %v2713 = vpop.permute.xlu0 %2712
        %2716 = vset.pattern.permute.xlu0 4
        %2717 = vperm.xlu0 %2716, %v2659
        %v2718 = vpop.permute.xlu0 %2717
        %2721 = vset.pattern.permute.xlu0 4
        %2722 = vperm.xlu0 %2721, %v2660
        %v2723 = vpop.permute.xlu0 %2722
        %v2725 = vsub.f32 %v2591, %v2688
        %v2726 = vsub.f32 %v2594, %v2693
        %v2727 = vsub.f32 %v2599, %v2698
        %v2728 = vsub.f32 %v2602, %v2703
        %v2729 = vsub.f32 %v2607, %v2708
        %v2730 = vsub.f32 %v2610, %v2713
        %v2731 = vsub.f32 %v2615, %v2718
        %v2732 = vsub.f32 %v2618, %v2723
        %v2733 = vmul.f32 %v2725, 1.442695
        %v2734 = vpow.pop %v2733
        %v2735 = vmul.f32 %v2726, 1.442695
        %v2736 = vpow.pop %v2735
        %v2737 = vmul.f32 %v2727, 1.442695
        %v2738 = vpow.pop %v2737
        %v2739 = vmul.f32 %v2728, 1.442695
        %v2740 = vpow.pop %v2739
        %v2741 = vmul.f32 %v2729, 1.442695
        %v2742 = vpow.pop %v2741
        %v2743 = vmul.f32 %v2730, 1.442695
        %v2744 = vpow.pop %v2743
        %v2745 = vmul.f32 %v2731, 1.442695
        %v2746 = vpow.pop %v2745
        %v2747 = vmul.f32 %v2732, 1.442695
        %v2748 = vpow.pop %v2747
        %v2749 = vld [vmem:[#allocation3] sm:$0xff]
        %v2750 = vld [vmem:[#allocation3 + $0x8] sm:$0xff]
        %v2751 = vld [vmem:[#allocation3 + $0x10] sm:$0xff]
        %v2752 = vld [vmem:[#allocation3 + $0x18] sm:$0xff]
        %v2753 = vld [vmem:[#allocation3 + $0x20] sm:$0xff]
        %v2754 = vld [vmem:[#allocation3 + $0x28] sm:$0xff]
        %v2755 = vld [vmem:[#allocation3 + $0x30] sm:$0xff]
        %v2756 = vld [vmem:[#allocation3 + $0x38] sm:$0xff]
        %v2757 = vmul.f32 %v2670, %v2749
        %v2758 = vmul.f32 %v2672, %v2750
        %v2759 = vmul.f32 %v2674, %v2751
        %v2760 = vmul.f32 %v2676, %v2752
        %v2761 = vmul.f32 %v2678, %v2753
        %v2762 = vmul.f32 %v2680, %v2754
        %v2763 = vmul.f32 %v2682, %v2755
        %v2764 = vmul.f32 %v2684, %v2756
        %v2765 = vsel %vm673, %v2734, 0.0
        %2766 = vadd.xlane.f32.xlu0 %v2765
        %v2767 = vpop.xlane.xlu0 %2766
        %v2768 = vsel %vm673, %v2736, 0.0
        %2769 = vadd.xlane.f32.xlu0 %v2768
        %v2770 = vpop.xlane.xlu0 %2769
        %v2771 = vsel %vm673, %v2738, 0.0
        %2772 = vadd.xlane.f32.xlu0 %v2771
        %v2773 = vpop.xlane.xlu0 %2772
        %v2774 = vsel %vm673, %v2740, 0.0
        %2775 = vadd.xlane.f32.xlu0 %v2774
        %v2776 = vpop.xlane.xlu0 %2775
        %v2777 = vsel %vm673, %v2742, 0.0
        %2778 = vadd.xlane.f32.xlu0 %v2777
        %v2779 = vpop.xlane.xlu0 %2778
        %v2780 = vsel %vm673, %v2744, 0.0
        %2781 = vadd.xlane.f32.xlu0 %v2780
        %v2782 = vpop.xlane.xlu0 %2781
        %v2783 = vsel %vm673, %v2746, 0.0
        %2784 = vadd.xlane.f32.xlu0 %v2783
        %v2785 = vpop.xlane.xlu0 %2784
        %v2786 = vsel %vm673, %v2748, 0.0
        %2787 = vadd.xlane.f32.xlu0 %v2786
        %v2788 = vpop.xlane.xlu0 %2787
        %v2789 = vadd.f32 %v2757, %v2767
        %v2790 = vadd.f32 %v2758, %v2770
        %v2791 = vadd.f32 %v2759, %v2773
        %v2792 = vadd.f32 %v2760, %v2776
        %v2793 = vadd.f32 %v2761, %v2779
        %v2794 = vadd.f32 %v2762, %v2782
        %v2795 = vadd.f32 %v2763, %v2785
        %v2796 = vadd.f32 %v2764, %v2788
        %vm2797 = vcmask 39968
        %2798 = vst.msk [vmem:[#allocation3] sm:$0xff] %vm2797, %v2789
        %2799 = vst.msk [vmem:[#allocation3 + $0x8] sm:$0xff] %vm2797, %v2790
        %2800 = vst.msk [vmem:[#allocation3 + $0x10] sm:$0xff] %vm2797, %v2791
        %2801 = vst.msk [vmem:[#allocation3 + $0x18] sm:$0xff] %vm2797, %v2792
        %2802 = vst.msk [vmem:[#allocation3 + $0x20] sm:$0xff] %vm2797, %v2793
        %2803 = vst.msk [vmem:[#allocation3 + $0x28] sm:$0xff] %vm2797, %v2794
        %2804 = vst.msk [vmem:[#allocation3 + $0x30] sm:$0xff] %vm2797, %v2795
        %2805 = vst.msk [vmem:[#allocation3 + $0x38] sm:$0xff] %vm2797, %v2796
        %v2806 = vld [vmem:[#allocation4] sm:$0xff]
        %v2807 = vld [vmem:[#allocation4 + $0x8] sm:$0xff]
        %v2808 = vld [vmem:[#allocation4 + $0x10] sm:$0xff]
        %v2809 = vld [vmem:[#allocation4 + $0x18] sm:$0xff]
        %v2810 = vld [vmem:[#allocation4 + $0x20] sm:$0xff]
        %v2811 = vld [vmem:[#allocation4 + $0x28] sm:$0xff]
        %v2812 = vld [vmem:[#allocation4 + $0x30] sm:$0xff]
        %v2813 = vld [vmem:[#allocation4 + $0x38] sm:$0xff]
        %2815 = vset.pattern.permute.xlu0 4
        %2816 = vperm.xlu0 %2815, %v2670
        %v2817 = vpop.permute.xlu0 %2816
        %2820 = vset.pattern.permute.xlu0 4
        %2821 = vperm.xlu0 %2820, %v2672
        %v2822 = vpop.permute.xlu0 %2821
        %2825 = vset.pattern.permute.xlu0 4
        %2826 = vperm.xlu0 %2825, %v2674
        %v2827 = vpop.permute.xlu0 %2826
        %2830 = vset.pattern.permute.xlu0 4
        %2831 = vperm.xlu0 %2830, %v2676
        %v2832 = vpop.permute.xlu0 %2831
        %2835 = vset.pattern.permute.xlu0 4
        %2836 = vperm.xlu0 %2835, %v2678
        %v2837 = vpop.permute.xlu0 %2836
        %2840 = vset.pattern.permute.xlu0 4
        %2841 = vperm.xlu0 %2840, %v2680
        %v2842 = vpop.permute.xlu0 %2841
        %2845 = vset.pattern.permute.xlu0 4
        %2846 = vperm.xlu0 %2845, %v2682
        %v2847 = vpop.permute.xlu0 %2846
        %2850 = vset.pattern.permute.xlu0 4
        %2851 = vperm.xlu0 %2850, %v2684
        %v2852 = vpop.permute.xlu0 %2851
        %v2854 = vmul.f32 %v2817, %v2806
        %v2855 = vmul.f32 %v2822, %v2807
        %v2856 = vmul.f32 %v2827, %v2808
        %v2857 = vmul.f32 %v2832, %v2809
        %v2858 = vmul.f32 %v2837, %v2810
        %v2859 = vmul.f32 %v2842, %v2811
        %v2860 = vmul.f32 %v2847, %v2812
        %v2861 = vmul.f32 %v2852, %v2813
        %v2862 = vpack.c.bf16 %v2736, %v2734
        %v2863 = vpack.c.bf16 %v2740, %v2738
        %v2864 = vpack.c.bf16 %v2744, %v2742
        %v2865 = vpack.c.bf16 %v2748, %v2746
        %2866 = vrot.lane.b32.xlu0 %v571, 80
        %v2867 = vpop.permute.xlu0 %2866
        %2868 = vrot.lane.b32.xlu0 %v572, 80
        %v2869 = vpop.permute.xlu0 %2868
        %2870 = vrot.lane.b32.xlu0 %v573, 80
        %v2871 = vpop.permute.xlu0 %2870
        %2872 = vrot.lane.b32.xlu0 %v574, 80
        %v2873 = vpop.permute.xlu0 %2872
        %v2879 = vsel %vm673, %v2862, 0
        %v2882 = vsel %vm673, %v2863, 0
        %v2885 = vsel %vm673, %v2864, 0
        %v2888 = vsel %vm673, %v2865, 0
        %2890 = vmatprep.subr.bf16.mxu0 0
        %2891 = vmatpush1.bf16.msra.mxu0 %v2867
        %2892 = vmatprep.subr.bf16.mxu0 0
        %2893 = vmatpush1.bf16.msra.mxu0 %v2869
        %2894 = vmatprep.subr.bf16.mxu0 0
        %2895 = vmatpush1.bf16.msra.mxu0 %v2871
        %2896 = vmatprep.subr.bf16.mxu0 0
        %2897 = vmatpush1.bf16.msra.mxu0 %v2873
        %2898 = vmatprep.subr.bf16.mxu0 0
        %2899 = vmatpush1.bf16.msra.mxu0 0
        %2900 = vmatprep.subr.bf16.mxu0 0
        %2901 = vmatpush1.bf16.msra.mxu0 0
        %2902 = vmatprep.subr.bf16.mxu0 0
        %2903 = vmatpush1.bf16.msra.mxu0 0
        %2904 = vmatprep.subr.bf16.mxu0 0
        %2905 = vmatpush1.bf16.msra.mxu0 0
        %2906 = vmatprep.subr.bf16.mxu0 0
        %2907 = vmatpush1.bf16.msra.mxu0 0
        %2908 = vmatprep.subr.bf16.mxu0 0
        %2909 = vmatpush1.bf16.msra.mxu0 0
        %2910 = vmatprep.subr.bf16.mxu0 0
        %2911 = vmatpush1.bf16.msra.mxu0 0
        %2912 = vmatprep.subr.bf16.mxu0 0
        %2913 = vmatpush1.bf16.msra.mxu0 0
        %2914 = vmatprep.subr.bf16.mxu0 0
        %2915 = vmatpush1.bf16.msra.mxu0 0
        %2916 = vmatprep.subr.bf16.mxu0 0
        %2917 = vmatpush1.bf16.msra.mxu0 0
        %2918 = vmatprep.subr.bf16.mxu0 0
        %2919 = vmatpush1.bf16.msra.mxu0 0
        %2920 = vmatprep.subr.bf16.mxu0 0
        %2921 = vmatpush1.bf16.msra.mxu0 0
        %2922 = vmatprep.mubr.bf16.mxu0 0
        %2923 = vmatmul.mubr.bf16.gmra.mrb[0].mxu0 %v2879
        %v2924 = vpop.f32.mrb[0].mxu0
        %v2925 = vadd.f32 0.0, %v2924
        %v2926 = vpop.f32.mrb[0].mxu0
        %v2927 = vpop.f32.mrb[0].mxu0
        %v2928 = vadd.f32 0.0, %v2927
        %v2929 = vpop.f32.mrb[0].mxu0
        %2930 = vmatprep.mubr.bf16.mxu0 0
        %2931 = vmatmul.mubr.bf16.gmra.mrb[0].mxu0 %v2882
        %v2932 = vpop.f32.mrb[0].mxu0
        %v2933 = vadd.f32 0.0, %v2932
        %v2934 = vpop.f32.mrb[0].mxu0
        %v2935 = vpop.f32.mrb[0].mxu0
        %v2936 = vadd.f32 0.0, %v2935
        %v2937 = vpop.f32.mrb[0].mxu0
        %2938 = vmatprep.mubr.bf16.mxu0 0
        %2939 = vmatmul.mubr.bf16.gmra.mrb[0].mxu0 %v2885
        %v2940 = vpop.f32.mrb[0].mxu0
        %v2941 = vadd.f32 0.0, %v2940
        %v2942 = vpop.f32.mrb[0].mxu0
        %v2943 = vpop.f32.mrb[0].mxu0
        %v2944 = vadd.f32 0.0, %v2943
        %v2945 = vpop.f32.mrb[0].mxu0
        %2946 = vmatprep.mubr.bf16.mxu0 0
        %2947 = vmatmul.mubr.bf16.gmra.mrb[0].mxu0 %v2888
        %v2948 = vpop.f32.mrb[0].mxu0
        %v2949 = vadd.f32 0.0, %v2948
        %v2950 = vpop.f32.mrb[0].mxu0
        %v2951 = vpop.f32.mrb[0].mxu0
        %v2952 = vadd.f32 0.0, %v2951
        %v2953 = vpop.f32.mrb[0].mxu0
        %2954 = vdwg.mxu0
        %2963 = vrot.lane.b32.xlu0 %v2925, 16
        %v2964 = vpop.permute.xlu0 %2963
        %2965 = vrot.lane.b32.xlu0 %v2928, 16
        %v2966 = vpop.permute.xlu0 %2965
        %2967 = vrot.lane.b32.xlu0 %v2933, 16
        %v2968 = vpop.permute.xlu0 %2967
        %2969 = vrot.lane.b32.xlu0 %v2936, 16
        %v2970 = vpop.permute.xlu0 %2969
        %2971 = vrot.lane.b32.xlu0 %v2941, 16
        %v2972 = vpop.permute.xlu0 %2971
        %2973 = vrot.lane.b32.xlu0 %v2944, 16
        %v2974 = vpop.permute.xlu0 %2973
        %2975 = vrot.lane.b32.xlu0 %v2949, 16
        %v2976 = vpop.permute.xlu0 %2975
        %2977 = vrot.lane.b32.xlu0 %v2952, 16
        %v2978 = vpop.permute.xlu0 %2977
        %v2987 = vadd.f32 %v2854, %v2964
        %v2988 = vadd.f32 %v2855, %v2966
        %v2989 = vadd.f32 %v2856, %v2968
        %v2990 = vadd.f32 %v2857, %v2970
        %v2991 = vadd.f32 %v2858, %v2972
        %v2992 = vadd.f32 %v2859, %v2974
        %v2993 = vadd.f32 %v2860, %v2976
        %v2994 = vadd.f32 %v2861, %v2978
        %vm2995 = vcmask 162944
        %2996 = vst.msk [vmem:[#allocation4] sm:$0xff] %vm2995, %v2987
        %2997 = vst.msk [vmem:[#allocation4 + $0x8] sm:$0xff] %vm2995, %v2988
        %2998 = vst.msk [vmem:[#allocation4 + $0x10] sm:$0xff] %vm2995, %v2989
        %2999 = vst.msk [vmem:[#allocation4 + $0x18] sm:$0xff] %vm2995, %v2990
        %3000 = vst.msk [vmem:[#allocation4 + $0x20] sm:$0xff] %vm2995, %v2991
        %3001 = vst.msk [vmem:[#allocation4 + $0x28] sm:$0xff] %vm2995, %v2992
        %3002 = vst.msk [vmem:[#allocation4 + $0x30] sm:$0xff] %vm2995, %v2993
        %3003 = vst.msk [vmem:[#allocation4 + $0x38] sm:$0xff] %vm2995, %v2994
        %3004 = vst.msk [vmem:[#allocation2] sm:$0xff] %vm2797, %v2653
        %3005 = vst.msk [vmem:[#allocation2 + $0x8] sm:$0xff] %vm2797, %v2654
        %3006 = vst.msk [vmem:[#allocation2 + $0x10] sm:$0xff] %vm2797, %v2655
        %3007 = vst.msk [vmem:[#allocation2 + $0x18] sm:$0xff] %vm2797, %v2656
        %3008 = vst.msk [vmem:[#allocation2 + $0x20] sm:$0xff] %vm2797, %v2657
        %3009 = vst.msk [vmem:[#allocation2 + $0x28] sm:$0xff] %vm2797, %v2658
        %3010 = vst.msk [vmem:[#allocation2 + $0x30] sm:$0xff] %vm2797, %v2659
        %3011 = vst.msk [vmem:[#allocation2 + $0x38] sm:$0xff] %vm2797, %v2660
        %3012 = vrot.lane.b32.xlu0 %v543, 108
        %v3013 = vpop.permute.xlu0 %3012
        %3014 = vrot.lane.b32.xlu0 %v544, 108
        %v3015 = vpop.permute.xlu0 %3014
        %3016 = vrot.lane.b32.xlu0 %v545, 108
        %v3017 = vpop.permute.xlu0 %3016
        %3018 = vrot.lane.b32.xlu0 %v546, 108
        %v3019 = vpop.permute.xlu0 %3018
        %3020 = vrot.lane.b32.xlu0 %v571, 108
        %v3021 = vpop.permute.xlu0 %3020
        %3022 = vrot.lane.b32.xlu0 %v572, 108
        %v3023 = vpop.permute.xlu0 %3022
        %3024 = vrot.lane.b32.xlu0 %v573, 108
        %v3025 = vpop.permute.xlu0 %3024
        %3026 = vrot.lane.b32.xlu0 %v574, 108
        %v3027 = vpop.permute.xlu0 %3026
        %v3029 = vsel %vm575, %v3013, 0
        %v3032 = vsel %vm575, %v3015, 0
        %v3035 = vsel %vm575, %v3017, 0
        %v3038 = vsel %vm575, %v3019, 0
        %v3041 = vsel %vm575, %v3021, 0
        %v3044 = vsel %vm575, %v3023, 0
        %v3047 = vsel %vm575, %v3025, 0
        %v3050 = vsel %vm575, %v3027, 0
        %3052 = vmatprep.subr.bf16.mxu0 0
        %3053 = vmatpush1.bf16.xpose.msra.mxu0 %v3041
        %3054 = vmatprep.subr.bf16.mxu0 0
        %3055 = vmatpush1.bf16.xpose.msra.mxu0 %v3044
        %3056 = vmatprep.subr.bf16.mxu0 0
        %3057 = vmatpush1.bf16.xpose.msra.mxu0 %v3047
        %3058 = vmatprep.subr.bf16.mxu0 0
        %3059 = vmatpush1.bf16.xpose.msra.mxu0 %v3050
        %3060 = vmatprep.subr.bf16.mxu0 0
        %3061 = vmatpush1.bf16.xpose.msra.mxu0 0
        %3062 = vmatprep.subr.bf16.mxu0 0
        %3063 = vmatpush1.bf16.xpose.msra.mxu0 0
        %3064 = vmatprep.subr.bf16.mxu0 0
        %3065 = vmatpush1.bf16.xpose.msra.mxu0 0
        %3066 = vmatprep.subr.bf16.mxu0 0
        %3067 = vmatpush1.bf16.xpose.msra.mxu0 0
        %3068 = vmatprep.subr.bf16.mxu0 0
        %3069 = vmatpush1.bf16.xpose.msra.mxu0 0
        %3070 = vmatprep.subr.bf16.mxu0 0
        %3071 = vmatpush1.bf16.xpose.msra.mxu0 0
        %3072 = vmatprep.subr.bf16.mxu0 0
        %3073 = vmatpush1.bf16.xpose.msra.mxu0 0
        %3074 = vmatprep.subr.bf16.mxu0 0
        %3075 = vmatpush1.bf16.xpose.msra.mxu0 0
        %3076 = vmatprep.subr.bf16.mxu0 0
        %3077 = vmatpush1.bf16.xpose.msra.mxu0 0
        %3078 = vmatprep.subr.bf16.mxu0 0
        %3079 = vmatpush1.bf16.xpose.msra.mxu0 0
        %3080 = vmatprep.subr.bf16.mxu0 0
        %3081 = vmatpush1.bf16.xpose.msra.mxu0 0
        %3082 = vmatprep.subr.bf16.mxu0 0
        %3083 = vmatpush1.bf16.xpose.msra.mxu0 0
        %3084 = vmatprep.mubr.bf16.mxu0 0
        %3085 = vmatmul.mubr.bf16.gmra.mrb[0].mxu0 %v3029
        %v3086 = vpop.f32.mrb[0].mxu0
        %v3087 = vadd.f32 0.0, %v3086
        %v3088 = vpop.f32.mrb[0].mxu0
        %v3089 = vpop.f32.mrb[0].mxu0
        %v3090 = vadd.f32 0.0, %v3089
        %v3091 = vpop.f32.mrb[0].mxu0
        %3092 = vmatprep.mubr.bf16.mxu0 0
        %3093 = vmatmul.mubr.bf16.gmra.mrb[0].mxu0 %v3032
        %v3094 = vpop.f32.mrb[0].mxu0
        %v3095 = vadd.f32 0.0, %v3094
        %v3096 = vpop.f32.mrb[0].mxu0
        %v3097 = vpop.f32.mrb[0].mxu0
        %v3098 = vadd.f32 0.0, %v3097
        %v3099 = vpop.f32.mrb[0].mxu0
        %3100 = vmatprep.mubr.bf16.mxu0 0
        %3101 = vmatmul.mubr.bf16.gmra.mrb[0].mxu0 %v3035
        %v3102 = vpop.f32.mrb[0].mxu0
        %v3103 = vadd.f32 0.0, %v3102
        %v3104 = vpop.f32.mrb[0].mxu0
        %v3105 = vpop.f32.mrb[0].mxu0
        %v3106 = vadd.f32 0.0, %v3105
        %v3107 = vpop.f32.mrb[0].mxu0
        %3108 = vmatprep.mubr.bf16.mxu0 0
        %3109 = vmatmul.mubr.bf16.gmra.mrb[0].mxu0 %v3038
        %v3110 = vpop.f32.mrb[0].mxu0
        %v3111 = vadd.f32 0.0, %v3110
        %v3112 = vpop.f32.mrb[0].mxu0
        %v3113 = vpop.f32.mrb[0].mxu0
        %v3114 = vadd.f32 0.0, %v3113
        %v3115 = vpop.f32.mrb[0].mxu0
        %3116 = vdwg.mxu0
        %v3117 = vld [vmem:[#allocation2] sm:$0xff]
        %v3118 = vld [vmem:[#allocation2 + $0x8] sm:$0xff]
        %v3119 = vld [vmem:[#allocation2 + $0x10] sm:$0xff]
        %v3120 = vld [vmem:[#allocation2 + $0x18] sm:$0xff]
        %v3121 = vld [vmem:[#allocation2 + $0x20] sm:$0xff]
        %v3122 = vld [vmem:[#allocation2 + $0x28] sm:$0xff]
        %v3123 = vld [vmem:[#allocation2 + $0x30] sm:$0xff]
        %v3124 = vld [vmem:[#allocation2 + $0x38] sm:$0xff]
        %v3125 = vsel %vm673, %v3087, -inf
        %3126 = vmax.xlane.f32.xlu0 %v3125
        %v3127 = vpop.xlane.xlu0 %3126
        %v3128 = vsel %vm673, %v3090, -inf
        %3129 = vmax.xlane.f32.xlu0 %v3128
        %v3130 = vpop.xlane.xlu0 %3129
        %v3131 = vsel %vm673, %v3095, -inf
        %3132 = vmax.xlane.f32.xlu0 %v3131
        %v3133 = vpop.xlane.xlu0 %3132
        %v3134 = vsel %vm673, %v3098, -inf
        %3135 = vmax.xlane.f32.xlu0 %v3134
        %v3136 = vpop.xlane.xlu0 %3135
        %v3137 = vsel %vm673, %v3103, -inf
        %3138 = vmax.xlane.f32.xlu0 %v3137
        %v3139 = vpop.xlane.xlu0 %3138
        %v3140 = vsel %vm673, %v3106, -inf
        %3141 = vmax.xlane.f32.xlu0 %v3140
        %v3142 = vpop.xlane.xlu0 %3141
        %v3143 = vsel %vm673, %v3111, -inf
        %3144 = vmax.xlane.f32.xlu0 %v3143
        %v3145 = vpop.xlane.xlu0 %3144
        %v3146 = vsel %vm673, %v3114, -inf
        %3147 = vmax.xlane.f32.xlu0 %v3146
        %v3148 = vpop.xlane.xlu0 %3147
        %v3149 = vmax.f32 %v3117, %v3127
        %v3150 = vmax.f32 %v3118, %v3130
        %v3151 = vmax.f32 %v3119, %v3133
        %v3152 = vmax.f32 %v3120, %v3136
        %v3153 = vmax.f32 %v3121, %v3139
        %v3154 = vmax.f32 %v3122, %v3142
        %v3155 = vmax.f32 %v3123, %v3145
        %v3156 = vmax.f32 %v3124, %v3148
        %v3157 = vsub.f32 %v3117, %v3149
        %v3158 = vsub.f32 %v3118, %v3150
        %v3159 = vsub.f32 %v3119, %v3151
        %v3160 = vsub.f32 %v3120, %v3152
        %v3161 = vsub.f32 %v3121, %v3153
        %v3162 = vsub.f32 %v3122, %v3154
        %v3163 = vsub.f32 %v3123, %v3155
        %v3164 = vsub.f32 %v3124, %v3156
        %v3165 = vmul.f32 %v3157, 1.442695
        %v3166 = vpow.pop %v3165
        %v3167 = vmul.f32 %v3158, 1.442695
        %v3168 = vpow.pop %v3167
        %v3169 = vmul.f32 %v3159, 1.442695
        %v3170 = vpow.pop %v3169
        %v3171 = vmul.f32 %v3160, 1.442695
        %v3172 = vpow.pop %v3171
        %v3173 = vmul.f32 %v3161, 1.442695
        %v3174 = vpow.pop %v3173
        %v3175 = vmul.f32 %v3162, 1.442695
        %v3176 = vpow.pop %v3175
        %v3177 = vmul.f32 %v3163, 1.442695
        %v3178 = vpow.pop %v3177
        %v3179 = vmul.f32 %v3164, 1.442695
        %v3180 = vpow.pop %v3179
        %3182 = vset.pattern.permute.xlu0 5
        %3183 = vperm.xlu0 %3182, %v3149
        %v3184 = vpop.permute.xlu0 %3183
        %3187 = vset.pattern.permute.xlu0 5
        %3188 = vperm.xlu0 %3187, %v3150
        %v3189 = vpop.permute.xlu0 %3188
        %3192 = vset.pattern.permute.xlu0 5
        %3193 = vperm.xlu0 %3192, %v3151
        %v3194 = vpop.permute.xlu0 %3193
        %3197 = vset.pattern.permute.xlu0 5
        %3198 = vperm.xlu0 %3197, %v3152
        %v3199 = vpop.permute.xlu0 %3198
        %3202 = vset.pattern.permute.xlu0 5
        %3203 = vperm.xlu0 %3202, %v3153
        %v3204 = vpop.permute.xlu0 %3203
        %3207 = vset.pattern.permute.xlu0 5
        %3208 = vperm.xlu0 %3207, %v3154
        %v3209 = vpop.permute.xlu0 %3208
        %3212 = vset.pattern.permute.xlu0 5
        %3213 = vperm.xlu0 %3212, %v3155
        %v3214 = vpop.permute.xlu0 %3213
        %3217 = vset.pattern.permute.xlu0 5
        %3218 = vperm.xlu0 %3217, %v3156
        %v3219 = vpop.permute.xlu0 %3218
        %v3221 = vsub.f32 %v3087, %v3184
        %v3222 = vsub.f32 %v3090, %v3189
        %v3223 = vsub.f32 %v3095, %v3194
        %v3224 = vsub.f32 %v3098, %v3199
        %v3225 = vsub.f32 %v3103, %v3204
        %v3226 = vsub.f32 %v3106, %v3209
        %v3227 = vsub.f32 %v3111, %v3214
        %v3228 = vsub.f32 %v3114, %v3219
        %v3229 = vmul.f32 %v3221, 1.442695
        %v3230 = vpow.pop %v3229
        %v3231 = vmul.f32 %v3222, 1.442695
        %v3232 = vpow.pop %v3231
        %v3233 = vmul.f32 %v3223, 1.442695
        %v3234 = vpow.pop %v3233
        %v3235 = vmul.f32 %v3224, 1.442695
        %v3236 = vpow.pop %v3235
        %v3237 = vmul.f32 %v3225, 1.442695
        %v3238 = vpow.pop %v3237
        %v3239 = vmul.f32 %v3226, 1.442695
        %v3240 = vpow.pop %v3239
        %v3241 = vmul.f32 %v3227, 1.442695
        %v3242 = vpow.pop %v3241
        %v3243 = vmul.f32 %v3228, 1.442695
        %v3244 = vpow.pop %v3243
        %v3245 = vld [vmem:[#allocation3] sm:$0xff]
        %v3246 = vld [vmem:[#allocation3 + $0x8] sm:$0xff]
        %v3247 = vld [vmem:[#allocation3 + $0x10] sm:$0xff]
        %v3248 = vld [vmem:[#allocation3 + $0x18] sm:$0xff]
        %v3249 = vld [vmem:[#allocation3 + $0x20] sm:$0xff]
        %v3250 = vld [vmem:[#allocation3 + $0x28] sm:$0xff]
        %v3251 = vld [vmem:[#allocation3 + $0x30] sm:$0xff]
        %v3252 = vld [vmem:[#allocation3 + $0x38] sm:$0xff]
        %v3253 = vmul.f32 %v3166, %v3245
        %v3254 = vmul.f32 %v3168, %v3246
        %v3255 = vmul.f32 %v3170, %v3247
        %v3256 = vmul.f32 %v3172, %v3248
        %v3257 = vmul.f32 %v3174, %v3249
        %v3258 = vmul.f32 %v3176, %v3250
        %v3259 = vmul.f32 %v3178, %v3251
        %v3260 = vmul.f32 %v3180, %v3252
        %v3261 = vsel %vm673, %v3230, 0.0
        %3262 = vadd.xlane.f32.xlu0 %v3261
        %v3263 = vpop.xlane.xlu0 %3262
        %v3264 = vsel %vm673, %v3232, 0.0
        %3265 = vadd.xlane.f32.xlu0 %v3264
        %v3266 = vpop.xlane.xlu0 %3265
        %v3267 = vsel %vm673, %v3234, 0.0
        %3268 = vadd.xlane.f32.xlu0 %v3267
        %v3269 = vpop.xlane.xlu0 %3268
        %v3270 = vsel %vm673, %v3236, 0.0
        %3271 = vadd.xlane.f32.xlu0 %v3270
        %v3272 = vpop.xlane.xlu0 %3271
        %v3273 = vsel %vm673, %v3238, 0.0
        %3274 = vadd.xlane.f32.xlu0 %v3273
        %v3275 = vpop.xlane.xlu0 %3274
        %v3276 = vsel %vm673, %v3240, 0.0
        %3277 = vadd.xlane.f32.xlu0 %v3276
        %v3278 = vpop.xlane.xlu0 %3277
        %v3279 = vsel %vm673, %v3242, 0.0
        %3280 = vadd.xlane.f32.xlu0 %v3279
        %v3281 = vpop.xlane.xlu0 %3280
        %v3282 = vsel %vm673, %v3244, 0.0
        %3283 = vadd.xlane.f32.xlu0 %v3282
        %v3284 = vpop.xlane.xlu0 %3283
        %v3285 = vadd.f32 %v3253, %v3263
        %v3286 = vadd.f32 %v3254, %v3266
        %v3287 = vadd.f32 %v3255, %v3269
        %v3288 = vadd.f32 %v3256, %v3272
        %v3289 = vadd.f32 %v3257, %v3275
        %v3290 = vadd.f32 %v3258, %v3278
        %v3291 = vadd.f32 %v3259, %v3281
        %v3292 = vadd.f32 %v3260, %v3284
        %vm3293 = vcmask 48168
        %3294 = vst.msk [vmem:[#allocation3] sm:$0xff] %vm3293, %v3285
        %3295 = vst.msk [vmem:[#allocation3 + $0x8] sm:$0xff] %vm3293, %v3286
        %3296 = vst.msk [vmem:[#allocation3 + $0x10] sm:$0xff] %vm3293, %v3287
        %3297 = vst.msk [vmem:[#allocation3 + $0x18] sm:$0xff] %vm3293, %v3288
        %3298 = vst.msk [vmem:[#allocation3 + $0x20] sm:$0xff] %vm3293, %v3289
        %3299 = vst.msk [vmem:[#allocation3 + $0x28] sm:$0xff] %vm3293, %v3290
        %3300 = vst.msk [vmem:[#allocation3 + $0x30] sm:$0xff] %vm3293, %v3291
        %3301 = vst.msk [vmem:[#allocation3 + $0x38] sm:$0xff] %vm3293, %v3292
        %v3302 = vld [vmem:[#allocation4] sm:$0xff]
        %v3303 = vld [vmem:[#allocation4 + $0x8] sm:$0xff]
        %v3304 = vld [vmem:[#allocation4 + $0x10] sm:$0xff]
        %v3305 = vld [vmem:[#allocation4 + $0x18] sm:$0xff]
        %v3306 = vld [vmem:[#allocation4 + $0x20] sm:$0xff]
        %v3307 = vld [vmem:[#allocation4 + $0x28] sm:$0xff]
        %v3308 = vld [vmem:[#allocation4 + $0x30] sm:$0xff]
        %v3309 = vld [vmem:[#allocation4 + $0x38] sm:$0xff]
        %3311 = vset.pattern.permute.xlu0 5
        %3312 = vperm.xlu0 %3311, %v3166
        %v3313 = vpop.permute.xlu0 %3312
        %3316 = vset.pattern.permute.xlu0 5
        %3317 = vperm.xlu0 %3316, %v3168
        %v3318 = vpop.permute.xlu0 %3317
        %3321 = vset.pattern.permute.xlu0 5
        %3322 = vperm.xlu0 %3321, %v3170
        %v3323 = vpop.permute.xlu0 %3322
        %3326 = vset.pattern.permute.xlu0 5
        %3327 = vperm.xlu0 %3326, %v3172
        %v3328 = vpop.permute.xlu0 %3327
        %3331 = vset.pattern.permute.xlu0 5
        %3332 = vperm.xlu0 %3331, %v3174
        %v3333 = vpop.permute.xlu0 %3332
        %3336 = vset.pattern.permute.xlu0 5
        %3337 = vperm.xlu0 %3336, %v3176
        %v3338 = vpop.permute.xlu0 %3337
        %3341 = vset.pattern.permute.xlu0 5
        %3342 = vperm.xlu0 %3341, %v3178
        %v3343 = vpop.permute.xlu0 %3342
        %3346 = vset.pattern.permute.xlu0 5
        %3347 = vperm.xlu0 %3346, %v3180
        %v3348 = vpop.permute.xlu0 %3347
        %v3350 = vmul.f32 %v3313, %v3302
        %v3351 = vmul.f32 %v3318, %v3303
        %v3352 = vmul.f32 %v3323, %v3304
        %v3353 = vmul.f32 %v3328, %v3305
        %v3354 = vmul.f32 %v3333, %v3306
        %v3355 = vmul.f32 %v3338, %v3307
        %v3356 = vmul.f32 %v3343, %v3308
        %v3357 = vmul.f32 %v3348, %v3309
        %v3358 = vpack.c.bf16 %v3232, %v3230
        %v3359 = vpack.c.bf16 %v3236, %v3234
        %v3360 = vpack.c.bf16 %v3240, %v3238
        %v3361 = vpack.c.bf16 %v3244, %v3242
        %3362 = vrot.lane.b32.xlu0 %v571, 76
        %v3363 = vpop.permute.xlu0 %3362
        %3364 = vrot.lane.b32.xlu0 %v572, 76
        %v3365 = vpop.permute.xlu0 %3364
        %3366 = vrot.lane.b32.xlu0 %v573, 76
        %v3367 = vpop.permute.xlu0 %3366
        %3368 = vrot.lane.b32.xlu0 %v574, 76
        %v3369 = vpop.permute.xlu0 %3368
        %v3375 = vsel %vm673, %v3358, 0
        %v3378 = vsel %vm673, %v3359, 0
        %v3381 = vsel %vm673, %v3360, 0
        %v3384 = vsel %vm673, %v3361, 0
        %3386 = vmatprep.subr.bf16.mxu0 0
        %3387 = vmatpush1.bf16.msra.mxu0 %v3363
        %3388 = vmatprep.subr.bf16.mxu0 0
        %3389 = vmatpush1.bf16.msra.mxu0 %v3365
        %3390 = vmatprep.subr.bf16.mxu0 0
        %3391 = vmatpush1.bf16.msra.mxu0 %v3367
        %3392 = vmatprep.subr.bf16.mxu0 0
        %3393 = vmatpush1.bf16.msra.mxu0 %v3369
        %3394 = vmatprep.subr.bf16.mxu0 0
        %3395 = vmatpush1.bf16.msra.mxu0 0
        %3396 = vmatprep.subr.bf16.mxu0 0
        %3397 = vmatpush1.bf16.msra.mxu0 0
        %3398 = vmatprep.subr.bf16.mxu0 0
        %3399 = vmatpush1.bf16.msra.mxu0 0
        %3400 = vmatprep.subr.bf16.mxu0 0
        %3401 = vmatpush1.bf16.msra.mxu0 0
        %3402 = vmatprep.subr.bf16.mxu0 0
        %3403 = vmatpush1.bf16.msra.mxu0 0
        %3404 = vmatprep.subr.bf16.mxu0 0
        %3405 = vmatpush1.bf16.msra.mxu0 0
        %3406 = vmatprep.subr.bf16.mxu0 0
        %3407 = vmatpush1.bf16.msra.mxu0 0
        %3408 = vmatprep.subr.bf16.mxu0 0
        %3409 = vmatpush1.bf16.msra.mxu0 0
        %3410 = vmatprep.subr.bf16.mxu0 0
        %3411 = vmatpush1.bf16.msra.mxu0 0
        %3412 = vmatprep.subr.bf16.mxu0 0
        %3413 = vmatpush1.bf16.msra.mxu0 0
        %3414 = vmatprep.subr.bf16.mxu0 0
        %3415 = vmatpush1.bf16.msra.mxu0 0
        %3416 = vmatprep.subr.bf16.mxu0 0
        %3417 = vmatpush1.bf16.msra.mxu0 0
        %3418 = vmatprep.mubr.bf16.mxu0 0
        %3419 = vmatmul.mubr.bf16.gmra.mrb[0].mxu0 %v3375
        %v3420 = vpop.f32.mrb[0].mxu0
        %v3421 = vadd.f32 0.0, %v3420
        %v3422 = vpop.f32.mrb[0].mxu0
        %v3423 = vpop.f32.mrb[0].mxu0
        %v3424 = vadd.f32 0.0, %v3423
        %v3425 = vpop.f32.mrb[0].mxu0
        %3426 = vmatprep.mubr.bf16.mxu0 0
        %3427 = vmatmul.mubr.bf16.gmra.mrb[0].mxu0 %v3378
        %v3428 = vpop.f32.mrb[0].mxu0
        %v3429 = vadd.f32 0.0, %v3428
        %v3430 = vpop.f32.mrb[0].mxu0
        %v3431 = vpop.f32.mrb[0].mxu0
        %v3432 = vadd.f32 0.0, %v3431
        %v3433 = vpop.f32.mrb[0].mxu0
        %3434 = vmatprep.mubr.bf16.mxu0 0
        %3435 = vmatmul.mubr.bf16.gmra.mrb[0].mxu0 %v3381
        %v3436 = vpop.f32.mrb[0].mxu0
        %v3437 = vadd.f32 0.0, %v3436
        %v3438 = vpop.f32.mrb[0].mxu0
        %v3439 = vpop.f32.mrb[0].mxu0
        %v3440 = vadd.f32 0.0, %v3439
        %v3441 = vpop.f32.mrb[0].mxu0
        %3442 = vmatprep.mubr.bf16.mxu0 0
        %3443 = vmatmul.mubr.bf16.gmra.mrb[0].mxu0 %v3384
        %v3444 = vpop.f32.mrb[0].mxu0
        %v3445 = vadd.f32 0.0, %v3444
        %v3446 = vpop.f32.mrb[0].mxu0
        %v3447 = vpop.f32.mrb[0].mxu0
        %v3448 = vadd.f32 0.0, %v3447
        %v3449 = vpop.f32.mrb[0].mxu0
        %3450 = vdwg.mxu0
        %3459 = vrot.lane.b32.xlu0 %v3421, 20
        %v3460 = vpop.permute.xlu0 %3459
        %3461 = vrot.lane.b32.xlu0 %v3424, 20
        %v3462 = vpop.permute.xlu0 %3461
        %3463 = vrot.lane.b32.xlu0 %v3429, 20
        %v3464 = vpop.permute.xlu0 %3463
        %3465 = vrot.lane.b32.xlu0 %v3432, 20
        %v3466 = vpop.permute.xlu0 %3465
        %3467 = vrot.lane.b32.xlu0 %v3437, 20
        %v3468 = vpop.permute.xlu0 %3467
        %3469 = vrot.lane.b32.xlu0 %v3440, 20
        %v3470 = vpop.permute.xlu0 %3469
        %3471 = vrot.lane.b32.xlu0 %v3445, 20
        %v3472 = vpop.permute.xlu0 %3471
        %3473 = vrot.lane.b32.xlu0 %v3448, 20
        %v3474 = vpop.permute.xlu0 %3473
        %v3483 = vadd.f32 %v3350, %v3460
        %v3484 = vadd.f32 %v3351, %v3462
        %v3485 = vadd.f32 %v3352, %v3464
        %v3486 = vadd.f32 %v3353, %v3466
        %v3487 = vadd.f32 %v3354, %v3468
        %v3488 = vadd.f32 %v3355, %v3470
        %v3489 = vadd.f32 %v3356, %v3472
        %v3490 = vadd.f32 %v3357, %v3474
        %vm3491 = vcmask 195744
        %3492 = vst.msk [vmem:[#allocation4] sm:$0xff] %vm3491, %v3483
        %3493 = vst.msk [vmem:[#allocation4 + $0x8] sm:$0xff] %vm3491, %v3484
        %3494 = vst.msk [vmem:[#allocation4 + $0x10] sm:$0xff] %vm3491, %v3485
        %3495 = vst.msk [vmem:[#allocation4 + $0x18] sm:$0xff] %vm3491, %v3486
        %3496 = vst.msk [vmem:[#allocation4 + $0x20] sm:$0xff] %vm3491, %v3487
        %3497 = vst.msk [vmem:[#allocation4 + $0x28] sm:$0xff] %vm3491, %v3488
        %3498 = vst.msk [vmem:[#allocation4 + $0x30] sm:$0xff] %vm3491, %v3489
        %3499 = vst.msk [vmem:[#allocation4 + $0x38] sm:$0xff] %vm3491, %v3490
        %3500 = vst.msk [vmem:[#allocation2] sm:$0xff] %vm3293, %v3149
        %3501 = vst.msk [vmem:[#allocation2 + $0x8] sm:$0xff] %vm3293, %v3150
        %3502 = vst.msk [vmem:[#allocation2 + $0x10] sm:$0xff] %vm3293, %v3151
        %3503 = vst.msk [vmem:[#allocation2 + $0x18] sm:$0xff] %vm3293, %v3152
        %3504 = vst.msk [vmem:[#allocation2 + $0x20] sm:$0xff] %vm3293, %v3153
        %3505 = vst.msk [vmem:[#allocation2 + $0x28] sm:$0xff] %vm3293, %v3154
        %3506 = vst.msk [vmem:[#allocation2 + $0x30] sm:$0xff] %vm3293, %v3155
        %3507 = vst.msk [vmem:[#allocation2 + $0x38] sm:$0xff] %vm3293, %v3156
        %3508 = vrot.lane.b32.xlu0 %v543, 104
        %v3509 = vpop.permute.xlu0 %3508
        %3510 = vrot.lane.b32.xlu0 %v544, 104
        %v3511 = vpop.permute.xlu0 %3510
        %3512 = vrot.lane.b32.xlu0 %v545, 104
        %v3513 = vpop.permute.xlu0 %3512
        %3514 = vrot.lane.b32.xlu0 %v546, 104
        %v3515 = vpop.permute.xlu0 %3514
        %3516 = vrot.lane.b32.xlu0 %v571, 104
        %v3517 = vpop.permute.xlu0 %3516
        %3518 = vrot.lane.b32.xlu0 %v572, 104
        %v3519 = vpop.permute.xlu0 %3518
        %3520 = vrot.lane.b32.xlu0 %v573, 104
        %v3521 = vpop.permute.xlu0 %3520
        %3522 = vrot.lane.b32.xlu0 %v574, 104
        %v3523 = vpop.permute.xlu0 %3522
        %v3525 = vsel %vm575, %v3509, 0
        %v3528 = vsel %vm575, %v3511, 0
        %v3531 = vsel %vm575, %v3513, 0
        %v3534 = vsel %vm575, %v3515, 0
        %v3537 = vsel %vm575, %v3517, 0
        %v3540 = vsel %vm575, %v3519, 0
        %v3543 = vsel %vm575, %v3521, 0
        %v3546 = vsel %vm575, %v3523, 0
        %3548 = vmatprep.subr.bf16.mxu0 0
        %3549 = vmatpush1.bf16.xpose.msra.mxu0 %v3537
        %3550 = vmatprep.subr.bf16.mxu0 0
        %3551 = vmatpush1.bf16.xpose.msra.mxu0 %v3540
        %3552 = vmatprep.subr.bf16.mxu0 0
        %3553 = vmatpush1.bf16.xpose.msra.mxu0 %v3543
        %3554 = vmatprep.subr.bf16.mxu0 0
        %3555 = vmatpush1.bf16.xpose.msra.mxu0 %v3546
        %3556 = vmatprep.subr.bf16.mxu0 0
        %3557 = vmatpush1.bf16.xpose.msra.mxu0 0
        %3558 = vmatprep.subr.bf16.mxu0 0
        %3559 = vmatpush1.bf16.xpose.msra.mxu0 0
        %3560 = vmatprep.subr.bf16.mxu0 0
        %3561 = vmatpush1.bf16.xpose.msra.mxu0 0
        %3562 = vmatprep.subr.bf16.mxu0 0
        %3563 = vmatpush1.bf16.xpose.msra.mxu0 0
        %3564 = vmatprep.subr.bf16.mxu0 0
        %3565 = vmatpush1.bf16.xpose.msra.mxu0 0
        %3566 = vmatprep.subr.bf16.mxu0 0
        %3567 = vmatpush1.bf16.xpose.msra.mxu0 0
        %3568 = vmatprep.subr.bf16.mxu0 0
        %3569 = vmatpush1.bf16.xpose.msra.mxu0 0
        %3570 = vmatprep.subr.bf16.mxu0 0
        %3571 = vmatpush1.bf16.xpose.msra.mxu0 0
        %3572 = vmatprep.subr.bf16.mxu0 0
        %3573 = vmatpush1.bf16.xpose.msra.mxu0 0
        %3574 = vmatprep.subr.bf16.mxu0 0
        %3575 = vmatpush1.bf16.xpose.msra.mxu0 0
        %3576 = vmatprep.subr.bf16.mxu0 0
        %3577 = vmatpush1.bf16.xpose.msra.mxu0 0
        %3578 = vmatprep.subr.bf16.mxu0 0
        %3579 = vmatpush1.bf16.xpose.msra.mxu0 0
        %3580 = vmatprep.mubr.bf16.mxu0 0
        %3581 = vmatmul.mubr.bf16.gmra.mrb[0].mxu0 %v3525
        %v3582 = vpop.f32.mrb[0].mxu0
        %v3583 = vadd.f32 0.0, %v3582
        %v3584 = vpop.f32.mrb[0].mxu0
        %v3585 = vpop.f32.mrb[0].mxu0
        %v3586 = vadd.f32 0.0, %v3585
        %v3587 = vpop.f32.mrb[0].mxu0
        %3588 = vmatprep.mubr.bf16.mxu0 0
        %3589 = vmatmul.mubr.bf16.gmra.mrb[0].mxu0 %v3528
        %v3590 = vpop.f32.mrb[0].mxu0
        %v3591 = vadd.f32 0.0, %v3590
        %v3592 = vpop.f32.mrb[0].mxu0
        %v3593 = vpop.f32.mrb[0].mxu0
        %v3594 = vadd.f32 0.0, %v3593
        %v3595 = vpop.f32.mrb[0].mxu0
        %3596 = vmatprep.mubr.bf16.mxu0 0
        %3597 = vmatmul.mubr.bf16.gmra.mrb[0].mxu0 %v3531
        %v3598 = vpop.f32.mrb[0].mxu0
        %v3599 = vadd.f32 0.0, %v3598
        %v3600 = vpop.f32.mrb[0].mxu0
        %v3601 = vpop.f32.mrb[0].mxu0
        %v3602 = vadd.f32 0.0, %v3601
        %v3603 = vpop.f32.mrb[0].mxu0
        %3604 = vmatprep.mubr.bf16.mxu0 0
        %3605 = vmatmul.mubr.bf16.gmra.mrb[0].mxu0 %v3534
        %v3606 = vpop.f32.mrb[0].mxu0
        %v3607 = vadd.f32 0.0, %v3606
        %v3608 = vpop.f32.mrb[0].mxu0
        %v3609 = vpop.f32.mrb[0].mxu0
        %v3610 = vadd.f32 0.0, %v3609
        %v3611 = vpop.f32.mrb[0].mxu0
        %3612 = vdwg.mxu0
        %v3613 = vld [vmem:[#allocation2] sm:$0xff]
        %v3614 = vld [vmem:[#allocation2 + $0x8] sm:$0xff]
        %v3615 = vld [vmem:[#allocation2 + $0x10] sm:$0xff]
        %v3616 = vld [vmem:[#allocation2 + $0x18] sm:$0xff]
        %v3617 = vld [vmem:[#allocation2 + $0x20] sm:$0xff]
        %v3618 = vld [vmem:[#allocation2 + $0x28] sm:$0xff]
        %v3619 = vld [vmem:[#allocation2 + $0x30] sm:$0xff]
        %v3620 = vld [vmem:[#allocation2 + $0x38] sm:$0xff]
        %v3621 = vsel %vm673, %v3583, -inf
        %3622 = vmax.xlane.f32.xlu0 %v3621
        %v3623 = vpop.xlane.xlu0 %3622
        %v3624 = vsel %vm673, %v3586, -inf
        %3625 = vmax.xlane.f32.xlu0 %v3624
        %v3626 = vpop.xlane.xlu0 %3625
        %v3627 = vsel %vm673, %v3591, -inf
        %3628 = vmax.xlane.f32.xlu0 %v3627
        %v3629 = vpop.xlane.xlu0 %3628
        %v3630 = vsel %vm673, %v3594, -inf
        %3631 = vmax.xlane.f32.xlu0 %v3630
        %v3632 = vpop.xlane.xlu0 %3631
        %v3633 = vsel %vm673, %v3599, -inf
        %3634 = vmax.xlane.f32.xlu0 %v3633
        %v3635 = vpop.xlane.xlu0 %3634
        %v3636 = vsel %vm673, %v3602, -inf
        %3637 = vmax.xlane.f32.xlu0 %v3636
        %v3638 = vpop.xlane.xlu0 %3637
        %v3639 = vsel %vm673, %v3607, -inf
        %3640 = vmax.xlane.f32.xlu0 %v3639
        %v3641 = vpop.xlane.xlu0 %3640
        %v3642 = vsel %vm673, %v3610, -inf
        %3643 = vmax.xlane.f32.xlu0 %v3642
        %v3644 = vpop.xlane.xlu0 %3643
        %v3645 = vmax.f32 %v3613, %v3623
        %v3646 = vmax.f32 %v3614, %v3626
        %v3647 = vmax.f32 %v3615, %v3629
        %v3648 = vmax.f32 %v3616, %v3632
        %v3649 = vmax.f32 %v3617, %v3635
        %v3650 = vmax.f32 %v3618, %v3638
        %v3651 = vmax.f32 %v3619, %v3641
        %v3652 = vmax.f32 %v3620, %v3644
        %v3653 = vsub.f32 %v3613, %v3645
        %v3654 = vsub.f32 %v3614, %v3646
        %v3655 = vsub.f32 %v3615, %v3647
        %v3656 = vsub.f32 %v3616, %v3648
        %v3657 = vsub.f32 %v3617, %v3649
        %v3658 = vsub.f32 %v3618, %v3650
        %v3659 = vsub.f32 %v3619, %v3651
        %v3660 = vsub.f32 %v3620, %v3652
        %v3661 = vmul.f32 %v3653, 1.442695
        %v3662 = vpow.pop %v3661
        %v3663 = vmul.f32 %v3654, 1.442695
        %v3664 = vpow.pop %v3663
        %v3665 = vmul.f32 %v3655, 1.442695
        %v3666 = vpow.pop %v3665
        %v3667 = vmul.f32 %v3656, 1.442695
        %v3668 = vpow.pop %v3667
        %v3669 = vmul.f32 %v3657, 1.442695
        %v3670 = vpow.pop %v3669
        %v3671 = vmul.f32 %v3658, 1.442695
        %v3672 = vpow.pop %v3671
        %v3673 = vmul.f32 %v3659, 1.442695
        %v3674 = vpow.pop %v3673
        %v3675 = vmul.f32 %v3660, 1.442695
        %v3676 = vpow.pop %v3675
        %3678 = vset.pattern.permute.xlu0 6
        %3679 = vperm.xlu0 %3678, %v3645
        %v3680 = vpop.permute.xlu0 %3679
        %3683 = vset.pattern.permute.xlu0 6
        %3684 = vperm.xlu0 %3683, %v3646
        %v3685 = vpop.permute.xlu0 %3684
        %3688 = vset.pattern.permute.xlu0 6
        %3689 = vperm.xlu0 %3688, %v3647
        %v3690 = vpop.permute.xlu0 %3689
        %3693 = vset.pattern.permute.xlu0 6
        %3694 = vperm.xlu0 %3693, %v3648
        %v3695 = vpop.permute.xlu0 %3694
        %3698 = vset.pattern.permute.xlu0 6
        %3699 = vperm.xlu0 %3698, %v3649
        %v3700 = vpop.permute.xlu0 %3699
        %3703 = vset.pattern.permute.xlu0 6
        %3704 = vperm.xlu0 %3703, %v3650
        %v3705 = vpop.permute.xlu0 %3704
        %3708 = vset.pattern.permute.xlu0 6
        %3709 = vperm.xlu0 %3708, %v3651
        %v3710 = vpop.permute.xlu0 %3709
        %3713 = vset.pattern.permute.xlu0 6
        %3714 = vperm.xlu0 %3713, %v3652
        %v3715 = vpop.permute.xlu0 %3714
        %v3717 = vsub.f32 %v3583, %v3680
        %v3718 = vsub.f32 %v3586, %v3685
        %v3719 = vsub.f32 %v3591, %v3690
        %v3720 = vsub.f32 %v3594, %v3695
        %v3721 = vsub.f32 %v3599, %v3700
        %v3722 = vsub.f32 %v3602, %v3705
        %v3723 = vsub.f32 %v3607, %v3710
        %v3724 = vsub.f32 %v3610, %v3715
        %v3725 = vmul.f32 %v3717, 1.442695
        %v3726 = vpow.pop %v3725
        %v3727 = vmul.f32 %v3718, 1.442695
        %v3728 = vpow.pop %v3727
        %v3729 = vmul.f32 %v3719, 1.442695
        %v3730 = vpow.pop %v3729
        %v3731 = vmul.f32 %v3720, 1.442695
        %v3732 = vpow.pop %v3731
        %v3733 = vmul.f32 %v3721, 1.442695
        %v3734 = vpow.pop %v3733
        %v3735 = vmul.f32 %v3722, 1.442695
        %v3736 = vpow.pop %v3735
        %v3737 = vmul.f32 %v3723, 1.442695
        %v3738 = vpow.pop %v3737
        %v3739 = vmul.f32 %v3724, 1.442695
        %v3740 = vpow.pop %v3739
        %v3741 = vld [vmem:[#allocation3] sm:$0xff]
        %v3742 = vld [vmem:[#allocation3 + $0x8] sm:$0xff]
        %v3743 = vld [vmem:[#allocation3 + $0x10] sm:$0xff]
        %v3744 = vld [vmem:[#allocation3 + $0x18] sm:$0xff]
        %v3745 = vld [vmem:[#allocation3 + $0x20] sm:$0xff]
        %v3746 = vld [vmem:[#allocation3 + $0x28] sm:$0xff]
        %v3747 = vld [vmem:[#allocation3 + $0x30] sm:$0xff]
        %v3748 = vld [vmem:[#allocation3 + $0x38] sm:$0xff]
        %v3749 = vmul.f32 %v3662, %v3741
        %v3750 = vmul.f32 %v3664, %v3742
        %v3751 = vmul.f32 %v3666, %v3743
        %v3752 = vmul.f32 %v3668, %v3744
        %v3753 = vmul.f32 %v3670, %v3745
        %v3754 = vmul.f32 %v3672, %v3746
        %v3755 = vmul.f32 %v3674, %v3747
        %v3756 = vmul.f32 %v3676, %v3748
        %v3757 = vsel %vm673, %v3726, 0.0
        %3758 = vadd.xlane.f32.xlu0 %v3757
        %v3759 = vpop.xlane.xlu0 %3758
        %v3760 = vsel %vm673, %v3728, 0.0
        %3761 = vadd.xlane.f32.xlu0 %v3760
        %v3762 = vpop.xlane.xlu0 %3761
        %v3763 = vsel %vm673, %v3730, 0.0
        %3764 = vadd.xlane.f32.xlu0 %v3763
        %v3765 = vpop.xlane.xlu0 %3764
        %v3766 = vsel %vm673, %v3732, 0.0
        %3767 = vadd.xlane.f32.xlu0 %v3766
        %v3768 = vpop.xlane.xlu0 %3767
        %v3769 = vsel %vm673, %v3734, 0.0
        %3770 = vadd.xlane.f32.xlu0 %v3769
        %v3771 = vpop.xlane.xlu0 %3770
        %v3772 = vsel %vm673, %v3736, 0.0
        %3773 = vadd.xlane.f32.xlu0 %v3772
        %v3774 = vpop.xlane.xlu0 %3773
        %v3775 = vsel %vm673, %v3738, 0.0
        %3776 = vadd.xlane.f32.xlu0 %v3775
        %v3777 = vpop.xlane.xlu0 %3776
        %v3778 = vsel %vm673, %v3740, 0.0
        %3779 = vadd.xlane.f32.xlu0 %v3778
        %v3780 = vpop.xlane.xlu0 %3779
        %v3781 = vadd.f32 %v3749, %v3759
        %v3782 = vadd.f32 %v3750, %v3762
        %v3783 = vadd.f32 %v3751, %v3765
        %v3784 = vadd.f32 %v3752, %v3768
        %v3785 = vadd.f32 %v3753, %v3771
        %v3786 = vadd.f32 %v3754, %v3774
        %v3787 = vadd.f32 %v3755, %v3777
        %v3788 = vadd.f32 %v3756, %v3780
        %vm3789 = vcmask 56368
        %3790 = vst.msk [vmem:[#allocation3] sm:$0xff] %vm3789, %v3781
        %3791 = vst.msk [vmem:[#allocation3 + $0x8] sm:$0xff] %vm3789, %v3782
        %3792 = vst.msk [vmem:[#allocation3 + $0x10] sm:$0xff] %vm3789, %v3783
        %3793 = vst.msk [vmem:[#allocation3 + $0x18] sm:$0xff] %vm3789, %v3784
        %3794 = vst.msk [vmem:[#allocation3 + $0x20] sm:$0xff] %vm3789, %v3785
        %3795 = vst.msk [vmem:[#allocation3 + $0x28] sm:$0xff] %vm3789, %v3786
        %3796 = vst.msk [vmem:[#allocation3 + $0x30] sm:$0xff] %vm3789, %v3787
        %3797 = vst.msk [vmem:[#allocation3 + $0x38] sm:$0xff] %vm3789, %v3788
        %v3798 = vld [vmem:[#allocation4] sm:$0xff]
        %v3799 = vld [vmem:[#allocation4 + $0x8] sm:$0xff]
        %v3800 = vld [vmem:[#allocation4 + $0x10] sm:$0xff]
        %v3801 = vld [vmem:[#allocation4 + $0x18] sm:$0xff]
        %v3802 = vld [vmem:[#allocation4 + $0x20] sm:$0xff]
        %v3803 = vld [vmem:[#allocation4 + $0x28] sm:$0xff]
        %v3804 = vld [vmem:[#allocation4 + $0x30] sm:$0xff]
        %v3805 = vld [vmem:[#allocation4 + $0x38] sm:$0xff]
        %3807 = vset.pattern.permute.xlu0 6
        %3808 = vperm.xlu0 %3807, %v3662
        %v3809 = vpop.permute.xlu0 %3808
        %3812 = vset.pattern.permute.xlu0 6
        %3813 = vperm.xlu0 %3812, %v3664
        %v3814 = vpop.permute.xlu0 %3813
        %3817 = vset.pattern.permute.xlu0 6
        %3818 = vperm.xlu0 %3817, %v3666
        %v3819 = vpop.permute.xlu0 %3818
        %3822 = vset.pattern.permute.xlu0 6
        %3823 = vperm.xlu0 %3822, %v3668
        %v3824 = vpop.permute.xlu0 %3823
        %3827 = vset.pattern.permute.xlu0 6
        %3828 = vperm.xlu0 %3827, %v3670
        %v3829 = vpop.permute.xlu0 %3828
        %3832 = vset.pattern.permute.xlu0 6
        %3833 = vperm.xlu0 %3832, %v3672
        %v3834 = vpop.permute.xlu0 %3833
        %3837 = vset.pattern.permute.xlu0 6
        %3838 = vperm.xlu0 %3837, %v3674
        %v3839 = vpop.permute.xlu0 %3838
        %3842 = vset.pattern.permute.xlu0 6
        %3843 = vperm.xlu0 %3842, %v3676
        %v3844 = vpop.permute.xlu0 %3843
        %v3846 = vmul.f32 %v3809, %v3798
        %v3847 = vmul.f32 %v3814, %v3799
        %v3848 = vmul.f32 %v3819, %v3800
        %v3849 = vmul.f32 %v3824, %v3801
        %v3850 = vmul.f32 %v3829, %v3802
        %v3851 = vmul.f32 %v3834, %v3803
        %v3852 = vmul.f32 %v3839, %v3804
        %v3853 = vmul.f32 %v3844, %v3805
        %v3854 = vpack.c.bf16 %v3728, %v3726
        %v3855 = vpack.c.bf16 %v3732, %v3730
        %v3856 = vpack.c.bf16 %v3736, %v3734
        %v3857 = vpack.c.bf16 %v3740, %v3738
        %3858 = vrot.lane.b32.xlu0 %v571, 72
        %v3859 = vpop.permute.xlu0 %3858
        %3860 = vrot.lane.b32.xlu0 %v572, 72
        %v3861 = vpop.permute.xlu0 %3860
        %3862 = vrot.lane.b32.xlu0 %v573, 72
        %v3863 = vpop.permute.xlu0 %3862
        %3864 = vrot.lane.b32.xlu0 %v574, 72
        %v3865 = vpop.permute.xlu0 %3864
        %v3871 = vsel %vm673, %v3854, 0
        %v3874 = vsel %vm673, %v3855, 0
        %v3877 = vsel %vm673, %v3856, 0
        %v3880 = vsel %vm673, %v3857, 0
        %3882 = vmatprep.subr.bf16.mxu0 0
        %3883 = vmatpush1.bf16.msra.mxu0 %v3859
        %3884 = vmatprep.subr.bf16.mxu0 0
        %3885 = vmatpush1.bf16.msra.mxu0 %v3861
        %3886 = vmatprep.subr.bf16.mxu0 0
        %3887 = vmatpush1.bf16.msra.mxu0 %v3863
        %3888 = vmatprep.subr.bf16.mxu0 0
        %3889 = vmatpush1.bf16.msra.mxu0 %v3865
        %3890 = vmatprep.subr.bf16.mxu0 0
        %3891 = vmatpush1.bf16.msra.mxu0 0
        %3892 = vmatprep.subr.bf16.mxu0 0
        %3893 = vmatpush1.bf16.msra.mxu0 0
        %3894 = vmatprep.subr.bf16.mxu0 0
        %3895 = vmatpush1.bf16.msra.mxu0 0
        %3896 = vmatprep.subr.bf16.mxu0 0
        %3897 = vmatpush1.bf16.msra.mxu0 0
        %3898 = vmatprep.subr.bf16.mxu0 0
        %3899 = vmatpush1.bf16.msra.mxu0 0
        %3900 = vmatprep.subr.bf16.mxu0 0
        %3901 = vmatpush1.bf16.msra.mxu0 0
        %3902 = vmatprep.subr.bf16.mxu0 0
        %3903 = vmatpush1.bf16.msra.mxu0 0
        %3904 = vmatprep.subr.bf16.mxu0 0
        %3905 = vmatpush1.bf16.msra.mxu0 0
        %3906 = vmatprep.subr.bf16.mxu0 0
        %3907 = vmatpush1.bf16.msra.mxu0 0
        %3908 = vmatprep.subr.bf16.mxu0 0
        %3909 = vmatpush1.bf16.msra.mxu0 0
        %3910 = vmatprep.subr.bf16.mxu0 0
        %3911 = vmatpush1.bf16.msra.mxu0 0
        %3912 = vmatprep.subr.bf16.mxu0 0
        %3913 = vmatpush1.bf16.msra.mxu0 0
        %3914 = vmatprep.mubr.bf16.mxu0 0
        %3915 = vmatmul.mubr.bf16.gmra.mrb[0].mxu0 %v3871
        %v3916 = vpop.f32.mrb[0].mxu0
        %v3917 = vadd.f32 0.0, %v3916
        %v3918 = vpop.f32.mrb[0].mxu0
        %v3919 = vpop.f32.mrb[0].mxu0
        %v3920 = vadd.f32 0.0, %v3919
        %v3921 = vpop.f32.mrb[0].mxu0
        %3922 = vmatprep.mubr.bf16.mxu0 0
        %3923 = vmatmul.mubr.bf16.gmra.mrb[0].mxu0 %v3874
        %v3924 = vpop.f32.mrb[0].mxu0
        %v3925 = vadd.f32 0.0, %v3924
        %v3926 = vpop.f32.mrb[0].mxu0
        %v3927 = vpop.f32.mrb[0].mxu0
        %v3928 = vadd.f32 0.0, %v3927
        %v3929 = vpop.f32.mrb[0].mxu0
        %3930 = vmatprep.mubr.bf16.mxu0 0
        %3931 = vmatmul.mubr.bf16.gmra.mrb[0].mxu0 %v3877
        %v3932 = vpop.f32.mrb[0].mxu0
        %v3933 = vadd.f32 0.0, %v3932
        %v3934 = vpop.f32.mrb[0].mxu0
        %v3935 = vpop.f32.mrb[0].mxu0
        %v3936 = vadd.f32 0.0, %v3935
        %v3937 = vpop.f32.mrb[0].mxu0
        %3938 = vmatprep.mubr.bf16.mxu0 0
        %3939 = vmatmul.mubr.bf16.gmra.mrb[0].mxu0 %v3880
        %v3940 = vpop.f32.mrb[0].mxu0
        %v3941 = vadd.f32 0.0, %v3940
        %v3942 = vpop.f32.mrb[0].mxu0
        %v3943 = vpop.f32.mrb[0].mxu0
        %v3944 = vadd.f32 0.0, %v3943
        %v3945 = vpop.f32.mrb[0].mxu0
        %3946 = vdwg.mxu0
        %3955 = vrot.lane.b32.xlu0 %v3917, 24
        %v3956 = vpop.permute.xlu0 %3955
        %3957 = vrot.lane.b32.xlu0 %v3920, 24
        %v3958 = vpop.permute.xlu0 %3957
        %3959 = vrot.lane.b32.xlu0 %v3925, 24
        %v3960 = vpop.permute.xlu0 %3959
        %3961 = vrot.lane.b32.xlu0 %v3928, 24
        %v3962 = vpop.permute.xlu0 %3961
        %3963 = vrot.lane.b32.xlu0 %v3933, 24
        %v3964 = vpop.permute.xlu0 %3963
        %3965 = vrot.lane.b32.xlu0 %v3936, 24
        %v3966 = vpop.permute.xlu0 %3965
        %3967 = vrot.lane.b32.xlu0 %v3941, 24
        %v3968 = vpop.permute.xlu0 %3967
        %3969 = vrot.lane.b32.xlu0 %v3944, 24
        %v3970 = vpop.permute.xlu0 %3969
        %v3979 = vadd.f32 %v3846, %v3956
        %v3980 = vadd.f32 %v3847, %v3958
        %v3981 = vadd.f32 %v3848, %v3960
        %v3982 = vadd.f32 %v3849, %v3962
        %v3983 = vadd.f32 %v3850, %v3964
        %v3984 = vadd.f32 %v3851, %v3966
        %v3985 = vadd.f32 %v3852, %v3968
        %v3986 = vadd.f32 %v3853, %v3970
        %vm3987 = vcmask 228544
        %3988 = vst.msk [vmem:[#allocation4] sm:$0xff] %vm3987, %v3979
        %3989 = vst.msk [vmem:[#allocation4 + $0x8] sm:$0xff] %vm3987, %v3980
        %3990 = vst.msk [vmem:[#allocation4 + $0x10] sm:$0xff] %vm3987, %v3981
        %3991 = vst.msk [vmem:[#allocation4 + $0x18] sm:$0xff] %vm3987, %v3982
        %3992 = vst.msk [vmem:[#allocation4 + $0x20] sm:$0xff] %vm3987, %v3983
        %3993 = vst.msk [vmem:[#allocation4 + $0x28] sm:$0xff] %vm3987, %v3984
        %3994 = vst.msk [vmem:[#allocation4 + $0x30] sm:$0xff] %vm3987, %v3985
        %3995 = vst.msk [vmem:[#allocation4 + $0x38] sm:$0xff] %vm3987, %v3986
        %3996 = vst.msk [vmem:[#allocation2] sm:$0xff] %vm3789, %v3645
        %3997 = vst.msk [vmem:[#allocation2 + $0x8] sm:$0xff] %vm3789, %v3646
        %3998 = vst.msk [vmem:[#allocation2 + $0x10] sm:$0xff] %vm3789, %v3647
        %3999 = vst.msk [vmem:[#allocation2 + $0x18] sm:$0xff] %vm3789, %v3648
        %4000 = vst.msk [vmem:[#allocation2 + $0x20] sm:$0xff] %vm3789, %v3649
        %4001 = vst.msk [vmem:[#allocation2 + $0x28] sm:$0xff] %vm3789, %v3650
        %4002 = vst.msk [vmem:[#allocation2 + $0x30] sm:$0xff] %vm3789, %v3651
        %4003 = vst.msk [vmem:[#allocation2 + $0x38] sm:$0xff] %vm3789, %v3652
        %4004 = vrot.lane.b32.xlu0 %v543, 100
        %v4005 = vpop.permute.xlu0 %4004
        %4006 = vrot.lane.b32.xlu0 %v544, 100
        %v4007 = vpop.permute.xlu0 %4006
        %4008 = vrot.lane.b32.xlu0 %v545, 100
        %v4009 = vpop.permute.xlu0 %4008
        %4010 = vrot.lane.b32.xlu0 %v546, 100
        %v4011 = vpop.permute.xlu0 %4010
        %4012 = vrot.lane.b32.xlu0 %v571, 100
        %v4013 = vpop.permute.xlu0 %4012
        %4014 = vrot.lane.b32.xlu0 %v572, 100
        %v4015 = vpop.permute.xlu0 %4014
        %4016 = vrot.lane.b32.xlu0 %v573, 100
        %v4017 = vpop.permute.xlu0 %4016
        %4018 = vrot.lane.b32.xlu0 %v574, 100
        %v4019 = vpop.permute.xlu0 %4018
        %v4021 = vsel %vm575, %v4005, 0
        %v4024 = vsel %vm575, %v4007, 0
        %v4027 = vsel %vm575, %v4009, 0
        %v4030 = vsel %vm575, %v4011, 0
        %v4033 = vsel %vm575, %v4013, 0
        %v4036 = vsel %vm575, %v4015, 0
        %v4039 = vsel %vm575, %v4017, 0
        %v4042 = vsel %vm575, %v4019, 0
        %4044 = vmatprep.subr.bf16.mxu0 0
        %4045 = vmatpush1.bf16.xpose.msra.mxu0 %v4033
        %4046 = vmatprep.subr.bf16.mxu0 0
        %4047 = vmatpush1.bf16.xpose.msra.mxu0 %v4036
        %4048 = vmatprep.subr.bf16.mxu0 0
        %4049 = vmatpush1.bf16.xpose.msra.mxu0 %v4039
        %4050 = vmatprep.subr.bf16.mxu0 0
        %4051 = vmatpush1.bf16.xpose.msra.mxu0 %v4042
        %4052 = vmatprep.subr.bf16.mxu0 0
        %4053 = vmatpush1.bf16.xpose.msra.mxu0 0
        %4054 = vmatprep.subr.bf16.mxu0 0
        %4055 = vmatpush1.bf16.xpose.msra.mxu0 0
        %4056 = vmatprep.subr.bf16.mxu0 0
        %4057 = vmatpush1.bf16.xpose.msra.mxu0 0
        %4058 = vmatprep.subr.bf16.mxu0 0
        %4059 = vmatpush1.bf16.xpose.msra.mxu0 0
        %4060 = vmatprep.subr.bf16.mxu0 0
        %4061 = vmatpush1.bf16.xpose.msra.mxu0 0
        %4062 = vmatprep.subr.bf16.mxu0 0
        %4063 = vmatpush1.bf16.xpose.msra.mxu0 0
        %4064 = vmatprep.subr.bf16.mxu0 0
        %4065 = vmatpush1.bf16.xpose.msra.mxu0 0
        %4066 = vmatprep.subr.bf16.mxu0 0
        %4067 = vmatpush1.bf16.xpose.msra.mxu0 0
        %4068 = vmatprep.subr.bf16.mxu0 0
        %4069 = vmatpush1.bf16.xpose.msra.mxu0 0
        %4070 = vmatprep.subr.bf16.mxu0 0
        %4071 = vmatpush1.bf16.xpose.msra.mxu0 0
        %4072 = vmatprep.subr.bf16.mxu0 0
        %4073 = vmatpush1.bf16.xpose.msra.mxu0 0
        %4074 = vmatprep.subr.bf16.mxu0 0
        %4075 = vmatpush1.bf16.xpose.msra.mxu0 0
        %4076 = vmatprep.mubr.bf16.mxu0 0
        %4077 = vmatmul.mubr.bf16.gmra.mrb[0].mxu0 %v4021
        %v4078 = vpop.f32.mrb[0].mxu0
        %v4079 = vadd.f32 0.0, %v4078
        %v4080 = vpop.f32.mrb[0].mxu0
        %v4081 = vpop.f32.mrb[0].mxu0
        %v4082 = vadd.f32 0.0, %v4081
        %v4083 = vpop.f32.mrb[0].mxu0
        %4084 = vmatprep.mubr.bf16.mxu0 0
        %4085 = vmatmul.mubr.bf16.gmra.mrb[0].mxu0 %v4024
        %v4086 = vpop.f32.mrb[0].mxu0
        %v4087 = vadd.f32 0.0, %v4086
        %v4088 = vpop.f32.mrb[0].mxu0
        %v4089 = vpop.f32.mrb[0].mxu0
        %v4090 = vadd.f32 0.0, %v4089
        %v4091 = vpop.f32.mrb[0].mxu0
        %4092 = vmatprep.mubr.bf16.mxu0 0
        %4093 = vmatmul.mubr.bf16.gmra.mrb[0].mxu0 %v4027
        %v4094 = vpop.f32.mrb[0].mxu0
        %v4095 = vadd.f32 0.0, %v4094
        %v4096 = vpop.f32.mrb[0].mxu0
        %v4097 = vpop.f32.mrb[0].mxu0
        %v4098 = vadd.f32 0.0, %v4097
        %v4099 = vpop.f32.mrb[0].mxu0
        %4100 = vmatprep.mubr.bf16.mxu0 0
        %4101 = vmatmul.mubr.bf16.gmra.mrb[0].mxu0 %v4030
        %v4102 = vpop.f32.mrb[0].mxu0
        %v4103 = vadd.f32 0.0, %v4102
        %v4104 = vpop.f32.mrb[0].mxu0
        %v4105 = vpop.f32.mrb[0].mxu0
        %v4106 = vadd.f32 0.0, %v4105
        %v4107 = vpop.f32.mrb[0].mxu0
        %4108 = vdwg.mxu0
        %v4109 = vld [vmem:[#allocation2] sm:$0xff]
        %v4110 = vld [vmem:[#allocation2 + $0x8] sm:$0xff]
        %v4111 = vld [vmem:[#allocation2 + $0x10] sm:$0xff]
        %v4112 = vld [vmem:[#allocation2 + $0x18] sm:$0xff]
        %v4113 = vld [vmem:[#allocation2 + $0x20] sm:$0xff]
        %v4114 = vld [vmem:[#allocation2 + $0x28] sm:$0xff]
        %v4115 = vld [vmem:[#allocation2 + $0x30] sm:$0xff]
        %v4116 = vld [vmem:[#allocation2 + $0x38] sm:$0xff]
        %v4117 = vsel %vm673, %v4079, -inf
        %4118 = vmax.xlane.f32.xlu0 %v4117
        %v4119 = vpop.xlane.xlu0 %4118
        %v4120 = vsel %vm673, %v4082, -inf
        %4121 = vmax.xlane.f32.xlu0 %v4120
        %v4122 = vpop.xlane.xlu0 %4121
        %v4123 = vsel %vm673, %v4087, -inf
        %4124 = vmax.xlane.f32.xlu0 %v4123
        %v4125 = vpop.xlane.xlu0 %4124
        %v4126 = vsel %vm673, %v4090, -inf
        %4127 = vmax.xlane.f32.xlu0 %v4126
        %v4128 = vpop.xlane.xlu0 %4127
        %v4129 = vsel %vm673, %v4095, -inf
        %4130 = vmax.xlane.f32.xlu0 %v4129
        %v4131 = vpop.xlane.xlu0 %4130
        %v4132 = vsel %vm673, %v4098, -inf
        %4133 = vmax.xlane.f32.xlu0 %v4132
        %v4134 = vpop.xlane.xlu0 %4133
        %v4135 = vsel %vm673, %v4103, -inf
        %4136 = vmax.xlane.f32.xlu0 %v4135
        %v4137 = vpop.xlane.xlu0 %4136
        %v4138 = vsel %vm673, %v4106, -inf
        %4139 = vmax.xlane.f32.xlu0 %v4138
        %v4140 = vpop.xlane.xlu0 %4139
        %v4141 = vmax.f32 %v4109, %v4119
        %v4142 = vmax.f32 %v4110, %v4122
        %v4143 = vmax.f32 %v4111, %v4125
        %v4144 = vmax.f32 %v4112, %v4128
        %v4145 = vmax.f32 %v4113, %v4131
        %v4146 = vmax.f32 %v4114, %v4134
        %v4147 = vmax.f32 %v4115, %v4137
        %v4148 = vmax.f32 %v4116, %v4140
        %v4149 = vsub.f32 %v4109, %v4141
        %v4150 = vsub.f32 %v4110, %v4142
        %v4151 = vsub.f32 %v4111, %v4143
        %v4152 = vsub.f32 %v4112, %v4144
        %v4153 = vsub.f32 %v4113, %v4145
        %v4154 = vsub.f32 %v4114, %v4146
        %v4155 = vsub.f32 %v4115, %v4147
        %v4156 = vsub.f32 %v4116, %v4148
        %v4157 = vmul.f32 %v4149, 1.442695
        %v4158 = vpow.pop %v4157
        %v4159 = vmul.f32 %v4150, 1.442695
        %v4160 = vpow.pop %v4159
        %v4161 = vmul.f32 %v4151, 1.442695
        %v4162 = vpow.pop %v4161
        %v4163 = vmul.f32 %v4152, 1.442695
        %v4164 = vpow.pop %v4163
        %v4165 = vmul.f32 %v4153, 1.442695
        %v4166 = vpow.pop %v4165
        %v4167 = vmul.f32 %v4154, 1.442695
        %v4168 = vpow.pop %v4167
        %v4169 = vmul.f32 %v4155, 1.442695
        %v4170 = vpow.pop %v4169
        %v4171 = vmul.f32 %v4156, 1.442695
        %v4172 = vpow.pop %v4171
        %4174 = vset.pattern.permute.xlu0 7
        %4175 = vperm.xlu0 %4174, %v4141
        %v4176 = vpop.permute.xlu0 %4175
        %4179 = vset.pattern.permute.xlu0 7
        %4180 = vperm.xlu0 %4179, %v4142
        %v4181 = vpop.permute.xlu0 %4180
        %4184 = vset.pattern.permute.xlu0 7
        %4185 = vperm.xlu0 %4184, %v4143
        %v4186 = vpop.permute.xlu0 %4185
        %4189 = vset.pattern.permute.xlu0 7
        %4190 = vperm.xlu0 %4189, %v4144
        %v4191 = vpop.permute.xlu0 %4190
        %4194 = vset.pattern.permute.xlu0 7
        %4195 = vperm.xlu0 %4194, %v4145
        %v4196 = vpop.permute.xlu0 %4195
        %4199 = vset.pattern.permute.xlu0 7
        %4200 = vperm.xlu0 %4199, %v4146
        %v4201 = vpop.permute.xlu0 %4200
        %4204 = vset.pattern.permute.xlu0 7
        %4205 = vperm.xlu0 %4204, %v4147
        %v4206 = vpop.permute.xlu0 %4205
        %4209 = vset.pattern.permute.xlu0 7
        %4210 = vperm.xlu0 %4209, %v4148
        %v4211 = vpop.permute.xlu0 %4210
        %v4213 = vsub.f32 %v4079, %v4176
        %v4214 = vsub.f32 %v4082, %v4181
        %v4215 = vsub.f32 %v4087, %v4186
        %v4216 = vsub.f32 %v4090, %v4191
        %v4217 = vsub.f32 %v4095, %v4196
        %v4218 = vsub.f32 %v4098, %v4201
        %v4219 = vsub.f32 %v4103, %v4206
        %v4220 = vsub.f32 %v4106, %v4211
        %v4221 = vmul.f32 %v4213, 1.442695
        %v4222 = vpow.pop %v4221
        %v4223 = vmul.f32 %v4214, 1.442695
        %v4224 = vpow.pop %v4223
        %v4225 = vmul.f32 %v4215, 1.442695
        %v4226 = vpow.pop %v4225
        %v4227 = vmul.f32 %v4216, 1.442695
        %v4228 = vpow.pop %v4227
        %v4229 = vmul.f32 %v4217, 1.442695
        %v4230 = vpow.pop %v4229
        %v4231 = vmul.f32 %v4218, 1.442695
        %v4232 = vpow.pop %v4231
        %v4233 = vmul.f32 %v4219, 1.442695
        %v4234 = vpow.pop %v4233
        %v4235 = vmul.f32 %v4220, 1.442695
        %v4236 = vpow.pop %v4235
        %v4237 = vld [vmem:[#allocation3] sm:$0xff]
        %v4238 = vld [vmem:[#allocation3 + $0x8] sm:$0xff]
        %v4239 = vld [vmem:[#allocation3 + $0x10] sm:$0xff]
        %v4240 = vld [vmem:[#allocation3 + $0x18] sm:$0xff]
        %v4241 = vld [vmem:[#allocation3 + $0x20] sm:$0xff]
        %v4242 = vld [vmem:[#allocation3 + $0x28] sm:$0xff]
        %v4243 = vld [vmem:[#allocation3 + $0x30] sm:$0xff]
        %v4244 = vld [vmem:[#allocation3 + $0x38] sm:$0xff]
        %v4245 = vmul.f32 %v4158, %v4237
        %v4246 = vmul.f32 %v4160, %v4238
        %v4247 = vmul.f32 %v4162, %v4239
        %v4248 = vmul.f32 %v4164, %v4240
        %v4249 = vmul.f32 %v4166, %v4241
        %v4250 = vmul.f32 %v4168, %v4242
        %v4251 = vmul.f32 %v4170, %v4243
        %v4252 = vmul.f32 %v4172, %v4244
        %v4253 = vsel %vm673, %v4222, 0.0
        %4254 = vadd.xlane.f32.xlu0 %v4253
        %v4255 = vpop.xlane.xlu0 %4254
        %v4256 = vsel %vm673, %v4224, 0.0
        %4257 = vadd.xlane.f32.xlu0 %v4256
        %v4258 = vpop.xlane.xlu0 %4257
        %v4259 = vsel %vm673, %v4226, 0.0
        %4260 = vadd.xlane.f32.xlu0 %v4259
        %v4261 = vpop.xlane.xlu0 %4260
        %v4262 = vsel %vm673, %v4228, 0.0
        %4263 = vadd.xlane.f32.xlu0 %v4262
        %v4264 = vpop.xlane.xlu0 %4263
        %v4265 = vsel %vm673, %v4230, 0.0
        %4266 = vadd.xlane.f32.xlu0 %v4265
        %v4267 = vpop.xlane.xlu0 %4266
        %v4268 = vsel %vm673, %v4232, 0.0
        %4269 = vadd.xlane.f32.xlu0 %v4268
        %v4270 = vpop.xlane.xlu0 %4269
        %v4271 = vsel %vm673, %v4234, 0.0
        %4272 = vadd.xlane.f32.xlu0 %v4271
        %v4273 = vpop.xlane.xlu0 %4272
        %v4274 = vsel %vm673, %v4236, 0.0
        %4275 = vadd.xlane.f32.xlu0 %v4274
        %v4276 = vpop.xlane.xlu0 %4275
        %v4277 = vadd.f32 %v4245, %v4255
        %v4278 = vadd.f32 %v4246, %v4258
        %v4279 = vadd.f32 %v4247, %v4261
        %v4280 = vadd.f32 %v4248, %v4264
        %v4281 = vadd.f32 %v4249, %v4267
        %v4282 = vadd.f32 %v4250, %v4270
        %v4283 = vadd.f32 %v4251, %v4273
        %v4284 = vadd.f32 %v4252, %v4276
        %vm4285 = vcmask 64568
        %4286 = vst.msk [vmem:[#allocation3] sm:$0xff] %vm4285, %v4277
        %4287 = vst.msk [vmem:[#allocation3 + $0x8] sm:$0xff] %vm4285, %v4278
        %4288 = vst.msk [vmem:[#allocation3 + $0x10] sm:$0xff] %vm4285, %v4279
        %4289 = vst.msk [vmem:[#allocation3 + $0x18] sm:$0xff] %vm4285, %v4280
        %4290 = vst.msk [vmem:[#allocation3 + $0x20] sm:$0xff] %vm4285, %v4281
        %4291 = vst.msk [vmem:[#allocation3 + $0x28] sm:$0xff] %vm4285, %v4282
        %4292 = vst.msk [vmem:[#allocation3 + $0x30] sm:$0xff] %vm4285, %v4283
        %4293 = vst.msk [vmem:[#allocation3 + $0x38] sm:$0xff] %vm4285, %v4284
        %v4294 = vld [vmem:[#allocation4] sm:$0xff]
        %v4295 = vld [vmem:[#allocation4 + $0x8] sm:$0xff]
        %v4296 = vld [vmem:[#allocation4 + $0x10] sm:$0xff]
        %v4297 = vld [vmem:[#allocation4 + $0x18] sm:$0xff]
        %v4298 = vld [vmem:[#allocation4 + $0x20] sm:$0xff]
        %v4299 = vld [vmem:[#allocation4 + $0x28] sm:$0xff]
        %v4300 = vld [vmem:[#allocation4 + $0x30] sm:$0xff]
        %v4301 = vld [vmem:[#allocation4 + $0x38] sm:$0xff]
        %4303 = vset.pattern.permute.xlu0 7
        %4304 = vperm.xlu0 %4303, %v4158
        %v4305 = vpop.permute.xlu0 %4304
        %4308 = vset.pattern.permute.xlu0 7
        %4309 = vperm.xlu0 %4308, %v4160
        %v4310 = vpop.permute.xlu0 %4309
        %4313 = vset.pattern.permute.xlu0 7
        %4314 = vperm.xlu0 %4313, %v4162
        %v4315 = vpop.permute.xlu0 %4314
        %4318 = vset.pattern.permute.xlu0 7
        %4319 = vperm.xlu0 %4318, %v4164
        %v4320 = vpop.permute.xlu0 %4319
        %4323 = vset.pattern.permute.xlu0 7
        %4324 = vperm.xlu0 %4323, %v4166
        %v4325 = vpop.permute.xlu0 %4324
        %4328 = vset.pattern.permute.xlu0 7
        %4329 = vperm.xlu0 %4328, %v4168
        %v4330 = vpop.permute.xlu0 %4329
        %4333 = vset.pattern.permute.xlu0 7
        %4334 = vperm.xlu0 %4333, %v4170
        %v4335 = vpop.permute.xlu0 %4334
        %4338 = vset.pattern.permute.xlu0 7
        %4339 = vperm.xlu0 %4338, %v4172
        %v4340 = vpop.permute.xlu0 %4339
        %v4342 = vmul.f32 %v4305, %v4294
        %v4343 = vmul.f32 %v4310, %v4295
        %v4344 = vmul.f32 %v4315, %v4296
        %v4345 = vmul.f32 %v4320, %v4297
        %v4346 = vmul.f32 %v4325, %v4298
        %v4347 = vmul.f32 %v4330, %v4299
        %v4348 = vmul.f32 %v4335, %v4300
        %v4349 = vmul.f32 %v4340, %v4301
        %v4350 = vpack.c.bf16 %v4224, %v4222
        %v4351 = vpack.c.bf16 %v4228, %v4226
        %v4352 = vpack.c.bf16 %v4232, %v4230
        %v4353 = vpack.c.bf16 %v4236, %v4234
        %4354 = vrot.lane.b32.xlu0 %v571, 68
        %v4355 = vpop.permute.xlu0 %4354
        %4356 = vrot.lane.b32.xlu0 %v572, 68
        %v4357 = vpop.permute.xlu0 %4356
        %4358 = vrot.lane.b32.xlu0 %v573, 68
        %v4359 = vpop.permute.xlu0 %4358
        %4360 = vrot.lane.b32.xlu0 %v574, 68
        %v4361 = vpop.permute.xlu0 %4360
        %v4367 = vsel %vm673, %v4350, 0
        %v4370 = vsel %vm673, %v4351, 0
        %v4373 = vsel %vm673, %v4352, 0
        %v4376 = vsel %vm673, %v4353, 0
        %4378 = vmatprep.subr.bf16.mxu0 0
        %4379 = vmatpush1.bf16.msra.mxu0 %v4355
        %4380 = vmatprep.subr.bf16.mxu0 0
        %4381 = vmatpush1.bf16.msra.mxu0 %v4357
        %4382 = vmatprep.subr.bf16.mxu0 0
        %4383 = vmatpush1.bf16.msra.mxu0 %v4359
        %4384 = vmatprep.subr.bf16.mxu0 0
        %4385 = vmatpush1.bf16.msra.mxu0 %v4361
        %4386 = vmatprep.subr.bf16.mxu0 0
        %4387 = vmatpush1.bf16.msra.mxu0 0
        %4388 = vmatprep.subr.bf16.mxu0 0
        %4389 = vmatpush1.bf16.msra.mxu0 0
        %4390 = vmatprep.subr.bf16.mxu0 0
        %4391 = vmatpush1.bf16.msra.mxu0 0
        %4392 = vmatprep.subr.bf16.mxu0 0
        %4393 = vmatpush1.bf16.msra.mxu0 0
        %4394 = vmatprep.subr.bf16.mxu0 0
        %4395 = vmatpush1.bf16.msra.mxu0 0
        %4396 = vmatprep.subr.bf16.mxu0 0
        %4397 = vmatpush1.bf16.msra.mxu0 0
        %4398 = vmatprep.subr.bf16.mxu0 0
        %4399 = vmatpush1.bf16.msra.mxu0 0
        %4400 = vmatprep.subr.bf16.mxu0 0
        %4401 = vmatpush1.bf16.msra.mxu0 0
        %4402 = vmatprep.subr.bf16.mxu0 0
        %4403 = vmatpush1.bf16.msra.mxu0 0
        %4404 = vmatprep.subr.bf16.mxu0 0
        %4405 = vmatpush1.bf16.msra.mxu0 0
        %4406 = vmatprep.subr.bf16.mxu0 0
        %4407 = vmatpush1.bf16.msra.mxu0 0
        %4408 = vmatprep.subr.bf16.mxu0 0
        %4409 = vmatpush1.bf16.msra.mxu0 0
        %4410 = vmatprep.mubr.bf16.mxu0 0
        %4411 = vmatmul.mubr.bf16.gmra.mrb[0].mxu0 %v4367
        %v4412 = vpop.f32.mrb[0].mxu0
        %v4413 = vadd.f32 0.0, %v4412
        %v4414 = vpop.f32.mrb[0].mxu0
        %v4415 = vpop.f32.mrb[0].mxu0
        %v4416 = vadd.f32 0.0, %v4415
        %v4417 = vpop.f32.mrb[0].mxu0
        %4418 = vmatprep.mubr.bf16.mxu0 0
        %4419 = vmatmul.mubr.bf16.gmra.mrb[0].mxu0 %v4370
        %v4420 = vpop.f32.mrb[0].mxu0
        %v4421 = vadd.f32 0.0, %v4420
        %v4422 = vpop.f32.mrb[0].mxu0
        %v4423 = vpop.f32.mrb[0].mxu0
        %v4424 = vadd.f32 0.0, %v4423
        %v4425 = vpop.f32.mrb[0].mxu0
        %4426 = vmatprep.mubr.bf16.mxu0 0
        %4427 = vmatmul.mubr.bf16.gmra.mrb[0].mxu0 %v4373
        %v4428 = vpop.f32.mrb[0].mxu0
        %v4429 = vadd.f32 0.0, %v4428
        %v4430 = vpop.f32.mrb[0].mxu0
        %v4431 = vpop.f32.mrb[0].mxu0
        %v4432 = vadd.f32 0.0, %v4431
        %v4433 = vpop.f32.mrb[0].mxu0
        %4434 = vmatprep.mubr.bf16.mxu0 0
        %4435 = vmatmul.mubr.bf16.gmra.mrb[0].mxu0 %v4376
        %v4436 = vpop.f32.mrb[0].mxu0
        %v4437 = vadd.f32 0.0, %v4436
        %v4438 = vpop.f32.mrb[0].mxu0
        %v4439 = vpop.f32.mrb[0].mxu0
        %v4440 = vadd.f32 0.0, %v4439
        %v4441 = vpop.f32.mrb[0].mxu0
        %4442 = vdwg.mxu0
        %4451 = vrot.lane.b32.xlu0 %v4413, 28
        %v4452 = vpop.permute.xlu0 %4451
        %4453 = vrot.lane.b32.xlu0 %v4416, 28
        %v4454 = vpop.permute.xlu0 %4453
        %4455 = vrot.lane.b32.xlu0 %v4421, 28
        %v4456 = vpop.permute.xlu0 %4455
        %4457 = vrot.lane.b32.xlu0 %v4424, 28
        %v4458 = vpop.permute.xlu0 %4457
        %4459 = vrot.lane.b32.xlu0 %v4429, 28
        %v4460 = vpop.permute.xlu0 %4459
        %4461 = vrot.lane.b32.xlu0 %v4432, 28
        %v4462 = vpop.permute.xlu0 %4461
        %4463 = vrot.lane.b32.xlu0 %v4437, 28
        %v4464 = vpop.permute.xlu0 %4463
        %4465 = vrot.lane.b32.xlu0 %v4440, 28
        %v4466 = vpop.permute.xlu0 %4465
        %v4475 = vadd.f32 %v4342, %v4452
        %v4476 = vadd.f32 %v4343, %v4454
        %v4477 = vadd.f32 %v4344, %v4456
        %v4478 = vadd.f32 %v4345, %v4458
        %v4479 = vadd.f32 %v4346, %v4460
        %v4480 = vadd.f32 %v4347, %v4462
        %v4481 = vadd.f32 %v4348, %v4464
        %v4482 = vadd.f32 %v4349, %v4466
        %vm4483 = vcmask 261344
        %4484 = vst.msk [vmem:[#allocation4] sm:$0xff] %vm4483, %v4475
        %4485 = vst.msk [vmem:[#allocation4 + $0x8] sm:$0xff] %vm4483, %v4476
        %4486 = vst.msk [vmem:[#allocation4 + $0x10] sm:$0xff] %vm4483, %v4477
        %4487 = vst.msk [vmem:[#allocation4 + $0x18] sm:$0xff] %vm4483, %v4478
        %4488 = vst.msk [vmem:[#allocation4 + $0x20] sm:$0xff] %vm4483, %v4479
        %4489 = vst.msk [vmem:[#allocation4 + $0x28] sm:$0xff] %vm4483, %v4480
        %4490 = vst.msk [vmem:[#allocation4 + $0x30] sm:$0xff] %vm4483, %v4481
        %4491 = vst.msk [vmem:[#allocation4 + $0x38] sm:$0xff] %vm4483, %v4482
        %4492 = vst.msk [vmem:[#allocation2] sm:$0xff] %vm4285, %v4141
        %4493 = vst.msk [vmem:[#allocation2 + $0x8] sm:$0xff] %vm4285, %v4142
        %4494 = vst.msk [vmem:[#allocation2 + $0x10] sm:$0xff] %vm4285, %v4143
        %4495 = vst.msk [vmem:[#allocation2 + $0x18] sm:$0xff] %vm4285, %v4144
        %4496 = vst.msk [vmem:[#allocation2 + $0x20] sm:$0xff] %vm4285, %v4145
        %4497 = vst.msk [vmem:[#allocation2 + $0x28] sm:$0xff] %vm4285, %v4146
        %4498 = vst.msk [vmem:[#allocation2 + $0x30] sm:$0xff] %vm4285, %v4147
        %4499 = vst.msk [vmem:[#allocation2 + $0x38] sm:$0xff] %vm4285, %v4148
        // Predicated region
        $region65: #{psa_block_forward.7} parent=59 // pred_check
          %p4500 = pneg %p505
        $region66: #{psa_block_forward.7} parent=59 // pred_check_branch
          %4502 = sbr.rel (%p4500) target = $region68
        $region67: #{psa_block_forward.7} parent=59 // pred_region
          %v4503 = vld [vmem:[#allocation3] sm:$0xff]
          %v4504 = vld [vmem:[#allocation3 + $0x8] sm:$0xff]
          %v4505 = vld [vmem:[#allocation3 + $0x10] sm:$0xff]
          %v4506 = vld [vmem:[#allocation3 + $0x18] sm:$0xff]
          %v4507 = vld [vmem:[#allocation3 + $0x20] sm:$0xff]
          %v4508 = vld [vmem:[#allocation3 + $0x28] sm:$0xff]
          %v4509 = vld [vmem:[#allocation3 + $0x30] sm:$0xff]
          %v4510 = vld [vmem:[#allocation3 + $0x38] sm:$0xff]
          %v4511 = vrcp.pop %v4503
          %v4512 = vrcp.pop %v4504
          %v4513 = vrcp.pop %v4505
          %v4514 = vrcp.pop %v4506
          %v4515 = vrcp.pop %v4507
          %v4516 = vrcp.pop %v4508
          %v4517 = vrcp.pop %v4509
          %v4518 = vrcp.pop %v4510
          %v4519 = vld [vmem:[#allocation4] sm:$0xff]
          %v4520 = vld [vmem:[#allocation4 + $0x8] sm:$0xff]
          %v4521 = vld [vmem:[#allocation4 + $0x10] sm:$0xff]
          %v4522 = vld [vmem:[#allocation4 + $0x18] sm:$0xff]
          %v4523 = vld [vmem:[#allocation4 + $0x20] sm:$0xff]
          %v4524 = vld [vmem:[#allocation4 + $0x28] sm:$0xff]
          %v4525 = vld [vmem:[#allocation4 + $0x30] sm:$0xff]
          %v4526 = vld [vmem:[#allocation4 + $0x38] sm:$0xff]
          %4528 = vset.pattern.permute.xlu0 0
          %4529 = vperm.xlu0 %4528, %v4511
          %v4530 = vpop.permute.xlu0 %4529
          %4533 = vset.pattern.permute.xlu0 0
          %4534 = vperm.xlu0 %4533, %v4512
          %v4535 = vpop.permute.xlu0 %4534
          %4538 = vset.pattern.permute.xlu0 0
          %4539 = vperm.xlu0 %4538, %v4513
          %v4540 = vpop.permute.xlu0 %4539
          %4543 = vset.pattern.permute.xlu0 0
          %4544 = vperm.xlu0 %4543, %v4514
          %v4545 = vpop.permute.xlu0 %4544
          %4548 = vset.pattern.permute.xlu0 0
          %4549 = vperm.xlu0 %4548, %v4515
          %v4550 = vpop.permute.xlu0 %4549
          %4553 = vset.pattern.permute.xlu0 0
          %4554 = vperm.xlu0 %4553, %v4516
          %v4555 = vpop.permute.xlu0 %4554
          %4558 = vset.pattern.permute.xlu0 0
          %4559 = vperm.xlu0 %4558, %v4517
          %v4560 = vpop.permute.xlu0 %4559
          %4563 = vset.pattern.permute.xlu0 0
          %4564 = vperm.xlu0 %4563, %v4518
          %v4565 = vpop.permute.xlu0 %4564
          %v4567 = vmul.f32 %v4519, %v4530
          %v4568 = vmul.f32 %v4520, %v4535
          %v4569 = vmul.f32 %v4521, %v4540
          %v4570 = vmul.f32 %v4522, %v4545
          %v4571 = vmul.f32 %v4523, %v4550
          %v4572 = vmul.f32 %v4524, %v4555
          %v4573 = vmul.f32 %v4525, %v4560
          %v4574 = vmul.f32 %v4526, %v4565
          %4575 = vst.msk [vmem:[#allocation4] sm:$0xff] %vm575, %v4567
          %4576 = vst.msk [vmem:[#allocation4 + $0x8] sm:$0xff] %vm575, %v4568
          %4577 = vst.msk [vmem:[#allocation4 + $0x10] sm:$0xff] %vm575, %v4569
          %4578 = vst.msk [vmem:[#allocation4 + $0x18] sm:$0xff] %vm575, %v4570
          %4579 = vst.msk [vmem:[#allocation4 + $0x20] sm:$0xff] %vm575, %v4571
          %4580 = vst.msk [vmem:[#allocation4 + $0x28] sm:$0xff] %vm575, %v4572
          %4581 = vst.msk [vmem:[#allocation4 + $0x30] sm:$0xff] %vm575, %v4573
          %4582 = vst.msk [vmem:[#allocation4 + $0x38] sm:$0xff] %vm575, %v4574
          %v4583 = vld [vmem:[#allocation3] sm:$0xff]
          %v4584 = vld [vmem:[#allocation3 + $0x8] sm:$0xff]
          %v4585 = vld [vmem:[#allocation3 + $0x10] sm:$0xff]
          %v4586 = vld [vmem:[#allocation3 + $0x18] sm:$0xff]
          %v4587 = vld [vmem:[#allocation3 + $0x20] sm:$0xff]
          %v4588 = vld [vmem:[#allocation3 + $0x28] sm:$0xff]
          %v4589 = vld [vmem:[#allocation3 + $0x30] sm:$0xff]
          %v4590 = vld [vmem:[#allocation3 + $0x38] sm:$0xff]
          %v4591 = vrcp.pop %v4583
          %v4592 = vrcp.pop %v4584
          %v4593 = vrcp.pop %v4585
          %v4594 = vrcp.pop %v4586
          %v4595 = vrcp.pop %v4587
          %v4596 = vrcp.pop %v4588
          %v4597 = vrcp.pop %v4589
          %v4598 = vrcp.pop %v4590
          %v4599 = vld [vmem:[#allocation4] sm:$0xff]
          %v4600 = vld [vmem:[#allocation4 + $0x8] sm:$0xff]
          %v4601 = vld [vmem:[#allocation4 + $0x10] sm:$0xff]
          %v4602 = vld [vmem:[#allocation4 + $0x18] sm:$0xff]
          %v4603 = vld [vmem:[#allocation4 + $0x20] sm:$0xff]
          %v4604 = vld [vmem:[#allocation4 + $0x28] sm:$0xff]
          %v4605 = vld [vmem:[#allocation4 + $0x30] sm:$0xff]
          %v4606 = vld [vmem:[#allocation4 + $0x38] sm:$0xff]
          %4608 = vset.pattern.permute.xlu0 1
          %4609 = vperm.xlu0 %4608, %v4591
          %v4610 = vpop.permute.xlu0 %4609
          %4613 = vset.pattern.permute.xlu0 1
          %4614 = vperm.xlu0 %4613, %v4592
          %v4615 = vpop.permute.xlu0 %4614
          %4618 = vset.pattern.permute.xlu0 1
          %4619 = vperm.xlu0 %4618, %v4593
          %v4620 = vpop.permute.xlu0 %4619
          %4623 = vset.pattern.permute.xlu0 1
          %4624 = vperm.xlu0 %4623, %v4594
          %v4625 = vpop.permute.xlu0 %4624
          %4628 = vset.pattern.permute.xlu0 1
          %4629 = vperm.xlu0 %4628, %v4595
          %v4630 = vpop.permute.xlu0 %4629
          %4633 = vset.pattern.permute.xlu0 1
          %4634 = vperm.xlu0 %4633, %v4596
          %v4635 = vpop.permute.xlu0 %4634
          %4638 = vset.pattern.permute.xlu0 1
          %4639 = vperm.xlu0 %4638, %v4597
          %v4640 = vpop.permute.xlu0 %4639
          %4643 = vset.pattern.permute.xlu0 1
          %4644 = vperm.xlu0 %4643, %v4598
          %v4645 = vpop.permute.xlu0 %4644
          %v4647 = vmul.f32 %v4599, %v4610
          %v4648 = vmul.f32 %v4600, %v4615
          %v4649 = vmul.f32 %v4601, %v4620
          %v4650 = vmul.f32 %v4602, %v4625
          %v4651 = vmul.f32 %v4603, %v4630
          %v4652 = vmul.f32 %v4604, %v4635
          %v4653 = vmul.f32 %v4605, %v4640
          %v4654 = vmul.f32 %v4606, %v4645
          %4655 = vst.msk [vmem:[#allocation4] sm:$0xff] %vm1507, %v4647
          %4656 = vst.msk [vmem:[#allocation4 + $0x8] sm:$0xff] %vm1507, %v4648
          %4657 = vst.msk [vmem:[#allocation4 + $0x10] sm:$0xff] %vm1507, %v4649
          %4658 = vst.msk [vmem:[#allocation4 + $0x18] sm:$0xff] %vm1507, %v4650
          %4659 = vst.msk [vmem:[#allocation4 + $0x20] sm:$0xff] %vm1507, %v4651
          %4660 = vst.msk [vmem:[#allocation4 + $0x28] sm:$0xff] %vm1507, %v4652
          %4661 = vst.msk [vmem:[#allocation4 + $0x30] sm:$0xff] %vm1507, %v4653
          %4662 = vst.msk [vmem:[#allocation4 + $0x38] sm:$0xff] %vm1507, %v4654
          %v4663 = vld [vmem:[#allocation3] sm:$0xff]
          %v4664 = vld [vmem:[#allocation3 + $0x8] sm:$0xff]
          %v4665 = vld [vmem:[#allocation3 + $0x10] sm:$0xff]
          %v4666 = vld [vmem:[#allocation3 + $0x18] sm:$0xff]
          %v4667 = vld [vmem:[#allocation3 + $0x20] sm:$0xff]
          %v4668 = vld [vmem:[#allocation3 + $0x28] sm:$0xff]
          %v4669 = vld [vmem:[#allocation3 + $0x30] sm:$0xff]
          %v4670 = vld [vmem:[#allocation3 + $0x38] sm:$0xff]
          %v4671 = vrcp.pop %v4663
          %v4672 = vrcp.pop %v4664
          %v4673 = vrcp.pop %v4665
          %v4674 = vrcp.pop %v4666
          %v4675 = vrcp.pop %v4667
          %v4676 = vrcp.pop %v4668
          %v4677 = vrcp.pop %v4669
          %v4678 = vrcp.pop %v4670
          %v4679 = vld [vmem:[#allocation4] sm:$0xff]
          %v4680 = vld [vmem:[#allocation4 + $0x8] sm:$0xff]
          %v4681 = vld [vmem:[#allocation4 + $0x10] sm:$0xff]
          %v4682 = vld [vmem:[#allocation4 + $0x18] sm:$0xff]
          %v4683 = vld [vmem:[#allocation4 + $0x20] sm:$0xff]
          %v4684 = vld [vmem:[#allocation4 + $0x28] sm:$0xff]
          %v4685 = vld [vmem:[#allocation4 + $0x30] sm:$0xff]
          %v4686 = vld [vmem:[#allocation4 + $0x38] sm:$0xff]
          %4688 = vset.pattern.permute.xlu0 2
          %4689 = vperm.xlu0 %4688, %v4671
          %v4690 = vpop.permute.xlu0 %4689
          %4693 = vset.pattern.permute.xlu0 2
          %4694 = vperm.xlu0 %4693, %v4672
          %v4695 = vpop.permute.xlu0 %4694
          %4698 = vset.pattern.permute.xlu0 2
          %4699 = vperm.xlu0 %4698, %v4673
          %v4700 = vpop.permute.xlu0 %4699
          %4703 = vset.pattern.permute.xlu0 2
          %4704 = vperm.xlu0 %4703, %v4674
          %v4705 = vpop.permute.xlu0 %4704
          %4708 = vset.pattern.permute.xlu0 2
          %4709 = vperm.xlu0 %4708, %v4675
          %v4710 = vpop.permute.xlu0 %4709
          %4713 = vset.pattern.permute.xlu0 2
          %4714 = vperm.xlu0 %4713, %v4676
          %v4715 = vpop.permute.xlu0 %4714
          %4718 = vset.pattern.permute.xlu0 2
          %4719 = vperm.xlu0 %4718, %v4677
          %v4720 = vpop.permute.xlu0 %4719
          %4723 = vset.pattern.permute.xlu0 2
          %4724 = vperm.xlu0 %4723, %v4678
          %v4725 = vpop.permute.xlu0 %4724
          %v4727 = vmul.f32 %v4679, %v4690
          %v4728 = vmul.f32 %v4680, %v4695
          %v4729 = vmul.f32 %v4681, %v4700
          %v4730 = vmul.f32 %v4682, %v4705
          %v4731 = vmul.f32 %v4683, %v4710
          %v4732 = vmul.f32 %v4684, %v4715
          %v4733 = vmul.f32 %v4685, %v4720
          %v4734 = vmul.f32 %v4686, %v4725
          %4735 = vst.msk [vmem:[#allocation4] sm:$0xff] %vm2003, %v4727
          %4736 = vst.msk [vmem:[#allocation4 + $0x8] sm:$0xff] %vm2003, %v4728
          %4737 = vst.msk [vmem:[#allocation4 + $0x10] sm:$0xff] %vm2003, %v4729
          %4738 = vst.msk [vmem:[#allocation4 + $0x18] sm:$0xff] %vm2003, %v4730
          %4739 = vst.msk [vmem:[#allocation4 + $0x20] sm:$0xff] %vm2003, %v4731
          %4740 = vst.msk [vmem:[#allocation4 + $0x28] sm:$0xff] %vm2003, %v4732
          %4741 = vst.msk [vmem:[#allocation4 + $0x30] sm:$0xff] %vm2003, %v4733
          %4742 = vst.msk [vmem:[#allocation4 + $0x38] sm:$0xff] %vm2003, %v4734
          %v4743 = vld [vmem:[#allocation3] sm:$0xff]
          %v4744 = vld [vmem:[#allocation3 + $0x8] sm:$0xff]
          %v4745 = vld [vmem:[#allocation3 + $0x10] sm:$0xff]
          %v4746 = vld [vmem:[#allocation3 + $0x18] sm:$0xff]
          %v4747 = vld [vmem:[#allocation3 + $0x20] sm:$0xff]
          %v4748 = vld [vmem:[#allocation3 + $0x28] sm:$0xff]
          %v4749 = vld [vmem:[#allocation3 + $0x30] sm:$0xff]
          %v4750 = vld [vmem:[#allocation3 + $0x38] sm:$0xff]
          %v4751 = vrcp.pop %v4743
          %v4752 = vrcp.pop %v4744
          %v4753 = vrcp.pop %v4745
          %v4754 = vrcp.pop %v4746
          %v4755 = vrcp.pop %v4747
          %v4756 = vrcp.pop %v4748
          %v4757 = vrcp.pop %v4749
          %v4758 = vrcp.pop %v4750
          %v4759 = vld [vmem:[#allocation4] sm:$0xff]
          %v4760 = vld [vmem:[#allocation4 + $0x8] sm:$0xff]
          %v4761 = vld [vmem:[#allocation4 + $0x10] sm:$0xff]
          %v4762 = vld [vmem:[#allocation4 + $0x18] sm:$0xff]
          %v4763 = vld [vmem:[#allocation4 + $0x20] sm:$0xff]
          %v4764 = vld [vmem:[#allocation4 + $0x28] sm:$0xff]
          %v4765 = vld [vmem:[#allocation4 + $0x30] sm:$0xff]
          %v4766 = vld [vmem:[#allocation4 + $0x38] sm:$0xff]
          %4768 = vset.pattern.permute.xlu0 3
          %4769 = vperm.xlu0 %4768, %v4751
          %v4770 = vpop.permute.xlu0 %4769
          %4773 = vset.pattern.permute.xlu0 3
          %4774 = vperm.xlu0 %4773, %v4752
          %v4775 = vpop.permute.xlu0 %4774
          %4778 = vset.pattern.permute.xlu0 3
          %4779 = vperm.xlu0 %4778, %v4753
          %v4780 = vpop.permute.xlu0 %4779
          %4783 = vset.pattern.permute.xlu0 3
          %4784 = vperm.xlu0 %4783, %v4754
          %v4785 = vpop.permute.xlu0 %4784
          %4788 = vset.pattern.permute.xlu0 3
          %4789 = vperm.xlu0 %4788, %v4755
          %v4790 = vpop.permute.xlu0 %4789
          %4793 = vset.pattern.permute.xlu0 3
          %4794 = vperm.xlu0 %4793, %v4756
          %v4795 = vpop.permute.xlu0 %4794
          %4798 = vset.pattern.permute.xlu0 3
          %4799 = vperm.xlu0 %4798, %v4757
          %v4800 = vpop.permute.xlu0 %4799
          %4803 = vset.pattern.permute.xlu0 3
          %4804 = vperm.xlu0 %4803, %v4758
          %v4805 = vpop.permute.xlu0 %4804
          %v4807 = vmul.f32 %v4759, %v4770
          %v4808 = vmul.f32 %v4760, %v4775
          %v4809 = vmul.f32 %v4761, %v4780
          %v4810 = vmul.f32 %v4762, %v4785
          %v4811 = vmul.f32 %v4763, %v4790
          %v4812 = vmul.f32 %v4764, %v4795
          %v4813 = vmul.f32 %v4765, %v4800
          %v4814 = vmul.f32 %v4766, %v4805
          %4815 = vst.msk [vmem:[#allocation4] sm:$0xff] %vm2499, %v4807
          %4816 = vst.msk [vmem:[#allocation4 + $0x8] sm:$0xff] %vm2499, %v4808
          %4817 = vst.msk [vmem:[#allocation4 + $0x10] sm:$0xff] %vm2499, %v4809
          %4818 = vst.msk [vmem:[#allocation4 + $0x18] sm:$0xff] %vm2499, %v4810
          %4819 = vst.msk [vmem:[#allocation4 + $0x20] sm:$0xff] %vm2499, %v4811
          %4820 = vst.msk [vmem:[#allocation4 + $0x28] sm:$0xff] %vm2499, %v4812
          %4821 = vst.msk [vmem:[#allocation4 + $0x30] sm:$0xff] %vm2499, %v4813
          %4822 = vst.msk [vmem:[#allocation4 + $0x38] sm:$0xff] %vm2499, %v4814
          %v4823 = vld [vmem:[#allocation3] sm:$0xff]
          %v4824 = vld [vmem:[#allocation3 + $0x8] sm:$0xff]
          %v4825 = vld [vmem:[#allocation3 + $0x10] sm:$0xff]
          %v4826 = vld [vmem:[#allocation3 + $0x18] sm:$0xff]
          %v4827 = vld [vmem:[#allocation3 + $0x20] sm:$0xff]
          %v4828 = vld [vmem:[#allocation3 + $0x28] sm:$0xff]
          %v4829 = vld [vmem:[#allocation3 + $0x30] sm:$0xff]
          %v4830 = vld [vmem:[#allocation3 + $0x38] sm:$0xff]
          %v4831 = vrcp.pop %v4823
          %v4832 = vrcp.pop %v4824
          %v4833 = vrcp.pop %v4825
          %v4834 = vrcp.pop %v4826
          %v4835 = vrcp.pop %v4827
          %v4836 = vrcp.pop %v4828
          %v4837 = vrcp.pop %v4829
          %v4838 = vrcp.pop %v4830
          %v4839 = vld [vmem:[#allocation4] sm:$0xff]
          %v4840 = vld [vmem:[#allocation4 + $0x8] sm:$0xff]
          %v4841 = vld [vmem:[#allocation4 + $0x10] sm:$0xff]
          %v4842 = vld [vmem:[#allocation4 + $0x18] sm:$0xff]
          %v4843 = vld [vmem:[#allocation4 + $0x20] sm:$0xff]
          %v4844 = vld [vmem:[#allocation4 + $0x28] sm:$0xff]
          %v4845 = vld [vmem:[#allocation4 + $0x30] sm:$0xff]
          %v4846 = vld [vmem:[#allocation4 + $0x38] sm:$0xff]
          %4848 = vset.pattern.permute.xlu0 4
          %4849 = vperm.xlu0 %4848, %v4831
          %v4850 = vpop.permute.xlu0 %4849
          %4853 = vset.pattern.permute.xlu0 4
          %4854 = vperm.xlu0 %4853, %v4832
          %v4855 = vpop.permute.xlu0 %4854
          %4858 = vset.pattern.permute.xlu0 4
          %4859 = vperm.xlu0 %4858, %v4833
          %v4860 = vpop.permute.xlu0 %4859
          %4863 = vset.pattern.permute.xlu0 4
          %4864 = vperm.xlu0 %4863, %v4834
          %v4865 = vpop.permute.xlu0 %4864
          %4868 = vset.pattern.permute.xlu0 4
          %4869 = vperm.xlu0 %4868, %v4835
          %v4870 = vpop.permute.xlu0 %4869
          %4873 = vset.pattern.permute.xlu0 4
          %4874 = vperm.xlu0 %4873, %v4836
          %v4875 = vpop.permute.xlu0 %4874
          %4878 = vset.pattern.permute.xlu0 4
          %4879 = vperm.xlu0 %4878, %v4837
          %v4880 = vpop.permute.xlu0 %4879
          %4883 = vset.pattern.permute.xlu0 4
          %4884 = vperm.xlu0 %4883, %v4838
          %v4885 = vpop.permute.xlu0 %4884
          %v4887 = vmul.f32 %v4839, %v4850
          %v4888 = vmul.f32 %v4840, %v4855
          %v4889 = vmul.f32 %v4841, %v4860
          %v4890 = vmul.f32 %v4842, %v4865
          %v4891 = vmul.f32 %v4843, %v4870
          %v4892 = vmul.f32 %v4844, %v4875
          %v4893 = vmul.f32 %v4845, %v4880
          %v4894 = vmul.f32 %v4846, %v4885
          %4895 = vst.msk [vmem:[#allocation4] sm:$0xff] %vm2995, %v4887
          %4896 = vst.msk [vmem:[#allocation4 + $0x8] sm:$0xff] %vm2995, %v4888
          %4897 = vst.msk [vmem:[#allocation4 + $0x10] sm:$0xff] %vm2995, %v4889
          %4898 = vst.msk [vmem:[#allocation4 + $0x18] sm:$0xff] %vm2995, %v4890
          %4899 = vst.msk [vmem:[#allocation4 + $0x20] sm:$0xff] %vm2995, %v4891
          %4900 = vst.msk [vmem:[#allocation4 + $0x28] sm:$0xff] %vm2995, %v4892
          %4901 = vst.msk [vmem:[#allocation4 + $0x30] sm:$0xff] %vm2995, %v4893
          %4902 = vst.msk [vmem:[#allocation4 + $0x38] sm:$0xff] %vm2995, %v4894
          %v4903 = vld [vmem:[#allocation3] sm:$0xff]
          %v4904 = vld [vmem:[#allocation3 + $0x8] sm:$0xff]
          %v4905 = vld [vmem:[#allocation3 + $0x10] sm:$0xff]
          %v4906 = vld [vmem:[#allocation3 + $0x18] sm:$0xff]
          %v4907 = vld [vmem:[#allocation3 + $0x20] sm:$0xff]
          %v4908 = vld [vmem:[#allocation3 + $0x28] sm:$0xff]
          %v4909 = vld [vmem:[#allocation3 + $0x30] sm:$0xff]
          %v4910 = vld [vmem:[#allocation3 + $0x38] sm:$0xff]
          %v4911 = vrcp.pop %v4903
          %v4912 = vrcp.pop %v4904
          %v4913 = vrcp.pop %v4905
          %v4914 = vrcp.pop %v4906
          %v4915 = vrcp.pop %v4907
          %v4916 = vrcp.pop %v4908
          %v4917 = vrcp.pop %v4909
          %v4918 = vrcp.pop %v4910
          %v4919 = vld [vmem:[#allocation4] sm:$0xff]
          %v4920 = vld [vmem:[#allocation4 + $0x8] sm:$0xff]
          %v4921 = vld [vmem:[#allocation4 + $0x10] sm:$0xff]
          %v4922 = vld [vmem:[#allocation4 + $0x18] sm:$0xff]
          %v4923 = vld [vmem:[#allocation4 + $0x20] sm:$0xff]
          %v4924 = vld [vmem:[#allocation4 + $0x28] sm:$0xff]
          %v4925 = vld [vmem:[#allocation4 + $0x30] sm:$0xff]
          %v4926 = vld [vmem:[#allocation4 + $0x38] sm:$0xff]
          %4928 = vset.pattern.permute.xlu0 5
          %4929 = vperm.xlu0 %4928, %v4911
          %v4930 = vpop.permute.xlu0 %4929
          %4933 = vset.pattern.permute.xlu0 5
          %4934 = vperm.xlu0 %4933, %v4912
          %v4935 = vpop.permute.xlu0 %4934
          %4938 = vset.pattern.permute.xlu0 5
          %4939 = vperm.xlu0 %4938, %v4913
          %v4940 = vpop.permute.xlu0 %4939
          %4943 = vset.pattern.permute.xlu0 5
          %4944 = vperm.xlu0 %4943, %v4914
          %v4945 = vpop.permute.xlu0 %4944
          %4948 = vset.pattern.permute.xlu0 5
          %4949 = vperm.xlu0 %4948, %v4915
          %v4950 = vpop.permute.xlu0 %4949
          %4953 = vset.pattern.permute.xlu0 5
          %4954 = vperm.xlu0 %4953, %v4916
          %v4955 = vpop.permute.xlu0 %4954
          %4958 = vset.pattern.permute.xlu0 5
          %4959 = vperm.xlu0 %4958, %v4917
          %v4960 = vpop.permute.xlu0 %4959
          %4963 = vset.pattern.permute.xlu0 5
          %4964 = vperm.xlu0 %4963, %v4918
          %v4965 = vpop.permute.xlu0 %4964
          %v4967 = vmul.f32 %v4919, %v4930
          %v4968 = vmul.f32 %v4920, %v4935
          %v4969 = vmul.f32 %v4921, %v4940
          %v4970 = vmul.f32 %v4922, %v4945
          %v4971 = vmul.f32 %v4923, %v4950
          %v4972 = vmul.f32 %v4924, %v4955
          %v4973 = vmul.f32 %v4925, %v4960
          %v4974 = vmul.f32 %v4926, %v4965
          %4975 = vst.msk [vmem:[#allocation4] sm:$0xff] %vm3491, %v4967
          %4976 = vst.msk [vmem:[#allocation4 + $0x8] sm:$0xff] %vm3491, %v4968
          %4977 = vst.msk [vmem:[#allocation4 + $0x10] sm:$0xff] %vm3491, %v4969
          %4978 = vst.msk [vmem:[#allocation4 + $0x18] sm:$0xff] %vm3491, %v4970
          %4979 = vst.msk [vmem:[#allocation4 + $0x20] sm:$0xff] %vm3491, %v4971
          %4980 = vst.msk [vmem:[#allocation4 + $0x28] sm:$0xff] %vm3491, %v4972
          %4981 = vst.msk [vmem:[#allocation4 + $0x30] sm:$0xff] %vm3491, %v4973
          %4982 = vst.msk [vmem:[#allocation4 + $0x38] sm:$0xff] %vm3491, %v4974
          %v4983 = vld [vmem:[#allocation3] sm:$0xff]
          %v4984 = vld [vmem:[#allocation3 + $0x8] sm:$0xff]
          %v4985 = vld [vmem:[#allocation3 + $0x10] sm:$0xff]
          %v4986 = vld [vmem:[#allocation3 + $0x18] sm:$0xff]
          %v4987 = vld [vmem:[#allocation3 + $0x20] sm:$0xff]
          %v4988 = vld [vmem:[#allocation3 + $0x28] sm:$0xff]
          %v4989 = vld [vmem:[#allocation3 + $0x30] sm:$0xff]
          %v4990 = vld [vmem:[#allocation3 + $0x38] sm:$0xff]
          %v4991 = vrcp.pop %v4983
          %v4992 = vrcp.pop %v4984
          %v4993 = vrcp.pop %v4985
          %v4994 = vrcp.pop %v4986
          %v4995 = vrcp.pop %v4987
          %v4996 = vrcp.pop %v4988
          %v4997 = vrcp.pop %v4989
          %v4998 = vrcp.pop %v4990
          %v4999 = vld [vmem:[#allocation4] sm:$0xff]
          %v5000 = vld [vmem:[#allocation4 + $0x8] sm:$0xff]
          %v5001 = vld [vmem:[#allocation4 + $0x10] sm:$0xff]
          %v5002 = vld [vmem:[#allocation4 + $0x18] sm:$0xff]
          %v5003 = vld [vmem:[#allocation4 + $0x20] sm:$0xff]
          %v5004 = vld [vmem:[#allocation4 + $0x28] sm:$0xff]
          %v5005 = vld [vmem:[#allocation4 + $0x30] sm:$0xff]
          %v5006 = vld [vmem:[#allocation4 + $0x38] sm:$0xff]
          %5008 = vset.pattern.permute.xlu0 6
          %5009 = vperm.xlu0 %5008, %v4991
          %v5010 = vpop.permute.xlu0 %5009
          %5013 = vset.pattern.permute.xlu0 6
          %5014 = vperm.xlu0 %5013, %v4992
          %v5015 = vpop.permute.xlu0 %5014
          %5018 = vset.pattern.permute.xlu0 6
          %5019 = vperm.xlu0 %5018, %v4993
          %v5020 = vpop.permute.xlu0 %5019
          %5023 = vset.pattern.permute.xlu0 6
          %5024 = vperm.xlu0 %5023, %v4994
          %v5025 = vpop.permute.xlu0 %5024
          %5028 = vset.pattern.permute.xlu0 6
          %5029 = vperm.xlu0 %5028, %v4995
          %v5030 = vpop.permute.xlu0 %5029
          %5033 = vset.pattern.permute.xlu0 6
          %5034 = vperm.xlu0 %5033, %v4996
          %v5035 = vpop.permute.xlu0 %5034
          %5038 = vset.pattern.permute.xlu0 6
          %5039 = vperm.xlu0 %5038, %v4997
          %v5040 = vpop.permute.xlu0 %5039
          %5043 = vset.pattern.permute.xlu0 6
          %5044 = vperm.xlu0 %5043, %v4998
          %v5045 = vpop.permute.xlu0 %5044
          %v5047 = vmul.f32 %v4999, %v5010
          %v5048 = vmul.f32 %v5000, %v5015
          %v5049 = vmul.f32 %v5001, %v5020
          %v5050 = vmul.f32 %v5002, %v5025
          %v5051 = vmul.f32 %v5003, %v5030
          %v5052 = vmul.f32 %v5004, %v5035
          %v5053 = vmul.f32 %v5005, %v5040
          %v5054 = vmul.f32 %v5006, %v5045
          %5055 = vst.msk [vmem:[#allocation4] sm:$0xff] %vm3987, %v5047
          %5056 = vst.msk [vmem:[#allocation4 + $0x8] sm:$0xff] %vm3987, %v5048
          %5057 = vst.msk [vmem:[#allocation4 + $0x10] sm:$0xff] %vm3987, %v5049
          %5058 = vst.msk [vmem:[#allocation4 + $0x18] sm:$0xff] %vm3987, %v5050
          %5059 = vst.msk [vmem:[#allocation4 + $0x20] sm:$0xff] %vm3987, %v5051
          %5060 = vst.msk [vmem:[#allocation4 + $0x28] sm:$0xff] %vm3987, %v5052
          %5061 = vst.msk [vmem:[#allocation4 + $0x30] sm:$0xff] %vm3987, %v5053
          %5062 = vst.msk [vmem:[#allocation4 + $0x38] sm:$0xff] %vm3987, %v5054
          %v5063 = vld [vmem:[#allocation3] sm:$0xff]
          %v5064 = vld [vmem:[#allocation3 + $0x8] sm:$0xff]
          %v5065 = vld [vmem:[#allocation3 + $0x10] sm:$0xff]
          %v5066 = vld [vmem:[#allocation3 + $0x18] sm:$0xff]
          %v5067 = vld [vmem:[#allocation3 + $0x20] sm:$0xff]
          %v5068 = vld [vmem:[#allocation3 + $0x28] sm:$0xff]
          %v5069 = vld [vmem:[#allocation3 + $0x30] sm:$0xff]
          %v5070 = vld [vmem:[#allocation3 + $0x38] sm:$0xff]
          %v5071 = vrcp.pop %v5063
          %v5072 = vrcp.pop %v5064
          %v5073 = vrcp.pop %v5065
          %v5074 = vrcp.pop %v5066
          %v5075 = vrcp.pop %v5067
          %v5076 = vrcp.pop %v5068
          %v5077 = vrcp.pop %v5069
          %v5078 = vrcp.pop %v5070
          %v5079 = vld [vmem:[#allocation4] sm:$0xff]
          %v5080 = vld [vmem:[#allocation4 + $0x8] sm:$0xff]
          %v5081 = vld [vmem:[#allocation4 + $0x10] sm:$0xff]
          %v5082 = vld [vmem:[#allocation4 + $0x18] sm:$0xff]
          %v5083 = vld [vmem:[#allocation4 + $0x20] sm:$0xff]
          %v5084 = vld [vmem:[#allocation4 + $0x28] sm:$0xff]
          %v5085 = vld [vmem:[#allocation4 + $0x30] sm:$0xff]
          %v5086 = vld [vmem:[#allocation4 + $0x38] sm:$0xff]
          %5088 = vset.pattern.permute.xlu0 7
          %5089 = vperm.xlu0 %5088, %v5071
          %v5090 = vpop.permute.xlu0 %5089
          %5093 = vset.pattern.permute.xlu0 7
          %5094 = vperm.xlu0 %5093, %v5072
          %v5095 = vpop.permute.xlu0 %5094
          %5098 = vset.pattern.permute.xlu0 7
          %5099 = vperm.xlu0 %5098, %v5073
          %v5100 = vpop.permute.xlu0 %5099
          %5103 = vset.pattern.permute.xlu0 7
          %5104 = vperm.xlu0 %5103, %v5074
          %v5105 = vpop.permute.xlu0 %5104
          %5108 = vset.pattern.permute.xlu0 7
          %5109 = vperm.xlu0 %5108, %v5075
          %v5110 = vpop.permute.xlu0 %5109
          %5113 = vset.pattern.permute.xlu0 7
          %5114 = vperm.xlu0 %5113, %v5076
          %v5115 = vpop.permute.xlu0 %5114
          %5118 = vset.pattern.permute.xlu0 7
          %5119 = vperm.xlu0 %5118, %v5077
          %v5120 = vpop.permute.xlu0 %5119
          %5123 = vset.pattern.permute.xlu0 7
          %5124 = vperm.xlu0 %5123, %v5078
          %v5125 = vpop.permute.xlu0 %5124
          %v5127 = vmul.f32 %v5079, %v5090
          %v5128 = vmul.f32 %v5080, %v5095
          %v5129 = vmul.f32 %v5081, %v5100
          %v5130 = vmul.f32 %v5082, %v5105
          %v5131 = vmul.f32 %v5083, %v5110
          %v5132 = vmul.f32 %v5084, %v5115
          %v5133 = vmul.f32 %v5085, %v5120
          %v5134 = vmul.f32 %v5086, %v5125
          %5135 = vst.msk [vmem:[#allocation4] sm:$0xff] %vm4483, %v5127
          %5136 = vst.msk [vmem:[#allocation4 + $0x8] sm:$0xff] %vm4483, %v5128
          %5137 = vst.msk [vmem:[#allocation4 + $0x10] sm:$0xff] %vm4483, %v5129
          %5138 = vst.msk [vmem:[#allocation4 + $0x18] sm:$0xff] %vm4483, %v5130
          %5139 = vst.msk [vmem:[#allocation4 + $0x20] sm:$0xff] %vm4483, %v5131
          %5140 = vst.msk [vmem:[#allocation4 + $0x28] sm:$0xff] %vm4483, %v5132
          %5141 = vst.msk [vmem:[#allocation4 + $0x30] sm:$0xff] %vm4483, %v5133
          %5142 = vst.msk [vmem:[#allocation4 + $0x38] sm:$0xff] %vm4483, %v5134
          %v5143 = vld [vmem:[#allocation4] sm:$0xff]
          %v5144 = vld [vmem:[#allocation4 + $0x8] sm:$0xff]
          %v5145 = vld [vmem:[#allocation4 + $0x10] sm:$0xff]
          %v5146 = vld [vmem:[#allocation4 + $0x18] sm:$0xff]
          %v5147 = vld [vmem:[#allocation4 + $0x20] sm:$0xff]
          %v5148 = vld [vmem:[#allocation4 + $0x28] sm:$0xff]
          %v5149 = vld [vmem:[#allocation4 + $0x30] sm:$0xff]
          %v5150 = vld [vmem:[#allocation4 + $0x38] sm:$0xff]
          %v5151 = vld [vmem:[%s491] sm:$0xf]
          %v5152 = vld [vmem:[%s491 + $0x4] sm:$0xf]
          %v5153 = vld [vmem:[%s491 + $0x8] sm:$0xf]
          %v5154 = vld [vmem:[%s491 + $0xc] sm:$0xf]
          %v5155 = vld [vmem:[%s491 + $0x10] sm:$0xf]
          %v5156 = vld [vmem:[%s491 + $0x14] sm:$0xf]
          %v5157 = vld [vmem:[%s491 + $0x18] sm:$0xf]
          %v5158 = vld [vmem:[%s491 + $0x1c] sm:$0xf]
          %v5159 = vunpack.c.l.bf16 %v5151
          %v5160 = vunpack.c.l.bf16 %v5152
          %v5161 = vunpack.c.l.bf16 %v5153
          %v5162 = vunpack.c.l.bf16 %v5154
          %v5163 = vunpack.c.l.bf16 %v5155
          %v5164 = vunpack.c.l.bf16 %v5156
          %v5165 = vunpack.c.l.bf16 %v5157
          %v5166 = vunpack.c.l.bf16 %v5158
          %v5167 = vadd.f32 %v5143, %v5159
          %v5168 = vadd.f32 %v5144, %v5160
          %v5169 = vadd.f32 %v5145, %v5161
          %v5170 = vadd.f32 %v5146, %v5162
          %v5171 = vadd.f32 %v5147, %v5163
          %v5172 = vadd.f32 %v5148, %v5164
          %v5173 = vadd.f32 %v5149, %v5165
          %v5174 = vadd.f32 %v5150, %v5166
          %v5175 = vpack.c.bf16 %v5168, %v5167
          %v5176 = vpack.c.bf16 %v5170, %v5169
          %v5177 = vpack.c.bf16 %v5172, %v5171
          %v5178 = vpack.c.bf16 %v5174, %v5173
          %v5179 = vld [vmem:[%s4] sm:$0xf]
          %v5180 = vld [vmem:[%s4 + $0x4] sm:$0xf]
          %v5181 = vld [vmem:[%s4 + $0x8] sm:$0xf]
          %v5182 = vld [vmem:[%s4 + $0xc] sm:$0xf]
          %v5183 = vld [vmem:[%s5] sm:$0x1]
          %v5185 = vlaneseq
          %v5186 = vshrl.u32 %v5185, 7
          %v5187 = vsub.s32 0, %v5186
          %v5188 = vrot.slane %v5183, %v5187
          %v5194 = vunpack.c.l.b16 %v5179
          %v5195 = vunpack.c.l.b16 %v5180
          %v5196 = vunpack.c.l.b16 %v5181
          %v5197 = vunpack.c.l.b16 %v5182
          %v5198 = vpack.c.b16 %v5195, %v5194
          %v5199 = vpack.c.b16 %v5197, %v5196
          %vm5202 = vcmask 261120
          %v5204 = vsel %vm5202, %v5175, 0
          %v5207 = vsel %vm5202, %v5176, 0
          %v5210 = vsel %vm5202, %v5177, 0
          %v5213 = vsel %vm5202, %v5178, 0
          %5215 = vmatprep.subr.bf16.mxu0 0
          %5216 = vmatpush1.bf16.msra.mxu0 %v5198
          %5217 = vmatprep.subr.bf16.mxu0 0
          %5218 = vmatpush1.bf16.msra.mxu0 %v5199
          %5219 = vmatprep.subr.bf16.mxu0 0
          %5220 = vmatpush1.bf16.msra.mxu0 0
          %5221 = vmatprep.subr.bf16.mxu0 0
          %5222 = vmatpush1.bf16.msra.mxu0 0
          %5223 = vmatprep.subr.bf16.mxu0 0
          %5224 = vmatpush1.bf16.msra.mxu0 0
          %5225 = vmatprep.subr.bf16.mxu0 0
          %5226 = vmatpush1.bf16.msra.mxu0 0
          %5227 = vmatprep.subr.bf16.mxu0 0
          %5228 = vmatpush1.bf16.msra.mxu0 0
          %5229 = vmatprep.subr.bf16.mxu0 0
          %5230 = vmatpush1.bf16.msra.mxu0 0
          %5231 = vmatprep.subr.bf16.mxu0 0
          %5232 = vmatpush1.bf16.msra.mxu0 0
          %5233 = vmatprep.subr.bf16.mxu0 0
          %5234 = vmatpush1.bf16.msra.mxu0 0
          %5235 = vmatprep.subr.bf16.mxu0 0
          %5236 = vmatpush1.bf16.msra.mxu0 0
          %5237 = vmatprep.subr.bf16.mxu0 0
          %5238 = vmatpush1.bf16.msra.mxu0 0
          %5239 = vmatprep.subr.bf16.mxu0 0
          %5240 = vmatpush1.bf16.msra.mxu0 0
          %5241 = vmatprep.subr.bf16.mxu0 0
          %5242 = vmatpush1.bf16.msra.mxu0 0
          %5243 = vmatprep.subr.bf16.mxu0 0
          %5244 = vmatpush1.bf16.msra.mxu0 0
          %5245 = vmatprep.subr.bf16.mxu0 0
          %5246 = vmatpush1.bf16.msra.mxu0 0
          %5247 = vmatprep.mubr.bf16.mxu0 0
          %5248 = vmatmul.mubr.bf16.gmra.mrb[0].mxu0 %v5204
          %v5249 = vpop.f32.mrb[0].mxu0
          %v5250 = vadd.f32 %v5188, %v5249
          %v5251 = vpop.f32.mrb[0].mxu0
          %v5252 = vpop.f32.mrb[0].mxu0
          %v5253 = vadd.f32 %v5188, %v5252
          %v5254 = vpop.f32.mrb[0].mxu0
          %5255 = vmatprep.mubr.bf16.mxu0 0
          %5256 = vmatmul.mubr.bf16.gmra.mrb[0].mxu0 %v5207
          %v5257 = vpop.f32.mrb[0].mxu0
          %v5258 = vadd.f32 %v5188, %v5257
          %v5259 = vpop.f32.mrb[0].mxu0
          %v5260 = vpop.f32.mrb[0].mxu0
          %v5261 = vadd.f32 %v5188, %v5260
          %v5262 = vpop.f32.mrb[0].mxu0
          %5263 = vmatprep.mubr.bf16.mxu0 0
          %5264 = vmatmul.mubr.bf16.gmra.mrb[0].mxu0 %v5210
          %v5265 = vpop.f32.mrb[0].mxu0
          %v5266 = vadd.f32 %v5188, %v5265
          %v5267 = vpop.f32.mrb[0].mxu0
          %v5268 = vpop.f32.mrb[0].mxu0
          %v5269 = vadd.f32 %v5188, %v5268
          %v5270 = vpop.f32.mrb[0].mxu0
          %5271 = vmatprep.mubr.bf16.mxu0 0
          %5272 = vmatmul.mubr.bf16.gmra.mrb[0].mxu0 %v5213
          %v5273 = vpop.f32.mrb[0].mxu0
          %v5274 = vadd.f32 %v5188, %v5273
          %v5275 = vpop.f32.mrb[0].mxu0
          %v5276 = vpop.f32.mrb[0].mxu0
          %v5277 = vadd.f32 %v5188, %v5276
          %v5278 = vpop.f32.mrb[0].mxu0
          %5279 = vdwg.mxu0
          %v5280 = vld [vmem:[%s501] sm:$0xff]
          %v5281 = vld [vmem:[%s501 + $0x8] sm:$0xff]
          %v5282 = vld [vmem:[%s501 + $0x10] sm:$0xff]
          %v5283 = vld [vmem:[%s501 + $0x18] sm:$0xff]
          %v5284 = vld [vmem:[%s501 + $0x20] sm:$0xff]
          %v5285 = vld [vmem:[%s501 + $0x28] sm:$0xff]
          %v5286 = vld [vmem:[%s501 + $0x30] sm:$0xff]
          %v5287 = vld [vmem:[%s501 + $0x38] sm:$0xff]
          %v5288 = vadd.f32 %v5280, %v5250
          %v5289 = vadd.f32 %v5281, %v5253
          %v5290 = vadd.f32 %v5282, %v5258
          %v5291 = vadd.f32 %v5283, %v5261
          %v5292 = vadd.f32 %v5284, %v5266
          %v5293 = vadd.f32 %v5285, %v5269
          %v5294 = vadd.f32 %v5286, %v5274
          %v5295 = vadd.f32 %v5287, %v5277
          %v5296 = vpack.c.bf16 %v5289, %v5288
          %v5297 = vpack.c.bf16 %v5291, %v5290
          %v5298 = vpack.c.bf16 %v5293, %v5292
          %v5299 = vpack.c.bf16 %v5295, %v5294
          %v5300 = vld [vmem:[%s6] sm:$0xf]
          %v5301 = vld [vmem:[%s6 + $0x4] sm:$0xf]
          %v5302 = vld [vmem:[%s6 + $0x8] sm:$0xf]
          %v5303 = vld [vmem:[%s6 + $0xc] sm:$0xf]
          %v5304 = vld [vmem:[%s7] sm:$0x1]
          %v5306 = vlaneseq
          %v5307 = vshrl.u32 %v5306, 7
          %v5308 = vsub.s32 0, %v5307
          %v5309 = vrot.slane %v5304, %v5308
          %v5315 = vunpack.c.l.b16 %v5300
          %v5316 = vunpack.c.l.b16 %v5301
          %v5317 = vunpack.c.l.b16 %v5302
          %v5318 = vunpack.c.l.b16 %v5303
          %v5319 = vpack.c.b16 %v5316, %v5315
          %v5320 = vpack.c.b16 %v5318, %v5317
          %v5324 = vsel %vm5202, %v5296, 0
          %v5327 = vsel %vm5202, %v5297, 0
          %v5330 = vsel %vm5202, %v5298, 0
          %v5333 = vsel %vm5202, %v5299, 0
          %5335 = vmatprep.subr.bf16.mxu0 0
          %5336 = vmatpush1.bf16.msra.mxu0 %v5319
          %5337 = vmatprep.subr.bf16.mxu0 0
          %5338 = vmatpush1.bf16.msra.mxu0 %v5320
          %5339 = vmatprep.subr.bf16.mxu0 0
          %5340 = vmatpush1.bf16.msra.mxu0 0
          %5341 = vmatprep.subr.bf16.mxu0 0
          %5342 = vmatpush1.bf16.msra.mxu0 0
          %5343 = vmatprep.subr.bf16.mxu0 0
          %5344 = vmatpush1.bf16.msra.mxu0 0
          %5345 = vmatprep.subr.bf16.mxu0 0
          %5346 = vmatpush1.bf16.msra.mxu0 0
          %5347 = vmatprep.subr.bf16.mxu0 0
          %5348 = vmatpush1.bf16.msra.mxu0 0
          %5349 = vmatprep.subr.bf16.mxu0 0
          %5350 = vmatpush1.bf16.msra.mxu0 0
          %5351 = vmatprep.subr.bf16.mxu0 0
          %5352 = vmatpush1.bf16.msra.mxu0 0
          %5353 = vmatprep.subr.bf16.mxu0 0
          %5354 = vmatpush1.bf16.msra.mxu0 0
          %5355 = vmatprep.subr.bf16.mxu0 0
          %5356 = vmatpush1.bf16.msra.mxu0 0
          %5357 = vmatprep.subr.bf16.mxu0 0
          %5358 = vmatpush1.bf16.msra.mxu0 0
          %5359 = vmatprep.subr.bf16.mxu0 0
          %5360 = vmatpush1.bf16.msra.mxu0 0
          %5361 = vmatprep.subr.bf16.mxu0 0
          %5362 = vmatpush1.bf16.msra.mxu0 0
          %5363 = vmatprep.subr.bf16.mxu0 0
          %5364 = vmatpush1.bf16.msra.mxu0 0
          %5365 = vmatprep.subr.bf16.mxu0 0
          %5366 = vmatpush1.bf16.msra.mxu0 0
          %5367 = vmatprep.mubr.bf16.mxu0 0
          %5368 = vmatmul.mubr.bf16.gmra.mrb[0].mxu0 %v5324
          %v5369 = vpop.f32.mrb[0].mxu0
          %v5370 = vadd.f32 %v5309, %v5369
          %v5371 = vpop.f32.mrb[0].mxu0
          %v5372 = vpop.f32.mrb[0].mxu0
          %v5373 = vadd.f32 %v5309, %v5372
          %v5374 = vpop.f32.mrb[0].mxu0
          %5375 = vmatprep.mubr.bf16.mxu0 0
          %5376 = vmatmul.mubr.bf16.gmra.mrb[0].mxu0 %v5327
          %v5377 = vpop.f32.mrb[0].mxu0
          %v5378 = vadd.f32 %v5309, %v5377
          %v5379 = vpop.f32.mrb[0].mxu0
          %v5380 = vpop.f32.mrb[0].mxu0
          %v5381 = vadd.f32 %v5309, %v5380
          %v5382 = vpop.f32.mrb[0].mxu0
          %5383 = vmatprep.mubr.bf16.mxu0 0
          %5384 = vmatmul.mubr.bf16.gmra.mrb[0].mxu0 %v5330
          %v5385 = vpop.f32.mrb[0].mxu0
          %v5386 = vadd.f32 %v5309, %v5385
          %v5387 = vpop.f32.mrb[0].mxu0
          %v5388 = vpop.f32.mrb[0].mxu0
          %v5389 = vadd.f32 %v5309, %v5388
          %v5390 = vpop.f32.mrb[0].mxu0
          %5391 = vmatprep.mubr.bf16.mxu0 0
          %5392 = vmatmul.mubr.bf16.gmra.mrb[0].mxu0 %v5333
          %v5393 = vpop.f32.mrb[0].mxu0
          %v5394 = vadd.f32 %v5309, %v5393
          %v5395 = vpop.f32.mrb[0].mxu0
          %v5396 = vpop.f32.mrb[0].mxu0
          %v5397 = vadd.f32 %v5309, %v5396
          %v5398 = vpop.f32.mrb[0].mxu0
          %5399 = vdwg.mxu0
          %v5400 = vxor.u32 %v5370, 2147483648
          %v5401 = vxor.u32 %v5373, 2147483648
          %v5402 = vxor.u32 %v5378, 2147483648
          %v5403 = vxor.u32 %v5381, 2147483648
          %v5404 = vxor.u32 %v5386, 2147483648
          %v5405 = vxor.u32 %v5389, 2147483648
          %v5406 = vxor.u32 %v5394, 2147483648
          %v5407 = vxor.u32 %v5397, 2147483648
          %v5408 = vmul.f32 %v5400, 1.442695
          %v5409 = vpow.pop %v5408
          %v5410 = vmul.f32 %v5401, 1.442695
          %v5411 = vpow.pop %v5410
          %v5412 = vmul.f32 %v5402, 1.442695
          %v5413 = vpow.pop %v5412
          %v5414 = vmul.f32 %v5403, 1.442695
          %v5415 = vpow.pop %v5414
          %v5416 = vmul.f32 %v5404, 1.442695
          %v5417 = vpow.pop %v5416
          %v5418 = vmul.f32 %v5405, 1.442695
          %v5419 = vpow.pop %v5418
          %v5420 = vmul.f32 %v5406, 1.442695
          %v5421 = vpow.pop %v5420
          %v5422 = vmul.f32 %v5407, 1.442695
          %v5423 = vpow.pop %v5422
          %v5424 = vadd.f32 %v5409, 1.0
          %v5425 = vadd.f32 %v5411, 1.0
          %v5426 = vadd.f32 %v5413, 1.0
          %v5427 = vadd.f32 %v5415, 1.0
          %v5428 = vadd.f32 %v5417, 1.0
          %v5429 = vadd.f32 %v5419, 1.0
          %v5430 = vadd.f32 %v5421, 1.0
          %v5431 = vadd.f32 %v5423, 1.0
          %v5432 = vrcp.pop %v5424
          %v5433 = vmul.f32 1.0, %v5432
          %v5434 = vrcp.pop %v5425
          %v5435 = vmul.f32 1.0, %v5434
          %v5436 = vrcp.pop %v5426
          %v5437 = vmul.f32 1.0, %v5436
          %v5438 = vrcp.pop %v5427
          %v5439 = vmul.f32 1.0, %v5438
          %v5440 = vrcp.pop %v5428
          %v5441 = vmul.f32 1.0, %v5440
          %v5442 = vrcp.pop %v5429
          %v5443 = vmul.f32 1.0, %v5442
          %v5444 = vrcp.pop %v5430
          %v5445 = vmul.f32 1.0, %v5444
          %v5446 = vrcp.pop %v5431
          %v5447 = vmul.f32 1.0, %v5446
          %v5448 = vmul.f32 %v5370, %v5433
          %v5449 = vmul.f32 %v5373, %v5435
          %v5450 = vmul.f32 %v5378, %v5437
          %v5451 = vmul.f32 %v5381, %v5439
          %v5452 = vmul.f32 %v5386, %v5441
          %v5453 = vmul.f32 %v5389, %v5443
          %v5454 = vmul.f32 %v5394, %v5445
          %v5455 = vmul.f32 %v5397, %v5447
          %v5456 = vpack.c.bf16 %v5449, %v5448
          %v5457 = vpack.c.bf16 %v5451, %v5450
          %v5458 = vpack.c.bf16 %v5453, %v5452
          %v5459 = vpack.c.bf16 %v5455, %v5454
          %v5460 = vld [vmem:[%s8] sm:$0xf]
          %v5461 = vld [vmem:[%s8 + $0x4] sm:$0xf]
          %v5462 = vld [vmem:[%s8 + $0x8] sm:$0xf]
          %v5463 = vld [vmem:[%s8 + $0xc] sm:$0xf]
          %v5464 = vld [vmem:[%s8 + $0x10] sm:$0xf]
          %v5465 = vld [vmem:[%s8 + $0x14] sm:$0xf]
          %v5466 = vld [vmem:[%s8 + $0x18] sm:$0xf]
          %v5467 = vld [vmem:[%s8 + $0x1c] sm:$0xf]
          %v5468 = vld [vmem:[%s9] sm:$0x1]
          %v5470 = vlaneseq
          %v5471 = vshrl.u32 %v5470, 7
          %v5472 = vsub.s32 0, %v5471
          %v5473 = vrot.slane %v5468, %v5472
          %v5483 = vunpack.c.l.b16 %v5460
          %v5484 = vunpack.c.l.b16 %v5461
          %v5485 = vunpack.c.l.b16 %v5462
          %v5486 = vunpack.c.l.b16 %v5463
          %v5487 = vunpack.c.l.b16 %v5464
          %v5488 = vunpack.c.l.b16 %v5465
          %v5489 = vunpack.c.l.b16 %v5466
          %v5490 = vunpack.c.l.b16 %v5467
          %v5491 = vpack.c.b16 %v5484, %v5483
          %v5492 = vpack.c.b16 %v5486, %v5485
          %v5493 = vpack.c.b16 %v5488, %v5487
          %v5494 = vpack.c.b16 %v5490, %v5489
          %v5500 = vsel %vm673, %v5456, 0
          %v5503 = vsel %vm673, %v5457, 0
          %v5506 = vsel %vm673, %v5458, 0
          %v5509 = vsel %vm673, %v5459, 0
          %5511 = vmatprep.subr.bf16.mxu0 0
          %5512 = vmatpush1.bf16.msra.mxu0 %v5491
          %5513 = vmatprep.subr.bf16.mxu0 0
          %5514 = vmatpush1.bf16.msra.mxu0 %v5492
          %5515 = vmatprep.subr.bf16.mxu0 0
          %5516 = vmatpush1.bf16.msra.mxu0 %v5493
          %5517 = vmatprep.subr.bf16.mxu0 0
          %5518 = vmatpush1.bf16.msra.mxu0 %v5494
          %5519 = vmatprep.subr.bf16.mxu0 0
          %5520 = vmatpush1.bf16.msra.mxu0 0
          %5521 = vmatprep.subr.bf16.mxu0 0
          %5522 = vmatpush1.bf16.msra.mxu0 0
          %5523 = vmatprep.subr.bf16.mxu0 0
          %5524 = vmatpush1.bf16.msra.mxu0 0
          %5525 = vmatprep.subr.bf16.mxu0 0
          %5526 = vmatpush1.bf16.msra.mxu0 0
          %5527 = vmatprep.subr.bf16.mxu0 0
          %5528 = vmatpush1.bf16.msra.mxu0 0
          %5529 = vmatprep.subr.bf16.mxu0 0
          %5530 = vmatpush1.bf16.msra.mxu0 0
          %5531 = vmatprep.subr.bf16.mxu0 0
          %5532 = vmatpush1.bf16.msra.mxu0 0
          %5533 = vmatprep.subr.bf16.mxu0 0
          %5534 = vmatpush1.bf16.msra.mxu0 0
          %5535 = vmatprep.subr.bf16.mxu0 0
          %5536 = vmatpush1.bf16.msra.mxu0 0
          %5537 = vmatprep.subr.bf16.mxu0 0
          %5538 = vmatpush1.bf16.msra.mxu0 0
          %5539 = vmatprep.subr.bf16.mxu0 0
          %5540 = vmatpush1.bf16.msra.mxu0 0
          %5541 = vmatprep.subr.bf16.mxu0 0
          %5542 = vmatpush1.bf16.msra.mxu0 0
          %5543 = vmatprep.mubr.bf16.mxu0 0
          %5544 = vmatmul.mubr.bf16.gmra.mrb[0].mxu0 %v5500
          %v5545 = vpop.f32.mrb[0].mxu0
          %v5546 = vadd.f32 %v5473, %v5545
          %v5547 = vpop.f32.mrb[0].mxu0
          %v5548 = vpop.f32.mrb[0].mxu0
          %v5549 = vadd.f32 %v5473, %v5548
          %v5550 = vpop.f32.mrb[0].mxu0
          %5551 = vmatprep.mubr.bf16.mxu0 0
          %5552 = vmatmul.mubr.bf16.gmra.mrb[0].mxu0 %v5503
          %v5553 = vpop.f32.mrb[0].mxu0
          %v5554 = vadd.f32 %v5473, %v5553
          %v5555 = vpop.f32.mrb[0].mxu0
          %v5556 = vpop.f32.mrb[0].mxu0
          %v5557 = vadd.f32 %v5473, %v5556
          %v5558 = vpop.f32.mrb[0].mxu0
          %5559 = vmatprep.mubr.bf16.mxu0 0
          %5560 = vmatmul.mubr.bf16.gmra.mrb[0].mxu0 %v5506
          %v5561 = vpop.f32.mrb[0].mxu0
          %v5562 = vadd.f32 %v5473, %v5561
          %v5563 = vpop.f32.mrb[0].mxu0
          %v5564 = vpop.f32.mrb[0].mxu0
          %v5565 = vadd.f32 %v5473, %v5564
          %v5566 = vpop.f32.mrb[0].mxu0
          %5567 = vmatprep.mubr.bf16.mxu0 0
          %5568 = vmatmul.mubr.bf16.gmra.mrb[0].mxu0 %v5509
          %v5569 = vpop.f32.mrb[0].mxu0
          %v5570 = vadd.f32 %v5473, %v5569
          %v5571 = vpop.f32.mrb[0].mxu0
          %v5572 = vpop.f32.mrb[0].mxu0
          %v5573 = vadd.f32 %v5473, %v5572
          %v5574 = vpop.f32.mrb[0].mxu0
          %5575 = vdwg.mxu0
          %v5576 = vadd.f32 %v5288, %v5546
          %v5577 = vadd.f32 %v5289, %v5549
          %v5578 = vadd.f32 %v5290, %v5554
          %v5579 = vadd.f32 %v5291, %v5557
          %v5580 = vadd.f32 %v5292, %v5562
          %v5581 = vadd.f32 %v5293, %v5565
          %v5582 = vadd.f32 %v5294, %v5570
          %v5583 = vadd.f32 %v5295, %v5573
          %5584 = vst.msk [vmem:[%s462] sm:$0xff] %vm5202, %v5576
          %5585 = vst.msk [vmem:[%s462 + $0x8] sm:$0xff] %vm5202, %v5577
          %5586 = vst.msk [vmem:[%s462 + $0x10] sm:$0xff] %vm5202, %v5578
          %5587 = vst.msk [vmem:[%s462 + $0x18] sm:$0xff] %vm5202, %v5579
          %5588 = vst.msk [vmem:[%s462 + $0x20] sm:$0xff] %vm5202, %v5580
          %5589 = vst.msk [vmem:[%s462 + $0x28] sm:$0xff] %vm5202, %v5581
          %5590 = vst.msk [vmem:[%s462 + $0x30] sm:$0xff] %vm5202, %v5582
          %5591 = vst.msk [vmem:[%s462 + $0x38] sm:$0xff] %vm5202, %v5583
        $region68: #{psa_block_forward.7} parent=59 // pred_fallthru
          _
        %s5592 = sand.u32 %s291, 1
        %s5593 = scalar_lea.sflag [#allocation6], %s5592
        %s5594 = sand.u32 %s291, 1
        %s5595 = smul.addr %s5594, 64
        %s5596 = scalar_lea.vmem [#allocation5], %s5595
        // Predicated region
        $region69: #{psa_block_forward.7} parent=59 // pred_check
          %p5597 = pneg %p301
        $region70: #{psa_block_forward.7} parent=59 // pred_check_branch
          %5599 = sbr.rel (%p5597) target = $region72
        $region71: #{psa_block_forward.7} parent=59 // pred_region
          %s5600 = smul.u32 8, %s30
          %s5602 = ssub.s32 1024, 1024
          %5603 = vsyncadd %s5593, %s5602
          %s5604 = smul.addr %s29, 8
          %s5605 = sadd.s32 %s5600, %s5604
          %s5606 = smul.addr %s5605, 128
          %s5607 = scalar_lea.hbm %s10, %s5606
          %s5608 = sshll.u32 %s5596, 4
          %s5609 = int_to_ptr.vmem [resolvable:$true] %s5608
          %5614 = dma.vmem_to_hbm [thread:$0]  %s5609, 1024, %s5607, %s5593, 128, 128, 8
        $region72: #{psa_block_forward.7} parent=59 // pred_fallthru
          _
      $region60: #{psa_block_forward.7} parent=5 // pred_fallthru
        _
      %p5615 = scmp.le.s32.totalorder 2, %s19
      // Predicated region
      $region73: #{psa_block_forward.7} parent=5 // pred_check
        %p5616 = pneg %p5615
      $region74: #{psa_block_forward.7} parent=5 // pred_check_branch
        %5618 = sbr.rel (%p5616) target = $region76
      $region75: #{psa_block_forward.7} parent=5 // pred_region
        %s5619 = ssub.s32 %s19, 2
        // Predicated region
        $region77: #{psa_block_forward.7} parent=75 // pred_check
          %p5620 = pneg %p307
        $region78: #{psa_block_forward.7} parent=75 // pred_check_branch
          %5622 = sbr.rel (%p5620) target = $region80
        $region79: #{psa_block_forward.7} parent=75 // pred_region
          %s5623 = sand.u32 %s292, 1
          %s5624 = scalar_lea.sflag [#allocation6], %s5623
          %s5625 = sand.u32 %s292, 1
          %s5626 = smul.addr %s5625, 64
          %s5627 = scalar_lea.vmem [#allocation5], %s5626
          %5628 = dma.done %s5624, 1024
        $region80: #{psa_block_forward.7} parent=75 // pred_fallthru
          _
      $region76: #{psa_block_forward.7} parent=5 // pred_fallthru
        _
    $region6: #{psa_block_forward.7} parent=1 // loop_footer
      %s23 = sadd.s32 1, %s19
    $region7: #{psa_block_forward.7} parent=1 // loop_footer_branch
      %18 = sbr.rel target = $region3
    $region8: #{psa_block_forward.7} parent=1 // loop_exit
      _
    %5629 = vsyncpa [#allocation6], 1
    %s5630 = scalar_lea.sflag [#allocation6], 1
    %5631 = vsyncpa %s5630, 1

</llo_original>
